<compile_context>
chip_gen: v7x
topology: tpu7x:2x2x1
jax: 0.10.0
libtpu: 0.0.40
codegen_flags: <defaults>
</compile_context>

<pallas_src>
import functools

import jax
import jax.numpy as jnp
import numpy as np
from jax.experimental import pallas as pl
from jax.experimental.pallas import tpu as pltpu


def _round_up(a, b):
    return ((a + b - 1) // b) * b


# ----------------------------- Pallas kernel ------------------------------ #

def _set_lstm_kernel(xg_ref, whh_ref, out_ref, *, set_length, hidden_size,
                     n_win):
    """One lane tile: loop over all windows, unrolled LSTM per window.

    xg_ref : [t, 4H, LB]   precomputed input gates (x W_ih^T + b_ih + b_hh),
                           batch on the lane axis (possibly bf16)
    whh_ref: [4H, H]       recurrent weights (PyTorch layout, gates i,f,g,o)
    out_ref: [n_win, H, LB] final hidden state per window for this lane tile
    """
    H = hidden_size
    whh = whh_ref[...].astype(jnp.float32)
    # Per-gate recurrent weights, loaded once per lane tile.
    w_rec = [whh[k * H:(k + 1) * H] for k in range(4)]          # i, f, g, o

    def one_window(w):
        # ---- step 0: h = c = 0  -> no recurrent matmul, no forget gate ----
        g0 = xg_ref[w].astype(jnp.float32)                      # [4H, LB]
        i_g = jax.nn.sigmoid(g0[0 * H:1 * H])
        g_g = jnp.tanh(g0[2 * H:3 * H])
        o_g = jax.nn.sigmoid(g0[3 * H:4 * H])
        c = i_g * g_g
        h = o_g * jnp.tanh(c)
        # ---- remaining steps (set_length is small: fully unrolled) --------
        for s in range(1, set_length):
            gx = xg_ref[w + s].astype(jnp.float32)              # [4H, LB]
            # Per-gate matmuls: the full [4H, LB] pre-activation never lives
            # in vregs at once.
            i_g = jax.nn.sigmoid(
                gx[0 * H:1 * H]
                + jnp.dot(w_rec[0], h, preferred_element_type=jnp.float32))
            f_g = jax.nn.sigmoid(
                gx[1 * H:2 * H]
                + jnp.dot(w_rec[1], h, preferred_element_type=jnp.float32))
            g_g = jnp.tanh(
                gx[2 * H:3 * H]
                + jnp.dot(w_rec[2], h, preferred_element_type=jnp.float32))
            o_g = jax.nn.sigmoid(
                gx[3 * H:4 * H]
                + jnp.dot(w_rec[3], h, preferred_element_type=jnp.float32))
            c = f_g * c + i_g * g_g
            h = o_g * jnp.tanh(c)
        out_ref[w] = h.astype(out_ref.dtype)

    if n_win <= 16:
        for w in range(n_win):                                  # static unroll
            one_window(w)
    else:
        def body(w, carry):
            one_window(w)
            return carry
        jax.lax.fori_loop(0, n_win, body, 0)


# ------------------------------ JAX wrapper -------------------------------- #

def set_lstm_forward(x, n, t, w_ih, w_hh, b_ih, b_hh, *, set_length=3,
                     lane_block=256, xg_dtype=jnp.bfloat16):
    """Pallas implementation of SetLSTM.forward.

    x     : [n*t, c, p]
    w_ih  : [4H, c], w_hh : [4H, H], b_ih/b_hh : [4H]   (PyTorch LSTM layout)
    returns [n, t - set_length + 1, p, H]
    """
    nt, c, p = x.shape
    assert nt == n * t
    S = set_length
    H = w_hh.shape[1]
    G = 4 * H
    n_win = t - S + 1
    NP = n * p
    NPp = _round_up(NP, 128)

    out_dtype = x.dtype
    xg_bytes = jnp.dtype(xg_dtype).itemsize
    out_bytes = jnp.dtype(out_dtype).itemsize

    # ---- lane-tile selection: multiple of 128 dividing NPp (no extra dead
    # lanes), <= lane_block, fits a double-buffered VMEM budget, and gives
    # >= 2 grid steps when possible (v7x megacore). ----
    per_lane = 2 * t * G * xg_bytes + 2 * n_win * H * out_bytes   # bytes/lane
    budget = 40 << 20
    cands = [d for d in range(128, NPp + 1, 128)
             if NPp % d == 0 and d <= lane_block]
    if not cands:
        cands = [128]
    fit = [d for d in cands if d * per_lane <= budget]
    pool = fit if fit else [min(cands)]
    multi = [d for d in pool if d < NPp]          # prefer >= 2 lane tiles
    LB = max(multi) if multi else max(pool)
    vmem_limit = int(min(max(LB * per_lane + (4 << 20), 16 << 20), 48 << 20))

    # ---- hoisted input projection, fused into the kernel layout:
    # one einsum producing [t, 4H, NPp]; pad happens on the small c-channel
    # tensor, no separate transpose/pad pass over the 4H-wide gate tensor. ----
    xl = jnp.transpose(x.reshape(n, t, c, p), (1, 2, 0, 3)).reshape(t, c, NP)
    if NPp != NP:
        # Padded lanes run a harmless self-contained LSTM on bias-only input;
        # they are sliced off below.
        xl = jnp.pad(xl, ((0, 0), (0, 0), (0, NPp - NP)))
    xg = jnp.einsum('gc,tcl->tgl', w_ih.astype(jnp.float32),
                    xl.astype(jnp.float32),
                    preferred_element_type=jnp.float32)
    xg = (xg + (b_ih + b_hh).astype(jnp.float32)[None, :, None]).astype(xg_dtype)

    kernel = functools.partial(_set_lstm_kernel, set_length=S, hidden_size=H,
                               n_win=n_win)

    out = pl.pallas_call(
        kernel,
        out_shape=jax.ShapeDtypeStruct((n_win, H, NPp), out_dtype),
        grid_spec=pltpu.PrefetchScalarGridSpec(
            num_scalar_prefetch=0,
            grid=(NPp // LB,),
            in_specs=[
                # Full time extent resident; overlapping windows are read
                # in-kernel via the dynamic leading-axis index (w + s).
                pl.BlockSpec((t, G, LB), lambda j: (0, 0, j)),
                pl.BlockSpec((G, H), lambda j: (0, 0)),
            ],
            out_specs=pl.BlockSpec((n_win, H, LB), lambda j: (0, 0, j)),
        ),
        compiler_params=pltpu.CompilerParams(
            dimension_semantics=("parallel",),
            vmem_limit_bytes=vmem_limit),
    )(xg, w_hh)

    out = out[:, :, :NP].reshape(n_win, H, n, p)
    return jnp.transpose(out, (2, 0, 3, 1))                    # [n, n_win, p, H]


# --------------------------- pure-JAX reference ---------------------------- #

def _set_lstm_reference(x, n, t, w_ih, w_hh, b_ih, b_hh, *, set_length=3):
    nt, c, p = x.shape
    S = set_length
    H = w_hh.shape[1]
    n_win = t - S + 1

    seq_x = x.reshape(n, t, c, p)
    windows = jnp.concatenate([seq_x[:, st:st + S] for st in range(n_win)],
                              axis=0)
    batched = jnp.transpose(windows, (0, 3, 1, 2)).reshape(-1, S, c)

    def step(carry, x_t):
        h, cc = carry
        gates = x_t @ w_ih.T + h @ w_hh.T + b_ih + b_hh
        i_g, f_g, g_g, o_g = jnp.split(gates, 4, axis=-1)
        i_g, f_g, o_g = (jax.nn.sigmoid(i_g), jax.nn.sigmoid(f_g),
                         jax.nn.sigmoid(o_g))
        g_g = jnp.tanh(g_g)
        cc = f_g * cc + i_g * g_g
        h = o_g * jnp.tanh(cc)
        return (h, cc), None

    B = batched.shape[0]
    h0 = jnp.zeros((B, H), x.dtype)
    c0 = jnp.zeros((B, H), x.dtype)
    (h, _), _ = jax.lax.scan(step, (h0, c0), jnp.transpose(batched, (1, 0, 2)))
    out = h.reshape(n_win, n, p, H)
    return jnp.transpose(out, (1, 0, 2, 3))


# --------------------------------- main ------------------------------------ #

if __name__ == "__main__":
    # Small shapes consistent with the module's forward.
    n, t = 2, 8                 # sequences, time steps
    c = 4                       # channels == feat_size of the LSTM
    p = 16                      # parts (spatial)
    hidden_size = 32
    set_length = 3

    key = jax.random.PRNGKey(0)
    kx, k1, k2, k3, k4 = jax.random.split(key, 5)

    x = jax.random.normal(kx, (n * t, c, p), dtype=jnp.float32)

    # PyTorch-style uniform(-1/sqrt(H), 1/sqrt(H)) LSTM parameters.
    k = 1.0 / np.sqrt(hidden_size)
    w_ih = jax.random.uniform(k1, (4 * hidden_size, c), jnp.float32, -k, k)
    w_hh = jax.random.uniform(k2, (4 * hidden_size, hidden_size), jnp.float32, -k, k)
    b_ih = jax.random.uniform(k3, (4 * hidden_size,), jnp.float32, -k, k)
    b_hh = jax.random.uniform(k4, (4 * hidden_size,), jnp.float32, -k, k)

    expected_shape = (n, t - set_length + 1, p, hidden_size)
    ref = jax.block_until_ready(
        _set_lstm_reference(x, n, t, w_ih, w_hh, b_ih, b_hh,
                            set_length=set_length))

    # f32 gate storage: tight check against the reference.
    out_f32 = jax.block_until_ready(
        set_lstm_forward(x, n, t, w_ih, w_hh, b_ih, b_hh,
                         set_length=set_length, xg_dtype=jnp.float32))
    assert out_f32.shape == expected_shape, (out_f32.shape, expected_shape)
    np.testing.assert_allclose(np.asarray(out_f32), np.asarray(ref),
                               rtol=1e-5, atol=1e-5)

    # Default bf16 gate storage (halves HBM traffic / VMEM); looser tolerance.
    out_bf16 = jax.block_until_ready(
        set_lstm_forward(x, n, t, w_ih, w_hh, b_ih, b_hh,
                         set_length=set_length))
    assert out_bf16.shape == expected_shape, (out_bf16.shape, expected_shape)
    np.testing.assert_allclose(np.asarray(out_bf16), np.asarray(ref),
                               rtol=5e-2, atol=2e-2)

    print("KERNEL_OK")
</pallas_src>

<mosaic_0001>
module attributes {stable_mosaic.version = 11 : i64} {
  func.func @_set_lstm_kernel(%arg0: i32, %arg1: memref<8x128x128xf32, #tpu.memory_space<vmem>>, %arg2: memref<128x32xf32, #tpu.memory_space<vmem>>, %arg3: memref<6x32x128xf32, #tpu.memory_space<vmem>>) attributes {dimension_semantics = [#tpu.dimension_semantics<parallel>], iteration_bounds = array<i64: 1>, scalar_prefetch = 0 : i64, scratch_operands = 0 : i64, tpu.core_type = #tpu.core_type<tc>, window_params = [{transform_indices = @transform_0, window_bounds = array<i64: 8, 128, 128>}, {pipeline_mode = #tpu.pipeline_mode<synchronous>, transform_indices = @transform_1, window_bounds = array<i64: 128, 32>}, {transform_indices = @transform_2, window_bounds = array<i64: 6, 32, 128>}]} {
    %c0 = arith.constant 0 : index
    %c0_0 = arith.constant 0 : index
    %0 = vector.load %arg2[%c0, %c0_0] : memref<128x32xf32, #tpu.memory_space<vmem>>, vector<128x32xf32>
    %1 = vector.extract_strided_slice %0 {offsets = [0, 0], sizes = [32, 32], strides = [1, 1]} : vector<128x32xf32> to vector<32x32xf32>
    %2 = vector.extract_strided_slice %0 {offsets = [32, 0], sizes = [32, 32], strides = [1, 1]} : vector<128x32xf32> to vector<32x32xf32>
    %3 = vector.extract_strided_slice %0 {offsets = [64, 0], sizes = [32, 32], strides = [1, 1]} : vector<128x32xf32> to vector<32x32xf32>
    %4 = vector.extract_strided_slice %0 {offsets = [96, 0], sizes = [32, 32], strides = [1, 1]} : vector<128x32xf32> to vector<32x32xf32>
    %c0_1 = arith.constant 0 : index
    %c0_2 = arith.constant 0 : index
    %c0_3 = arith.constant 0 : index
    %5 = vector.load %arg1[%c0_1, %c0_2, %c0_3] : memref<8x128x128xf32, #tpu.memory_space<vmem>>, vector<1x128x128xf32>
    %6 = vector.shape_cast %5 : vector<1x128x128xf32> to vector<128x128xf32>
    %7 = vector.extract_strided_slice %6 {offsets = [0, 0], sizes = [32, 128], strides = [1, 1]} : vector<128x128xf32> to vector<32x128xf32>
    %8 = arith.negf %7 : vector<32x128xf32>
    %9 = math.exp %8 : vector<32x128xf32>
    %cst = arith.constant 1.000000e+00 : f32
    %10 = vector.broadcast %cst : f32 to vector<32x128xf32>
    %11 = arith.addf %10, %9 : vector<32x128xf32>
    %12 = arith.divf %10, %11 : vector<32x128xf32>
    %13 = vector.extract_strided_slice %6 {offsets = [64, 0], sizes = [32, 128], strides = [1, 1]} : vector<128x128xf32> to vector<32x128xf32>
    %14 = math.tanh %13 : vector<32x128xf32>
    %15 = vector.extract_strided_slice %6 {offsets = [96, 0], sizes = [32, 128], strides = [1, 1]} : vector<128x128xf32> to vector<32x128xf32>
    %16 = arith.negf %15 : vector<32x128xf32>
    %17 = math.exp %16 : vector<32x128xf32>
    %cst_4 = arith.constant 1.000000e+00 : f32
    %18 = vector.broadcast %cst_4 : f32 to vector<32x128xf32>
    %19 = arith.addf %18, %17 : vector<32x128xf32>
    %20 = arith.divf %18, %19 : vector<32x128xf32>
    %21 = arith.mulf %12, %14 : vector<32x128xf32>
    %22 = math.tanh %21 : vector<32x128xf32>
    %23 = arith.mulf %20, %22 : vector<32x128xf32>
    %c1 = arith.constant 1 : index
    %c0_5 = arith.constant 0 : index
    %c0_6 = arith.constant 0 : index
    %24 = vector.load %arg1[%c1, %c0_5, %c0_6] : memref<8x128x128xf32, #tpu.memory_space<vmem>>, vector<1x128x128xf32>
    %25 = vector.shape_cast %24 : vector<1x128x128xf32> to vector<128x128xf32>
    %26 = vector.extract_strided_slice %25 {offsets = [0, 0], sizes = [32, 128], strides = [1, 1]} : vector<128x128xf32> to vector<32x128xf32>
    %cst_7 = arith.constant dense<0.000000e+00> : vector<32x128xf32>
    %27 = tpu.matmul %1, %23, %cst_7 {dimension_numbers = #tpu.dot_dimension_numbers<[1], [0], [0], [1], [0, 0, 1, 1], [], []>} : vector<32x32xf32>, vector<32x128xf32>, vector<32x128xf32> -> vector<32x128xf32>
    %28 = arith.addf %26, %27 : vector<32x128xf32>
    %29 = arith.negf %28 : vector<32x128xf32>
    %30 = math.exp %29 : vector<32x128xf32>
    %cst_8 = arith.constant 1.000000e+00 : f32
    %31 = vector.broadcast %cst_8 : f32 to vector<32x128xf32>
    %32 = arith.addf %31, %30 : vector<32x128xf32>
    %33 = arith.divf %31, %32 : vector<32x128xf32>
    %34 = vector.extract_strided_slice %25 {offsets = [32, 0], sizes = [32, 128], strides = [1, 1]} : vector<128x128xf32> to vector<32x128xf32>
    %cst_9 = arith.constant dense<0.000000e+00> : vector<32x128xf32>
    %35 = tpu.matmul %2, %23, %cst_9 {dimension_numbers = #tpu.dot_dimension_numbers<[1], [0], [0], [1], [0, 0, 1, 1], [], []>} : vector<32x32xf32>, vector<32x128xf32>, vector<32x128xf32> -> vector<32x128xf32>
    %36 = arith.addf %34, %35 : vector<32x128xf32>
    %37 = arith.negf %36 : vector<32x128xf32>
    %38 = math.exp %37 : vector<32x128xf32>
    %cst_10 = arith.constant 1.000000e+00 : f32
    %39 = vector.broadcast %cst_10 : f32 to vector<32x128xf32>
    %40 = arith.addf %39, %38 : vector<32x128xf32>
    %41 = arith.divf %39, %40 : vector<32x128xf32>
    %42 = vector.extract_strided_slice %25 {offsets = [64, 0], sizes = [32, 128], strides = [1, 1]} : vector<128x128xf32> to vector<32x128xf32>
    %cst_11 = arith.constant dense<0.000000e+00> : vector<32x128xf32>
    %43 = tpu.matmul %3, %23, %cst_11 {dimension_numbers = #tpu.dot_dimension_numbers<[1], [0], [0], [1], [0, 0, 1, 1], [], []>} : vector<32x32xf32>, vector<32x128xf32>, vector<32x128xf32> -> vector<32x128xf32>
    %44 = arith.addf %42, %43 : vector<32x128xf32>
    %45 = math.tanh %44 : vector<32x128xf32>
    %46 = vector.extract_strided_slice %25 {offsets = [96, 0], sizes = [32, 128], strides = [1, 1]} : vector<128x128xf32> to vector<32x128xf32>
    %cst_12 = arith.constant dense<0.000000e+00> : vector<32x128xf32>
    %47 = tpu.matmul %4, %23, %cst_12 {dimension_numbers = #tpu.dot_dimension_numbers<[1], [0], [0], [1], [0, 0, 1, 1], [], []>} : vector<32x32xf32>, vector<32x128xf32>, vector<32x128xf32> -> vector<32x128xf32>
    %48 = arith.addf %46, %47 : vector<32x128xf32>
    %49 = arith.negf %48 : vector<32x128xf32>
    %50 = math.exp %49 : vector<32x128xf32>
    %cst_13 = arith.constant 1.000000e+00 : f32
    %51 = vector.broadcast %cst_13 : f32 to vector<32x128xf32>
    %52 = arith.addf %51, %50 : vector<32x128xf32>
    %53 = arith.divf %51, %52 : vector<32x128xf32>
    %54 = arith.mulf %41, %21 : vector<32x128xf32>
    %55 = arith.mulf %33, %45 : vector<32x128xf32>
    %56 = arith.addf %54, %55 : vector<32x128xf32>
    %57 = math.tanh %56 : vector<32x128xf32>
    %58 = arith.mulf %53, %57 : vector<32x128xf32>
    %c2 = arith.constant 2 : index
    %c0_14 = arith.constant 0 : index
    %c0_15 = arith.constant 0 : index
    %59 = vector.load %arg1[%c2, %c0_14, %c0_15] : memref<8x128x128xf32, #tpu.memory_space<vmem>>, vector<1x128x128xf32>
    %60 = vector.shape_cast %59 : vector<1x128x128xf32> to vector<128x128xf32>
    %61 = vector.extract_strided_slice %60 {offsets = [0, 0], sizes = [32, 128], strides = [1, 1]} : vector<128x128xf32> to vector<32x128xf32>
    %cst_16 = arith.constant dense<0.000000e+00> : vector<32x128xf32>
    %62 = tpu.matmul %1, %58, %cst_16 {dimension_numbers = #tpu.dot_dimension_numbers<[1], [0], [0], [1], [0, 0, 1, 1], [], []>} : vector<32x32xf32>, vector<32x128xf32>, vector<32x128xf32> -> vector<32x128xf32>
    %63 = arith.addf %61, %62 : vector<32x128xf32>
    %64 = arith.negf %63 : vector<32x128xf32>
    %65 = math.exp %64 : vector<32x128xf32>
    %cst_17 = arith.constant 1.000000e+00 : f32
    %66 = vector.broadcast %cst_17 : f32 to vector<32x128xf32>
    %67 = arith.addf %66, %65 : vector<32x128xf32>
    %68 = arith.divf %66, %67 : vector<32x128xf32>
    %69 = vector.extract_strided_slice %60 {offsets = [32, 0], sizes = [32, 128], strides = [1, 1]} : vector<128x128xf32> to vector<32x128xf32>
    %cst_18 = arith.constant dense<0.000000e+00> : vector<32x128xf32>
    %70 = tpu.matmul %2, %58, %cst_18 {dimension_numbers = #tpu.dot_dimension_numbers<[1], [0], [0], [1], [0, 0, 1, 1], [], []>} : vector<32x32xf32>, vector<32x128xf32>, vector<32x128xf32> -> vector<32x128xf32>
    %71 = arith.addf %69, %70 : vector<32x128xf32>
    %72 = arith.negf %71 : vector<32x128xf32>
    %73 = math.exp %72 : vector<32x128xf32>
    %cst_19 = arith.constant 1.000000e+00 : f32
    %74 = vector.broadcast %cst_19 : f32 to vector<32x128xf32>
    %75 = arith.addf %74, %73 : vector<32x128xf32>
    %76 = arith.divf %74, %75 : vector<32x128xf32>
    %77 = vector.extract_strided_slice %60 {offsets = [64, 0], sizes = [32, 128], strides = [1, 1]} : vector<128x128xf32> to vector<32x128xf32>
    %cst_20 = arith.constant dense<0.000000e+00> : vector<32x128xf32>
    %78 = tpu.matmul %3, %58, %cst_20 {dimension_numbers = #tpu.dot_dimension_numbers<[1], [0], [0], [1], [0, 0, 1, 1], [], []>} : vector<32x32xf32>, vector<32x128xf32>, vector<32x128xf32> -> vector<32x128xf32>
    %79 = arith.addf %77, %78 : vector<32x128xf32>
    %80 = math.tanh %79 : vector<32x128xf32>
    %81 = vector.extract_strided_slice %60 {offsets = [96, 0], sizes = [32, 128], strides = [1, 1]} : vector<128x128xf32> to vector<32x128xf32>
    %cst_21 = arith.constant dense<0.000000e+00> : vector<32x128xf32>
    %82 = tpu.matmul %4, %58, %cst_21 {dimension_numbers = #tpu.dot_dimension_numbers<[1], [0], [0], [1], [0, 0, 1, 1], [], []>} : vector<32x32xf32>, vector<32x128xf32>, vector<32x128xf32> -> vector<32x128xf32>
    %83 = arith.addf %81, %82 : vector<32x128xf32>
    %84 = arith.negf %83 : vector<32x128xf32>
    %85 = math.exp %84 : vector<32x128xf32>
    %cst_22 = arith.constant 1.000000e+00 : f32
    %86 = vector.broadcast %cst_22 : f32 to vector<32x128xf32>
    %87 = arith.addf %86, %85 : vector<32x128xf32>
    %88 = arith.divf %86, %87 : vector<32x128xf32>
    %89 = arith.mulf %76, %56 : vector<32x128xf32>
    %90 = arith.mulf %68, %80 : vector<32x128xf32>
    %91 = arith.addf %89, %90 : vector<32x128xf32>
    %92 = math.tanh %91 : vector<32x128xf32>
    %93 = arith.mulf %88, %92 : vector<32x128xf32>
    %c0_23 = arith.constant 0 : index
    %c0_24 = arith.constant 0 : index
    %c0_25 = arith.constant 0 : index
    %94 = vector.load %arg3[%c0_23, %c0_24, %c0_25] : memref<6x32x128xf32, #tpu.memory_space<vmem>>, vector<1x32x128xf32>
    %95 = vector.shape_cast %94 : vector<1x32x128xf32> to vector<32x128xf32>
    %96 = vector.shape_cast %93 : vector<32x128xf32> to vector<1x32x128xf32>
    tpu.vector_store %arg3[%c0_23, %c0_24, %c0_25], %96 {strides = array<i32>} : memref<6x32x128xf32, #tpu.memory_space<vmem>>, vector<1x32x128xf32>,
    %c1_26 = arith.constant 1 : index
    %c0_27 = arith.constant 0 : index
    %c0_28 = arith.constant 0 : index
    %97 = vector.load %arg1[%c1_26, %c0_27, %c0_28] : memref<8x128x128xf32, #tpu.memory_space<vmem>>, vector<1x128x128xf32>
    %98 = vector.shape_cast %97 : vector<1x128x128xf32> to vector<128x128xf32>
    %99 = vector.extract_strided_slice %98 {offsets = [0, 0], sizes = [32, 128], strides = [1, 1]} : vector<128x128xf32> to vector<32x128xf32>
    %100 = arith.negf %99 : vector<32x128xf32>
    %101 = math.exp %100 : vector<32x128xf32>
    %cst_29 = arith.constant 1.000000e+00 : f32
    %102 = vector.broadcast %cst_29 : f32 to vector<32x128xf32>
    %103 = arith.addf %102, %101 : vector<32x128xf32>
    %104 = arith.divf %102, %103 : vector<32x128xf32>
    %105 = vector.extract_strided_slice %98 {offsets = [64, 0], sizes = [32, 128], strides = [1, 1]} : vector<128x128xf32> to vector<32x128xf32>
    %106 = math.tanh %105 : vector<32x128xf32>
    %107 = vector.extract_strided_slice %98 {offsets = [96, 0], sizes = [32, 128], strides = [1, 1]} : vector<128x128xf32> to vector<32x128xf32>
    %108 = arith.negf %107 : vector<32x128xf32>
    %109 = math.exp %108 : vector<32x128xf32>
    %cst_30 = arith.constant 1.000000e+00 : f32
    %110 = vector.broadcast %cst_30 : f32 to vector<32x128xf32>
    %111 = arith.addf %110, %109 : vector<32x128xf32>
    %112 = arith.divf %110, %111 : vector<32x128xf32>
    %113 = arith.mulf %104, %106 : vector<32x128xf32>
    %114 = math.tanh %113 : vector<32x128xf32>
    %115 = arith.mulf %112, %114 : vector<32x128xf32>
    %c2_31 = arith.constant 2 : index
    %c0_32 = arith.constant 0 : index
    %c0_33 = arith.constant 0 : index
    %116 = vector.load %arg1[%c2_31, %c0_32, %c0_33] : memref<8x128x128xf32, #tpu.memory_space<vmem>>, vector<1x128x128xf32>
    %117 = vector.shape_cast %116 : vector<1x128x128xf32> to vector<128x128xf32>
    %118 = vector.extract_strided_slice %117 {offsets = [0, 0], sizes = [32, 128], strides = [1, 1]} : vector<128x128xf32> to vector<32x128xf32>
    %cst_34 = arith.constant dense<0.000000e+00> : vector<32x128xf32>
    %119 = tpu.matmul %1, %115, %cst_34 {dimension_numbers = #tpu.dot_dimension_numbers<[1], [0], [0], [1], [0, 0, 1, 1], [], []>} : vector<32x32xf32>, vector<32x128xf32>, vector<32x128xf32> -> vector<32x128xf32>
    %120 = arith.addf %118, %119 : vector<32x128xf32>
    %121 = arith.negf %120 : vector<32x128xf32>
    %122 = math.exp %121 : vector<32x128xf32>
    %cst_35 = arith.constant 1.000000e+00 : f32
    %123 = vector.broadcast %cst_35 : f32 to vector<32x128xf32>
    %124 = arith.addf %123, %122 : vector<32x128xf32>
    %125 = arith.divf %123, %124 : vector<32x128xf32>
    %126 = vector.extract_strided_slice %117 {offsets = [32, 0], sizes = [32, 128], strides = [1, 1]} : vector<128x128xf32> to vector<32x128xf32>
    %cst_36 = arith.constant dense<0.000000e+00> : vector<32x128xf32>
    %127 = tpu.matmul %2, %115, %cst_36 {dimension_numbers = #tpu.dot_dimension_numbers<[1], [0], [0], [1], [0, 0, 1, 1], [], []>} : vector<32x32xf32>, vector<32x128xf32>, vector<32x128xf32> -> vector<32x128xf32>
    %128 = arith.addf %126, %127 : vector<32x128xf32>
    %129 = arith.negf %128 : vector<32x128xf32>
    %130 = math.exp %129 : vector<32x128xf32>
    %cst_37 = arith.constant 1.000000e+00 : f32
    %131 = vector.broadcast %cst_37 : f32 to vector<32x128xf32>
    %132 = arith.addf %131, %130 : vector<32x128xf32>
    %133 = arith.divf %131, %132 : vector<32x128xf32>
    %134 = vector.extract_strided_slice %117 {offsets = [64, 0], sizes = [32, 128], strides = [1, 1]} : vector<128x128xf32> to vector<32x128xf32>
    %cst_38 = arith.constant dense<0.000000e+00> : vector<32x128xf32>
    %135 = tpu.matmul %3, %115, %cst_38 {dimension_numbers = #tpu.dot_dimension_numbers<[1], [0], [0], [1], [0, 0, 1, 1], [], []>} : vector<32x32xf32>, vector<32x128xf32>, vector<32x128xf32> -> vector<32x128xf32>
    %136 = arith.addf %134, %135 : vector<32x128xf32>
    %137 = math.tanh %136 : vector<32x128xf32>
    %138 = vector.extract_strided_slice %117 {offsets = [96, 0], sizes = [32, 128], strides = [1, 1]} : vector<128x128xf32> to vector<32x128xf32>
    %cst_39 = arith.constant dense<0.000000e+00> : vector<32x128xf32>
    %139 = tpu.matmul %4, %115, %cst_39 {dimension_numbers = #tpu.dot_dimension_numbers<[1], [0], [0], [1], [0, 0, 1, 1], [], []>} : vector<32x32xf32>, vector<32x128xf32>, vector<32x128xf32> -> vector<32x128xf32>
    %140 = arith.addf %138, %139 : vector<32x128xf32>
    %141 = arith.negf %140 : vector<32x128xf32>
    %142 = math.exp %141 : vector<32x128xf32>
    %cst_40 = arith.constant 1.000000e+00 : f32
    %143 = vector.broadcast %cst_40 : f32 to vector<32x128xf32>
    %144 = arith.addf %143, %142 : vector<32x128xf32>
    %145 = arith.divf %143, %144 : vector<32x128xf32>
    %146 = arith.mulf %133, %113 : vector<32x128xf32>
    %147 = arith.mulf %125, %137 : vector<32x128xf32>
    %148 = arith.addf %146, %147 : vector<32x128xf32>
    %149 = math.tanh %148 : vector<32x128xf32>
    %150 = arith.mulf %145, %149 : vector<32x128xf32>
    %c3 = arith.constant 3 : index
    %c0_41 = arith.constant 0 : index
    %c0_42 = arith.constant 0 : index
    %151 = vector.load %arg1[%c3, %c0_41, %c0_42] : memref<8x128x128xf32, #tpu.memory_space<vmem>>, vector<1x128x128xf32>
    %152 = vector.shape_cast %151 : vector<1x128x128xf32> to vector<128x128xf32>
    %153 = vector.extract_strided_slice %152 {offsets = [0, 0], sizes = [32, 128], strides = [1, 1]} : vector<128x128xf32> to vector<32x128xf32>
    %cst_43 = arith.constant dense<0.000000e+00> : vector<32x128xf32>
    %154 = tpu.matmul %1, %150, %cst_43 {dimension_numbers = #tpu.dot_dimension_numbers<[1], [0], [0], [1], [0, 0, 1, 1], [], []>} : vector<32x32xf32>, vector<32x128xf32>, vector<32x128xf32> -> vector<32x128xf32>
    %155 = arith.addf %153, %154 : vector<32x128xf32>
    %156 = arith.negf %155 : vector<32x128xf32>
    %157 = math.exp %156 : vector<32x128xf32>
    %cst_44 = arith.constant 1.000000e+00 : f32
    %158 = vector.broadcast %cst_44 : f32 to vector<32x128xf32>
    %159 = arith.addf %158, %157 : vector<32x128xf32>
    %160 = arith.divf %158, %159 : vector<32x128xf32>
    %161 = vector.extract_strided_slice %152 {offsets = [32, 0], sizes = [32, 128], strides = [1, 1]} : vector<128x128xf32> to vector<32x128xf32>
    %cst_45 = arith.constant dense<0.000000e+00> : vector<32x128xf32>
    %162 = tpu.matmul %2, %150, %cst_45 {dimension_numbers = #tpu.dot_dimension_numbers<[1], [0], [0], [1], [0, 0, 1, 1], [], []>} : vector<32x32xf32>, vector<32x128xf32>, vector<32x128xf32> -> vector<32x128xf32>
    %163 = arith.addf %161, %162 : vector<32x128xf32>
    %164 = arith.negf %163 : vector<32x128xf32>
    %165 = math.exp %164 : vector<32x128xf32>
    %cst_46 = arith.constant 1.000000e+00 : f32
    %166 = vector.broadcast %cst_46 : f32 to vector<32x128xf32>
    %167 = arith.addf %166, %165 : vector<32x128xf32>
    %168 = arith.divf %166, %167 : vector<32x128xf32>
    %169 = vector.extract_strided_slice %152 {offsets = [64, 0], sizes = [32, 128], strides = [1, 1]} : vector<128x128xf32> to vector<32x128xf32>
    %cst_47 = arith.constant dense<0.000000e+00> : vector<32x128xf32>
    %170 = tpu.matmul %3, %150, %cst_47 {dimension_numbers = #tpu.dot_dimension_numbers<[1], [0], [0], [1], [0, 0, 1, 1], [], []>} : vector<32x32xf32>, vector<32x128xf32>, vector<32x128xf32> -> vector<32x128xf32>
    %171 = arith.addf %169, %170 : vector<32x128xf32>
    %172 = math.tanh %171 : vector<32x128xf32>
    %173 = vector.extract_strided_slice %152 {offsets = [96, 0], sizes = [32, 128], strides = [1, 1]} : vector<128x128xf32> to vector<32x128xf32>
    %cst_48 = arith.constant dense<0.000000e+00> : vector<32x128xf32>
    %174 = tpu.matmul %4, %150, %cst_48 {dimension_numbers = #tpu.dot_dimension_numbers<[1], [0], [0], [1], [0, 0, 1, 1], [], []>} : vector<32x32xf32>, vector<32x128xf32>, vector<32x128xf32> -> vector<32x128xf32>
    %175 = arith.addf %173, %174 : vector<32x128xf32>
    %176 = arith.negf %175 : vector<32x128xf32>
    %177 = math.exp %176 : vector<32x128xf32>
    %cst_49 = arith.constant 1.000000e+00 : f32
    %178 = vector.broadcast %cst_49 : f32 to vector<32x128xf32>
    %179 = arith.addf %178, %177 : vector<32x128xf32>
    %180 = arith.divf %178, %179 : vector<32x128xf32>
    %181 = arith.mulf %168, %148 : vector<32x128xf32>
    %182 = arith.mulf %160, %172 : vector<32x128xf32>
    %183 = arith.addf %181, %182 : vector<32x128xf32>
    %184 = math.tanh %183 : vector<32x128xf32>
    %185 = arith.mulf %180, %184 : vector<32x128xf32>
    %c1_50 = arith.constant 1 : index
    %c0_51 = arith.constant 0 : index
    %c0_52 = arith.constant 0 : index
    %186 = vector.load %arg3[%c1_50, %c0_51, %c0_52] : memref<6x32x128xf32, #tpu.memory_space<vmem>>, vector<1x32x128xf32>
    %187 = vector.shape_cast %186 : vector<1x32x128xf32> to vector<32x128xf32>
    %188 = vector.shape_cast %185 : vector<32x128xf32> to vector<1x32x128xf32>
    tpu.vector_store %arg3[%c1_50, %c0_51, %c0_52], %188 {strides = array<i32>} : memref<6x32x128xf32, #tpu.memory_space<vmem>>, vector<1x32x128xf32>,
    %c2_53 = arith.constant 2 : index
    %c0_54 = arith.constant 0 : index
    %c0_55 = arith.constant 0 : index
    %189 = vector.load %arg1[%c2_53, %c0_54, %c0_55] : memref<8x128x128xf32, #tpu.memory_space<vmem>>, vector<1x128x128xf32>
    %190 = vector.shape_cast %189 : vector<1x128x128xf32> to vector<128x128xf32>
    %191 = vector.extract_strided_slice %190 {offsets = [0, 0], sizes = [32, 128], strides = [1, 1]} : vector<128x128xf32> to vector<32x128xf32>
    %192 = arith.negf %191 : vector<32x128xf32>
    %193 = math.exp %192 : vector<32x128xf32>
    %cst_56 = arith.constant 1.000000e+00 : f32
    %194 = vector.broadcast %cst_56 : f32 to vector<32x128xf32>
    %195 = arith.addf %194, %193 : vector<32x128xf32>
    %196 = arith.divf %194, %195 : vector<32x128xf32>
    %197 = vector.extract_strided_slice %190 {offsets = [64, 0], sizes = [32, 128], strides = [1, 1]} : vector<128x128xf32> to vector<32x128xf32>
    %198 = math.tanh %197 : vector<32x128xf32>
    %199 = vector.extract_strided_slice %190 {offsets = [96, 0], sizes = [32, 128], strides = [1, 1]} : vector<128x128xf32> to vector<32x128xf32>
    %200 = arith.negf %199 : vector<32x128xf32>
    %201 = math.exp %200 : vector<32x128xf32>
    %cst_57 = arith.constant 1.000000e+00 : f32
    %202 = vector.broadcast %cst_57 : f32 to vector<32x128xf32>
    %203 = arith.addf %202, %201 : vector<32x128xf32>
    %204 = arith.divf %202, %203 : vector<32x128xf32>
    %205 = arith.mulf %196, %198 : vector<32x128xf32>
    %206 = math.tanh %205 : vector<32x128xf32>
    %207 = arith.mulf %204, %206 : vector<32x128xf32>
    %c3_58 = arith.constant 3 : index
    %c0_59 = arith.constant 0 : index
    %c0_60 = arith.constant 0 : index
    %208 = vector.load %arg1[%c3_58, %c0_59, %c0_60] : memref<8x128x128xf32, #tpu.memory_space<vmem>>, vector<1x128x128xf32>
    %209 = vector.shape_cast %208 : vector<1x128x128xf32> to vector<128x128xf32>
    %210 = vector.extract_strided_slice %209 {offsets = [0, 0], sizes = [32, 128], strides = [1, 1]} : vector<128x128xf32> to vector<32x128xf32>
    %cst_61 = arith.constant dense<0.000000e+00> : vector<32x128xf32>
    %211 = tpu.matmul %1, %207, %cst_61 {dimension_numbers = #tpu.dot_dimension_numbers<[1], [0], [0], [1], [0, 0, 1, 1], [], []>} : vector<32x32xf32>, vector<32x128xf32>, vector<32x128xf32> -> vector<32x128xf32>
    %212 = arith.addf %210, %211 : vector<32x128xf32>
    %213 = arith.negf %212 : vector<32x128xf32>
    %214 = math.exp %213 : vector<32x128xf32>
    %cst_62 = arith.constant 1.000000e+00 : f32
    %215 = vector.broadcast %cst_62 : f32 to vector<32x128xf32>
    %216 = arith.addf %215, %214 : vector<32x128xf32>
    %217 = arith.divf %215, %216 : vector<32x128xf32>
    %218 = vector.extract_strided_slice %209 {offsets = [32, 0], sizes = [32, 128], strides = [1, 1]} : vector<128x128xf32> to vector<32x128xf32>
    %cst_63 = arith.constant dense<0.000000e+00> : vector<32x128xf32>
    %219 = tpu.matmul %2, %207, %cst_63 {dimension_numbers = #tpu.dot_dimension_numbers<[1], [0], [0], [1], [0, 0, 1, 1], [], []>} : vector<32x32xf32>, vector<32x128xf32>, vector<32x128xf32> -> vector<32x128xf32>
    %220 = arith.addf %218, %219 : vector<32x128xf32>
    %221 = arith.negf %220 : vector<32x128xf32>
    %222 = math.exp %221 : vector<32x128xf32>
    %cst_64 = arith.constant 1.000000e+00 : f32
    %223 = vector.broadcast %cst_64 : f32 to vector<32x128xf32>
    %224 = arith.addf %223, %222 : vector<32x128xf32>
    %225 = arith.divf %223, %224 : vector<32x128xf32>
    %226 = vector.extract_strided_slice %209 {offsets = [64, 0], sizes = [32, 128], strides = [1, 1]} : vector<128x128xf32> to vector<32x128xf32>
    %cst_65 = arith.constant dense<0.000000e+00> : vector<32x128xf32>
    %227 = tpu.matmul %3, %207, %cst_65 {dimension_numbers = #tpu.dot_dimension_numbers<[1], [0], [0], [1], [0, 0, 1, 1], [], []>} : vector<32x32xf32>, vector<32x128xf32>, vector<32x128xf32> -> vector<32x128xf32>
    %228 = arith.addf %226, %227 : vector<32x128xf32>
    %229 = math.tanh %228 : vector<32x128xf32>
    %230 = vector.extract_strided_slice %209 {offsets = [96, 0], sizes = [32, 128], strides = [1, 1]} : vector<128x128xf32> to vector<32x128xf32>
    %cst_66 = arith.constant dense<0.000000e+00> : vector<32x128xf32>
    %231 = tpu.matmul %4, %207, %cst_66 {dimension_numbers = #tpu.dot_dimension_numbers<[1], [0], [0], [1], [0, 0, 1, 1], [], []>} : vector<32x32xf32>, vector<32x128xf32>, vector<32x128xf32> -> vector<32x128xf32>
    %232 = arith.addf %230, %231 : vector<32x128xf32>
    %233 = arith.negf %232 : vector<32x128xf32>
    %234 = math.exp %233 : vector<32x128xf32>
    %cst_67 = arith.constant 1.000000e+00 : f32
    %235 = vector.broadcast %cst_67 : f32 to vector<32x128xf32>
    %236 = arith.addf %235, %234 : vector<32x128xf32>
    %237 = arith.divf %235, %236 : vector<32x128xf32>
    %238 = arith.mulf %225, %205 : vector<32x128xf32>
    %239 = arith.mulf %217, %229 : vector<32x128xf32>
    %240 = arith.addf %238, %239 : vector<32x128xf32>
    %241 = math.tanh %240 : vector<32x128xf32>
    %242 = arith.mulf %237, %241 : vector<32x128xf32>
    %c4 = arith.constant 4 : index
    %c0_68 = arith.constant 0 : index
    %c0_69 = arith.constant 0 : index
    %243 = vector.load %arg1[%c4, %c0_68, %c0_69] : memref<8x128x128xf32, #tpu.memory_space<vmem>>, vector<1x128x128xf32>
    %244 = vector.shape_cast %243 : vector<1x128x128xf32> to vector<128x128xf32>
    %245 = vector.extract_strided_slice %244 {offsets = [0, 0], sizes = [32, 128], strides = [1, 1]} : vector<128x128xf32> to vector<32x128xf32>
    %cst_70 = arith.constant dense<0.000000e+00> : vector<32x128xf32>
    %246 = tpu.matmul %1, %242, %cst_70 {dimension_numbers = #tpu.dot_dimension_numbers<[1], [0], [0], [1], [0, 0, 1, 1], [], []>} : vector<32x32xf32>, vector<32x128xf32>, vector<32x128xf32> -> vector<32x128xf32>
    %247 = arith.addf %245, %246 : vector<32x128xf32>
    %248 = arith.negf %247 : vector<32x128xf32>
    %249 = math.exp %248 : vector<32x128xf32>
    %cst_71 = arith.constant 1.000000e+00 : f32
    %250 = vector.broadcast %cst_71 : f32 to vector<32x128xf32>
    %251 = arith.addf %250, %249 : vector<32x128xf32>
    %252 = arith.divf %250, %251 : vector<32x128xf32>
    %253 = vector.extract_strided_slice %244 {offsets = [32, 0], sizes = [32, 128], strides = [1, 1]} : vector<128x128xf32> to vector<32x128xf32>
    %cst_72 = arith.constant dense<0.000000e+00> : vector<32x128xf32>
    %254 = tpu.matmul %2, %242, %cst_72 {dimension_numbers = #tpu.dot_dimension_numbers<[1], [0], [0], [1], [0, 0, 1, 1], [], []>} : vector<32x32xf32>, vector<32x128xf32>, vector<32x128xf32> -> vector<32x128xf32>
    %255 = arith.addf %253, %254 : vector<32x128xf32>
    %256 = arith.negf %255 : vector<32x128xf32>
    %257 = math.exp %256 : vector<32x128xf32>
    %cst_73 = arith.constant 1.000000e+00 : f32
    %258 = vector.broadcast %cst_73 : f32 to vector<32x128xf32>
    %259 = arith.addf %258, %257 : vector<32x128xf32>
    %260 = arith.divf %258, %259 : vector<32x128xf32>
    %261 = vector.extract_strided_slice %244 {offsets = [64, 0], sizes = [32, 128], strides = [1, 1]} : vector<128x128xf32> to vector<32x128xf32>
    %cst_74 = arith.constant dense<0.000000e+00> : vector<32x128xf32>
    %262 = tpu.matmul %3, %242, %cst_74 {dimension_numbers = #tpu.dot_dimension_numbers<[1], [0], [0], [1], [0, 0, 1, 1], [], []>} : vector<32x32xf32>, vector<32x128xf32>, vector<32x128xf32> -> vector<32x128xf32>
    %263 = arith.addf %261, %262 : vector<32x128xf32>
    %264 = math.tanh %263 : vector<32x128xf32>
    %265 = vector.extract_strided_slice %244 {offsets = [96, 0], sizes = [32, 128], strides = [1, 1]} : vector<128x128xf32> to vector<32x128xf32>
    %cst_75 = arith.constant dense<0.000000e+00> : vector<32x128xf32>
    %266 = tpu.matmul %4, %242, %cst_75 {dimension_numbers = #tpu.dot_dimension_numbers<[1], [0], [0], [1], [0, 0, 1, 1], [], []>} : vector<32x32xf32>, vector<32x128xf32>, vector<32x128xf32> -> vector<32x128xf32>
    %267 = arith.addf %265, %266 : vector<32x128xf32>
    %268 = arith.negf %267 : vector<32x128xf32>
    %269 = math.exp %268 : vector<32x128xf32>
    %cst_76 = arith.constant 1.000000e+00 : f32
    %270 = vector.broadcast %cst_76 : f32 to vector<32x128xf32>
    %271 = arith.addf %270, %269 : vector<32x128xf32>
    %272 = arith.divf %270, %271 : vector<32x128xf32>
    %273 = arith.mulf %260, %240 : vector<32x128xf32>
    %274 = arith.mulf %252, %264 : vector<32x128xf32>
    %275 = arith.addf %273, %274 : vector<32x128xf32>
    %276 = math.tanh %275 : vector<32x128xf32>
    %277 = arith.mulf %272, %276 : vector<32x128xf32>
    %c2_77 = arith.constant 2 : index
    %c0_78 = arith.constant 0 : index
    %c0_79 = arith.constant 0 : index
    %278 = vector.load %arg3[%c2_77, %c0_78, %c0_79] : memref<6x32x128xf32, #tpu.memory_space<vmem>>, vector<1x32x128xf32>
    %279 = vector.shape_cast %278 : vector<1x32x128xf32> to vector<32x128xf32>
    %280 = vector.shape_cast %277 : vector<32x128xf32> to vector<1x32x128xf32>
    tpu.vector_store %arg3[%c2_77, %c0_78, %c0_79], %280 {strides = array<i32>} : memref<6x32x128xf32, #tpu.memory_space<vmem>>, vector<1x32x128xf32>,
    %c3_80 = arith.constant 3 : index
    %c0_81 = arith.constant 0 : index
    %c0_82 = arith.constant 0 : index
    %281 = vector.load %arg1[%c3_80, %c0_81, %c0_82] : memref<8x128x128xf32, #tpu.memory_space<vmem>>, vector<1x128x128xf32>
    %282 = vector.shape_cast %281 : vector<1x128x128xf32> to vector<128x128xf32>
    %283 = vector.extract_strided_slice %282 {offsets = [0, 0], sizes = [32, 128], strides = [1, 1]} : vector<128x128xf32> to vector<32x128xf32>
    %284 = arith.negf %283 : vector<32x128xf32>
    %285 = math.exp %284 : vector<32x128xf32>
    %cst_83 = arith.constant 1.000000e+00 : f32
    %286 = vector.broadcast %cst_83 : f32 to vector<32x128xf32>
    %287 = arith.addf %286, %285 : vector<32x128xf32>
    %288 = arith.divf %286, %287 : vector<32x128xf32>
    %289 = vector.extract_strided_slice %282 {offsets = [64, 0], sizes = [32, 128], strides = [1, 1]} : vector<128x128xf32> to vector<32x128xf32>
    %290 = math.tanh %289 : vector<32x128xf32>
    %291 = vector.extract_strided_slice %282 {offsets = [96, 0], sizes = [32, 128], strides = [1, 1]} : vector<128x128xf32> to vector<32x128xf32>
    %292 = arith.negf %291 : vector<32x128xf32>
    %293 = math.exp %292 : vector<32x128xf32>
    %cst_84 = arith.constant 1.000000e+00 : f32
    %294 = vector.broadcast %cst_84 : f32 to vector<32x128xf32>
    %295 = arith.addf %294, %293 : vector<32x128xf32>
    %296 = arith.divf %294, %295 : vector<32x128xf32>
    %297 = arith.mulf %288, %290 : vector<32x128xf32>
    %298 = math.tanh %297 : vector<32x128xf32>
    %299 = arith.mulf %296, %298 : vector<32x128xf32>
    %c4_85 = arith.constant 4 : index
    %c0_86 = arith.constant 0 : index
    %c0_87 = arith.constant 0 : index
    %300 = vector.load %arg1[%c4_85, %c0_86, %c0_87] : memref<8x128x128xf32, #tpu.memory_space<vmem>>, vector<1x128x128xf32>
    %301 = vector.shape_cast %300 : vector<1x128x128xf32> to vector<128x128xf32>
    %302 = vector.extract_strided_slice %301 {offsets = [0, 0], sizes = [32, 128], strides = [1, 1]} : vector<128x128xf32> to vector<32x128xf32>
    %cst_88 = arith.constant dense<0.000000e+00> : vector<32x128xf32>
    %303 = tpu.matmul %1, %299, %cst_88 {dimension_numbers = #tpu.dot_dimension_numbers<[1], [0], [0], [1], [0, 0, 1, 1], [], []>} : vector<32x32xf32>, vector<32x128xf32>, vector<32x128xf32> -> vector<32x128xf32>
    %304 = arith.addf %302, %303 : vector<32x128xf32>
    %305 = arith.negf %304 : vector<32x128xf32>
    %306 = math.exp %305 : vector<32x128xf32>
    %cst_89 = arith.constant 1.000000e+00 : f32
    %307 = vector.broadcast %cst_89 : f32 to vector<32x128xf32>
    %308 = arith.addf %307, %306 : vector<32x128xf32>
    %309 = arith.divf %307, %308 : vector<32x128xf32>
    %310 = vector.extract_strided_slice %301 {offsets = [32, 0], sizes = [32, 128], strides = [1, 1]} : vector<128x128xf32> to vector<32x128xf32>
    %cst_90 = arith.constant dense<0.000000e+00> : vector<32x128xf32>
    %311 = tpu.matmul %2, %299, %cst_90 {dimension_numbers = #tpu.dot_dimension_numbers<[1], [0], [0], [1], [0, 0, 1, 1], [], []>} : vector<32x32xf32>, vector<32x128xf32>, vector<32x128xf32> -> vector<32x128xf32>
    %312 = arith.addf %310, %311 : vector<32x128xf32>
    %313 = arith.negf %312 : vector<32x128xf32>
    %314 = math.exp %313 : vector<32x128xf32>
    %cst_91 = arith.constant 1.000000e+00 : f32
    %315 = vector.broadcast %cst_91 : f32 to vector<32x128xf32>
    %316 = arith.addf %315, %314 : vector<32x128xf32>
    %317 = arith.divf %315, %316 : vector<32x128xf32>
    %318 = vector.extract_strided_slice %301 {offsets = [64, 0], sizes = [32, 128], strides = [1, 1]} : vector<128x128xf32> to vector<32x128xf32>
    %cst_92 = arith.constant dense<0.000000e+00> : vector<32x128xf32>
    %319 = tpu.matmul %3, %299, %cst_92 {dimension_numbers = #tpu.dot_dimension_numbers<[1], [0], [0], [1], [0, 0, 1, 1], [], []>} : vector<32x32xf32>, vector<32x128xf32>, vector<32x128xf32> -> vector<32x128xf32>
    %320 = arith.addf %318, %319 : vector<32x128xf32>
    %321 = math.tanh %320 : vector<32x128xf32>
    %322 = vector.extract_strided_slice %301 {offsets = [96, 0], sizes = [32, 128], strides = [1, 1]} : vector<128x128xf32> to vector<32x128xf32>
    %cst_93 = arith.constant dense<0.000000e+00> : vector<32x128xf32>
    %323 = tpu.matmul %4, %299, %cst_93 {dimension_numbers = #tpu.dot_dimension_numbers<[1], [0], [0], [1], [0, 0, 1, 1], [], []>} : vector<32x32xf32>, vector<32x128xf32>, vector<32x128xf32> -> vector<32x128xf32>
    %324 = arith.addf %322, %323 : vector<32x128xf32>
    %325 = arith.negf %324 : vector<32x128xf32>
    %326 = math.exp %325 : vector<32x128xf32>
    %cst_94 = arith.constant 1.000000e+00 : f32
    %327 = vector.broadcast %cst_94 : f32 to vector<32x128xf32>
    %328 = arith.addf %327, %326 : vector<32x128xf32>
    %329 = arith.divf %327, %328 : vector<32x128xf32>
    %330 = arith.mulf %317, %297 : vector<32x128xf32>
    %331 = arith.mulf %309, %321 : vector<32x128xf32>
    %332 = arith.addf %330, %331 : vector<32x128xf32>
    %333 = math.tanh %332 : vector<32x128xf32>
    %334 = arith.mulf %329, %333 : vector<32x128xf32>
    %c5 = arith.constant 5 : index
    %c0_95 = arith.constant 0 : index
    %c0_96 = arith.constant 0 : index
    %335 = vector.load %arg1[%c5, %c0_95, %c0_96] : memref<8x128x128xf32, #tpu.memory_space<vmem>>, vector<1x128x128xf32>
    %336 = vector.shape_cast %335 : vector<1x128x128xf32> to vector<128x128xf32>
    %337 = vector.extract_strided_slice %336 {offsets = [0, 0], sizes = [32, 128], strides = [1, 1]} : vector<128x128xf32> to vector<32x128xf32>
    %cst_97 = arith.constant dense<0.000000e+00> : vector<32x128xf32>
    %338 = tpu.matmul %1, %334, %cst_97 {dimension_numbers = #tpu.dot_dimension_numbers<[1], [0], [0], [1], [0, 0, 1, 1], [], []>} : vector<32x32xf32>, vector<32x128xf32>, vector<32x128xf32> -> vector<32x128xf32>
    %339 = arith.addf %337, %338 : vector<32x128xf32>
    %340 = arith.negf %339 : vector<32x128xf32>
    %341 = math.exp %340 : vector<32x128xf32>
    %cst_98 = arith.constant 1.000000e+00 : f32
    %342 = vector.broadcast %cst_98 : f32 to vector<32x128xf32>
    %343 = arith.addf %342, %341 : vector<32x128xf32>
    %344 = arith.divf %342, %343 : vector<32x128xf32>
    %345 = vector.extract_strided_slice %336 {offsets = [32, 0], sizes = [32, 128], strides = [1, 1]} : vector<128x128xf32> to vector<32x128xf32>
    %cst_99 = arith.constant dense<0.000000e+00> : vector<32x128xf32>
    %346 = tpu.matmul %2, %334, %cst_99 {dimension_numbers = #tpu.dot_dimension_numbers<[1], [0], [0], [1], [0, 0, 1, 1], [], []>} : vector<32x32xf32>, vector<32x128xf32>, vector<32x128xf32> -> vector<32x128xf32>
    %347 = arith.addf %345, %346 : vector<32x128xf32>
    %348 = arith.negf %347 : vector<32x128xf32>
    %349 = math.exp %348 : vector<32x128xf32>
    %cst_100 = arith.constant 1.000000e+00 : f32
    %350 = vector.broadcast %cst_100 : f32 to vector<32x128xf32>
    %351 = arith.addf %350, %349 : vector<32x128xf32>
    %352 = arith.divf %350, %351 : vector<32x128xf32>
    %353 = vector.extract_strided_slice %336 {offsets = [64, 0], sizes = [32, 128], strides = [1, 1]} : vector<128x128xf32> to vector<32x128xf32>
    %cst_101 = arith.constant dense<0.000000e+00> : vector<32x128xf32>
    %354 = tpu.matmul %3, %334, %cst_101 {dimension_numbers = #tpu.dot_dimension_numbers<[1], [0], [0], [1], [0, 0, 1, 1], [], []>} : vector<32x32xf32>, vector<32x128xf32>, vector<32x128xf32> -> vector<32x128xf32>
    %355 = arith.addf %353, %354 : vector<32x128xf32>
    %356 = math.tanh %355 : vector<32x128xf32>
    %357 = vector.extract_strided_slice %336 {offsets = [96, 0], sizes = [32, 128], strides = [1, 1]} : vector<128x128xf32> to vector<32x128xf32>
    %cst_102 = arith.constant dense<0.000000e+00> : vector<32x128xf32>
    %358 = tpu.matmul %4, %334, %cst_102 {dimension_numbers = #tpu.dot_dimension_numbers<[1], [0], [0], [1], [0, 0, 1, 1], [], []>} : vector<32x32xf32>, vector<32x128xf32>, vector<32x128xf32> -> vector<32x128xf32>
    %359 = arith.addf %357, %358 : vector<32x128xf32>
    %360 = arith.negf %359 : vector<32x128xf32>
    %361 = math.exp %360 : vector<32x128xf32>
    %cst_103 = arith.constant 1.000000e+00 : f32
    %362 = vector.broadcast %cst_103 : f32 to vector<32x128xf32>
    %363 = arith.addf %362, %361 : vector<32x128xf32>
    %364 = arith.divf %362, %363 : vector<32x128xf32>
    %365 = arith.mulf %352, %332 : vector<32x128xf32>
    %366 = arith.mulf %344, %356 : vector<32x128xf32>
    %367 = arith.addf %365, %366 : vector<32x128xf32>
    %368 = math.tanh %367 : vector<32x128xf32>
    %369 = arith.mulf %364, %368 : vector<32x128xf32>
    %c3_104 = arith.constant 3 : index
    %c0_105 = arith.constant 0 : index
    %c0_106 = arith.constant 0 : index
    %370 = vector.load %arg3[%c3_104, %c0_105, %c0_106] : memref<6x32x128xf32, #tpu.memory_space<vmem>>, vector<1x32x128xf32>
    %371 = vector.shape_cast %370 : vector<1x32x128xf32> to vector<32x128xf32>
    %372 = vector.shape_cast %369 : vector<32x128xf32> to vector<1x32x128xf32>
    tpu.vector_store %arg3[%c3_104, %c0_105, %c0_106], %372 {strides = array<i32>} : memref<6x32x128xf32, #tpu.memory_space<vmem>>, vector<1x32x128xf32>,
    %c4_107 = arith.constant 4 : index
    %c0_108 = arith.constant 0 : index
    %c0_109 = arith.constant 0 : index
    %373 = vector.load %arg1[%c4_107, %c0_108, %c0_109] : memref<8x128x128xf32, #tpu.memory_space<vmem>>, vector<1x128x128xf32>
    %374 = vector.shape_cast %373 : vector<1x128x128xf32> to vector<128x128xf32>
    %375 = vector.extract_strided_slice %374 {offsets = [0, 0], sizes = [32, 128], strides = [1, 1]} : vector<128x128xf32> to vector<32x128xf32>
    %376 = arith.negf %375 : vector<32x128xf32>
    %377 = math.exp %376 : vector<32x128xf32>
    %cst_110 = arith.constant 1.000000e+00 : f32
    %378 = vector.broadcast %cst_110 : f32 to vector<32x128xf32>
    %379 = arith.addf %378, %377 : vector<32x128xf32>
    %380 = arith.divf %378, %379 : vector<32x128xf32>
    %381 = vector.extract_strided_slice %374 {offsets = [64, 0], sizes = [32, 128], strides = [1, 1]} : vector<128x128xf32> to vector<32x128xf32>
    %382 = math.tanh %381 : vector<32x128xf32>
    %383 = vector.extract_strided_slice %374 {offsets = [96, 0], sizes = [32, 128], strides = [1, 1]} : vector<128x128xf32> to vector<32x128xf32>
    %384 = arith.negf %383 : vector<32x128xf32>
    %385 = math.exp %384 : vector<32x128xf32>
    %cst_111 = arith.constant 1.000000e+00 : f32
    %386 = vector.broadcast %cst_111 : f32 to vector<32x128xf32>
    %387 = arith.addf %386, %385 : vector<32x128xf32>
    %388 = arith.divf %386, %387 : vector<32x128xf32>
    %389 = arith.mulf %380, %382 : vector<32x128xf32>
    %390 = math.tanh %389 : vector<32x128xf32>
    %391 = arith.mulf %388, %390 : vector<32x128xf32>
    %c5_112 = arith.constant 5 : index
    %c0_113 = arith.constant 0 : index
    %c0_114 = arith.constant 0 : index
    %392 = vector.load %arg1[%c5_112, %c0_113, %c0_114] : memref<8x128x128xf32, #tpu.memory_space<vmem>>, vector<1x128x128xf32>
    %393 = vector.shape_cast %392 : vector<1x128x128xf32> to vector<128x128xf32>
    %394 = vector.extract_strided_slice %393 {offsets = [0, 0], sizes = [32, 128], strides = [1, 1]} : vector<128x128xf32> to vector<32x128xf32>
    %cst_115 = arith.constant dense<0.000000e+00> : vector<32x128xf32>
    %395 = tpu.matmul %1, %391, %cst_115 {dimension_numbers = #tpu.dot_dimension_numbers<[1], [0], [0], [1], [0, 0, 1, 1], [], []>} : vector<32x32xf32>, vector<32x128xf32>, vector<32x128xf32> -> vector<32x128xf32>
    %396 = arith.addf %394, %395 : vector<32x128xf32>
    %397 = arith.negf %396 : vector<32x128xf32>
    %398 = math.exp %397 : vector<32x128xf32>
    %cst_116 = arith.constant 1.000000e+00 : f32
    %399 = vector.broadcast %cst_116 : f32 to vector<32x128xf32>
    %400 = arith.addf %399, %398 : vector<32x128xf32>
    %401 = arith.divf %399, %400 : vector<32x128xf32>
    %402 = vector.extract_strided_slice %393 {offsets = [32, 0], sizes = [32, 128], strides = [1, 1]} : vector<128x128xf32> to vector<32x128xf32>
    %cst_117 = arith.constant dense<0.000000e+00> : vector<32x128xf32>
    %403 = tpu.matmul %2, %391, %cst_117 {dimension_numbers = #tpu.dot_dimension_numbers<[1], [0], [0], [1], [0, 0, 1, 1], [], []>} : vector<32x32xf32>, vector<32x128xf32>, vector<32x128xf32> -> vector<32x128xf32>
    %404 = arith.addf %402, %403 : vector<32x128xf32>
    %405 = arith.negf %404 : vector<32x128xf32>
    %406 = math.exp %405 : vector<32x128xf32>
    %cst_118 = arith.constant 1.000000e+00 : f32
    %407 = vector.broadcast %cst_118 : f32 to vector<32x128xf32>
    %408 = arith.addf %407, %406 : vector<32x128xf32>
    %409 = arith.divf %407, %408 : vector<32x128xf32>
    %410 = vector.extract_strided_slice %393 {offsets = [64, 0], sizes = [32, 128], strides = [1, 1]} : vector<128x128xf32> to vector<32x128xf32>
    %cst_119 = arith.constant dense<0.000000e+00> : vector<32x128xf32>
    %411 = tpu.matmul %3, %391, %cst_119 {dimension_numbers = #tpu.dot_dimension_numbers<[1], [0], [0], [1], [0, 0, 1, 1], [], []>} : vector<32x32xf32>, vector<32x128xf32>, vector<32x128xf32> -> vector<32x128xf32>
    %412 = arith.addf %410, %411 : vector<32x128xf32>
    %413 = math.tanh %412 : vector<32x128xf32>
    %414 = vector.extract_strided_slice %393 {offsets = [96, 0], sizes = [32, 128], strides = [1, 1]} : vector<128x128xf32> to vector<32x128xf32>
    %cst_120 = arith.constant dense<0.000000e+00> : vector<32x128xf32>
    %415 = tpu.matmul %4, %391, %cst_120 {dimension_numbers = #tpu.dot_dimension_numbers<[1], [0], [0], [1], [0, 0, 1, 1], [], []>} : vector<32x32xf32>, vector<32x128xf32>, vector<32x128xf32> -> vector<32x128xf32>
    %416 = arith.addf %414, %415 : vector<32x128xf32>
    %417 = arith.negf %416 : vector<32x128xf32>
    %418 = math.exp %417 : vector<32x128xf32>
    %cst_121 = arith.constant 1.000000e+00 : f32
    %419 = vector.broadcast %cst_121 : f32 to vector<32x128xf32>
    %420 = arith.addf %419, %418 : vector<32x128xf32>
    %421 = arith.divf %419, %420 : vector<32x128xf32>
    %422 = arith.mulf %409, %389 : vector<32x128xf32>
    %423 = arith.mulf %401, %413 : vector<32x128xf32>
    %424 = arith.addf %422, %423 : vector<32x128xf32>
    %425 = math.tanh %424 : vector<32x128xf32>
    %426 = arith.mulf %421, %425 : vector<32x128xf32>
    %c6 = arith.constant 6 : index
    %c0_122 = arith.constant 0 : index
    %c0_123 = arith.constant 0 : index
    %427 = vector.load %arg1[%c6, %c0_122, %c0_123] : memref<8x128x128xf32, #tpu.memory_space<vmem>>, vector<1x128x128xf32>
    %428 = vector.shape_cast %427 : vector<1x128x128xf32> to vector<128x128xf32>
    %429 = vector.extract_strided_slice %428 {offsets = [0, 0], sizes = [32, 128], strides = [1, 1]} : vector<128x128xf32> to vector<32x128xf32>
    %cst_124 = arith.constant dense<0.000000e+00> : vector<32x128xf32>
    %430 = tpu.matmul %1, %426, %cst_124 {dimension_numbers = #tpu.dot_dimension_numbers<[1], [0], [0], [1], [0, 0, 1, 1], [], []>} : vector<32x32xf32>, vector<32x128xf32>, vector<32x128xf32> -> vector<32x128xf32>
    %431 = arith.addf %429, %430 : vector<32x128xf32>
    %432 = arith.negf %431 : vector<32x128xf32>
    %433 = math.exp %432 : vector<32x128xf32>
    %cst_125 = arith.constant 1.000000e+00 : f32
    %434 = vector.broadcast %cst_125 : f32 to vector<32x128xf32>
    %435 = arith.addf %434, %433 : vector<32x128xf32>
    %436 = arith.divf %434, %435 : vector<32x128xf32>
    %437 = vector.extract_strided_slice %428 {offsets = [32, 0], sizes = [32, 128], strides = [1, 1]} : vector<128x128xf32> to vector<32x128xf32>
    %cst_126 = arith.constant dense<0.000000e+00> : vector<32x128xf32>
    %438 = tpu.matmul %2, %426, %cst_126 {dimension_numbers = #tpu.dot_dimension_numbers<[1], [0], [0], [1], [0, 0, 1, 1], [], []>} : vector<32x32xf32>, vector<32x128xf32>, vector<32x128xf32> -> vector<32x128xf32>
    %439 = arith.addf %437, %438 : vector<32x128xf32>
    %440 = arith.negf %439 : vector<32x128xf32>
    %441 = math.exp %440 : vector<32x128xf32>
    %cst_127 = arith.constant 1.000000e+00 : f32
    %442 = vector.broadcast %cst_127 : f32 to vector<32x128xf32>
    %443 = arith.addf %442, %441 : vector<32x128xf32>
    %444 = arith.divf %442, %443 : vector<32x128xf32>
    %445 = vector.extract_strided_slice %428 {offsets = [64, 0], sizes = [32, 128], strides = [1, 1]} : vector<128x128xf32> to vector<32x128xf32>
    %cst_128 = arith.constant dense<0.000000e+00> : vector<32x128xf32>
    %446 = tpu.matmul %3, %426, %cst_128 {dimension_numbers = #tpu.dot_dimension_numbers<[1], [0], [0], [1], [0, 0, 1, 1], [], []>} : vector<32x32xf32>, vector<32x128xf32>, vector<32x128xf32> -> vector<32x128xf32>
    %447 = arith.addf %445, %446 : vector<32x128xf32>
    %448 = math.tanh %447 : vector<32x128xf32>
    %449 = vector.extract_strided_slice %428 {offsets = [96, 0], sizes = [32, 128], strides = [1, 1]} : vector<128x128xf32> to vector<32x128xf32>
    %cst_129 = arith.constant dense<0.000000e+00> : vector<32x128xf32>
    %450 = tpu.matmul %4, %426, %cst_129 {dimension_numbers = #tpu.dot_dimension_numbers<[1], [0], [0], [1], [0, 0, 1, 1], [], []>} : vector<32x32xf32>, vector<32x128xf32>, vector<32x128xf32> -> vector<32x128xf32>
    %451 = arith.addf %449, %450 : vector<32x128xf32>
    %452 = arith.negf %451 : vector<32x128xf32>
    %453 = math.exp %452 : vector<32x128xf32>
    %cst_130 = arith.constant 1.000000e+00 : f32
    %454 = vector.broadcast %cst_130 : f32 to vector<32x128xf32>
    %455 = arith.addf %454, %453 : vector<32x128xf32>
    %456 = arith.divf %454, %455 : vector<32x128xf32>
    %457 = arith.mulf %444, %424 : vector<32x128xf32>
    %458 = arith.mulf %436, %448 : vector<32x128xf32>
    %459 = arith.addf %457, %458 : vector<32x128xf32>
    %460 = math.tanh %459 : vector<32x128xf32>
    %461 = arith.mulf %456, %460 : vector<32x128xf32>
    %c4_131 = arith.constant 4 : index
    %c0_132 = arith.constant 0 : index
    %c0_133 = arith.constant 0 : index
    %462 = vector.load %arg3[%c4_131, %c0_132, %c0_133] : memref<6x32x128xf32, #tpu.memory_space<vmem>>, vector<1x32x128xf32>
    %463 = vector.shape_cast %462 : vector<1x32x128xf32> to vector<32x128xf32>
    %464 = vector.shape_cast %461 : vector<32x128xf32> to vector<1x32x128xf32>
    tpu.vector_store %arg3[%c4_131, %c0_132, %c0_133], %464 {strides = array<i32>} : memref<6x32x128xf32, #tpu.memory_space<vmem>>, vector<1x32x128xf32>,
    %c5_134 = arith.constant 5 : index
    %c0_135 = arith.constant 0 : index
    %c0_136 = arith.constant 0 : index
    %465 = vector.load %arg1[%c5_134, %c0_135, %c0_136] : memref<8x128x128xf32, #tpu.memory_space<vmem>>, vector<1x128x128xf32>
    %466 = vector.shape_cast %465 : vector<1x128x128xf32> to vector<128x128xf32>
    %467 = vector.extract_strided_slice %466 {offsets = [0, 0], sizes = [32, 128], strides = [1, 1]} : vector<128x128xf32> to vector<32x128xf32>
    %468 = arith.negf %467 : vector<32x128xf32>
    %469 = math.exp %468 : vector<32x128xf32>
    %cst_137 = arith.constant 1.000000e+00 : f32
    %470 = vector.broadcast %cst_137 : f32 to vector<32x128xf32>
    %471 = arith.addf %470, %469 : vector<32x128xf32>
    %472 = arith.divf %470, %471 : vector<32x128xf32>
    %473 = vector.extract_strided_slice %466 {offsets = [64, 0], sizes = [32, 128], strides = [1, 1]} : vector<128x128xf32> to vector<32x128xf32>
    %474 = math.tanh %473 : vector<32x128xf32>
    %475 = vector.extract_strided_slice %466 {offsets = [96, 0], sizes = [32, 128], strides = [1, 1]} : vector<128x128xf32> to vector<32x128xf32>
    %476 = arith.negf %475 : vector<32x128xf32>
    %477 = math.exp %476 : vector<32x128xf32>
    %cst_138 = arith.constant 1.000000e+00 : f32
    %478 = vector.broadcast %cst_138 : f32 to vector<32x128xf32>
    %479 = arith.addf %478, %477 : vector<32x128xf32>
    %480 = arith.divf %478, %479 : vector<32x128xf32>
    %481 = arith.mulf %472, %474 : vector<32x128xf32>
    %482 = math.tanh %481 : vector<32x128xf32>
    %483 = arith.mulf %480, %482 : vector<32x128xf32>
    %c6_139 = arith.constant 6 : index
    %c0_140 = arith.constant 0 : index
    %c0_141 = arith.constant 0 : index
    %484 = vector.load %arg1[%c6_139, %c0_140, %c0_141] : memref<8x128x128xf32, #tpu.memory_space<vmem>>, vector<1x128x128xf32>
    %485 = vector.shape_cast %484 : vector<1x128x128xf32> to vector<128x128xf32>
    %486 = vector.extract_strided_slice %485 {offsets = [0, 0], sizes = [32, 128], strides = [1, 1]} : vector<128x128xf32> to vector<32x128xf32>
    %cst_142 = arith.constant dense<0.000000e+00> : vector<32x128xf32>
    %487 = tpu.matmul %1, %483, %cst_142 {dimension_numbers = #tpu.dot_dimension_numbers<[1], [0], [0], [1], [0, 0, 1, 1], [], []>} : vector<32x32xf32>, vector<32x128xf32>, vector<32x128xf32> -> vector<32x128xf32>
    %488 = arith.addf %486, %487 : vector<32x128xf32>
    %489 = arith.negf %488 : vector<32x128xf32>
    %490 = math.exp %489 : vector<32x128xf32>
    %cst_143 = arith.constant 1.000000e+00 : f32
    %491 = vector.broadcast %cst_143 : f32 to vector<32x128xf32>
    %492 = arith.addf %491, %490 : vector<32x128xf32>
    %493 = arith.divf %491, %492 : vector<32x128xf32>
    %494 = vector.extract_strided_slice %485 {offsets = [32, 0], sizes = [32, 128], strides = [1, 1]} : vector<128x128xf32> to vector<32x128xf32>
    %cst_144 = arith.constant dense<0.000000e+00> : vector<32x128xf32>
    %495 = tpu.matmul %2, %483, %cst_144 {dimension_numbers = #tpu.dot_dimension_numbers<[1], [0], [0], [1], [0, 0, 1, 1], [], []>} : vector<32x32xf32>, vector<32x128xf32>, vector<32x128xf32> -> vector<32x128xf32>
    %496 = arith.addf %494, %495 : vector<32x128xf32>
    %497 = arith.negf %496 : vector<32x128xf32>
    %498 = math.exp %497 : vector<32x128xf32>
    %cst_145 = arith.constant 1.000000e+00 : f32
    %499 = vector.broadcast %cst_145 : f32 to vector<32x128xf32>
    %500 = arith.addf %499, %498 : vector<32x128xf32>
    %501 = arith.divf %499, %500 : vector<32x128xf32>
    %502 = vector.extract_strided_slice %485 {offsets = [64, 0], sizes = [32, 128], strides = [1, 1]} : vector<128x128xf32> to vector<32x128xf32>
    %cst_146 = arith.constant dense<0.000000e+00> : vector<32x128xf32>
    %503 = tpu.matmul %3, %483, %cst_146 {dimension_numbers = #tpu.dot_dimension_numbers<[1], [0], [0], [1], [0, 0, 1, 1], [], []>} : vector<32x32xf32>, vector<32x128xf32>, vector<32x128xf32> -> vector<32x128xf32>
    %504 = arith.addf %502, %503 : vector<32x128xf32>
    %505 = math.tanh %504 : vector<32x128xf32>
    %506 = vector.extract_strided_slice %485 {offsets = [96, 0], sizes = [32, 128], strides = [1, 1]} : vector<128x128xf32> to vector<32x128xf32>
    %cst_147 = arith.constant dense<0.000000e+00> : vector<32x128xf32>
    %507 = tpu.matmul %4, %483, %cst_147 {dimension_numbers = #tpu.dot_dimension_numbers<[1], [0], [0], [1], [0, 0, 1, 1], [], []>} : vector<32x32xf32>, vector<32x128xf32>, vector<32x128xf32> -> vector<32x128xf32>
    %508 = arith.addf %506, %507 : vector<32x128xf32>
    %509 = arith.negf %508 : vector<32x128xf32>
    %510 = math.exp %509 : vector<32x128xf32>
    %cst_148 = arith.constant 1.000000e+00 : f32
    %511 = vector.broadcast %cst_148 : f32 to vector<32x128xf32>
    %512 = arith.addf %511, %510 : vector<32x128xf32>
    %513 = arith.divf %511, %512 : vector<32x128xf32>
    %514 = arith.mulf %501, %481 : vector<32x128xf32>
    %515 = arith.mulf %493, %505 : vector<32x128xf32>
    %516 = arith.addf %514, %515 : vector<32x128xf32>
    %517 = math.tanh %516 : vector<32x128xf32>
    %518 = arith.mulf %513, %517 : vector<32x128xf32>
    %c7 = arith.constant 7 : index
    %c0_149 = arith.constant 0 : index
    %c0_150 = arith.constant 0 : index
    %519 = vector.load %arg1[%c7, %c0_149, %c0_150] : memref<8x128x128xf32, #tpu.memory_space<vmem>>, vector<1x128x128xf32>
    %520 = vector.shape_cast %519 : vector<1x128x128xf32> to vector<128x128xf32>
    %521 = vector.extract_strided_slice %520 {offsets = [0, 0], sizes = [32, 128], strides = [1, 1]} : vector<128x128xf32> to vector<32x128xf32>
    %cst_151 = arith.constant dense<0.000000e+00> : vector<32x128xf32>
    %522 = tpu.matmul %1, %518, %cst_151 {dimension_numbers = #tpu.dot_dimension_numbers<[1], [0], [0], [1], [0, 0, 1, 1], [], []>} : vector<32x32xf32>, vector<32x128xf32>, vector<32x128xf32> -> vector<32x128xf32>
    %523 = arith.addf %521, %522 : vector<32x128xf32>
    %524 = arith.negf %523 : vector<32x128xf32>
    %525 = math.exp %524 : vector<32x128xf32>
    %cst_152 = arith.constant 1.000000e+00 : f32
    %526 = vector.broadcast %cst_152 : f32 to vector<32x128xf32>
    %527 = arith.addf %526, %525 : vector<32x128xf32>
    %528 = arith.divf %526, %527 : vector<32x128xf32>
    %529 = vector.extract_strided_slice %520 {offsets = [32, 0], sizes = [32, 128], strides = [1, 1]} : vector<128x128xf32> to vector<32x128xf32>
    %cst_153 = arith.constant dense<0.000000e+00> : vector<32x128xf32>
    %530 = tpu.matmul %2, %518, %cst_153 {dimension_numbers = #tpu.dot_dimension_numbers<[1], [0], [0], [1], [0, 0, 1, 1], [], []>} : vector<32x32xf32>, vector<32x128xf32>, vector<32x128xf32> -> vector<32x128xf32>
    %531 = arith.addf %529, %530 : vector<32x128xf32>
    %532 = arith.negf %531 : vector<32x128xf32>
    %533 = math.exp %532 : vector<32x128xf32>
    %cst_154 = arith.constant 1.000000e+00 : f32
    %534 = vector.broadcast %cst_154 : f32 to vector<32x128xf32>
    %535 = arith.addf %534, %533 : vector<32x128xf32>
    %536 = arith.divf %534, %535 : vector<32x128xf32>
    %537 = vector.extract_strided_slice %520 {offsets = [64, 0], sizes = [32, 128], strides = [1, 1]} : vector<128x128xf32> to vector<32x128xf32>
    %cst_155 = arith.constant dense<0.000000e+00> : vector<32x128xf32>
    %538 = tpu.matmul %3, %518, %cst_155 {dimension_numbers = #tpu.dot_dimension_numbers<[1], [0], [0], [1], [0, 0, 1, 1], [], []>} : vector<32x32xf32>, vector<32x128xf32>, vector<32x128xf32> -> vector<32x128xf32>
    %539 = arith.addf %537, %538 : vector<32x128xf32>
    %540 = math.tanh %539 : vector<32x128xf32>
    %541 = vector.extract_strided_slice %520 {offsets = [96, 0], sizes = [32, 128], strides = [1, 1]} : vector<128x128xf32> to vector<32x128xf32>
    %cst_156 = arith.constant dense<0.000000e+00> : vector<32x128xf32>
    %542 = tpu.matmul %4, %518, %cst_156 {dimension_numbers = #tpu.dot_dimension_numbers<[1], [0], [0], [1], [0, 0, 1, 1], [], []>} : vector<32x32xf32>, vector<32x128xf32>, vector<32x128xf32> -> vector<32x128xf32>
    %543 = arith.addf %541, %542 : vector<32x128xf32>
    %544 = arith.negf %543 : vector<32x128xf32>
    %545 = math.exp %544 : vector<32x128xf32>
    %cst_157 = arith.constant 1.000000e+00 : f32
    %546 = vector.broadcast %cst_157 : f32 to vector<32x128xf32>
    %547 = arith.addf %546, %545 : vector<32x128xf32>
    %548 = arith.divf %546, %547 : vector<32x128xf32>
    %549 = arith.mulf %536, %516 : vector<32x128xf32>
    %550 = arith.mulf %528, %540 : vector<32x128xf32>
    %551 = arith.addf %549, %550 : vector<32x128xf32>
    %552 = math.tanh %551 : vector<32x128xf32>
    %553 = arith.mulf %548, %552 : vector<32x128xf32>
    %c5_158 = arith.constant 5 : index
    %c0_159 = arith.constant 0 : index
    %c0_160 = arith.constant 0 : index
    %554 = vector.load %arg3[%c5_158, %c0_159, %c0_160] : memref<6x32x128xf32, #tpu.memory_space<vmem>>, vector<1x32x128xf32>
    %555 = vector.shape_cast %554 : vector<1x32x128xf32> to vector<32x128xf32>
    %556 = vector.shape_cast %553 : vector<32x128xf32> to vector<1x32x128xf32>
    tpu.vector_store %arg3[%c5_158, %c0_159, %c0_160], %556 {strides = array<i32>} : memref<6x32x128xf32, #tpu.memory_space<vmem>>, vector<1x32x128xf32>,
    return
  }
  func.func @transform_0(%arg0: i32) -> (i32, i32, i32) {
    %c0_i32 = arith.constant 0 : i32
    %c0_i32_0 = arith.constant 0 : i32
    %c0_i32_1 = arith.constant 0 : i32
    return %c0_i32, %c0_i32_0, %arg0 : i32, i32, i32
  }
  func.func @transform_1(%arg0: i32) -> (i32, i32) {
    %c0_i32 = arith.constant 0 : i32
    %c0_i32_0 = arith.constant 0 : i32
    %c0_i32_1 = arith.constant 0 : i32
    return %c0_i32, %c0_i32_0 : i32, i32
  }
  func.func @transform_2(%arg0: i32) -> (i32, i32, i32) {
    %c0_i32 = arith.constant 0 : i32
    %c0_i32_0 = arith.constant 0 : i32
    %c0_i32_1 = arith.constant 0 : i32
    return %c0_i32, %c0_i32_0, %arg0 : i32, i32, i32
  }
}

</mosaic_0001>

<llo_original>
// kernel: tpu_custom_call.1
$region0: #{tpu_custom_call.1}
  #allocation0 [shape = 'u32[]', space=smem, size = 0x4, offset = 0x4, fixed_abs, tag = 'smem constant byte address 0x4 - core index']
  #allocation1 [shape = 'u32[144,128]{1,0:T(1,128)}', space=vmem, size = 0x12000, scoped, tag = 'internal scratch']
  %s0 = inlined_call_operand.hbm [shape: f32[8,128,128], index: 0, kind: input, shape index: {}]
  %s1 = inlined_call_operand.vmem [shape: f32[128,32], index: 1, kind: input, shape index: {}]
  %s2 = inlined_call_operand.hbm [shape: f32[6,32,128], index: 2, kind: output, shape index: {}]
  %s3 = sld [smem:[#allocation0]]
  $region22: #{tpu_custom_call.1} parent=0
    _
  %s5 = ssub.s32 1, %s3
  %s6 = scalar_select 0, %s5, %s3
  $region1: #{tpu_custom_call.1} parent=0
    #allocation2 [shape = 'u8[524288]{0}', space=vmem, size = 0x80000, scoped, tag = 'input window, operand 0, single buffered']
    #allocation3 [shape = 's32[1]{0}', space=sflag, size = 0x4, scoped, tag = 'scoped memory for tpu_custom_call.1']
    #allocation4 [shape = 's32[1]{0}', space=sflag, size = 0x4, scoped, tag = 'scoped memory for tpu_custom_call.1']
    #allocation5 [shape = 'u8[98304]{0}', space=vmem, size = 0x18000, scoped, tag = 'output window, operand 0, single buffered']
    %7 = vsyncpa [#allocation3], 0
    %8 = vsyncpa [#allocation4], 0
    // Predicated region
    $region2: #{tpu_custom_call.1} parent=1 // pred_check
      _
    $region3: #{tpu_custom_call.1} parent=1 // pred_check_branch
      %10 = sbr.rel (0) target = $region5
    $region4: #{tpu_custom_call.1} parent=1 // pred_region
      %s12 = ssub.s32 16384, 16384
      %13 = vsyncadd [#allocation3], %s12
      %s14 = sshll.u32 [#allocation2], 4
      %s15 = int_to_ptr.vmem [resolvable:$true] %s14
      %20 = dma.hbm_to_vmem [thread:$0]  %s0, 16384, %s15, [#allocation3], 128, 128, 8
    $region5: #{tpu_custom_call.1} parent=1 // pred_fallthru
      _
    // Predicated region
    $region6: #{tpu_custom_call.1} parent=1 // pred_check
      _
    $region7: #{tpu_custom_call.1} parent=1 // pred_check_branch
      %22 = sbr.rel (0) target = $region9
    $region8: #{tpu_custom_call.1} parent=1 // pred_region
      _
    $region9: #{tpu_custom_call.1} parent=1 // pred_fallthru
      _
    // Predicated region
    $region10: #{tpu_custom_call.1} parent=1 // pred_check
      _
    $region11: #{tpu_custom_call.1} parent=1 // pred_check_branch
      %24 = sbr.rel (0) target = $region13
    $region12: #{tpu_custom_call.1} parent=1 // pred_region
      %25 = dma.done [#allocation3], 16384
    $region13: #{tpu_custom_call.1} parent=1 // pred_fallthru
      _
    %v26 = vld [vmem:[%s1] sm:$0xff]
    %v27 = vld [vmem:[%s1 + $0x8] sm:$0xff]
    %v28 = vld [vmem:[%s1 + $0x10] sm:$0xff]
    %v29 = vld [vmem:[%s1 + $0x18] sm:$0xff]
    %v30 = vld [vmem:[%s1 + $0x20] sm:$0xff]
    %v31 = vld [vmem:[%s1 + $0x28] sm:$0xff]
    %v32 = vld [vmem:[%s1 + $0x30] sm:$0xff]
    %v33 = vld [vmem:[%s1 + $0x38] sm:$0xff]
    %v34 = vld [vmem:[%s1 + $0x40] sm:$0xff]
    %v35 = vld [vmem:[%s1 + $0x48] sm:$0xff]
    %v36 = vld [vmem:[%s1 + $0x50] sm:$0xff]
    %v37 = vld [vmem:[%s1 + $0x58] sm:$0xff]
    %v38 = vld [vmem:[%s1 + $0x60] sm:$0xff]
    %v39 = vld [vmem:[%s1 + $0x68] sm:$0xff]
    %v40 = vld [vmem:[%s1 + $0x70] sm:$0xff]
    %v41 = vld [vmem:[%s1 + $0x78] sm:$0xff]
    %v42 = vld [vmem:[#allocation2] sm:$0xff]
    %v43 = vld [vmem:[#allocation2 + $0x8] sm:$0xff]
    %v44 = vld [vmem:[#allocation2 + $0x10] sm:$0xff]
    %v45 = vld [vmem:[#allocation2 + $0x18] sm:$0xff]
    %v46 = vld [vmem:[#allocation2 + $0x40] sm:$0xff]
    %v47 = vld [vmem:[#allocation2 + $0x48] sm:$0xff]
    %v48 = vld [vmem:[#allocation2 + $0x50] sm:$0xff]
    %v49 = vld [vmem:[#allocation2 + $0x58] sm:$0xff]
    %v50 = vld [vmem:[#allocation2 + $0x60] sm:$0xff]
    %v51 = vld [vmem:[#allocation2 + $0x68] sm:$0xff]
    %v52 = vld [vmem:[#allocation2 + $0x70] sm:$0xff]
    %v53 = vld [vmem:[#allocation2 + $0x78] sm:$0xff]
    %v54 = vxor.u32 %v42, 2147483648
    %v55 = vxor.u32 %v43, 2147483648
    %v56 = vxor.u32 %v44, 2147483648
    %v57 = vxor.u32 %v45, 2147483648
    %v58 = vmul.f32 %v54, 1.442695
    %v59 = vpow.pop %v58
    %v60 = vmul.f32 %v55, 1.442695
    %v61 = vpow.pop %v60
    %v62 = vmul.f32 %v56, 1.442695
    %v63 = vpow.pop %v62
    %v64 = vmul.f32 %v57, 1.442695
    %v65 = vpow.pop %v64
    %v66 = vadd.f32 %v59, 1.0
    %v67 = vadd.f32 %v61, 1.0
    %v68 = vadd.f32 %v63, 1.0
    %v69 = vadd.f32 %v65, 1.0
    %v70 = vrcp.pop %v66
    %v71 = vmul.f32 1.0, %v70
    %v72 = vrcp.pop %v67
    %v73 = vmul.f32 1.0, %v72
    %v74 = vrcp.pop %v68
    %v75 = vmul.f32 1.0, %v74
    %v76 = vrcp.pop %v69
    %v77 = vmul.f32 1.0, %v76
    %v78 = vtanh.pop %v46
    %v79 = vtanh.pop %v47
    %v80 = vtanh.pop %v48
    %v81 = vtanh.pop %v49
    %v82 = vxor.u32 %v50, 2147483648
    %v83 = vxor.u32 %v51, 2147483648
    %v84 = vxor.u32 %v52, 2147483648
    %v85 = vxor.u32 %v53, 2147483648
    %v86 = vmul.f32 %v82, 1.442695
    %v87 = vpow.pop %v86
    %v88 = vmul.f32 %v83, 1.442695
    %v89 = vpow.pop %v88
    %v90 = vmul.f32 %v84, 1.442695
    %v91 = vpow.pop %v90
    %v92 = vmul.f32 %v85, 1.442695
    %v93 = vpow.pop %v92
    %v94 = vadd.f32 %v87, 1.0
    %v95 = vadd.f32 %v89, 1.0
    %v96 = vadd.f32 %v91, 1.0
    %v97 = vadd.f32 %v93, 1.0
    %v98 = vrcp.pop %v94
    %v99 = vmul.f32 1.0, %v98
    %v100 = vrcp.pop %v95
    %v101 = vmul.f32 1.0, %v100
    %v102 = vrcp.pop %v96
    %v103 = vmul.f32 1.0, %v102
    %v104 = vrcp.pop %v97
    %v105 = vmul.f32 1.0, %v104
    %v106 = vmul.f32 %v71, %v78
    %v107 = vmul.f32 %v73, %v79
    %v108 = vmul.f32 %v75, %v80
    %v109 = vmul.f32 %v77, %v81
    %v110 = vtanh.pop %v106
    %v111 = vtanh.pop %v107
    %v112 = vtanh.pop %v108
    %v113 = vtanh.pop %v109
    %v114 = vmul.f32 %v99, %v110
    %v115 = vmul.f32 %v101, %v111
    %v116 = vmul.f32 %v103, %v112
    %v117 = vmul.f32 %v105, %v113
    %s118 = scalar_lea.vmem [#allocation2], 128
    %v119 = vld [vmem:[%s118] sm:$0xff]
    %v120 = vld [vmem:[%s118 + $0x8] sm:$0xff]
    %v121 = vld [vmem:[%s118 + $0x10] sm:$0xff]
    %v122 = vld [vmem:[%s118 + $0x18] sm:$0xff]
    %v123 = vld [vmem:[%s118 + $0x20] sm:$0xff]
    %v124 = vld [vmem:[%s118 + $0x28] sm:$0xff]
    %v125 = vld [vmem:[%s118 + $0x30] sm:$0xff]
    %v126 = vld [vmem:[%s118 + $0x38] sm:$0xff]
    %v127 = vld [vmem:[%s118 + $0x40] sm:$0xff]
    %v128 = vld [vmem:[%s118 + $0x48] sm:$0xff]
    %v129 = vld [vmem:[%s118 + $0x50] sm:$0xff]
    %v130 = vld [vmem:[%s118 + $0x58] sm:$0xff]
    %v131 = vld [vmem:[%s118 + $0x60] sm:$0xff]
    %v132 = vld [vmem:[%s118 + $0x68] sm:$0xff]
    %v133 = vld [vmem:[%s118 + $0x70] sm:$0xff]
    %v134 = vld [vmem:[%s118 + $0x78] sm:$0xff]
    %vm135 = vcmask 261120
    %v137 = vsel %vm135, %v26, 0
    %v140 = vsel %vm135, %v27, 0
    %v143 = vsel %vm135, %v28, 0
    %v146 = vsel %vm135, %v29, 0
    %148 = vmatprep.subr.mxu0 0.0
    %149 = vmatpush1.msra.mxu0 %v114
    %150 = vmatprep.subr.mxu0 0.0
    %151 = vmatpush1.msra.mxu0 %v115
    %152 = vmatprep.subr.mxu0 0.0
    %153 = vmatpush1.msra.mxu0 %v116
    %154 = vmatprep.subr.mxu0 0.0
    %155 = vmatpush1.msra.mxu0 %v117
    %156 = vmatprep.subr.mxu0 0.0
    %157 = vmatpush1.msra.mxu0 0.0
    %158 = vmatprep.subr.mxu0 0.0
    %159 = vmatpush1.msra.mxu0 0.0
    %160 = vmatprep.subr.mxu0 0.0
    %161 = vmatpush1.msra.mxu0 0.0
    %162 = vmatprep.subr.mxu0 0.0
    %163 = vmatpush1.msra.mxu0 0.0
    %164 = vmatprep.subr.mxu0 0.0
    %165 = vmatpush1.msra.mxu0 0.0
    %166 = vmatprep.subr.mxu0 0.0
    %167 = vmatpush1.msra.mxu0 0.0
    %168 = vmatprep.subr.mxu0 0.0
    %169 = vmatpush1.msra.mxu0 0.0
    %170 = vmatprep.subr.mxu0 0.0
    %171 = vmatpush1.msra.mxu0 0.0
    %172 = vmatprep.subr.mxu0 0.0
    %173 = vmatpush1.msra.mxu0 0.0
    %174 = vmatprep.subr.mxu0 0.0
    %175 = vmatpush1.msra.mxu0 0.0
    %176 = vmatprep.subr.mxu0 0.0
    %177 = vmatpush1.msra.mxu0 0.0
    %178 = vmatprep.subr.mxu0 0.0
    %179 = vmatpush1.msra.mxu0 0.0
    %180 = vmatprep.subr.mxu0 0.0
    %181 = vmatpush1.msra.mxu0 0.0
    %182 = vmatprep.subr.mxu0 0.0
    %183 = vmatpush1.msra.mxu0 0.0
    %184 = vmatprep.subr.mxu0 0.0
    %185 = vmatpush1.msra.mxu0 0.0
    %186 = vmatprep.subr.mxu0 0.0
    %187 = vmatpush1.msra.mxu0 0.0
    %188 = vmatprep.subr.mxu0 0.0
    %189 = vmatpush1.msra.mxu0 0.0
    %190 = vmatprep.subr.mxu0 0.0
    %191 = vmatpush1.msra.mxu0 0.0
    %192 = vmatprep.subr.mxu0 0.0
    %193 = vmatpush1.msra.mxu0 0.0
    %194 = vmatprep.subr.mxu0 0.0
    %195 = vmatpush1.msra.mxu0 0.0
    %196 = vmatprep.subr.mxu0 0.0
    %197 = vmatpush1.msra.mxu0 0.0
    %198 = vmatprep.subr.mxu0 0.0
    %199 = vmatpush1.msra.mxu0 0.0
    %200 = vmatprep.subr.mxu0 0.0
    %201 = vmatpush1.msra.mxu0 0.0
    %202 = vmatprep.subr.mxu0 0.0
    %203 = vmatpush1.msra.mxu0 0.0
    %204 = vmatprep.subr.mxu0 0.0
    %205 = vmatpush1.msra.mxu0 0.0
    %206 = vmatprep.subr.mxu0 0.0
    %207 = vmatpush1.msra.mxu0 0.0
    %208 = vmatprep.subr.mxu0 0.0
    %209 = vmatpush1.msra.mxu0 0.0
    %210 = vmatprep.subr.mxu0 0.0
    %211 = vmatpush1.msra.mxu0 0.0
    %212 = vmatprep.mubr.f32.mxu0 0.0
    %213 = vmatmul.mubr.f32.gmra.mrb[0].mxu0 %v137
    %v214 = vpop.f32.mrb[0].mxu0
    %v215 = vadd.f32 0.0, %v214
    %v216 = vpop.f32.mrb[0].mxu0
    %217 = vmatprep.mubr.f32.mxu0 0.0
    %218 = vmatmul.mubr.f32.gmra.mrb[0].mxu0 %v140
    %v219 = vpop.f32.mrb[0].mxu0
    %v220 = vadd.f32 0.0, %v219
    %v221 = vpop.f32.mrb[0].mxu0
    %222 = vmatprep.mubr.f32.mxu0 0.0
    %223 = vmatmul.mubr.f32.gmra.mrb[0].mxu0 %v143
    %v224 = vpop.f32.mrb[0].mxu0
    %v225 = vadd.f32 0.0, %v224
    %v226 = vpop.f32.mrb[0].mxu0
    %227 = vmatprep.mubr.f32.mxu0 0.0
    %228 = vmatmul.mubr.f32.gmra.mrb[0].mxu0 %v146
    %v229 = vpop.f32.mrb[0].mxu0
    %v230 = vadd.f32 0.0, %v229
    %v231 = vpop.f32.mrb[0].mxu0
    %232 = vdwg.mxu0
    %v233 = vadd.f32 %v119, %v215
    %v234 = vadd.f32 %v120, %v220
    %v235 = vadd.f32 %v121, %v225
    %v236 = vadd.f32 %v122, %v230
    %v237 = vxor.u32 %v233, 2147483648
    %v238 = vxor.u32 %v234, 2147483648
    %v239 = vxor.u32 %v235, 2147483648
    %v240 = vxor.u32 %v236, 2147483648
    %v241 = vmul.f32 %v237, 1.442695
    %v242 = vpow.pop %v241
    %v243 = vmul.f32 %v238, 1.442695
    %v244 = vpow.pop %v243
    %v245 = vmul.f32 %v239, 1.442695
    %v246 = vpow.pop %v245
    %v247 = vmul.f32 %v240, 1.442695
    %v248 = vpow.pop %v247
    %v249 = vadd.f32 %v242, 1.0
    %v250 = vadd.f32 %v244, 1.0
    %v251 = vadd.f32 %v246, 1.0
    %v252 = vadd.f32 %v248, 1.0
    %v253 = vrcp.pop %v249
    %v254 = vmul.f32 1.0, %v253
    %v255 = vrcp.pop %v250
    %v256 = vmul.f32 1.0, %v255
    %v257 = vrcp.pop %v251
    %v258 = vmul.f32 1.0, %v257
    %v259 = vrcp.pop %v252
    %v260 = vmul.f32 1.0, %v259
    %v262 = vsel %vm135, %v30, 0
    %v265 = vsel %vm135, %v31, 0
    %v268 = vsel %vm135, %v32, 0
    %v271 = vsel %vm135, %v33, 0
    %273 = vmatprep.subr.mxu0 0.0
    %274 = vmatpush1.msra.mxu0 %v114
    %275 = vmatprep.subr.mxu0 0.0
    %276 = vmatpush1.msra.mxu0 %v115
    %277 = vmatprep.subr.mxu0 0.0
    %278 = vmatpush1.msra.mxu0 %v116
    %279 = vmatprep.subr.mxu0 0.0
    %280 = vmatpush1.msra.mxu0 %v117
    %281 = vmatprep.subr.mxu0 0.0
    %282 = vmatpush1.msra.mxu0 0.0
    %283 = vmatprep.subr.mxu0 0.0
    %284 = vmatpush1.msra.mxu0 0.0
    %285 = vmatprep.subr.mxu0 0.0
    %286 = vmatpush1.msra.mxu0 0.0
    %287 = vmatprep.subr.mxu0 0.0
    %288 = vmatpush1.msra.mxu0 0.0
    %289 = vmatprep.subr.mxu0 0.0
    %290 = vmatpush1.msra.mxu0 0.0
    %291 = vmatprep.subr.mxu0 0.0
    %292 = vmatpush1.msra.mxu0 0.0
    %293 = vmatprep.subr.mxu0 0.0
    %294 = vmatpush1.msra.mxu0 0.0
    %295 = vmatprep.subr.mxu0 0.0
    %296 = vmatpush1.msra.mxu0 0.0
    %297 = vmatprep.subr.mxu0 0.0
    %298 = vmatpush1.msra.mxu0 0.0
    %299 = vmatprep.subr.mxu0 0.0
    %300 = vmatpush1.msra.mxu0 0.0
    %301 = vmatprep.subr.mxu0 0.0
    %302 = vmatpush1.msra.mxu0 0.0
    %303 = vmatprep.subr.mxu0 0.0
    %304 = vmatpush1.msra.mxu0 0.0
    %305 = vmatprep.subr.mxu0 0.0
    %306 = vmatpush1.msra.mxu0 0.0
    %307 = vmatprep.subr.mxu0 0.0
    %308 = vmatpush1.msra.mxu0 0.0
    %309 = vmatprep.subr.mxu0 0.0
    %310 = vmatpush1.msra.mxu0 0.0
    %311 = vmatprep.subr.mxu0 0.0
    %312 = vmatpush1.msra.mxu0 0.0
    %313 = vmatprep.subr.mxu0 0.0
    %314 = vmatpush1.msra.mxu0 0.0
    %315 = vmatprep.subr.mxu0 0.0
    %316 = vmatpush1.msra.mxu0 0.0
    %317 = vmatprep.subr.mxu0 0.0
    %318 = vmatpush1.msra.mxu0 0.0
    %319 = vmatprep.subr.mxu0 0.0
    %320 = vmatpush1.msra.mxu0 0.0
    %321 = vmatprep.subr.mxu0 0.0
    %322 = vmatpush1.msra.mxu0 0.0
    %323 = vmatprep.subr.mxu0 0.0
    %324 = vmatpush1.msra.mxu0 0.0
    %325 = vmatprep.subr.mxu0 0.0
    %326 = vmatpush1.msra.mxu0 0.0
    %327 = vmatprep.subr.mxu0 0.0
    %328 = vmatpush1.msra.mxu0 0.0
    %329 = vmatprep.subr.mxu0 0.0
    %330 = vmatpush1.msra.mxu0 0.0
    %331 = vmatprep.subr.mxu0 0.0
    %332 = vmatpush1.msra.mxu0 0.0
    %333 = vmatprep.subr.mxu0 0.0
    %334 = vmatpush1.msra.mxu0 0.0
    %335 = vmatprep.subr.mxu0 0.0
    %336 = vmatpush1.msra.mxu0 0.0
    %337 = vmatprep.mubr.f32.mxu0 0.0
    %338 = vmatmul.mubr.f32.gmra.mrb[0].mxu0 %v262
    %v339 = vpop.f32.mrb[0].mxu0
    %v340 = vadd.f32 0.0, %v339
    %v341 = vpop.f32.mrb[0].mxu0
    %342 = vmatprep.mubr.f32.mxu0 0.0
    %343 = vmatmul.mubr.f32.gmra.mrb[0].mxu0 %v265
    %v344 = vpop.f32.mrb[0].mxu0
    %v345 = vadd.f32 0.0, %v344
    %v346 = vpop.f32.mrb[0].mxu0
    %347 = vmatprep.mubr.f32.mxu0 0.0
    %348 = vmatmul.mubr.f32.gmra.mrb[0].mxu0 %v268
    %v349 = vpop.f32.mrb[0].mxu0
    %v350 = vadd.f32 0.0, %v349
    %v351 = vpop.f32.mrb[0].mxu0
    %352 = vmatprep.mubr.f32.mxu0 0.0
    %353 = vmatmul.mubr.f32.gmra.mrb[0].mxu0 %v271
    %v354 = vpop.f32.mrb[0].mxu0
    %v355 = vadd.f32 0.0, %v354
    %v356 = vpop.f32.mrb[0].mxu0
    %357 = vdwg.mxu0
    %v358 = vadd.f32 %v123, %v340
    %v359 = vadd.f32 %v124, %v345
    %v360 = vadd.f32 %v125, %v350
    %v361 = vadd.f32 %v126, %v355
    %v362 = vxor.u32 %v358, 2147483648
    %v363 = vxor.u32 %v359, 2147483648
    %v364 = vxor.u32 %v360, 2147483648
    %v365 = vxor.u32 %v361, 2147483648
    %v366 = vmul.f32 %v362, 1.442695
    %v367 = vpow.pop %v366
    %v368 = vmul.f32 %v363, 1.442695
    %v369 = vpow.pop %v368
    %v370 = vmul.f32 %v364, 1.442695
    %v371 = vpow.pop %v370
    %v372 = vmul.f32 %v365, 1.442695
    %v373 = vpow.pop %v372
    %v374 = vadd.f32 %v367, 1.0
    %v375 = vadd.f32 %v369, 1.0
    %v376 = vadd.f32 %v371, 1.0
    %v377 = vadd.f32 %v373, 1.0
    %v378 = vrcp.pop %v374
    %v379 = vmul.f32 1.0, %v378
    %v380 = vrcp.pop %v375
    %v381 = vmul.f32 1.0, %v380
    %v382 = vrcp.pop %v376
    %v383 = vmul.f32 1.0, %v382
    %v384 = vrcp.pop %v377
    %v385 = vmul.f32 1.0, %v384
    %v387 = vsel %vm135, %v34, 0
    %v390 = vsel %vm135, %v35, 0
    %v393 = vsel %vm135, %v36, 0
    %v396 = vsel %vm135, %v37, 0
    %398 = vmatprep.subr.mxu0 0.0
    %399 = vmatpush1.msra.mxu0 %v114
    %400 = vmatprep.subr.mxu0 0.0
    %401 = vmatpush1.msra.mxu0 %v115
    %402 = vmatprep.subr.mxu0 0.0
    %403 = vmatpush1.msra.mxu0 %v116
    %404 = vmatprep.subr.mxu0 0.0
    %405 = vmatpush1.msra.mxu0 %v117
    %406 = vmatprep.subr.mxu0 0.0
    %407 = vmatpush1.msra.mxu0 0.0
    %408 = vmatprep.subr.mxu0 0.0
    %409 = vmatpush1.msra.mxu0 0.0
    %410 = vmatprep.subr.mxu0 0.0
    %411 = vmatpush1.msra.mxu0 0.0
    %412 = vmatprep.subr.mxu0 0.0
    %413 = vmatpush1.msra.mxu0 0.0
    %414 = vmatprep.subr.mxu0 0.0
    %415 = vmatpush1.msra.mxu0 0.0
    %416 = vmatprep.subr.mxu0 0.0
    %417 = vmatpush1.msra.mxu0 0.0
    %418 = vmatprep.subr.mxu0 0.0
    %419 = vmatpush1.msra.mxu0 0.0
    %420 = vmatprep.subr.mxu0 0.0
    %421 = vmatpush1.msra.mxu0 0.0
    %422 = vmatprep.subr.mxu0 0.0
    %423 = vmatpush1.msra.mxu0 0.0
    %424 = vmatprep.subr.mxu0 0.0
    %425 = vmatpush1.msra.mxu0 0.0
    %426 = vmatprep.subr.mxu0 0.0
    %427 = vmatpush1.msra.mxu0 0.0
    %428 = vmatprep.subr.mxu0 0.0
    %429 = vmatpush1.msra.mxu0 0.0
    %430 = vmatprep.subr.mxu0 0.0
    %431 = vmatpush1.msra.mxu0 0.0
    %432 = vmatprep.subr.mxu0 0.0
    %433 = vmatpush1.msra.mxu0 0.0
    %434 = vmatprep.subr.mxu0 0.0
    %435 = vmatpush1.msra.mxu0 0.0
    %436 = vmatprep.subr.mxu0 0.0
    %437 = vmatpush1.msra.mxu0 0.0
    %438 = vmatprep.subr.mxu0 0.0
    %439 = vmatpush1.msra.mxu0 0.0
    %440 = vmatprep.subr.mxu0 0.0
    %441 = vmatpush1.msra.mxu0 0.0
    %442 = vmatprep.subr.mxu0 0.0
    %443 = vmatpush1.msra.mxu0 0.0
    %444 = vmatprep.subr.mxu0 0.0
    %445 = vmatpush1.msra.mxu0 0.0
    %446 = vmatprep.subr.mxu0 0.0
    %447 = vmatpush1.msra.mxu0 0.0
    %448 = vmatprep.subr.mxu0 0.0
    %449 = vmatpush1.msra.mxu0 0.0
    %450 = vmatprep.subr.mxu0 0.0
    %451 = vmatpush1.msra.mxu0 0.0
    %452 = vmatprep.subr.mxu0 0.0
    %453 = vmatpush1.msra.mxu0 0.0
    %454 = vmatprep.subr.mxu0 0.0
    %455 = vmatpush1.msra.mxu0 0.0
    %456 = vmatprep.subr.mxu0 0.0
    %457 = vmatpush1.msra.mxu0 0.0
    %458 = vmatprep.subr.mxu0 0.0
    %459 = vmatpush1.msra.mxu0 0.0
    %460 = vmatprep.subr.mxu0 0.0
    %461 = vmatpush1.msra.mxu0 0.0
    %462 = vmatprep.mubr.f32.mxu0 0.0
    %463 = vmatmul.mubr.f32.gmra.mrb[0].mxu0 %v387
    %v464 = vpop.f32.mrb[0].mxu0
    %v465 = vadd.f32 0.0, %v464
    %v466 = vpop.f32.mrb[0].mxu0
    %467 = vmatprep.mubr.f32.mxu0 0.0
    %468 = vmatmul.mubr.f32.gmra.mrb[0].mxu0 %v390
    %v469 = vpop.f32.mrb[0].mxu0
    %v470 = vadd.f32 0.0, %v469
    %v471 = vpop.f32.mrb[0].mxu0
    %472 = vmatprep.mubr.f32.mxu0 0.0
    %473 = vmatmul.mubr.f32.gmra.mrb[0].mxu0 %v393
    %v474 = vpop.f32.mrb[0].mxu0
    %v475 = vadd.f32 0.0, %v474
    %v476 = vpop.f32.mrb[0].mxu0
    %477 = vmatprep.mubr.f32.mxu0 0.0
    %478 = vmatmul.mubr.f32.gmra.mrb[0].mxu0 %v396
    %v479 = vpop.f32.mrb[0].mxu0
    %v480 = vadd.f32 0.0, %v479
    %v481 = vpop.f32.mrb[0].mxu0
    %482 = vdwg.mxu0
    %v483 = vadd.f32 %v127, %v465
    %v484 = vadd.f32 %v128, %v470
    %v485 = vadd.f32 %v129, %v475
    %v486 = vadd.f32 %v130, %v480
    %v487 = vtanh.pop %v483
    %v488 = vtanh.pop %v484
    %v489 = vtanh.pop %v485
    %v490 = vtanh.pop %v486
    %v492 = vsel %vm135, %v38, 0
    %v495 = vsel %vm135, %v39, 0
    %v498 = vsel %vm135, %v40, 0
    %v501 = vsel %vm135, %v41, 0
    %503 = vmatprep.subr.mxu0 0.0
    %504 = vmatpush1.msra.mxu0 %v114
    %505 = vmatprep.subr.mxu0 0.0
    %506 = vmatpush1.msra.mxu0 %v115
    %507 = vmatprep.subr.mxu0 0.0
    %508 = vmatpush1.msra.mxu0 %v116
    %509 = vmatprep.subr.mxu0 0.0
    %510 = vmatpush1.msra.mxu0 %v117
    %511 = vmatprep.subr.mxu0 0.0
    %512 = vmatpush1.msra.mxu0 0.0
    %513 = vmatprep.subr.mxu0 0.0
    %514 = vmatpush1.msra.mxu0 0.0
    %515 = vmatprep.subr.mxu0 0.0
    %516 = vmatpush1.msra.mxu0 0.0
    %517 = vmatprep.subr.mxu0 0.0
    %518 = vmatpush1.msra.mxu0 0.0
    %519 = vmatprep.subr.mxu0 0.0
    %520 = vmatpush1.msra.mxu0 0.0
    %521 = vmatprep.subr.mxu0 0.0
    %522 = vmatpush1.msra.mxu0 0.0
    %523 = vmatprep.subr.mxu0 0.0
    %524 = vmatpush1.msra.mxu0 0.0
    %525 = vmatprep.subr.mxu0 0.0
    %526 = vmatpush1.msra.mxu0 0.0
    %527 = vmatprep.subr.mxu0 0.0
    %528 = vmatpush1.msra.mxu0 0.0
    %529 = vmatprep.subr.mxu0 0.0
    %530 = vmatpush1.msra.mxu0 0.0
    %531 = vmatprep.subr.mxu0 0.0
    %532 = vmatpush1.msra.mxu0 0.0
    %533 = vmatprep.subr.mxu0 0.0
    %534 = vmatpush1.msra.mxu0 0.0
    %535 = vmatprep.subr.mxu0 0.0
    %536 = vmatpush1.msra.mxu0 0.0
    %537 = vmatprep.subr.mxu0 0.0
    %538 = vmatpush1.msra.mxu0 0.0
    %539 = vmatprep.subr.mxu0 0.0
    %540 = vmatpush1.msra.mxu0 0.0
    %541 = vmatprep.subr.mxu0 0.0
    %542 = vmatpush1.msra.mxu0 0.0
    %543 = vmatprep.subr.mxu0 0.0
    %544 = vmatpush1.msra.mxu0 0.0
    %545 = vmatprep.subr.mxu0 0.0
    %546 = vmatpush1.msra.mxu0 0.0
    %547 = vmatprep.subr.mxu0 0.0
    %548 = vmatpush1.msra.mxu0 0.0
    %549 = vmatprep.subr.mxu0 0.0
    %550 = vmatpush1.msra.mxu0 0.0
    %551 = vmatprep.subr.mxu0 0.0
    %552 = vmatpush1.msra.mxu0 0.0
    %553 = vmatprep.subr.mxu0 0.0
    %554 = vmatpush1.msra.mxu0 0.0
    %555 = vmatprep.subr.mxu0 0.0
    %556 = vmatpush1.msra.mxu0 0.0
    %557 = vmatprep.subr.mxu0 0.0
    %558 = vmatpush1.msra.mxu0 0.0
    %559 = vmatprep.subr.mxu0 0.0
    %560 = vmatpush1.msra.mxu0 0.0
    %561 = vmatprep.subr.mxu0 0.0
    %562 = vmatpush1.msra.mxu0 0.0
    %563 = vmatprep.subr.mxu0 0.0
    %564 = vmatpush1.msra.mxu0 0.0
    %565 = vmatprep.subr.mxu0 0.0
    %566 = vmatpush1.msra.mxu0 0.0
    %567 = vmatprep.mubr.f32.mxu0 0.0
    %568 = vmatmul.mubr.f32.gmra.mrb[0].mxu0 %v492
    %v569 = vpop.f32.mrb[0].mxu0
    %v570 = vadd.f32 0.0, %v569
    %v571 = vpop.f32.mrb[0].mxu0
    %572 = vmatprep.mubr.f32.mxu0 0.0
    %573 = vmatmul.mubr.f32.gmra.mrb[0].mxu0 %v495
    %v574 = vpop.f32.mrb[0].mxu0
    %v575 = vadd.f32 0.0, %v574
    %v576 = vpop.f32.mrb[0].mxu0
    %577 = vmatprep.mubr.f32.mxu0 0.0
    %578 = vmatmul.mubr.f32.gmra.mrb[0].mxu0 %v498
    %v579 = vpop.f32.mrb[0].mxu0
    %v580 = vadd.f32 0.0, %v579
    %v581 = vpop.f32.mrb[0].mxu0
    %582 = vmatprep.mubr.f32.mxu0 0.0
    %583 = vmatmul.mubr.f32.gmra.mrb[0].mxu0 %v501
    %v584 = vpop.f32.mrb[0].mxu0
    %v585 = vadd.f32 0.0, %v584
    %v586 = vpop.f32.mrb[0].mxu0
    %587 = vdwg.mxu0
    %v588 = vadd.f32 %v131, %v570
    %v589 = vadd.f32 %v132, %v575
    %v590 = vadd.f32 %v133, %v580
    %v591 = vadd.f32 %v134, %v585
    %v592 = vxor.u32 %v588, 2147483648
    %v593 = vxor.u32 %v589, 2147483648
    %v594 = vxor.u32 %v590, 2147483648
    %v595 = vxor.u32 %v591, 2147483648
    %v596 = vmul.f32 %v592, 1.442695
    %v597 = vpow.pop %v596
    %v598 = vmul.f32 %v593, 1.442695
    %v599 = vpow.pop %v598
    %v600 = vmul.f32 %v594, 1.442695
    %v601 = vpow.pop %v600
    %v602 = vmul.f32 %v595, 1.442695
    %v603 = vpow.pop %v602
    %v604 = vadd.f32 %v597, 1.0
    %v605 = vadd.f32 %v599, 1.0
    %v606 = vadd.f32 %v601, 1.0
    %v607 = vadd.f32 %v603, 1.0
    %v608 = vrcp.pop %v604
    %v609 = vmul.f32 1.0, %v608
    %v610 = vrcp.pop %v605
    %v611 = vmul.f32 1.0, %v610
    %v612 = vrcp.pop %v606
    %v613 = vmul.f32 1.0, %v612
    %v614 = vrcp.pop %v607
    %v615 = vmul.f32 1.0, %v614
    %v616 = vmul.f32 %v379, %v106
    %v617 = vmul.f32 %v381, %v107
    %v618 = vmul.f32 %v383, %v108
    %v619 = vmul.f32 %v385, %v109
    %v620 = vmul.f32 %v254, %v487
    %v621 = vmul.f32 %v256, %v488
    %v622 = vmul.f32 %v258, %v489
    %v623 = vmul.f32 %v260, %v490
    %v624 = vadd.f32 %v616, %v620
    %v625 = vadd.f32 %v617, %v621
    %v626 = vadd.f32 %v618, %v622
    %v627 = vadd.f32 %v619, %v623
    %v628 = vtanh.pop %v624
    %v629 = vtanh.pop %v625
    %v630 = vtanh.pop %v626
    %v631 = vtanh.pop %v627
    %v632 = vmul.f32 %v609, %v628
    %v633 = vmul.f32 %v611, %v629
    %v634 = vmul.f32 %v613, %v630
    %v635 = vmul.f32 %v615, %v631
    %s636 = scalar_lea.vmem [#allocation2], 256
    %v637 = vld [vmem:[%s636] sm:$0xff]
    %v638 = vld [vmem:[%s636 + $0x8] sm:$0xff]
    %v639 = vld [vmem:[%s636 + $0x10] sm:$0xff]
    %v640 = vld [vmem:[%s636 + $0x18] sm:$0xff]
    %v641 = vld [vmem:[%s636 + $0x20] sm:$0xff]
    %v642 = vld [vmem:[%s636 + $0x28] sm:$0xff]
    %v643 = vld [vmem:[%s636 + $0x30] sm:$0xff]
    %v644 = vld [vmem:[%s636 + $0x38] sm:$0xff]
    %v645 = vld [vmem:[%s636 + $0x40] sm:$0xff]
    %v646 = vld [vmem:[%s636 + $0x48] sm:$0xff]
    %v647 = vld [vmem:[%s636 + $0x50] sm:$0xff]
    %v648 = vld [vmem:[%s636 + $0x58] sm:$0xff]
    %v649 = vld [vmem:[%s636 + $0x60] sm:$0xff]
    %v650 = vld [vmem:[%s636 + $0x68] sm:$0xff]
    %v651 = vld [vmem:[%s636 + $0x70] sm:$0xff]
    %v652 = vld [vmem:[%s636 + $0x78] sm:$0xff]
    %653 = vmatprep.subr.mxu0 0.0
    %654 = vmatpush1.msra.mxu0 %v632
    %655 = vmatprep.subr.mxu0 0.0
    %656 = vmatpush1.msra.mxu0 %v633
    %657 = vmatprep.subr.mxu0 0.0
    %658 = vmatpush1.msra.mxu0 %v634
    %659 = vmatprep.subr.mxu0 0.0
    %660 = vmatpush1.msra.mxu0 %v635
    %661 = vmatprep.subr.mxu0 0.0
    %662 = vmatpush1.msra.mxu0 0.0
    %663 = vmatprep.subr.mxu0 0.0
    %664 = vmatpush1.msra.mxu0 0.0
    %665 = vmatprep.subr.mxu0 0.0
    %666 = vmatpush1.msra.mxu0 0.0
    %667 = vmatprep.subr.mxu0 0.0
    %668 = vmatpush1.msra.mxu0 0.0
    %669 = vmatprep.subr.mxu0 0.0
    %670 = vmatpush1.msra.mxu0 0.0
    %671 = vmatprep.subr.mxu0 0.0
    %672 = vmatpush1.msra.mxu0 0.0
    %673 = vmatprep.subr.mxu0 0.0
    %674 = vmatpush1.msra.mxu0 0.0
    %675 = vmatprep.subr.mxu0 0.0
    %676 = vmatpush1.msra.mxu0 0.0
    %677 = vmatprep.subr.mxu0 0.0
    %678 = vmatpush1.msra.mxu0 0.0
    %679 = vmatprep.subr.mxu0 0.0
    %680 = vmatpush1.msra.mxu0 0.0
    %681 = vmatprep.subr.mxu0 0.0
    %682 = vmatpush1.msra.mxu0 0.0
    %683 = vmatprep.subr.mxu0 0.0
    %684 = vmatpush1.msra.mxu0 0.0
    %685 = vmatprep.subr.mxu0 0.0
    %686 = vmatpush1.msra.mxu0 0.0
    %687 = vmatprep.subr.mxu0 0.0
    %688 = vmatpush1.msra.mxu0 0.0
    %689 = vmatprep.subr.mxu0 0.0
    %690 = vmatpush1.msra.mxu0 0.0
    %691 = vmatprep.subr.mxu0 0.0
    %692 = vmatpush1.msra.mxu0 0.0
    %693 = vmatprep.subr.mxu0 0.0
    %694 = vmatpush1.msra.mxu0 0.0
    %695 = vmatprep.subr.mxu0 0.0
    %696 = vmatpush1.msra.mxu0 0.0
    %697 = vmatprep.subr.mxu0 0.0
    %698 = vmatpush1.msra.mxu0 0.0
    %699 = vmatprep.subr.mxu0 0.0
    %700 = vmatpush1.msra.mxu0 0.0
    %701 = vmatprep.subr.mxu0 0.0
    %702 = vmatpush1.msra.mxu0 0.0
    %703 = vmatprep.subr.mxu0 0.0
    %704 = vmatpush1.msra.mxu0 0.0
    %705 = vmatprep.subr.mxu0 0.0
    %706 = vmatpush1.msra.mxu0 0.0
    %707 = vmatprep.subr.mxu0 0.0
    %708 = vmatpush1.msra.mxu0 0.0
    %709 = vmatprep.subr.mxu0 0.0
    %710 = vmatpush1.msra.mxu0 0.0
    %711 = vmatprep.subr.mxu0 0.0
    %712 = vmatpush1.msra.mxu0 0.0
    %713 = vmatprep.subr.mxu0 0.0
    %714 = vmatpush1.msra.mxu0 0.0
    %715 = vmatprep.subr.mxu0 0.0
    %716 = vmatpush1.msra.mxu0 0.0
    %717 = vmatprep.mubr.f32.mxu0 0.0
    %718 = vmatmul.mubr.f32.gmra.mrb[0].mxu0 %v137
    %v719 = vpop.f32.mrb[0].mxu0
    %v720 = vadd.f32 0.0, %v719
    %v721 = vpop.f32.mrb[0].mxu0
    %722 = vmatprep.mubr.f32.mxu0 0.0
    %723 = vmatmul.mubr.f32.gmra.mrb[0].mxu0 %v140
    %v724 = vpop.f32.mrb[0].mxu0
    %v725 = vadd.f32 0.0, %v724
    %v726 = vpop.f32.mrb[0].mxu0
    %727 = vmatprep.mubr.f32.mxu0 0.0
    %728 = vmatmul.mubr.f32.gmra.mrb[0].mxu0 %v143
    %v729 = vpop.f32.mrb[0].mxu0
    %v730 = vadd.f32 0.0, %v729
    %v731 = vpop.f32.mrb[0].mxu0
    %732 = vmatprep.mubr.f32.mxu0 0.0
    %733 = vmatmul.mubr.f32.gmra.mrb[0].mxu0 %v146
    %v734 = vpop.f32.mrb[0].mxu0
    %v735 = vadd.f32 0.0, %v734
    %v736 = vpop.f32.mrb[0].mxu0
    %737 = vdwg.mxu0
    %v738 = vadd.f32 %v637, %v720
    %v739 = vadd.f32 %v638, %v725
    %v740 = vadd.f32 %v639, %v730
    %v741 = vadd.f32 %v640, %v735
    %v742 = vxor.u32 %v738, 2147483648
    %v743 = vxor.u32 %v739, 2147483648
    %v744 = vxor.u32 %v740, 2147483648
    %v745 = vxor.u32 %v741, 2147483648
    %v746 = vmul.f32 %v742, 1.442695
    %v747 = vpow.pop %v746
    %v748 = vmul.f32 %v743, 1.442695
    %v749 = vpow.pop %v748
    %v750 = vmul.f32 %v744, 1.442695
    %v751 = vpow.pop %v750
    %v752 = vmul.f32 %v745, 1.442695
    %v753 = vpow.pop %v752
    %v754 = vadd.f32 %v747, 1.0
    %v755 = vadd.f32 %v749, 1.0
    %v756 = vadd.f32 %v751, 1.0
    %v757 = vadd.f32 %v753, 1.0
    %v758 = vrcp.pop %v754
    %v759 = vmul.f32 1.0, %v758
    %v760 = vrcp.pop %v755
    %v761 = vmul.f32 1.0, %v760
    %v762 = vrcp.pop %v756
    %v763 = vmul.f32 1.0, %v762
    %v764 = vrcp.pop %v757
    %v765 = vmul.f32 1.0, %v764
    %766 = vmatprep.subr.mxu0 0.0
    %767 = vmatpush1.msra.mxu0 %v632
    %768 = vmatprep.subr.mxu0 0.0
    %769 = vmatpush1.msra.mxu0 %v633
    %770 = vmatprep.subr.mxu0 0.0
    %771 = vmatpush1.msra.mxu0 %v634
    %772 = vmatprep.subr.mxu0 0.0
    %773 = vmatpush1.msra.mxu0 %v635
    %774 = vmatprep.subr.mxu0 0.0
    %775 = vmatpush1.msra.mxu0 0.0
    %776 = vmatprep.subr.mxu0 0.0
    %777 = vmatpush1.msra.mxu0 0.0
    %778 = vmatprep.subr.mxu0 0.0
    %779 = vmatpush1.msra.mxu0 0.0
    %780 = vmatprep.subr.mxu0 0.0
    %781 = vmatpush1.msra.mxu0 0.0
    %782 = vmatprep.subr.mxu0 0.0
    %783 = vmatpush1.msra.mxu0 0.0
    %784 = vmatprep.subr.mxu0 0.0
    %785 = vmatpush1.msra.mxu0 0.0
    %786 = vmatprep.subr.mxu0 0.0
    %787 = vmatpush1.msra.mxu0 0.0
    %788 = vmatprep.subr.mxu0 0.0
    %789 = vmatpush1.msra.mxu0 0.0
    %790 = vmatprep.subr.mxu0 0.0
    %791 = vmatpush1.msra.mxu0 0.0
    %792 = vmatprep.subr.mxu0 0.0
    %793 = vmatpush1.msra.mxu0 0.0
    %794 = vmatprep.subr.mxu0 0.0
    %795 = vmatpush1.msra.mxu0 0.0
    %796 = vmatprep.subr.mxu0 0.0
    %797 = vmatpush1.msra.mxu0 0.0
    %798 = vmatprep.subr.mxu0 0.0
    %799 = vmatpush1.msra.mxu0 0.0
    %800 = vmatprep.subr.mxu0 0.0
    %801 = vmatpush1.msra.mxu0 0.0
    %802 = vmatprep.subr.mxu0 0.0
    %803 = vmatpush1.msra.mxu0 0.0
    %804 = vmatprep.subr.mxu0 0.0
    %805 = vmatpush1.msra.mxu0 0.0
    %806 = vmatprep.subr.mxu0 0.0
    %807 = vmatpush1.msra.mxu0 0.0
    %808 = vmatprep.subr.mxu0 0.0
    %809 = vmatpush1.msra.mxu0 0.0
    %810 = vmatprep.subr.mxu0 0.0
    %811 = vmatpush1.msra.mxu0 0.0
    %812 = vmatprep.subr.mxu0 0.0
    %813 = vmatpush1.msra.mxu0 0.0
    %814 = vmatprep.subr.mxu0 0.0
    %815 = vmatpush1.msra.mxu0 0.0
    %816 = vmatprep.subr.mxu0 0.0
    %817 = vmatpush1.msra.mxu0 0.0
    %818 = vmatprep.subr.mxu0 0.0
    %819 = vmatpush1.msra.mxu0 0.0
    %820 = vmatprep.subr.mxu0 0.0
    %821 = vmatpush1.msra.mxu0 0.0
    %822 = vmatprep.subr.mxu0 0.0
    %823 = vmatpush1.msra.mxu0 0.0
    %824 = vmatprep.subr.mxu0 0.0
    %825 = vmatpush1.msra.mxu0 0.0
    %826 = vmatprep.subr.mxu0 0.0
    %827 = vmatpush1.msra.mxu0 0.0
    %828 = vmatprep.subr.mxu0 0.0
    %829 = vmatpush1.msra.mxu0 0.0
    %830 = vmatprep.mubr.f32.mxu0 0.0
    %831 = vmatmul.mubr.f32.gmra.mrb[0].mxu0 %v262
    %v832 = vpop.f32.mrb[0].mxu0
    %v833 = vadd.f32 0.0, %v832
    %v834 = vpop.f32.mrb[0].mxu0
    %835 = vmatprep.mubr.f32.mxu0 0.0
    %836 = vmatmul.mubr.f32.gmra.mrb[0].mxu0 %v265
    %v837 = vpop.f32.mrb[0].mxu0
    %v838 = vadd.f32 0.0, %v837
    %v839 = vpop.f32.mrb[0].mxu0
    %840 = vmatprep.mubr.f32.mxu0 0.0
    %841 = vmatmul.mubr.f32.gmra.mrb[0].mxu0 %v268
    %v842 = vpop.f32.mrb[0].mxu0
    %v843 = vadd.f32 0.0, %v842
    %v844 = vpop.f32.mrb[0].mxu0
    %845 = vmatprep.mubr.f32.mxu0 0.0
    %846 = vmatmul.mubr.f32.gmra.mrb[0].mxu0 %v271
    %v847 = vpop.f32.mrb[0].mxu0
    %v848 = vadd.f32 0.0, %v847
    %v849 = vpop.f32.mrb[0].mxu0
    %850 = vdwg.mxu0
    %v851 = vadd.f32 %v641, %v833
    %v852 = vadd.f32 %v642, %v838
    %v853 = vadd.f32 %v643, %v843
    %v854 = vadd.f32 %v644, %v848
    %v855 = vxor.u32 %v851, 2147483648
    %v856 = vxor.u32 %v852, 2147483648
    %v857 = vxor.u32 %v853, 2147483648
    %v858 = vxor.u32 %v854, 2147483648
    %v859 = vmul.f32 %v855, 1.442695
    %v860 = vpow.pop %v859
    %v861 = vmul.f32 %v856, 1.442695
    %v862 = vpow.pop %v861
    %v863 = vmul.f32 %v857, 1.442695
    %v864 = vpow.pop %v863
    %v865 = vmul.f32 %v858, 1.442695
    %v866 = vpow.pop %v865
    %v867 = vadd.f32 %v860, 1.0
    %v868 = vadd.f32 %v862, 1.0
    %v869 = vadd.f32 %v864, 1.0
    %v870 = vadd.f32 %v866, 1.0
    %v871 = vrcp.pop %v867
    %v872 = vmul.f32 1.0, %v871
    %v873 = vrcp.pop %v868
    %v874 = vmul.f32 1.0, %v873
    %v875 = vrcp.pop %v869
    %v876 = vmul.f32 1.0, %v875
    %v877 = vrcp.pop %v870
    %v878 = vmul.f32 1.0, %v877
    %879 = vmatprep.subr.mxu0 0.0
    %880 = vmatpush1.msra.mxu0 %v632
    %881 = vmatprep.subr.mxu0 0.0
    %882 = vmatpush1.msra.mxu0 %v633
    %883 = vmatprep.subr.mxu0 0.0
    %884 = vmatpush1.msra.mxu0 %v634
    %885 = vmatprep.subr.mxu0 0.0
    %886 = vmatpush1.msra.mxu0 %v635
    %887 = vmatprep.subr.mxu0 0.0
    %888 = vmatpush1.msra.mxu0 0.0
    %889 = vmatprep.subr.mxu0 0.0
    %890 = vmatpush1.msra.mxu0 0.0
    %891 = vmatprep.subr.mxu0 0.0
    %892 = vmatpush1.msra.mxu0 0.0
    %893 = vmatprep.subr.mxu0 0.0
    %894 = vmatpush1.msra.mxu0 0.0
    %895 = vmatprep.subr.mxu0 0.0
    %896 = vmatpush1.msra.mxu0 0.0
    %897 = vmatprep.subr.mxu0 0.0
    %898 = vmatpush1.msra.mxu0 0.0
    %899 = vmatprep.subr.mxu0 0.0
    %900 = vmatpush1.msra.mxu0 0.0
    %901 = vmatprep.subr.mxu0 0.0
    %902 = vmatpush1.msra.mxu0 0.0
    %903 = vmatprep.subr.mxu0 0.0
    %904 = vmatpush1.msra.mxu0 0.0
    %905 = vmatprep.subr.mxu0 0.0
    %906 = vmatpush1.msra.mxu0 0.0
    %907 = vmatprep.subr.mxu0 0.0
    %908 = vmatpush1.msra.mxu0 0.0
    %909 = vmatprep.subr.mxu0 0.0
    %910 = vmatpush1.msra.mxu0 0.0
    %911 = vmatprep.subr.mxu0 0.0
    %912 = vmatpush1.msra.mxu0 0.0
    %913 = vmatprep.subr.mxu0 0.0
    %914 = vmatpush1.msra.mxu0 0.0
    %915 = vmatprep.subr.mxu0 0.0
    %916 = vmatpush1.msra.mxu0 0.0
    %917 = vmatprep.subr.mxu0 0.0
    %918 = vmatpush1.msra.mxu0 0.0
    %919 = vmatprep.subr.mxu0 0.0
    %920 = vmatpush1.msra.mxu0 0.0
    %921 = vmatprep.subr.mxu0 0.0
    %922 = vmatpush1.msra.mxu0 0.0
    %923 = vmatprep.subr.mxu0 0.0
    %924 = vmatpush1.msra.mxu0 0.0
    %925 = vmatprep.subr.mxu0 0.0
    %926 = vmatpush1.msra.mxu0 0.0
    %927 = vmatprep.subr.mxu0 0.0
    %928 = vmatpush1.msra.mxu0 0.0
    %929 = vmatprep.subr.mxu0 0.0
    %930 = vmatpush1.msra.mxu0 0.0
    %931 = vmatprep.subr.mxu0 0.0
    %932 = vmatpush1.msra.mxu0 0.0
    %933 = vmatprep.subr.mxu0 0.0
    %934 = vmatpush1.msra.mxu0 0.0
    %935 = vmatprep.subr.mxu0 0.0
    %936 = vmatpush1.msra.mxu0 0.0
    %937 = vmatprep.subr.mxu0 0.0
    %938 = vmatpush1.msra.mxu0 0.0
    %939 = vmatprep.subr.mxu0 0.0
    %940 = vmatpush1.msra.mxu0 0.0
    %941 = vmatprep.subr.mxu0 0.0
    %942 = vmatpush1.msra.mxu0 0.0
    %943 = vmatprep.mubr.f32.mxu0 0.0
    %944 = vmatmul.mubr.f32.gmra.mrb[0].mxu0 %v387
    %v945 = vpop.f32.mrb[0].mxu0
    %v946 = vadd.f32 0.0, %v945
    %v947 = vpop.f32.mrb[0].mxu0
    %948 = vmatprep.mubr.f32.mxu0 0.0
    %949 = vmatmul.mubr.f32.gmra.mrb[0].mxu0 %v390
    %v950 = vpop.f32.mrb[0].mxu0
    %v951 = vadd.f32 0.0, %v950
    %v952 = vpop.f32.mrb[0].mxu0
    %953 = vmatprep.mubr.f32.mxu0 0.0
    %954 = vmatmul.mubr.f32.gmra.mrb[0].mxu0 %v393
    %v955 = vpop.f32.mrb[0].mxu0
    %v956 = vadd.f32 0.0, %v955
    %v957 = vpop.f32.mrb[0].mxu0
    %958 = vmatprep.mubr.f32.mxu0 0.0
    %959 = vmatmul.mubr.f32.gmra.mrb[0].mxu0 %v396
    %v960 = vpop.f32.mrb[0].mxu0
    %v961 = vadd.f32 0.0, %v960
    %v962 = vpop.f32.mrb[0].mxu0
    %963 = vdwg.mxu0
    %v964 = vadd.f32 %v645, %v946
    %v965 = vadd.f32 %v646, %v951
    %v966 = vadd.f32 %v647, %v956
    %v967 = vadd.f32 %v648, %v961
    %v968 = vtanh.pop %v964
    %v969 = vtanh.pop %v965
    %v970 = vtanh.pop %v966
    %v971 = vtanh.pop %v967
    %972 = vmatprep.subr.mxu0 0.0
    %973 = vmatpush1.msra.mxu0 %v632
    %974 = vmatprep.subr.mxu0 0.0
    %975 = vmatpush1.msra.mxu0 %v633
    %976 = vmatprep.subr.mxu0 0.0
    %977 = vmatpush1.msra.mxu0 %v634
    %978 = vmatprep.subr.mxu0 0.0
    %979 = vmatpush1.msra.mxu0 %v635
    %980 = vmatprep.subr.mxu0 0.0
    %981 = vmatpush1.msra.mxu0 0.0
    %982 = vmatprep.subr.mxu0 0.0
    %983 = vmatpush1.msra.mxu0 0.0
    %984 = vmatprep.subr.mxu0 0.0
    %985 = vmatpush1.msra.mxu0 0.0
    %986 = vmatprep.subr.mxu0 0.0
    %987 = vmatpush1.msra.mxu0 0.0
    %988 = vmatprep.subr.mxu0 0.0
    %989 = vmatpush1.msra.mxu0 0.0
    %990 = vmatprep.subr.mxu0 0.0
    %991 = vmatpush1.msra.mxu0 0.0
    %992 = vmatprep.subr.mxu0 0.0
    %993 = vmatpush1.msra.mxu0 0.0
    %994 = vmatprep.subr.mxu0 0.0
    %995 = vmatpush1.msra.mxu0 0.0
    %996 = vmatprep.subr.mxu0 0.0
    %997 = vmatpush1.msra.mxu0 0.0
    %998 = vmatprep.subr.mxu0 0.0
    %999 = vmatpush1.msra.mxu0 0.0
    %1000 = vmatprep.subr.mxu0 0.0
    %1001 = vmatpush1.msra.mxu0 0.0
    %1002 = vmatprep.subr.mxu0 0.0
    %1003 = vmatpush1.msra.mxu0 0.0
    %1004 = vmatprep.subr.mxu0 0.0
    %1005 = vmatpush1.msra.mxu0 0.0
    %1006 = vmatprep.subr.mxu0 0.0
    %1007 = vmatpush1.msra.mxu0 0.0
    %1008 = vmatprep.subr.mxu0 0.0
    %1009 = vmatpush1.msra.mxu0 0.0
    %1010 = vmatprep.subr.mxu0 0.0
    %1011 = vmatpush1.msra.mxu0 0.0
    %1012 = vmatprep.subr.mxu0 0.0
    %1013 = vmatpush1.msra.mxu0 0.0
    %1014 = vmatprep.subr.mxu0 0.0
    %1015 = vmatpush1.msra.mxu0 0.0
    %1016 = vmatprep.subr.mxu0 0.0
    %1017 = vmatpush1.msra.mxu0 0.0
    %1018 = vmatprep.subr.mxu0 0.0
    %1019 = vmatpush1.msra.mxu0 0.0
    %1020 = vmatprep.subr.mxu0 0.0
    %1021 = vmatpush1.msra.mxu0 0.0
    %1022 = vmatprep.subr.mxu0 0.0
    %1023 = vmatpush1.msra.mxu0 0.0
    %1024 = vmatprep.subr.mxu0 0.0
    %1025 = vmatpush1.msra.mxu0 0.0
    %1026 = vmatprep.subr.mxu0 0.0
    %1027 = vmatpush1.msra.mxu0 0.0
    %1028 = vmatprep.subr.mxu0 0.0
    %1029 = vmatpush1.msra.mxu0 0.0
    %1030 = vmatprep.subr.mxu0 0.0
    %1031 = vmatpush1.msra.mxu0 0.0
    %1032 = vmatprep.subr.mxu0 0.0
    %1033 = vmatpush1.msra.mxu0 0.0
    %1034 = vmatprep.subr.mxu0 0.0
    %1035 = vmatpush1.msra.mxu0 0.0
    %1036 = vmatprep.mubr.f32.mxu0 0.0
    %1037 = vmatmul.mubr.f32.gmra.mrb[0].mxu0 %v492
    %v1038 = vpop.f32.mrb[0].mxu0
    %v1039 = vadd.f32 0.0, %v1038
    %v1040 = vpop.f32.mrb[0].mxu0
    %1041 = vmatprep.mubr.f32.mxu0 0.0
    %1042 = vmatmul.mubr.f32.gmra.mrb[0].mxu0 %v495
    %v1043 = vpop.f32.mrb[0].mxu0
    %v1044 = vadd.f32 0.0, %v1043
    %v1045 = vpop.f32.mrb[0].mxu0
    %1046 = vmatprep.mubr.f32.mxu0 0.0
    %1047 = vmatmul.mubr.f32.gmra.mrb[0].mxu0 %v498
    %v1048 = vpop.f32.mrb[0].mxu0
    %v1049 = vadd.f32 0.0, %v1048
    %v1050 = vpop.f32.mrb[0].mxu0
    %1051 = vmatprep.mubr.f32.mxu0 0.0
    %1052 = vmatmul.mubr.f32.gmra.mrb[0].mxu0 %v501
    %v1053 = vpop.f32.mrb[0].mxu0
    %v1054 = vadd.f32 0.0, %v1053
    %v1055 = vpop.f32.mrb[0].mxu0
    %1056 = vdwg.mxu0
    %v1057 = vadd.f32 %v649, %v1039
    %v1058 = vadd.f32 %v650, %v1044
    %v1059 = vadd.f32 %v651, %v1049
    %v1060 = vadd.f32 %v652, %v1054
    %v1061 = vxor.u32 %v1057, 2147483648
    %v1062 = vxor.u32 %v1058, 2147483648
    %v1063 = vxor.u32 %v1059, 2147483648
    %v1064 = vxor.u32 %v1060, 2147483648
    %v1065 = vmul.f32 %v1061, 1.442695
    %v1066 = vpow.pop %v1065
    %v1067 = vmul.f32 %v1062, 1.442695
    %v1068 = vpow.pop %v1067
    %v1069 = vmul.f32 %v1063, 1.442695
    %v1070 = vpow.pop %v1069
    %v1071 = vmul.f32 %v1064, 1.442695
    %v1072 = vpow.pop %v1071
    %v1073 = vadd.f32 %v1066, 1.0
    %v1074 = vadd.f32 %v1068, 1.0
    %v1075 = vadd.f32 %v1070, 1.0
    %v1076 = vadd.f32 %v1072, 1.0
    %v1077 = vrcp.pop %v1073
    %v1078 = vmul.f32 1.0, %v1077
    %v1079 = vrcp.pop %v1074
    %v1080 = vmul.f32 1.0, %v1079
    %v1081 = vrcp.pop %v1075
    %v1082 = vmul.f32 1.0, %v1081
    %v1083 = vrcp.pop %v1076
    %v1084 = vmul.f32 1.0, %v1083
    %v1085 = vmul.f32 %v872, %v624
    %v1086 = vmul.f32 %v874, %v625
    %v1087 = vmul.f32 %v876, %v626
    %v1088 = vmul.f32 %v878, %v627
    %v1089 = vmul.f32 %v759, %v968
    %v1090 = vmul.f32 %v761, %v969
    %v1091 = vmul.f32 %v763, %v970
    %v1092 = vmul.f32 %v765, %v971
    %v1093 = vadd.f32 %v1085, %v1089
    %v1094 = vadd.f32 %v1086, %v1090
    %v1095 = vadd.f32 %v1087, %v1091
    %v1096 = vadd.f32 %v1088, %v1092
    %v1097 = vtanh.pop %v1093
    %v1098 = vtanh.pop %v1094
    %v1099 = vtanh.pop %v1095
    %v1100 = vtanh.pop %v1096
    %v1101 = vmul.f32 %v1078, %v1097
    %v1102 = vmul.f32 %v1080, %v1098
    %v1103 = vmul.f32 %v1082, %v1099
    %v1104 = vmul.f32 %v1084, %v1100
    %1105 = vst [vmem:[#allocation5] sm:$0xff] %v1101
    %1106 = vst [vmem:[#allocation5 + $0x8] sm:$0xff] %v1102
    %1107 = vst [vmem:[#allocation5 + $0x10] sm:$0xff] %v1103
    %1108 = vst [vmem:[#allocation5 + $0x18] sm:$0xff] %v1104
    %v1109 = vld [vmem:[%s118] sm:$0xff]
    %v1110 = vld [vmem:[%s118 + $0x8] sm:$0xff]
    %v1111 = vld [vmem:[%s118 + $0x10] sm:$0xff]
    %v1112 = vld [vmem:[%s118 + $0x18] sm:$0xff]
    %v1113 = vld [vmem:[%s118 + $0x40] sm:$0xff]
    %v1114 = vld [vmem:[%s118 + $0x48] sm:$0xff]
    %v1115 = vld [vmem:[%s118 + $0x50] sm:$0xff]
    %v1116 = vld [vmem:[%s118 + $0x58] sm:$0xff]
    %v1117 = vld [vmem:[%s118 + $0x60] sm:$0xff]
    %v1118 = vld [vmem:[%s118 + $0x68] sm:$0xff]
    %v1119 = vld [vmem:[%s118 + $0x70] sm:$0xff]
    %v1120 = vld [vmem:[%s118 + $0x78] sm:$0xff]
    %v1121 = vxor.u32 %v1109, 2147483648
    %v1122 = vxor.u32 %v1110, 2147483648
    %v1123 = vxor.u32 %v1111, 2147483648
    %v1124 = vxor.u32 %v1112, 2147483648
    %v1125 = vmul.f32 %v1121, 1.442695
    %v1126 = vpow.pop %v1125
    %v1127 = vmul.f32 %v1122, 1.442695
    %v1128 = vpow.pop %v1127
    %v1129 = vmul.f32 %v1123, 1.442695
    %v1130 = vpow.pop %v1129
    %v1131 = vmul.f32 %v1124, 1.442695
    %v1132 = vpow.pop %v1131
    %v1133 = vadd.f32 %v1126, 1.0
    %v1134 = vadd.f32 %v1128, 1.0
    %v1135 = vadd.f32 %v1130, 1.0
    %v1136 = vadd.f32 %v1132, 1.0
    %v1137 = vrcp.pop %v1133
    %v1138 = vmul.f32 1.0, %v1137
    %v1139 = vrcp.pop %v1134
    %v1140 = vmul.f32 1.0, %v1139
    %v1141 = vrcp.pop %v1135
    %v1142 = vmul.f32 1.0, %v1141
    %v1143 = vrcp.pop %v1136
    %v1144 = vmul.f32 1.0, %v1143
    %v1145 = vtanh.pop %v1113
    %v1146 = vtanh.pop %v1114
    %v1147 = vtanh.pop %v1115
    %v1148 = vtanh.pop %v1116
    %v1149 = vxor.u32 %v1117, 2147483648
    %v1150 = vxor.u32 %v1118, 2147483648
    %v1151 = vxor.u32 %v1119, 2147483648
    %v1152 = vxor.u32 %v1120, 2147483648
    %v1153 = vmul.f32 %v1149, 1.442695
    %v1154 = vpow.pop %v1153
    %v1155 = vmul.f32 %v1150, 1.442695
    %v1156 = vpow.pop %v1155
    %v1157 = vmul.f32 %v1151, 1.442695
    %v1158 = vpow.pop %v1157
    %v1159 = vmul.f32 %v1152, 1.442695
    %v1160 = vpow.pop %v1159
    %v1161 = vadd.f32 %v1154, 1.0
    %v1162 = vadd.f32 %v1156, 1.0
    %v1163 = vadd.f32 %v1158, 1.0
    %v1164 = vadd.f32 %v1160, 1.0
    %v1165 = vrcp.pop %v1161
    %v1166 = vmul.f32 1.0, %v1165
    %v1167 = vrcp.pop %v1162
    %v1168 = vmul.f32 1.0, %v1167
    %v1169 = vrcp.pop %v1163
    %v1170 = vmul.f32 1.0, %v1169
    %v1171 = vrcp.pop %v1164
    %v1172 = vmul.f32 1.0, %v1171
    %v1173 = vmul.f32 %v1138, %v1145
    %v1174 = vmul.f32 %v1140, %v1146
    %v1175 = vmul.f32 %v1142, %v1147
    %v1176 = vmul.f32 %v1144, %v1148
    %v1177 = vtanh.pop %v1173
    %v1178 = vtanh.pop %v1174
    %v1179 = vtanh.pop %v1175
    %v1180 = vtanh.pop %v1176
    %v1181 = vmul.f32 %v1166, %v1177
    %v1182 = vmul.f32 %v1168, %v1178
    %v1183 = vmul.f32 %v1170, %v1179
    %v1184 = vmul.f32 %v1172, %v1180
    %v1185 = vld [vmem:[%s636] sm:$0xff]
    %v1186 = vld [vmem:[%s636 + $0x8] sm:$0xff]
    %v1187 = vld [vmem:[%s636 + $0x10] sm:$0xff]
    %v1188 = vld [vmem:[%s636 + $0x18] sm:$0xff]
    %v1189 = vld [vmem:[%s636 + $0x20] sm:$0xff]
    %v1190 = vld [vmem:[%s636 + $0x28] sm:$0xff]
    %v1191 = vld [vmem:[%s636 + $0x30] sm:$0xff]
    %v1192 = vld [vmem:[%s636 + $0x38] sm:$0xff]
    %v1193 = vld [vmem:[%s636 + $0x40] sm:$0xff]
    %v1194 = vld [vmem:[%s636 + $0x48] sm:$0xff]
    %v1195 = vld [vmem:[%s636 + $0x50] sm:$0xff]
    %v1196 = vld [vmem:[%s636 + $0x58] sm:$0xff]
    %v1197 = vld [vmem:[%s636 + $0x60] sm:$0xff]
    %v1198 = vld [vmem:[%s636 + $0x68] sm:$0xff]
    %v1199 = vld [vmem:[%s636 + $0x70] sm:$0xff]
    %v1200 = vld [vmem:[%s636 + $0x78] sm:$0xff]
    %1201 = vmatprep.subr.mxu0 0.0
    %1202 = vmatpush1.msra.mxu0 %v1181
    %1203 = vmatprep.subr.mxu0 0.0
    %1204 = vmatpush1.msra.mxu0 %v1182
    %1205 = vmatprep.subr.mxu0 0.0
    %1206 = vmatpush1.msra.mxu0 %v1183
    %1207 = vmatprep.subr.mxu0 0.0
    %1208 = vmatpush1.msra.mxu0 %v1184
    %1209 = vmatprep.subr.mxu0 0.0
    %1210 = vmatpush1.msra.mxu0 0.0
    %1211 = vmatprep.subr.mxu0 0.0
    %1212 = vmatpush1.msra.mxu0 0.0
    %1213 = vmatprep.subr.mxu0 0.0
    %1214 = vmatpush1.msra.mxu0 0.0
    %1215 = vmatprep.subr.mxu0 0.0
    %1216 = vmatpush1.msra.mxu0 0.0
    %1217 = vmatprep.subr.mxu0 0.0
    %1218 = vmatpush1.msra.mxu0 0.0
    %1219 = vmatprep.subr.mxu0 0.0
    %1220 = vmatpush1.msra.mxu0 0.0
    %1221 = vmatprep.subr.mxu0 0.0
    %1222 = vmatpush1.msra.mxu0 0.0
    %1223 = vmatprep.subr.mxu0 0.0
    %1224 = vmatpush1.msra.mxu0 0.0
    %1225 = vmatprep.subr.mxu0 0.0
    %1226 = vmatpush1.msra.mxu0 0.0
    %1227 = vmatprep.subr.mxu0 0.0
    %1228 = vmatpush1.msra.mxu0 0.0
    %1229 = vmatprep.subr.mxu0 0.0
    %1230 = vmatpush1.msra.mxu0 0.0
    %1231 = vmatprep.subr.mxu0 0.0
    %1232 = vmatpush1.msra.mxu0 0.0
    %1233 = vmatprep.subr.mxu0 0.0
    %1234 = vmatpush1.msra.mxu0 0.0
    %1235 = vmatprep.subr.mxu0 0.0
    %1236 = vmatpush1.msra.mxu0 0.0
    %1237 = vmatprep.subr.mxu0 0.0
    %1238 = vmatpush1.msra.mxu0 0.0
    %1239 = vmatprep.subr.mxu0 0.0
    %1240 = vmatpush1.msra.mxu0 0.0
    %1241 = vmatprep.subr.mxu0 0.0
    %1242 = vmatpush1.msra.mxu0 0.0
    %1243 = vmatprep.subr.mxu0 0.0
    %1244 = vmatpush1.msra.mxu0 0.0
    %1245 = vmatprep.subr.mxu0 0.0
    %1246 = vmatpush1.msra.mxu0 0.0
    %1247 = vmatprep.subr.mxu0 0.0
    %1248 = vmatpush1.msra.mxu0 0.0
    %1249 = vmatprep.subr.mxu0 0.0
    %1250 = vmatpush1.msra.mxu0 0.0
    %1251 = vmatprep.subr.mxu0 0.0
    %1252 = vmatpush1.msra.mxu0 0.0
    %1253 = vmatprep.subr.mxu0 0.0
    %1254 = vmatpush1.msra.mxu0 0.0
    %1255 = vmatprep.subr.mxu0 0.0
    %1256 = vmatpush1.msra.mxu0 0.0
    %1257 = vmatprep.subr.mxu0 0.0
    %1258 = vmatpush1.msra.mxu0 0.0
    %1259 = vmatprep.subr.mxu0 0.0
    %1260 = vmatpush1.msra.mxu0 0.0
    %1261 = vmatprep.subr.mxu0 0.0
    %1262 = vmatpush1.msra.mxu0 0.0
    %1263 = vmatprep.subr.mxu0 0.0
    %1264 = vmatpush1.msra.mxu0 0.0
    %1265 = vmatprep.mubr.f32.mxu0 0.0
    %1266 = vmatmul.mubr.f32.gmra.mrb[0].mxu0 %v137
    %v1267 = vpop.f32.mrb[0].mxu0
    %v1268 = vadd.f32 0.0, %v1267
    %v1269 = vpop.f32.mrb[0].mxu0
    %1270 = vmatprep.mubr.f32.mxu0 0.0
    %1271 = vmatmul.mubr.f32.gmra.mrb[0].mxu0 %v140
    %v1272 = vpop.f32.mrb[0].mxu0
    %v1273 = vadd.f32 0.0, %v1272
    %v1274 = vpop.f32.mrb[0].mxu0
    %1275 = vmatprep.mubr.f32.mxu0 0.0
    %1276 = vmatmul.mubr.f32.gmra.mrb[0].mxu0 %v143
    %v1277 = vpop.f32.mrb[0].mxu0
    %v1278 = vadd.f32 0.0, %v1277
    %v1279 = vpop.f32.mrb[0].mxu0
    %1280 = vmatprep.mubr.f32.mxu0 0.0
    %1281 = vmatmul.mubr.f32.gmra.mrb[0].mxu0 %v146
    %v1282 = vpop.f32.mrb[0].mxu0
    %v1283 = vadd.f32 0.0, %v1282
    %v1284 = vpop.f32.mrb[0].mxu0
    %1285 = vdwg.mxu0
    %v1286 = vadd.f32 %v1185, %v1268
    %v1287 = vadd.f32 %v1186, %v1273
    %v1288 = vadd.f32 %v1187, %v1278
    %v1289 = vadd.f32 %v1188, %v1283
    %v1290 = vxor.u32 %v1286, 2147483648
    %v1291 = vxor.u32 %v1287, 2147483648
    %v1292 = vxor.u32 %v1288, 2147483648
    %v1293 = vxor.u32 %v1289, 2147483648
    %v1294 = vmul.f32 %v1290, 1.442695
    %v1295 = vpow.pop %v1294
    %v1296 = vmul.f32 %v1291, 1.442695
    %v1297 = vpow.pop %v1296
    %v1298 = vmul.f32 %v1292, 1.442695
    %v1299 = vpow.pop %v1298
    %v1300 = vmul.f32 %v1293, 1.442695
    %v1301 = vpow.pop %v1300
    %v1302 = vadd.f32 %v1295, 1.0
    %v1303 = vadd.f32 %v1297, 1.0
    %v1304 = vadd.f32 %v1299, 1.0
    %v1305 = vadd.f32 %v1301, 1.0
    %v1306 = vrcp.pop %v1302
    %v1307 = vmul.f32 1.0, %v1306
    %v1308 = vrcp.pop %v1303
    %v1309 = vmul.f32 1.0, %v1308
    %v1310 = vrcp.pop %v1304
    %v1311 = vmul.f32 1.0, %v1310
    %v1312 = vrcp.pop %v1305
    %v1313 = vmul.f32 1.0, %v1312
    %1314 = vmatprep.subr.mxu0 0.0
    %1315 = vmatpush1.msra.mxu0 %v1181
    %1316 = vmatprep.subr.mxu0 0.0
    %1317 = vmatpush1.msra.mxu0 %v1182
    %1318 = vmatprep.subr.mxu0 0.0
    %1319 = vmatpush1.msra.mxu0 %v1183
    %1320 = vmatprep.subr.mxu0 0.0
    %1321 = vmatpush1.msra.mxu0 %v1184
    %1322 = vmatprep.subr.mxu0 0.0
    %1323 = vmatpush1.msra.mxu0 0.0
    %1324 = vmatprep.subr.mxu0 0.0
    %1325 = vmatpush1.msra.mxu0 0.0
    %1326 = vmatprep.subr.mxu0 0.0
    %1327 = vmatpush1.msra.mxu0 0.0
    %1328 = vmatprep.subr.mxu0 0.0
    %1329 = vmatpush1.msra.mxu0 0.0
    %1330 = vmatprep.subr.mxu0 0.0
    %1331 = vmatpush1.msra.mxu0 0.0
    %1332 = vmatprep.subr.mxu0 0.0
    %1333 = vmatpush1.msra.mxu0 0.0
    %1334 = vmatprep.subr.mxu0 0.0
    %1335 = vmatpush1.msra.mxu0 0.0
    %1336 = vmatprep.subr.mxu0 0.0
    %1337 = vmatpush1.msra.mxu0 0.0
    %1338 = vmatprep.subr.mxu0 0.0
    %1339 = vmatpush1.msra.mxu0 0.0
    %1340 = vmatprep.subr.mxu0 0.0
    %1341 = vmatpush1.msra.mxu0 0.0
    %1342 = vmatprep.subr.mxu0 0.0
    %1343 = vmatpush1.msra.mxu0 0.0
    %1344 = vmatprep.subr.mxu0 0.0
    %1345 = vmatpush1.msra.mxu0 0.0
    %1346 = vmatprep.subr.mxu0 0.0
    %1347 = vmatpush1.msra.mxu0 0.0
    %1348 = vmatprep.subr.mxu0 0.0
    %1349 = vmatpush1.msra.mxu0 0.0
    %1350 = vmatprep.subr.mxu0 0.0
    %1351 = vmatpush1.msra.mxu0 0.0
    %1352 = vmatprep.subr.mxu0 0.0
    %1353 = vmatpush1.msra.mxu0 0.0
    %1354 = vmatprep.subr.mxu0 0.0
    %1355 = vmatpush1.msra.mxu0 0.0
    %1356 = vmatprep.subr.mxu0 0.0
    %1357 = vmatpush1.msra.mxu0 0.0
    %1358 = vmatprep.subr.mxu0 0.0
    %1359 = vmatpush1.msra.mxu0 0.0
    %1360 = vmatprep.subr.mxu0 0.0
    %1361 = vmatpush1.msra.mxu0 0.0
    %1362 = vmatprep.subr.mxu0 0.0
    %1363 = vmatpush1.msra.mxu0 0.0
    %1364 = vmatprep.subr.mxu0 0.0
    %1365 = vmatpush1.msra.mxu0 0.0
    %1366 = vmatprep.subr.mxu0 0.0
    %1367 = vmatpush1.msra.mxu0 0.0
    %1368 = vmatprep.subr.mxu0 0.0
    %1369 = vmatpush1.msra.mxu0 0.0
    %1370 = vmatprep.subr.mxu0 0.0
    %1371 = vmatpush1.msra.mxu0 0.0
    %1372 = vmatprep.subr.mxu0 0.0
    %1373 = vmatpush1.msra.mxu0 0.0
    %1374 = vmatprep.subr.mxu0 0.0
    %1375 = vmatpush1.msra.mxu0 0.0
    %1376 = vmatprep.subr.mxu0 0.0
    %1377 = vmatpush1.msra.mxu0 0.0
    %1378 = vmatprep.mubr.f32.mxu0 0.0
    %1379 = vmatmul.mubr.f32.gmra.mrb[0].mxu0 %v262
    %v1380 = vpop.f32.mrb[0].mxu0
    %v1381 = vadd.f32 0.0, %v1380
    %v1382 = vpop.f32.mrb[0].mxu0
    %1383 = vmatprep.mubr.f32.mxu0 0.0
    %1384 = vmatmul.mubr.f32.gmra.mrb[0].mxu0 %v265
    %v1385 = vpop.f32.mrb[0].mxu0
    %v1386 = vadd.f32 0.0, %v1385
    %v1387 = vpop.f32.mrb[0].mxu0
    %1388 = vmatprep.mubr.f32.mxu0 0.0
    %1389 = vmatmul.mubr.f32.gmra.mrb[0].mxu0 %v268
    %v1390 = vpop.f32.mrb[0].mxu0
    %v1391 = vadd.f32 0.0, %v1390
    %v1392 = vpop.f32.mrb[0].mxu0
    %1393 = vmatprep.mubr.f32.mxu0 0.0
    %1394 = vmatmul.mubr.f32.gmra.mrb[0].mxu0 %v271
    %v1395 = vpop.f32.mrb[0].mxu0
    %v1396 = vadd.f32 0.0, %v1395
    %v1397 = vpop.f32.mrb[0].mxu0
    %1398 = vdwg.mxu0
    %v1399 = vadd.f32 %v1189, %v1381
    %v1400 = vadd.f32 %v1190, %v1386
    %v1401 = vadd.f32 %v1191, %v1391
    %v1402 = vadd.f32 %v1192, %v1396
    %v1403 = vxor.u32 %v1399, 2147483648
    %v1404 = vxor.u32 %v1400, 2147483648
    %v1405 = vxor.u32 %v1401, 2147483648
    %v1406 = vxor.u32 %v1402, 2147483648
    %v1407 = vmul.f32 %v1403, 1.442695
    %v1408 = vpow.pop %v1407
    %v1409 = vmul.f32 %v1404, 1.442695
    %v1410 = vpow.pop %v1409
    %v1411 = vmul.f32 %v1405, 1.442695
    %v1412 = vpow.pop %v1411
    %v1413 = vmul.f32 %v1406, 1.442695
    %v1414 = vpow.pop %v1413
    %v1415 = vadd.f32 %v1408, 1.0
    %v1416 = vadd.f32 %v1410, 1.0
    %v1417 = vadd.f32 %v1412, 1.0
    %v1418 = vadd.f32 %v1414, 1.0
    %v1419 = vrcp.pop %v1415
    %v1420 = vmul.f32 1.0, %v1419
    %v1421 = vrcp.pop %v1416
    %v1422 = vmul.f32 1.0, %v1421
    %v1423 = vrcp.pop %v1417
    %v1424 = vmul.f32 1.0, %v1423
    %v1425 = vrcp.pop %v1418
    %v1426 = vmul.f32 1.0, %v1425
    %1427 = vmatprep.subr.mxu0 0.0
    %1428 = vmatpush1.msra.mxu0 %v1181
    %1429 = vmatprep.subr.mxu0 0.0
    %1430 = vmatpush1.msra.mxu0 %v1182
    %1431 = vmatprep.subr.mxu0 0.0
    %1432 = vmatpush1.msra.mxu0 %v1183
    %1433 = vmatprep.subr.mxu0 0.0
    %1434 = vmatpush1.msra.mxu0 %v1184
    %1435 = vmatprep.subr.mxu0 0.0
    %1436 = vmatpush1.msra.mxu0 0.0
    %1437 = vmatprep.subr.mxu0 0.0
    %1438 = vmatpush1.msra.mxu0 0.0
    %1439 = vmatprep.subr.mxu0 0.0
    %1440 = vmatpush1.msra.mxu0 0.0
    %1441 = vmatprep.subr.mxu0 0.0
    %1442 = vmatpush1.msra.mxu0 0.0
    %1443 = vmatprep.subr.mxu0 0.0
    %1444 = vmatpush1.msra.mxu0 0.0
    %1445 = vmatprep.subr.mxu0 0.0
    %1446 = vmatpush1.msra.mxu0 0.0
    %1447 = vmatprep.subr.mxu0 0.0
    %1448 = vmatpush1.msra.mxu0 0.0
    %1449 = vmatprep.subr.mxu0 0.0
    %1450 = vmatpush1.msra.mxu0 0.0
    %1451 = vmatprep.subr.mxu0 0.0
    %1452 = vmatpush1.msra.mxu0 0.0
    %1453 = vmatprep.subr.mxu0 0.0
    %1454 = vmatpush1.msra.mxu0 0.0
    %1455 = vmatprep.subr.mxu0 0.0
    %1456 = vmatpush1.msra.mxu0 0.0
    %1457 = vmatprep.subr.mxu0 0.0
    %1458 = vmatpush1.msra.mxu0 0.0
    %1459 = vmatprep.subr.mxu0 0.0
    %1460 = vmatpush1.msra.mxu0 0.0
    %1461 = vmatprep.subr.mxu0 0.0
    %1462 = vmatpush1.msra.mxu0 0.0
    %1463 = vmatprep.subr.mxu0 0.0
    %1464 = vmatpush1.msra.mxu0 0.0
    %1465 = vmatprep.subr.mxu0 0.0
    %1466 = vmatpush1.msra.mxu0 0.0
    %1467 = vmatprep.subr.mxu0 0.0
    %1468 = vmatpush1.msra.mxu0 0.0
    %1469 = vmatprep.subr.mxu0 0.0
    %1470 = vmatpush1.msra.mxu0 0.0
    %1471 = vmatprep.subr.mxu0 0.0
    %1472 = vmatpush1.msra.mxu0 0.0
    %1473 = vmatprep.subr.mxu0 0.0
    %1474 = vmatpush1.msra.mxu0 0.0
    %1475 = vmatprep.subr.mxu0 0.0
    %1476 = vmatpush1.msra.mxu0 0.0
    %1477 = vmatprep.subr.mxu0 0.0
    %1478 = vmatpush1.msra.mxu0 0.0
    %1479 = vmatprep.subr.mxu0 0.0
    %1480 = vmatpush1.msra.mxu0 0.0
    %1481 = vmatprep.subr.mxu0 0.0
    %1482 = vmatpush1.msra.mxu0 0.0
    %1483 = vmatprep.subr.mxu0 0.0
    %1484 = vmatpush1.msra.mxu0 0.0
    %1485 = vmatprep.subr.mxu0 0.0
    %1486 = vmatpush1.msra.mxu0 0.0
    %1487 = vmatprep.subr.mxu0 0.0
    %1488 = vmatpush1.msra.mxu0 0.0
    %1489 = vmatprep.subr.mxu0 0.0
    %1490 = vmatpush1.msra.mxu0 0.0
    %1491 = vmatprep.mubr.f32.mxu0 0.0
    %1492 = vmatmul.mubr.f32.gmra.mrb[0].mxu0 %v387
    %v1493 = vpop.f32.mrb[0].mxu0
    %v1494 = vadd.f32 0.0, %v1493
    %v1495 = vpop.f32.mrb[0].mxu0
    %1496 = vmatprep.mubr.f32.mxu0 0.0
    %1497 = vmatmul.mubr.f32.gmra.mrb[0].mxu0 %v390
    %v1498 = vpop.f32.mrb[0].mxu0
    %v1499 = vadd.f32 0.0, %v1498
    %v1500 = vpop.f32.mrb[0].mxu0
    %1501 = vmatprep.mubr.f32.mxu0 0.0
    %1502 = vmatmul.mubr.f32.gmra.mrb[0].mxu0 %v393
    %v1503 = vpop.f32.mrb[0].mxu0
    %v1504 = vadd.f32 0.0, %v1503
    %v1505 = vpop.f32.mrb[0].mxu0
    %1506 = vmatprep.mubr.f32.mxu0 0.0
    %1507 = vmatmul.mubr.f32.gmra.mrb[0].mxu0 %v396
    %v1508 = vpop.f32.mrb[0].mxu0
    %v1509 = vadd.f32 0.0, %v1508
    %v1510 = vpop.f32.mrb[0].mxu0
    %1511 = vdwg.mxu0
    %v1512 = vadd.f32 %v1193, %v1494
    %v1513 = vadd.f32 %v1194, %v1499
    %v1514 = vadd.f32 %v1195, %v1504
    %v1515 = vadd.f32 %v1196, %v1509
    %v1516 = vtanh.pop %v1512
    %v1517 = vtanh.pop %v1513
    %v1518 = vtanh.pop %v1514
    %v1519 = vtanh.pop %v1515
    %1520 = vmatprep.subr.mxu0 0.0
    %1521 = vmatpush1.msra.mxu0 %v1181
    %1522 = vmatprep.subr.mxu0 0.0
    %1523 = vmatpush1.msra.mxu0 %v1182
    %1524 = vmatprep.subr.mxu0 0.0
    %1525 = vmatpush1.msra.mxu0 %v1183
    %1526 = vmatprep.subr.mxu0 0.0
    %1527 = vmatpush1.msra.mxu0 %v1184
    %1528 = vmatprep.subr.mxu0 0.0
    %1529 = vmatpush1.msra.mxu0 0.0
    %1530 = vmatprep.subr.mxu0 0.0
    %1531 = vmatpush1.msra.mxu0 0.0
    %1532 = vmatprep.subr.mxu0 0.0
    %1533 = vmatpush1.msra.mxu0 0.0
    %1534 = vmatprep.subr.mxu0 0.0
    %1535 = vmatpush1.msra.mxu0 0.0
    %1536 = vmatprep.subr.mxu0 0.0
    %1537 = vmatpush1.msra.mxu0 0.0
    %1538 = vmatprep.subr.mxu0 0.0
    %1539 = vmatpush1.msra.mxu0 0.0
    %1540 = vmatprep.subr.mxu0 0.0
    %1541 = vmatpush1.msra.mxu0 0.0
    %1542 = vmatprep.subr.mxu0 0.0
    %1543 = vmatpush1.msra.mxu0 0.0
    %1544 = vmatprep.subr.mxu0 0.0
    %1545 = vmatpush1.msra.mxu0 0.0
    %1546 = vmatprep.subr.mxu0 0.0
    %1547 = vmatpush1.msra.mxu0 0.0
    %1548 = vmatprep.subr.mxu0 0.0
    %1549 = vmatpush1.msra.mxu0 0.0
    %1550 = vmatprep.subr.mxu0 0.0
    %1551 = vmatpush1.msra.mxu0 0.0
    %1552 = vmatprep.subr.mxu0 0.0
    %1553 = vmatpush1.msra.mxu0 0.0
    %1554 = vmatprep.subr.mxu0 0.0
    %1555 = vmatpush1.msra.mxu0 0.0
    %1556 = vmatprep.subr.mxu0 0.0
    %1557 = vmatpush1.msra.mxu0 0.0
    %1558 = vmatprep.subr.mxu0 0.0
    %1559 = vmatpush1.msra.mxu0 0.0
    %1560 = vmatprep.subr.mxu0 0.0
    %1561 = vmatpush1.msra.mxu0 0.0
    %1562 = vmatprep.subr.mxu0 0.0
    %1563 = vmatpush1.msra.mxu0 0.0
    %1564 = vmatprep.subr.mxu0 0.0
    %1565 = vmatpush1.msra.mxu0 0.0
    %1566 = vmatprep.subr.mxu0 0.0
    %1567 = vmatpush1.msra.mxu0 0.0
    %1568 = vmatprep.subr.mxu0 0.0
    %1569 = vmatpush1.msra.mxu0 0.0
    %1570 = vmatprep.subr.mxu0 0.0
    %1571 = vmatpush1.msra.mxu0 0.0
    %1572 = vmatprep.subr.mxu0 0.0
    %1573 = vmatpush1.msra.mxu0 0.0
    %1574 = vmatprep.subr.mxu0 0.0
    %1575 = vmatpush1.msra.mxu0 0.0
    %1576 = vmatprep.subr.mxu0 0.0
    %1577 = vmatpush1.msra.mxu0 0.0
    %1578 = vmatprep.subr.mxu0 0.0
    %1579 = vmatpush1.msra.mxu0 0.0
    %1580 = vmatprep.subr.mxu0 0.0
    %1581 = vmatpush1.msra.mxu0 0.0
    %1582 = vmatprep.subr.mxu0 0.0
    %1583 = vmatpush1.msra.mxu0 0.0
    %1584 = vmatprep.mubr.f32.mxu0 0.0
    %1585 = vmatmul.mubr.f32.gmra.mrb[0].mxu0 %v492
    %v1586 = vpop.f32.mrb[0].mxu0
    %v1587 = vadd.f32 0.0, %v1586
    %v1588 = vpop.f32.mrb[0].mxu0
    %1589 = vmatprep.mubr.f32.mxu0 0.0
    %1590 = vmatmul.mubr.f32.gmra.mrb[0].mxu0 %v495
    %v1591 = vpop.f32.mrb[0].mxu0
    %v1592 = vadd.f32 0.0, %v1591
    %v1593 = vpop.f32.mrb[0].mxu0
    %1594 = vmatprep.mubr.f32.mxu0 0.0
    %1595 = vmatmul.mubr.f32.gmra.mrb[0].mxu0 %v498
    %v1596 = vpop.f32.mrb[0].mxu0
    %v1597 = vadd.f32 0.0, %v1596
    %v1598 = vpop.f32.mrb[0].mxu0
    %1599 = vmatprep.mubr.f32.mxu0 0.0
    %1600 = vmatmul.mubr.f32.gmra.mrb[0].mxu0 %v501
    %v1601 = vpop.f32.mrb[0].mxu0
    %v1602 = vadd.f32 0.0, %v1601
    %v1603 = vpop.f32.mrb[0].mxu0
    %1604 = vdwg.mxu0
    %v1605 = vadd.f32 %v1197, %v1587
    %v1606 = vadd.f32 %v1198, %v1592
    %v1607 = vadd.f32 %v1199, %v1597
    %v1608 = vadd.f32 %v1200, %v1602
    %v1609 = vxor.u32 %v1605, 2147483648
    %v1610 = vxor.u32 %v1606, 2147483648
    %v1611 = vxor.u32 %v1607, 2147483648
    %v1612 = vxor.u32 %v1608, 2147483648
    %v1613 = vmul.f32 %v1609, 1.442695
    %v1614 = vpow.pop %v1613
    %v1615 = vmul.f32 %v1610, 1.442695
    %v1616 = vpow.pop %v1615
    %v1617 = vmul.f32 %v1611, 1.442695
    %v1618 = vpow.pop %v1617
    %v1619 = vmul.f32 %v1612, 1.442695
    %v1620 = vpow.pop %v1619
    %v1621 = vadd.f32 %v1614, 1.0
    %v1622 = vadd.f32 %v1616, 1.0
    %v1623 = vadd.f32 %v1618, 1.0
    %v1624 = vadd.f32 %v1620, 1.0
    %v1625 = vrcp.pop %v1621
    %v1626 = vmul.f32 1.0, %v1625
    %v1627 = vrcp.pop %v1622
    %v1628 = vmul.f32 1.0, %v1627
    %v1629 = vrcp.pop %v1623
    %v1630 = vmul.f32 1.0, %v1629
    %v1631 = vrcp.pop %v1624
    %v1632 = vmul.f32 1.0, %v1631
    %v1633 = vmul.f32 %v1420, %v1173
    %v1634 = vmul.f32 %v1422, %v1174
    %v1635 = vmul.f32 %v1424, %v1175
    %v1636 = vmul.f32 %v1426, %v1176
    %v1637 = vmul.f32 %v1307, %v1516
    %v1638 = vmul.f32 %v1309, %v1517
    %v1639 = vmul.f32 %v1311, %v1518
    %v1640 = vmul.f32 %v1313, %v1519
    %v1641 = vadd.f32 %v1633, %v1637
    %v1642 = vadd.f32 %v1634, %v1638
    %v1643 = vadd.f32 %v1635, %v1639
    %v1644 = vadd.f32 %v1636, %v1640
    %v1645 = vtanh.pop %v1641
    %v1646 = vtanh.pop %v1642
    %v1647 = vtanh.pop %v1643
    %v1648 = vtanh.pop %v1644
    %v1649 = vmul.f32 %v1626, %v1645
    %v1650 = vmul.f32 %v1628, %v1646
    %v1651 = vmul.f32 %v1630, %v1647
    %v1652 = vmul.f32 %v1632, %v1648
    %s1653 = scalar_lea.vmem [#allocation2], 384
    %v1654 = vld [vmem:[%s1653] sm:$0xff]
    %v1655 = vld [vmem:[%s1653 + $0x8] sm:$0xff]
    %v1656 = vld [vmem:[%s1653 + $0x10] sm:$0xff]
    %v1657 = vld [vmem:[%s1653 + $0x18] sm:$0xff]
    %v1658 = vld [vmem:[%s1653 + $0x20] sm:$0xff]
    %v1659 = vld [vmem:[%s1653 + $0x28] sm:$0xff]
    %v1660 = vld [vmem:[%s1653 + $0x30] sm:$0xff]
    %v1661 = vld [vmem:[%s1653 + $0x38] sm:$0xff]
    %v1662 = vld [vmem:[%s1653 + $0x40] sm:$0xff]
    %v1663 = vld [vmem:[%s1653 + $0x48] sm:$0xff]
    %v1664 = vld [vmem:[%s1653 + $0x50] sm:$0xff]
    %v1665 = vld [vmem:[%s1653 + $0x58] sm:$0xff]
    %v1666 = vld [vmem:[%s1653 + $0x60] sm:$0xff]
    %v1667 = vld [vmem:[%s1653 + $0x68] sm:$0xff]
    %v1668 = vld [vmem:[%s1653 + $0x70] sm:$0xff]
    %v1669 = vld [vmem:[%s1653 + $0x78] sm:$0xff]
    %1670 = vmatprep.subr.mxu0 0.0
    %1671 = vmatpush1.msra.mxu0 %v1649
    %1672 = vmatprep.subr.mxu0 0.0
    %1673 = vmatpush1.msra.mxu0 %v1650
    %1674 = vmatprep.subr.mxu0 0.0
    %1675 = vmatpush1.msra.mxu0 %v1651
    %1676 = vmatprep.subr.mxu0 0.0
    %1677 = vmatpush1.msra.mxu0 %v1652
    %1678 = vmatprep.subr.mxu0 0.0
    %1679 = vmatpush1.msra.mxu0 0.0
    %1680 = vmatprep.subr.mxu0 0.0
    %1681 = vmatpush1.msra.mxu0 0.0
    %1682 = vmatprep.subr.mxu0 0.0
    %1683 = vmatpush1.msra.mxu0 0.0
    %1684 = vmatprep.subr.mxu0 0.0
    %1685 = vmatpush1.msra.mxu0 0.0
    %1686 = vmatprep.subr.mxu0 0.0
    %1687 = vmatpush1.msra.mxu0 0.0
    %1688 = vmatprep.subr.mxu0 0.0
    %1689 = vmatpush1.msra.mxu0 0.0
    %1690 = vmatprep.subr.mxu0 0.0
    %1691 = vmatpush1.msra.mxu0 0.0
    %1692 = vmatprep.subr.mxu0 0.0
    %1693 = vmatpush1.msra.mxu0 0.0
    %1694 = vmatprep.subr.mxu0 0.0
    %1695 = vmatpush1.msra.mxu0 0.0
    %1696 = vmatprep.subr.mxu0 0.0
    %1697 = vmatpush1.msra.mxu0 0.0
    %1698 = vmatprep.subr.mxu0 0.0
    %1699 = vmatpush1.msra.mxu0 0.0
    %1700 = vmatprep.subr.mxu0 0.0
    %1701 = vmatpush1.msra.mxu0 0.0
    %1702 = vmatprep.subr.mxu0 0.0
    %1703 = vmatpush1.msra.mxu0 0.0
    %1704 = vmatprep.subr.mxu0 0.0
    %1705 = vmatpush1.msra.mxu0 0.0
    %1706 = vmatprep.subr.mxu0 0.0
    %1707 = vmatpush1.msra.mxu0 0.0
    %1708 = vmatprep.subr.mxu0 0.0
    %1709 = vmatpush1.msra.mxu0 0.0
    %1710 = vmatprep.subr.mxu0 0.0
    %1711 = vmatpush1.msra.mxu0 0.0
    %1712 = vmatprep.subr.mxu0 0.0
    %1713 = vmatpush1.msra.mxu0 0.0
    %1714 = vmatprep.subr.mxu0 0.0
    %1715 = vmatpush1.msra.mxu0 0.0
    %1716 = vmatprep.subr.mxu0 0.0
    %1717 = vmatpush1.msra.mxu0 0.0
    %1718 = vmatprep.subr.mxu0 0.0
    %1719 = vmatpush1.msra.mxu0 0.0
    %1720 = vmatprep.subr.mxu0 0.0
    %1721 = vmatpush1.msra.mxu0 0.0
    %1722 = vmatprep.subr.mxu0 0.0
    %1723 = vmatpush1.msra.mxu0 0.0
    %1724 = vmatprep.subr.mxu0 0.0
    %1725 = vmatpush1.msra.mxu0 0.0
    %1726 = vmatprep.subr.mxu0 0.0
    %1727 = vmatpush1.msra.mxu0 0.0
    %1728 = vmatprep.subr.mxu0 0.0
    %1729 = vmatpush1.msra.mxu0 0.0
    %1730 = vmatprep.subr.mxu0 0.0
    %1731 = vmatpush1.msra.mxu0 0.0
    %1732 = vmatprep.subr.mxu0 0.0
    %1733 = vmatpush1.msra.mxu0 0.0
    %1734 = vmatprep.mubr.f32.mxu0 0.0
    %1735 = vmatmul.mubr.f32.gmra.mrb[0].mxu0 %v137
    %v1736 = vpop.f32.mrb[0].mxu0
    %v1737 = vadd.f32 0.0, %v1736
    %v1738 = vpop.f32.mrb[0].mxu0
    %1739 = vmatprep.mubr.f32.mxu0 0.0
    %1740 = vmatmul.mubr.f32.gmra.mrb[0].mxu0 %v140
    %v1741 = vpop.f32.mrb[0].mxu0
    %v1742 = vadd.f32 0.0, %v1741
    %v1743 = vpop.f32.mrb[0].mxu0
    %1744 = vmatprep.mubr.f32.mxu0 0.0
    %1745 = vmatmul.mubr.f32.gmra.mrb[0].mxu0 %v143
    %v1746 = vpop.f32.mrb[0].mxu0
    %v1747 = vadd.f32 0.0, %v1746
    %v1748 = vpop.f32.mrb[0].mxu0
    %1749 = vmatprep.mubr.f32.mxu0 0.0
    %1750 = vmatmul.mubr.f32.gmra.mrb[0].mxu0 %v146
    %v1751 = vpop.f32.mrb[0].mxu0
    %v1752 = vadd.f32 0.0, %v1751
    %v1753 = vpop.f32.mrb[0].mxu0
    %1754 = vdwg.mxu0
    %v1755 = vadd.f32 %v1654, %v1737
    %v1756 = vadd.f32 %v1655, %v1742
    %v1757 = vadd.f32 %v1656, %v1747
    %v1758 = vadd.f32 %v1657, %v1752
    %v1759 = vxor.u32 %v1755, 2147483648
    %v1760 = vxor.u32 %v1756, 2147483648
    %v1761 = vxor.u32 %v1757, 2147483648
    %v1762 = vxor.u32 %v1758, 2147483648
    %v1763 = vmul.f32 %v1759, 1.442695
    %v1764 = vpow.pop %v1763
    %v1765 = vmul.f32 %v1760, 1.442695
    %v1766 = vpow.pop %v1765
    %v1767 = vmul.f32 %v1761, 1.442695
    %v1768 = vpow.pop %v1767
    %v1769 = vmul.f32 %v1762, 1.442695
    %v1770 = vpow.pop %v1769
    %v1771 = vadd.f32 %v1764, 1.0
    %v1772 = vadd.f32 %v1766, 1.0
    %v1773 = vadd.f32 %v1768, 1.0
    %v1774 = vadd.f32 %v1770, 1.0
    %v1775 = vrcp.pop %v1771
    %v1776 = vmul.f32 1.0, %v1775
    %v1777 = vrcp.pop %v1772
    %v1778 = vmul.f32 1.0, %v1777
    %v1779 = vrcp.pop %v1773
    %v1780 = vmul.f32 1.0, %v1779
    %v1781 = vrcp.pop %v1774
    %v1782 = vmul.f32 1.0, %v1781
    %1783 = vmatprep.subr.mxu0 0.0
    %1784 = vmatpush1.msra.mxu0 %v1649
    %1785 = vmatprep.subr.mxu0 0.0
    %1786 = vmatpush1.msra.mxu0 %v1650
    %1787 = vmatprep.subr.mxu0 0.0
    %1788 = vmatpush1.msra.mxu0 %v1651
    %1789 = vmatprep.subr.mxu0 0.0
    %1790 = vmatpush1.msra.mxu0 %v1652
    %1791 = vmatprep.subr.mxu0 0.0
    %1792 = vmatpush1.msra.mxu0 0.0
    %1793 = vmatprep.subr.mxu0 0.0
    %1794 = vmatpush1.msra.mxu0 0.0
    %1795 = vmatprep.subr.mxu0 0.0
    %1796 = vmatpush1.msra.mxu0 0.0
    %1797 = vmatprep.subr.mxu0 0.0
    %1798 = vmatpush1.msra.mxu0 0.0
    %1799 = vmatprep.subr.mxu0 0.0
    %1800 = vmatpush1.msra.mxu0 0.0
    %1801 = vmatprep.subr.mxu0 0.0
    %1802 = vmatpush1.msra.mxu0 0.0
    %1803 = vmatprep.subr.mxu0 0.0
    %1804 = vmatpush1.msra.mxu0 0.0
    %1805 = vmatprep.subr.mxu0 0.0
    %1806 = vmatpush1.msra.mxu0 0.0
    %1807 = vmatprep.subr.mxu0 0.0
    %1808 = vmatpush1.msra.mxu0 0.0
    %1809 = vmatprep.subr.mxu0 0.0
    %1810 = vmatpush1.msra.mxu0 0.0
    %1811 = vmatprep.subr.mxu0 0.0
    %1812 = vmatpush1.msra.mxu0 0.0
    %1813 = vmatprep.subr.mxu0 0.0
    %1814 = vmatpush1.msra.mxu0 0.0
    %1815 = vmatprep.subr.mxu0 0.0
    %1816 = vmatpush1.msra.mxu0 0.0
    %1817 = vmatprep.subr.mxu0 0.0
    %1818 = vmatpush1.msra.mxu0 0.0
    %1819 = vmatprep.subr.mxu0 0.0
    %1820 = vmatpush1.msra.mxu0 0.0
    %1821 = vmatprep.subr.mxu0 0.0
    %1822 = vmatpush1.msra.mxu0 0.0
    %1823 = vmatprep.subr.mxu0 0.0
    %1824 = vmatpush1.msra.mxu0 0.0
    %1825 = vmatprep.subr.mxu0 0.0
    %1826 = vmatpush1.msra.mxu0 0.0
    %1827 = vmatprep.subr.mxu0 0.0
    %1828 = vmatpush1.msra.mxu0 0.0
    %1829 = vmatprep.subr.mxu0 0.0
    %1830 = vmatpush1.msra.mxu0 0.0
    %1831 = vmatprep.subr.mxu0 0.0
    %1832 = vmatpush1.msra.mxu0 0.0
    %1833 = vmatprep.subr.mxu0 0.0
    %1834 = vmatpush1.msra.mxu0 0.0
    %1835 = vmatprep.subr.mxu0 0.0
    %1836 = vmatpush1.msra.mxu0 0.0
    %1837 = vmatprep.subr.mxu0 0.0
    %1838 = vmatpush1.msra.mxu0 0.0
    %1839 = vmatprep.subr.mxu0 0.0
    %1840 = vmatpush1.msra.mxu0 0.0
    %1841 = vmatprep.subr.mxu0 0.0
    %1842 = vmatpush1.msra.mxu0 0.0
    %1843 = vmatprep.subr.mxu0 0.0
    %1844 = vmatpush1.msra.mxu0 0.0
    %1845 = vmatprep.subr.mxu0 0.0
    %1846 = vmatpush1.msra.mxu0 0.0
    %1847 = vmatprep.mubr.f32.mxu0 0.0
    %1848 = vmatmul.mubr.f32.gmra.mrb[0].mxu0 %v262
    %v1849 = vpop.f32.mrb[0].mxu0
    %v1850 = vadd.f32 0.0, %v1849
    %v1851 = vpop.f32.mrb[0].mxu0
    %1852 = vmatprep.mubr.f32.mxu0 0.0
    %1853 = vmatmul.mubr.f32.gmra.mrb[0].mxu0 %v265
    %v1854 = vpop.f32.mrb[0].mxu0
    %v1855 = vadd.f32 0.0, %v1854
    %v1856 = vpop.f32.mrb[0].mxu0
    %1857 = vmatprep.mubr.f32.mxu0 0.0
    %1858 = vmatmul.mubr.f32.gmra.mrb[0].mxu0 %v268
    %v1859 = vpop.f32.mrb[0].mxu0
    %v1860 = vadd.f32 0.0, %v1859
    %v1861 = vpop.f32.mrb[0].mxu0
    %1862 = vmatprep.mubr.f32.mxu0 0.0
    %1863 = vmatmul.mubr.f32.gmra.mrb[0].mxu0 %v271
    %v1864 = vpop.f32.mrb[0].mxu0
    %v1865 = vadd.f32 0.0, %v1864
    %v1866 = vpop.f32.mrb[0].mxu0
    %1867 = vdwg.mxu0
    %v1868 = vadd.f32 %v1658, %v1850
    %v1869 = vadd.f32 %v1659, %v1855
    %v1870 = vadd.f32 %v1660, %v1860
    %v1871 = vadd.f32 %v1661, %v1865
    %v1872 = vxor.u32 %v1868, 2147483648
    %v1873 = vxor.u32 %v1869, 2147483648
    %v1874 = vxor.u32 %v1870, 2147483648
    %v1875 = vxor.u32 %v1871, 2147483648
    %v1876 = vmul.f32 %v1872, 1.442695
    %v1877 = vpow.pop %v1876
    %v1878 = vmul.f32 %v1873, 1.442695
    %v1879 = vpow.pop %v1878
    %v1880 = vmul.f32 %v1874, 1.442695
    %v1881 = vpow.pop %v1880
    %v1882 = vmul.f32 %v1875, 1.442695
    %v1883 = vpow.pop %v1882
    %v1884 = vadd.f32 %v1877, 1.0
    %v1885 = vadd.f32 %v1879, 1.0
    %v1886 = vadd.f32 %v1881, 1.0
    %v1887 = vadd.f32 %v1883, 1.0
    %v1888 = vrcp.pop %v1884
    %v1889 = vmul.f32 1.0, %v1888
    %v1890 = vrcp.pop %v1885
    %v1891 = vmul.f32 1.0, %v1890
    %v1892 = vrcp.pop %v1886
    %v1893 = vmul.f32 1.0, %v1892
    %v1894 = vrcp.pop %v1887
    %v1895 = vmul.f32 1.0, %v1894
    %1896 = vmatprep.subr.mxu0 0.0
    %1897 = vmatpush1.msra.mxu0 %v1649
    %1898 = vmatprep.subr.mxu0 0.0
    %1899 = vmatpush1.msra.mxu0 %v1650
    %1900 = vmatprep.subr.mxu0 0.0
    %1901 = vmatpush1.msra.mxu0 %v1651
    %1902 = vmatprep.subr.mxu0 0.0
    %1903 = vmatpush1.msra.mxu0 %v1652
    %1904 = vmatprep.subr.mxu0 0.0
    %1905 = vmatpush1.msra.mxu0 0.0
    %1906 = vmatprep.subr.mxu0 0.0
    %1907 = vmatpush1.msra.mxu0 0.0
    %1908 = vmatprep.subr.mxu0 0.0
    %1909 = vmatpush1.msra.mxu0 0.0
    %1910 = vmatprep.subr.mxu0 0.0
    %1911 = vmatpush1.msra.mxu0 0.0
    %1912 = vmatprep.subr.mxu0 0.0
    %1913 = vmatpush1.msra.mxu0 0.0
    %1914 = vmatprep.subr.mxu0 0.0
    %1915 = vmatpush1.msra.mxu0 0.0
    %1916 = vmatprep.subr.mxu0 0.0
    %1917 = vmatpush1.msra.mxu0 0.0
    %1918 = vmatprep.subr.mxu0 0.0
    %1919 = vmatpush1.msra.mxu0 0.0
    %1920 = vmatprep.subr.mxu0 0.0
    %1921 = vmatpush1.msra.mxu0 0.0
    %1922 = vmatprep.subr.mxu0 0.0
    %1923 = vmatpush1.msra.mxu0 0.0
    %1924 = vmatprep.subr.mxu0 0.0
    %1925 = vmatpush1.msra.mxu0 0.0
    %1926 = vmatprep.subr.mxu0 0.0
    %1927 = vmatpush1.msra.mxu0 0.0
    %1928 = vmatprep.subr.mxu0 0.0
    %1929 = vmatpush1.msra.mxu0 0.0
    %1930 = vmatprep.subr.mxu0 0.0
    %1931 = vmatpush1.msra.mxu0 0.0
    %1932 = vmatprep.subr.mxu0 0.0
    %1933 = vmatpush1.msra.mxu0 0.0
    %1934 = vmatprep.subr.mxu0 0.0
    %1935 = vmatpush1.msra.mxu0 0.0
    %1936 = vmatprep.subr.mxu0 0.0
    %1937 = vmatpush1.msra.mxu0 0.0
    %1938 = vmatprep.subr.mxu0 0.0
    %1939 = vmatpush1.msra.mxu0 0.0
    %1940 = vmatprep.subr.mxu0 0.0
    %1941 = vmatpush1.msra.mxu0 0.0
    %1942 = vmatprep.subr.mxu0 0.0
    %1943 = vmatpush1.msra.mxu0 0.0
    %1944 = vmatprep.subr.mxu0 0.0
    %1945 = vmatpush1.msra.mxu0 0.0
    %1946 = vmatprep.subr.mxu0 0.0
    %1947 = vmatpush1.msra.mxu0 0.0
    %1948 = vmatprep.subr.mxu0 0.0
    %1949 = vmatpush1.msra.mxu0 0.0
    %1950 = vmatprep.subr.mxu0 0.0
    %1951 = vmatpush1.msra.mxu0 0.0
    %1952 = vmatprep.subr.mxu0 0.0
    %1953 = vmatpush1.msra.mxu0 0.0
    %1954 = vmatprep.subr.mxu0 0.0
    %1955 = vmatpush1.msra.mxu0 0.0
    %1956 = vmatprep.subr.mxu0 0.0
    %1957 = vmatpush1.msra.mxu0 0.0
    %1958 = vmatprep.subr.mxu0 0.0
    %1959 = vmatpush1.msra.mxu0 0.0
    %1960 = vmatprep.mubr.f32.mxu0 0.0
    %1961 = vmatmul.mubr.f32.gmra.mrb[0].mxu0 %v387
    %v1962 = vpop.f32.mrb[0].mxu0
    %v1963 = vadd.f32 0.0, %v1962
    %v1964 = vpop.f32.mrb[0].mxu0
    %1965 = vmatprep.mubr.f32.mxu0 0.0
    %1966 = vmatmul.mubr.f32.gmra.mrb[0].mxu0 %v390
    %v1967 = vpop.f32.mrb[0].mxu0
    %v1968 = vadd.f32 0.0, %v1967
    %v1969 = vpop.f32.mrb[0].mxu0
    %1970 = vmatprep.mubr.f32.mxu0 0.0
    %1971 = vmatmul.mubr.f32.gmra.mrb[0].mxu0 %v393
    %v1972 = vpop.f32.mrb[0].mxu0
    %v1973 = vadd.f32 0.0, %v1972
    %v1974 = vpop.f32.mrb[0].mxu0
    %1975 = vmatprep.mubr.f32.mxu0 0.0
    %1976 = vmatmul.mubr.f32.gmra.mrb[0].mxu0 %v396
    %v1977 = vpop.f32.mrb[0].mxu0
    %v1978 = vadd.f32 0.0, %v1977
    %v1979 = vpop.f32.mrb[0].mxu0
    %1980 = vdwg.mxu0
    %v1981 = vadd.f32 %v1662, %v1963
    %v1982 = vadd.f32 %v1663, %v1968
    %v1983 = vadd.f32 %v1664, %v1973
    %v1984 = vadd.f32 %v1665, %v1978
    %v1985 = vtanh.pop %v1981
    %v1986 = vtanh.pop %v1982
    %v1987 = vtanh.pop %v1983
    %v1988 = vtanh.pop %v1984
    %1989 = vmatprep.subr.mxu0 0.0
    %1990 = vmatpush1.msra.mxu0 %v1649
    %1991 = vmatprep.subr.mxu0 0.0
    %1992 = vmatpush1.msra.mxu0 %v1650
    %1993 = vmatprep.subr.mxu0 0.0
    %1994 = vmatpush1.msra.mxu0 %v1651
    %1995 = vmatprep.subr.mxu0 0.0
    %1996 = vmatpush1.msra.mxu0 %v1652
    %1997 = vmatprep.subr.mxu0 0.0
    %1998 = vmatpush1.msra.mxu0 0.0
    %1999 = vmatprep.subr.mxu0 0.0
    %2000 = vmatpush1.msra.mxu0 0.0
    %2001 = vmatprep.subr.mxu0 0.0
    %2002 = vmatpush1.msra.mxu0 0.0
    %2003 = vmatprep.subr.mxu0 0.0
    %2004 = vmatpush1.msra.mxu0 0.0
    %2005 = vmatprep.subr.mxu0 0.0
    %2006 = vmatpush1.msra.mxu0 0.0
    %2007 = vmatprep.subr.mxu0 0.0
    %2008 = vmatpush1.msra.mxu0 0.0
    %2009 = vmatprep.subr.mxu0 0.0
    %2010 = vmatpush1.msra.mxu0 0.0
    %2011 = vmatprep.subr.mxu0 0.0
    %2012 = vmatpush1.msra.mxu0 0.0
    %2013 = vmatprep.subr.mxu0 0.0
    %2014 = vmatpush1.msra.mxu0 0.0
    %2015 = vmatprep.subr.mxu0 0.0
    %2016 = vmatpush1.msra.mxu0 0.0
    %2017 = vmatprep.subr.mxu0 0.0
    %2018 = vmatpush1.msra.mxu0 0.0
    %2019 = vmatprep.subr.mxu0 0.0
    %2020 = vmatpush1.msra.mxu0 0.0
    %2021 = vmatprep.subr.mxu0 0.0
    %2022 = vmatpush1.msra.mxu0 0.0
    %2023 = vmatprep.subr.mxu0 0.0
    %2024 = vmatpush1.msra.mxu0 0.0
    %2025 = vmatprep.subr.mxu0 0.0
    %2026 = vmatpush1.msra.mxu0 0.0
    %2027 = vmatprep.subr.mxu0 0.0
    %2028 = vmatpush1.msra.mxu0 0.0
    %2029 = vmatprep.subr.mxu0 0.0
    %2030 = vmatpush1.msra.mxu0 0.0
    %2031 = vmatprep.subr.mxu0 0.0
    %2032 = vmatpush1.msra.mxu0 0.0
    %2033 = vmatprep.subr.mxu0 0.0
    %2034 = vmatpush1.msra.mxu0 0.0
    %2035 = vmatprep.subr.mxu0 0.0
    %2036 = vmatpush1.msra.mxu0 0.0
    %2037 = vmatprep.subr.mxu0 0.0
    %2038 = vmatpush1.msra.mxu0 0.0
    %2039 = vmatprep.subr.mxu0 0.0
    %2040 = vmatpush1.msra.mxu0 0.0
    %2041 = vmatprep.subr.mxu0 0.0
    %2042 = vmatpush1.msra.mxu0 0.0
    %2043 = vmatprep.subr.mxu0 0.0
    %2044 = vmatpush1.msra.mxu0 0.0
    %2045 = vmatprep.subr.mxu0 0.0
    %2046 = vmatpush1.msra.mxu0 0.0
    %2047 = vmatprep.subr.mxu0 0.0
    %2048 = vmatpush1.msra.mxu0 0.0
    %2049 = vmatprep.subr.mxu0 0.0
    %2050 = vmatpush1.msra.mxu0 0.0
    %2051 = vmatprep.subr.mxu0 0.0
    %2052 = vmatpush1.msra.mxu0 0.0
    %2053 = vmatprep.mubr.f32.mxu0 0.0
    %2054 = vmatmul.mubr.f32.gmra.mrb[0].mxu0 %v492
    %v2055 = vpop.f32.mrb[0].mxu0
    %v2056 = vadd.f32 0.0, %v2055
    %v2057 = vpop.f32.mrb[0].mxu0
    %2058 = vmatprep.mubr.f32.mxu0 0.0
    %2059 = vmatmul.mubr.f32.gmra.mrb[0].mxu0 %v495
    %v2060 = vpop.f32.mrb[0].mxu0
    %v2061 = vadd.f32 0.0, %v2060
    %v2062 = vpop.f32.mrb[0].mxu0
    %2063 = vmatprep.mubr.f32.mxu0 0.0
    %2064 = vmatmul.mubr.f32.gmra.mrb[0].mxu0 %v498
    %v2065 = vpop.f32.mrb[0].mxu0
    %v2066 = vadd.f32 0.0, %v2065
    %v2067 = vpop.f32.mrb[0].mxu0
    %2068 = vmatprep.mubr.f32.mxu0 0.0
    %2069 = vmatmul.mubr.f32.gmra.mrb[0].mxu0 %v501
    %v2070 = vpop.f32.mrb[0].mxu0
    %v2071 = vadd.f32 0.0, %v2070
    %v2072 = vpop.f32.mrb[0].mxu0
    %2073 = vdwg.mxu0
    %v2074 = vadd.f32 %v1666, %v2056
    %v2075 = vadd.f32 %v1667, %v2061
    %v2076 = vadd.f32 %v1668, %v2066
    %v2077 = vadd.f32 %v1669, %v2071
    %v2078 = vxor.u32 %v2074, 2147483648
    %v2079 = vxor.u32 %v2075, 2147483648
    %v2080 = vxor.u32 %v2076, 2147483648
    %v2081 = vxor.u32 %v2077, 2147483648
    %v2082 = vmul.f32 %v2078, 1.442695
    %v2083 = vpow.pop %v2082
    %v2084 = vmul.f32 %v2079, 1.442695
    %v2085 = vpow.pop %v2084
    %v2086 = vmul.f32 %v2080, 1.442695
    %v2087 = vpow.pop %v2086
    %v2088 = vmul.f32 %v2081, 1.442695
    %v2089 = vpow.pop %v2088
    %v2090 = vadd.f32 %v2083, 1.0
    %v2091 = vadd.f32 %v2085, 1.0
    %v2092 = vadd.f32 %v2087, 1.0
    %v2093 = vadd.f32 %v2089, 1.0
    %v2094 = vrcp.pop %v2090
    %v2095 = vmul.f32 1.0, %v2094
    %v2096 = vrcp.pop %v2091
    %v2097 = vmul.f32 1.0, %v2096
    %v2098 = vrcp.pop %v2092
    %v2099 = vmul.f32 1.0, %v2098
    %v2100 = vrcp.pop %v2093
    %v2101 = vmul.f32 1.0, %v2100
    %v2102 = vmul.f32 %v1889, %v1641
    %v2103 = vmul.f32 %v1891, %v1642
    %v2104 = vmul.f32 %v1893, %v1643
    %v2105 = vmul.f32 %v1895, %v1644
    %v2106 = vmul.f32 %v1776, %v1985
    %v2107 = vmul.f32 %v1778, %v1986
    %v2108 = vmul.f32 %v1780, %v1987
    %v2109 = vmul.f32 %v1782, %v1988
    %v2110 = vadd.f32 %v2102, %v2106
    %v2111 = vadd.f32 %v2103, %v2107
    %v2112 = vadd.f32 %v2104, %v2108
    %v2113 = vadd.f32 %v2105, %v2109
    %v2114 = vtanh.pop %v2110
    %v2115 = vtanh.pop %v2111
    %v2116 = vtanh.pop %v2112
    %v2117 = vtanh.pop %v2113
    %v2118 = vmul.f32 %v2095, %v2114
    %v2119 = vmul.f32 %v2097, %v2115
    %v2120 = vmul.f32 %v2099, %v2116
    %v2121 = vmul.f32 %v2101, %v2117
    %s2122 = scalar_lea.vmem [#allocation5], 32
    %2123 = vst [vmem:[%s2122] sm:$0xff] %v2118
    %2124 = vst [vmem:[%s2122 + $0x8] sm:$0xff] %v2119
    %2125 = vst [vmem:[%s2122 + $0x10] sm:$0xff] %v2120
    %2126 = vst [vmem:[%s2122 + $0x18] sm:$0xff] %v2121
    %v2127 = vld [vmem:[%s636] sm:$0xff]
    %v2128 = vld [vmem:[%s636 + $0x8] sm:$0xff]
    %v2129 = vld [vmem:[%s636 + $0x10] sm:$0xff]
    %v2130 = vld [vmem:[%s636 + $0x18] sm:$0xff]
    %v2131 = vld [vmem:[%s636 + $0x40] sm:$0xff]
    %v2132 = vld [vmem:[%s636 + $0x48] sm:$0xff]
    %v2133 = vld [vmem:[%s636 + $0x50] sm:$0xff]
    %v2134 = vld [vmem:[%s636 + $0x58] sm:$0xff]
    %v2135 = vld [vmem:[%s636 + $0x60] sm:$0xff]
    %v2136 = vld [vmem:[%s636 + $0x68] sm:$0xff]
    %v2137 = vld [vmem:[%s636 + $0x70] sm:$0xff]
    %v2138 = vld [vmem:[%s636 + $0x78] sm:$0xff]
    %v2139 = vxor.u32 %v2127, 2147483648
    %v2140 = vxor.u32 %v2128, 2147483648
    %v2141 = vxor.u32 %v2129, 2147483648
    %v2142 = vxor.u32 %v2130, 2147483648
    %v2143 = vmul.f32 %v2139, 1.442695
    %v2144 = vpow.pop %v2143
    %v2145 = vmul.f32 %v2140, 1.442695
    %v2146 = vpow.pop %v2145
    %v2147 = vmul.f32 %v2141, 1.442695
    %v2148 = vpow.pop %v2147
    %v2149 = vmul.f32 %v2142, 1.442695
    %v2150 = vpow.pop %v2149
    %v2151 = vadd.f32 %v2144, 1.0
    %v2152 = vadd.f32 %v2146, 1.0
    %v2153 = vadd.f32 %v2148, 1.0
    %v2154 = vadd.f32 %v2150, 1.0
    %v2155 = vrcp.pop %v2151
    %v2156 = vmul.f32 1.0, %v2155
    %v2157 = vrcp.pop %v2152
    %v2158 = vmul.f32 1.0, %v2157
    %v2159 = vrcp.pop %v2153
    %v2160 = vmul.f32 1.0, %v2159
    %v2161 = vrcp.pop %v2154
    %v2162 = vmul.f32 1.0, %v2161
    %v2163 = vtanh.pop %v2131
    %v2164 = vtanh.pop %v2132
    %v2165 = vtanh.pop %v2133
    %v2166 = vtanh.pop %v2134
    %v2167 = vxor.u32 %v2135, 2147483648
    %v2168 = vxor.u32 %v2136, 2147483648
    %v2169 = vxor.u32 %v2137, 2147483648
    %v2170 = vxor.u32 %v2138, 2147483648
    %v2171 = vmul.f32 %v2167, 1.442695
    %v2172 = vpow.pop %v2171
    %v2173 = vmul.f32 %v2168, 1.442695
    %v2174 = vpow.pop %v2173
    %v2175 = vmul.f32 %v2169, 1.442695
    %v2176 = vpow.pop %v2175
    %v2177 = vmul.f32 %v2170, 1.442695
    %v2178 = vpow.pop %v2177
    %v2179 = vadd.f32 %v2172, 1.0
    %v2180 = vadd.f32 %v2174, 1.0
    %v2181 = vadd.f32 %v2176, 1.0
    %v2182 = vadd.f32 %v2178, 1.0
    %v2183 = vrcp.pop %v2179
    %v2184 = vmul.f32 1.0, %v2183
    %v2185 = vrcp.pop %v2180
    %v2186 = vmul.f32 1.0, %v2185
    %v2187 = vrcp.pop %v2181
    %v2188 = vmul.f32 1.0, %v2187
    %v2189 = vrcp.pop %v2182
    %v2190 = vmul.f32 1.0, %v2189
    %v2191 = vmul.f32 %v2156, %v2163
    %v2192 = vmul.f32 %v2158, %v2164
    %v2193 = vmul.f32 %v2160, %v2165
    %v2194 = vmul.f32 %v2162, %v2166
    %v2195 = vtanh.pop %v2191
    %v2196 = vtanh.pop %v2192
    %v2197 = vtanh.pop %v2193
    %v2198 = vtanh.pop %v2194
    %v2199 = vmul.f32 %v2184, %v2195
    %v2200 = vmul.f32 %v2186, %v2196
    %v2201 = vmul.f32 %v2188, %v2197
    %v2202 = vmul.f32 %v2190, %v2198
    %v2203 = vld [vmem:[%s1653] sm:$0xff]
    %v2204 = vld [vmem:[%s1653 + $0x8] sm:$0xff]
    %v2205 = vld [vmem:[%s1653 + $0x10] sm:$0xff]
    %v2206 = vld [vmem:[%s1653 + $0x18] sm:$0xff]
    %v2207 = vld [vmem:[%s1653 + $0x20] sm:$0xff]
    %v2208 = vld [vmem:[%s1653 + $0x28] sm:$0xff]
    %v2209 = vld [vmem:[%s1653 + $0x30] sm:$0xff]
    %v2210 = vld [vmem:[%s1653 + $0x38] sm:$0xff]
    %v2211 = vld [vmem:[%s1653 + $0x40] sm:$0xff]
    %v2212 = vld [vmem:[%s1653 + $0x48] sm:$0xff]
    %v2213 = vld [vmem:[%s1653 + $0x50] sm:$0xff]
    %v2214 = vld [vmem:[%s1653 + $0x58] sm:$0xff]
    %v2215 = vld [vmem:[%s1653 + $0x60] sm:$0xff]
    %v2216 = vld [vmem:[%s1653 + $0x68] sm:$0xff]
    %v2217 = vld [vmem:[%s1653 + $0x70] sm:$0xff]
    %v2218 = vld [vmem:[%s1653 + $0x78] sm:$0xff]
    %2219 = vmatprep.subr.mxu0 0.0
    %2220 = vmatpush1.msra.mxu0 %v2199
    %2221 = vmatprep.subr.mxu0 0.0
    %2222 = vmatpush1.msra.mxu0 %v2200
    %2223 = vmatprep.subr.mxu0 0.0
    %2224 = vmatpush1.msra.mxu0 %v2201
    %2225 = vmatprep.subr.mxu0 0.0
    %2226 = vmatpush1.msra.mxu0 %v2202
    %2227 = vmatprep.subr.mxu0 0.0
    %2228 = vmatpush1.msra.mxu0 0.0
    %2229 = vmatprep.subr.mxu0 0.0
    %2230 = vmatpush1.msra.mxu0 0.0
    %2231 = vmatprep.subr.mxu0 0.0
    %2232 = vmatpush1.msra.mxu0 0.0
    %2233 = vmatprep.subr.mxu0 0.0
    %2234 = vmatpush1.msra.mxu0 0.0
    %2235 = vmatprep.subr.mxu0 0.0
    %2236 = vmatpush1.msra.mxu0 0.0
    %2237 = vmatprep.subr.mxu0 0.0
    %2238 = vmatpush1.msra.mxu0 0.0
    %2239 = vmatprep.subr.mxu0 0.0
    %2240 = vmatpush1.msra.mxu0 0.0
    %2241 = vmatprep.subr.mxu0 0.0
    %2242 = vmatpush1.msra.mxu0 0.0
    %2243 = vmatprep.subr.mxu0 0.0
    %2244 = vmatpush1.msra.mxu0 0.0
    %2245 = vmatprep.subr.mxu0 0.0
    %2246 = vmatpush1.msra.mxu0 0.0
    %2247 = vmatprep.subr.mxu0 0.0
    %2248 = vmatpush1.msra.mxu0 0.0
    %2249 = vmatprep.subr.mxu0 0.0
    %2250 = vmatpush1.msra.mxu0 0.0
    %2251 = vmatprep.subr.mxu0 0.0
    %2252 = vmatpush1.msra.mxu0 0.0
    %2253 = vmatprep.subr.mxu0 0.0
    %2254 = vmatpush1.msra.mxu0 0.0
    %2255 = vmatprep.subr.mxu0 0.0
    %2256 = vmatpush1.msra.mxu0 0.0
    %2257 = vmatprep.subr.mxu0 0.0
    %2258 = vmatpush1.msra.mxu0 0.0
    %2259 = vmatprep.subr.mxu0 0.0
    %2260 = vmatpush1.msra.mxu0 0.0
    %2261 = vmatprep.subr.mxu0 0.0
    %2262 = vmatpush1.msra.mxu0 0.0
    %2263 = vmatprep.subr.mxu0 0.0
    %2264 = vmatpush1.msra.mxu0 0.0
    %2265 = vmatprep.subr.mxu0 0.0
    %2266 = vmatpush1.msra.mxu0 0.0
    %2267 = vmatprep.subr.mxu0 0.0
    %2268 = vmatpush1.msra.mxu0 0.0
    %2269 = vmatprep.subr.mxu0 0.0
    %2270 = vmatpush1.msra.mxu0 0.0
    %2271 = vmatprep.subr.mxu0 0.0
    %2272 = vmatpush1.msra.mxu0 0.0
    %2273 = vmatprep.subr.mxu0 0.0
    %2274 = vmatpush1.msra.mxu0 0.0
    %2275 = vmatprep.subr.mxu0 0.0
    %2276 = vmatpush1.msra.mxu0 0.0
    %2277 = vmatprep.subr.mxu0 0.0
    %2278 = vmatpush1.msra.mxu0 0.0
    %2279 = vmatprep.subr.mxu0 0.0
    %2280 = vmatpush1.msra.mxu0 0.0
    %2281 = vmatprep.subr.mxu0 0.0
    %2282 = vmatpush1.msra.mxu0 0.0
    %2283 = vmatprep.mubr.f32.mxu0 0.0
    %2284 = vmatmul.mubr.f32.gmra.mrb[0].mxu0 %v137
    %v2285 = vpop.f32.mrb[0].mxu0
    %v2286 = vadd.f32 0.0, %v2285
    %v2287 = vpop.f32.mrb[0].mxu0
    %2288 = vmatprep.mubr.f32.mxu0 0.0
    %2289 = vmatmul.mubr.f32.gmra.mrb[0].mxu0 %v140
    %v2290 = vpop.f32.mrb[0].mxu0
    %v2291 = vadd.f32 0.0, %v2290
    %v2292 = vpop.f32.mrb[0].mxu0
    %2293 = vmatprep.mubr.f32.mxu0 0.0
    %2294 = vmatmul.mubr.f32.gmra.mrb[0].mxu0 %v143
    %v2295 = vpop.f32.mrb[0].mxu0
    %v2296 = vadd.f32 0.0, %v2295
    %v2297 = vpop.f32.mrb[0].mxu0
    %2298 = vmatprep.mubr.f32.mxu0 0.0
    %2299 = vmatmul.mubr.f32.gmra.mrb[0].mxu0 %v146
    %v2300 = vpop.f32.mrb[0].mxu0
    %v2301 = vadd.f32 0.0, %v2300
    %v2302 = vpop.f32.mrb[0].mxu0
    %2303 = vdwg.mxu0
    %v2304 = vadd.f32 %v2203, %v2286
    %v2305 = vadd.f32 %v2204, %v2291
    %v2306 = vadd.f32 %v2205, %v2296
    %v2307 = vadd.f32 %v2206, %v2301
    %v2308 = vxor.u32 %v2304, 2147483648
    %v2309 = vxor.u32 %v2305, 2147483648
    %v2310 = vxor.u32 %v2306, 2147483648
    %v2311 = vxor.u32 %v2307, 2147483648
    %v2312 = vmul.f32 %v2308, 1.442695
    %v2313 = vpow.pop %v2312
    %v2314 = vmul.f32 %v2309, 1.442695
    %v2315 = vpow.pop %v2314
    %v2316 = vmul.f32 %v2310, 1.442695
    %v2317 = vpow.pop %v2316
    %v2318 = vmul.f32 %v2311, 1.442695
    %v2319 = vpow.pop %v2318
    %v2320 = vadd.f32 %v2313, 1.0
    %v2321 = vadd.f32 %v2315, 1.0
    %v2322 = vadd.f32 %v2317, 1.0
    %v2323 = vadd.f32 %v2319, 1.0
    %v2324 = vrcp.pop %v2320
    %v2325 = vmul.f32 1.0, %v2324
    %v2326 = vrcp.pop %v2321
    %v2327 = vmul.f32 1.0, %v2326
    %v2328 = vrcp.pop %v2322
    %v2329 = vmul.f32 1.0, %v2328
    %v2330 = vrcp.pop %v2323
    %v2331 = vmul.f32 1.0, %v2330
    %2332 = vmatprep.subr.mxu0 0.0
    %2333 = vmatpush1.msra.mxu0 %v2199
    %2334 = vmatprep.subr.mxu0 0.0
    %2335 = vmatpush1.msra.mxu0 %v2200
    %2336 = vmatprep.subr.mxu0 0.0
    %2337 = vmatpush1.msra.mxu0 %v2201
    %2338 = vmatprep.subr.mxu0 0.0
    %2339 = vmatpush1.msra.mxu0 %v2202
    %2340 = vmatprep.subr.mxu0 0.0
    %2341 = vmatpush1.msra.mxu0 0.0
    %2342 = vmatprep.subr.mxu0 0.0
    %2343 = vmatpush1.msra.mxu0 0.0
    %2344 = vmatprep.subr.mxu0 0.0
    %2345 = vmatpush1.msra.mxu0 0.0
    %2346 = vmatprep.subr.mxu0 0.0
    %2347 = vmatpush1.msra.mxu0 0.0
    %2348 = vmatprep.subr.mxu0 0.0
    %2349 = vmatpush1.msra.mxu0 0.0
    %2350 = vmatprep.subr.mxu0 0.0
    %2351 = vmatpush1.msra.mxu0 0.0
    %2352 = vmatprep.subr.mxu0 0.0
    %2353 = vmatpush1.msra.mxu0 0.0
    %2354 = vmatprep.subr.mxu0 0.0
    %2355 = vmatpush1.msra.mxu0 0.0
    %2356 = vmatprep.subr.mxu0 0.0
    %2357 = vmatpush1.msra.mxu0 0.0
    %2358 = vmatprep.subr.mxu0 0.0
    %2359 = vmatpush1.msra.mxu0 0.0
    %2360 = vmatprep.subr.mxu0 0.0
    %2361 = vmatpush1.msra.mxu0 0.0
    %2362 = vmatprep.subr.mxu0 0.0
    %2363 = vmatpush1.msra.mxu0 0.0
    %2364 = vmatprep.subr.mxu0 0.0
    %2365 = vmatpush1.msra.mxu0 0.0
    %2366 = vmatprep.subr.mxu0 0.0
    %2367 = vmatpush1.msra.mxu0 0.0
    %2368 = vmatprep.subr.mxu0 0.0
    %2369 = vmatpush1.msra.mxu0 0.0
    %2370 = vmatprep.subr.mxu0 0.0
    %2371 = vmatpush1.msra.mxu0 0.0
    %2372 = vmatprep.subr.mxu0 0.0
    %2373 = vmatpush1.msra.mxu0 0.0
    %2374 = vmatprep.subr.mxu0 0.0
    %2375 = vmatpush1.msra.mxu0 0.0
    %2376 = vmatprep.subr.mxu0 0.0
    %2377 = vmatpush1.msra.mxu0 0.0
    %2378 = vmatprep.subr.mxu0 0.0
    %2379 = vmatpush1.msra.mxu0 0.0
    %2380 = vmatprep.subr.mxu0 0.0
    %2381 = vmatpush1.msra.mxu0 0.0
    %2382 = vmatprep.subr.mxu0 0.0
    %2383 = vmatpush1.msra.mxu0 0.0
    %2384 = vmatprep.subr.mxu0 0.0
    %2385 = vmatpush1.msra.mxu0 0.0
    %2386 = vmatprep.subr.mxu0 0.0
    %2387 = vmatpush1.msra.mxu0 0.0
    %2388 = vmatprep.subr.mxu0 0.0
    %2389 = vmatpush1.msra.mxu0 0.0
    %2390 = vmatprep.subr.mxu0 0.0
    %2391 = vmatpush1.msra.mxu0 0.0
    %2392 = vmatprep.subr.mxu0 0.0
    %2393 = vmatpush1.msra.mxu0 0.0
    %2394 = vmatprep.subr.mxu0 0.0
    %2395 = vmatpush1.msra.mxu0 0.0
    %2396 = vmatprep.mubr.f32.mxu0 0.0
    %2397 = vmatmul.mubr.f32.gmra.mrb[0].mxu0 %v262
    %v2398 = vpop.f32.mrb[0].mxu0
    %v2399 = vadd.f32 0.0, %v2398
    %v2400 = vpop.f32.mrb[0].mxu0
    %2401 = vmatprep.mubr.f32.mxu0 0.0
    %2402 = vmatmul.mubr.f32.gmra.mrb[0].mxu0 %v265
    %v2403 = vpop.f32.mrb[0].mxu0
    %v2404 = vadd.f32 0.0, %v2403
    %v2405 = vpop.f32.mrb[0].mxu0
    %2406 = vmatprep.mubr.f32.mxu0 0.0
    %2407 = vmatmul.mubr.f32.gmra.mrb[0].mxu0 %v268
    %v2408 = vpop.f32.mrb[0].mxu0
    %v2409 = vadd.f32 0.0, %v2408
    %v2410 = vpop.f32.mrb[0].mxu0
    %2411 = vmatprep.mubr.f32.mxu0 0.0
    %2412 = vmatmul.mubr.f32.gmra.mrb[0].mxu0 %v271
    %v2413 = vpop.f32.mrb[0].mxu0
    %v2414 = vadd.f32 0.0, %v2413
    %v2415 = vpop.f32.mrb[0].mxu0
    %2416 = vdwg.mxu0
    %v2417 = vadd.f32 %v2207, %v2399
    %v2418 = vadd.f32 %v2208, %v2404
    %v2419 = vadd.f32 %v2209, %v2409
    %v2420 = vadd.f32 %v2210, %v2414
    %v2421 = vxor.u32 %v2417, 2147483648
    %v2422 = vxor.u32 %v2418, 2147483648
    %v2423 = vxor.u32 %v2419, 2147483648
    %v2424 = vxor.u32 %v2420, 2147483648
    %v2425 = vmul.f32 %v2421, 1.442695
    %v2426 = vpow.pop %v2425
    %v2427 = vmul.f32 %v2422, 1.442695
    %v2428 = vpow.pop %v2427
    %v2429 = vmul.f32 %v2423, 1.442695
    %v2430 = vpow.pop %v2429
    %v2431 = vmul.f32 %v2424, 1.442695
    %v2432 = vpow.pop %v2431
    %v2433 = vadd.f32 %v2426, 1.0
    %v2434 = vadd.f32 %v2428, 1.0
    %v2435 = vadd.f32 %v2430, 1.0
    %v2436 = vadd.f32 %v2432, 1.0
    %v2437 = vrcp.pop %v2433
    %v2438 = vmul.f32 1.0, %v2437
    %v2439 = vrcp.pop %v2434
    %v2440 = vmul.f32 1.0, %v2439
    %v2441 = vrcp.pop %v2435
    %v2442 = vmul.f32 1.0, %v2441
    %v2443 = vrcp.pop %v2436
    %v2444 = vmul.f32 1.0, %v2443
    %2445 = vmatprep.subr.mxu0 0.0
    %2446 = vmatpush1.msra.mxu0 %v2199
    %2447 = vmatprep.subr.mxu0 0.0
    %2448 = vmatpush1.msra.mxu0 %v2200
    %2449 = vmatprep.subr.mxu0 0.0
    %2450 = vmatpush1.msra.mxu0 %v2201
    %2451 = vmatprep.subr.mxu0 0.0
    %2452 = vmatpush1.msra.mxu0 %v2202
    %2453 = vmatprep.subr.mxu0 0.0
    %2454 = vmatpush1.msra.mxu0 0.0
    %2455 = vmatprep.subr.mxu0 0.0
    %2456 = vmatpush1.msra.mxu0 0.0
    %2457 = vmatprep.subr.mxu0 0.0
    %2458 = vmatpush1.msra.mxu0 0.0
    %2459 = vmatprep.subr.mxu0 0.0
    %2460 = vmatpush1.msra.mxu0 0.0
    %2461 = vmatprep.subr.mxu0 0.0
    %2462 = vmatpush1.msra.mxu0 0.0
    %2463 = vmatprep.subr.mxu0 0.0
    %2464 = vmatpush1.msra.mxu0 0.0
    %2465 = vmatprep.subr.mxu0 0.0
    %2466 = vmatpush1.msra.mxu0 0.0
    %2467 = vmatprep.subr.mxu0 0.0
    %2468 = vmatpush1.msra.mxu0 0.0
    %2469 = vmatprep.subr.mxu0 0.0
    %2470 = vmatpush1.msra.mxu0 0.0
    %2471 = vmatprep.subr.mxu0 0.0
    %2472 = vmatpush1.msra.mxu0 0.0
    %2473 = vmatprep.subr.mxu0 0.0
    %2474 = vmatpush1.msra.mxu0 0.0
    %2475 = vmatprep.subr.mxu0 0.0
    %2476 = vmatpush1.msra.mxu0 0.0
    %2477 = vmatprep.subr.mxu0 0.0
    %2478 = vmatpush1.msra.mxu0 0.0
    %2479 = vmatprep.subr.mxu0 0.0
    %2480 = vmatpush1.msra.mxu0 0.0
    %2481 = vmatprep.subr.mxu0 0.0
    %2482 = vmatpush1.msra.mxu0 0.0
    %2483 = vmatprep.subr.mxu0 0.0
    %2484 = vmatpush1.msra.mxu0 0.0
    %2485 = vmatprep.subr.mxu0 0.0
    %2486 = vmatpush1.msra.mxu0 0.0
    %2487 = vmatprep.subr.mxu0 0.0
    %2488 = vmatpush1.msra.mxu0 0.0
    %2489 = vmatprep.subr.mxu0 0.0
    %2490 = vmatpush1.msra.mxu0 0.0
    %2491 = vmatprep.subr.mxu0 0.0
    %2492 = vmatpush1.msra.mxu0 0.0
    %2493 = vmatprep.subr.mxu0 0.0
    %2494 = vmatpush1.msra.mxu0 0.0
    %2495 = vmatprep.subr.mxu0 0.0
    %2496 = vmatpush1.msra.mxu0 0.0
    %2497 = vmatprep.subr.mxu0 0.0
    %2498 = vmatpush1.msra.mxu0 0.0
    %2499 = vmatprep.subr.mxu0 0.0
    %2500 = vmatpush1.msra.mxu0 0.0
    %2501 = vmatprep.subr.mxu0 0.0
    %2502 = vmatpush1.msra.mxu0 0.0
    %2503 = vmatprep.subr.mxu0 0.0
    %2504 = vmatpush1.msra.mxu0 0.0
    %2505 = vmatprep.subr.mxu0 0.0
    %2506 = vmatpush1.msra.mxu0 0.0
    %2507 = vmatprep.subr.mxu0 0.0
    %2508 = vmatpush1.msra.mxu0 0.0
    %2509 = vmatprep.mubr.f32.mxu0 0.0
    %2510 = vmatmul.mubr.f32.gmra.mrb[0].mxu0 %v387
    %v2511 = vpop.f32.mrb[0].mxu0
    %v2512 = vadd.f32 0.0, %v2511
    %v2513 = vpop.f32.mrb[0].mxu0
    %2514 = vmatprep.mubr.f32.mxu0 0.0
    %2515 = vmatmul.mubr.f32.gmra.mrb[0].mxu0 %v390
    %v2516 = vpop.f32.mrb[0].mxu0
    %v2517 = vadd.f32 0.0, %v2516
    %v2518 = vpop.f32.mrb[0].mxu0
    %2519 = vmatprep.mubr.f32.mxu0 0.0
    %2520 = vmatmul.mubr.f32.gmra.mrb[0].mxu0 %v393
    %v2521 = vpop.f32.mrb[0].mxu0
    %v2522 = vadd.f32 0.0, %v2521
    %v2523 = vpop.f32.mrb[0].mxu0
    %2524 = vmatprep.mubr.f32.mxu0 0.0
    %2525 = vmatmul.mubr.f32.gmra.mrb[0].mxu0 %v396
    %v2526 = vpop.f32.mrb[0].mxu0
    %v2527 = vadd.f32 0.0, %v2526
    %v2528 = vpop.f32.mrb[0].mxu0
    %2529 = vdwg.mxu0
    %v2530 = vadd.f32 %v2211, %v2512
    %v2531 = vadd.f32 %v2212, %v2517
    %v2532 = vadd.f32 %v2213, %v2522
    %v2533 = vadd.f32 %v2214, %v2527
    %v2534 = vtanh.pop %v2530
    %v2535 = vtanh.pop %v2531
    %v2536 = vtanh.pop %v2532
    %v2537 = vtanh.pop %v2533
    %2538 = vmatprep.subr.mxu0 0.0
    %2539 = vmatpush1.msra.mxu0 %v2199
    %2540 = vmatprep.subr.mxu0 0.0
    %2541 = vmatpush1.msra.mxu0 %v2200
    %2542 = vmatprep.subr.mxu0 0.0
    %2543 = vmatpush1.msra.mxu0 %v2201
    %2544 = vmatprep.subr.mxu0 0.0
    %2545 = vmatpush1.msra.mxu0 %v2202
    %2546 = vmatprep.subr.mxu0 0.0
    %2547 = vmatpush1.msra.mxu0 0.0
    %2548 = vmatprep.subr.mxu0 0.0
    %2549 = vmatpush1.msra.mxu0 0.0
    %2550 = vmatprep.subr.mxu0 0.0
    %2551 = vmatpush1.msra.mxu0 0.0
    %2552 = vmatprep.subr.mxu0 0.0
    %2553 = vmatpush1.msra.mxu0 0.0
    %2554 = vmatprep.subr.mxu0 0.0
    %2555 = vmatpush1.msra.mxu0 0.0
    %2556 = vmatprep.subr.mxu0 0.0
    %2557 = vmatpush1.msra.mxu0 0.0
    %2558 = vmatprep.subr.mxu0 0.0
    %2559 = vmatpush1.msra.mxu0 0.0
    %2560 = vmatprep.subr.mxu0 0.0
    %2561 = vmatpush1.msra.mxu0 0.0
    %2562 = vmatprep.subr.mxu0 0.0
    %2563 = vmatpush1.msra.mxu0 0.0
    %2564 = vmatprep.subr.mxu0 0.0
    %2565 = vmatpush1.msra.mxu0 0.0
    %2566 = vmatprep.subr.mxu0 0.0
    %2567 = vmatpush1.msra.mxu0 0.0
    %2568 = vmatprep.subr.mxu0 0.0
    %2569 = vmatpush1.msra.mxu0 0.0
    %2570 = vmatprep.subr.mxu0 0.0
    %2571 = vmatpush1.msra.mxu0 0.0
    %2572 = vmatprep.subr.mxu0 0.0
    %2573 = vmatpush1.msra.mxu0 0.0
    %2574 = vmatprep.subr.mxu0 0.0
    %2575 = vmatpush1.msra.mxu0 0.0
    %2576 = vmatprep.subr.mxu0 0.0
    %2577 = vmatpush1.msra.mxu0 0.0
    %2578 = vmatprep.subr.mxu0 0.0
    %2579 = vmatpush1.msra.mxu0 0.0
    %2580 = vmatprep.subr.mxu0 0.0
    %2581 = vmatpush1.msra.mxu0 0.0
    %2582 = vmatprep.subr.mxu0 0.0
    %2583 = vmatpush1.msra.mxu0 0.0
    %2584 = vmatprep.subr.mxu0 0.0
    %2585 = vmatpush1.msra.mxu0 0.0
    %2586 = vmatprep.subr.mxu0 0.0
    %2587 = vmatpush1.msra.mxu0 0.0
    %2588 = vmatprep.subr.mxu0 0.0
    %2589 = vmatpush1.msra.mxu0 0.0
    %2590 = vmatprep.subr.mxu0 0.0
    %2591 = vmatpush1.msra.mxu0 0.0
    %2592 = vmatprep.subr.mxu0 0.0
    %2593 = vmatpush1.msra.mxu0 0.0
    %2594 = vmatprep.subr.mxu0 0.0
    %2595 = vmatpush1.msra.mxu0 0.0
    %2596 = vmatprep.subr.mxu0 0.0
    %2597 = vmatpush1.msra.mxu0 0.0
    %2598 = vmatprep.subr.mxu0 0.0
    %2599 = vmatpush1.msra.mxu0 0.0
    %2600 = vmatprep.subr.mxu0 0.0
    %2601 = vmatpush1.msra.mxu0 0.0
    %2602 = vmatprep.mubr.f32.mxu0 0.0
    %2603 = vmatmul.mubr.f32.gmra.mrb[0].mxu0 %v492
    %v2604 = vpop.f32.mrb[0].mxu0
    %v2605 = vadd.f32 0.0, %v2604
    %v2606 = vpop.f32.mrb[0].mxu0
    %2607 = vmatprep.mubr.f32.mxu0 0.0
    %2608 = vmatmul.mubr.f32.gmra.mrb[0].mxu0 %v495
    %v2609 = vpop.f32.mrb[0].mxu0
    %v2610 = vadd.f32 0.0, %v2609
    %v2611 = vpop.f32.mrb[0].mxu0
    %2612 = vmatprep.mubr.f32.mxu0 0.0
    %2613 = vmatmul.mubr.f32.gmra.mrb[0].mxu0 %v498
    %v2614 = vpop.f32.mrb[0].mxu0
    %v2615 = vadd.f32 0.0, %v2614
    %v2616 = vpop.f32.mrb[0].mxu0
    %2617 = vmatprep.mubr.f32.mxu0 0.0
    %2618 = vmatmul.mubr.f32.gmra.mrb[0].mxu0 %v501
    %v2619 = vpop.f32.mrb[0].mxu0
    %v2620 = vadd.f32 0.0, %v2619
    %v2621 = vpop.f32.mrb[0].mxu0
    %2622 = vdwg.mxu0
    %v2623 = vadd.f32 %v2215, %v2605
    %v2624 = vadd.f32 %v2216, %v2610
    %v2625 = vadd.f32 %v2217, %v2615
    %v2626 = vadd.f32 %v2218, %v2620
    %v2627 = vxor.u32 %v2623, 2147483648
    %v2628 = vxor.u32 %v2624, 2147483648
    %v2629 = vxor.u32 %v2625, 2147483648
    %v2630 = vxor.u32 %v2626, 2147483648
    %v2631 = vmul.f32 %v2627, 1.442695
    %v2632 = vpow.pop %v2631
    %v2633 = vmul.f32 %v2628, 1.442695
    %v2634 = vpow.pop %v2633
    %v2635 = vmul.f32 %v2629, 1.442695
    %v2636 = vpow.pop %v2635
    %v2637 = vmul.f32 %v2630, 1.442695
    %v2638 = vpow.pop %v2637
    %v2639 = vadd.f32 %v2632, 1.0
    %v2640 = vadd.f32 %v2634, 1.0
    %v2641 = vadd.f32 %v2636, 1.0
    %v2642 = vadd.f32 %v2638, 1.0
    %v2643 = vrcp.pop %v2639
    %v2644 = vmul.f32 1.0, %v2643
    %v2645 = vrcp.pop %v2640
    %v2646 = vmul.f32 1.0, %v2645
    %v2647 = vrcp.pop %v2641
    %v2648 = vmul.f32 1.0, %v2647
    %v2649 = vrcp.pop %v2642
    %v2650 = vmul.f32 1.0, %v2649
    %v2651 = vmul.f32 %v2438, %v2191
    %v2652 = vmul.f32 %v2440, %v2192
    %v2653 = vmul.f32 %v2442, %v2193
    %v2654 = vmul.f32 %v2444, %v2194
    %v2655 = vmul.f32 %v2325, %v2534
    %v2656 = vmul.f32 %v2327, %v2535
    %v2657 = vmul.f32 %v2329, %v2536
    %v2658 = vmul.f32 %v2331, %v2537
    %v2659 = vadd.f32 %v2651, %v2655
    %v2660 = vadd.f32 %v2652, %v2656
    %v2661 = vadd.f32 %v2653, %v2657
    %v2662 = vadd.f32 %v2654, %v2658
    %v2663 = vtanh.pop %v2659
    %v2664 = vtanh.pop %v2660
    %v2665 = vtanh.pop %v2661
    %v2666 = vtanh.pop %v2662
    %v2667 = vmul.f32 %v2644, %v2663
    %v2668 = vmul.f32 %v2646, %v2664
    %v2669 = vmul.f32 %v2648, %v2665
    %v2670 = vmul.f32 %v2650, %v2666
    %s2671 = scalar_lea.vmem [#allocation2], 512
    %v2672 = vld [vmem:[%s2671] sm:$0xff]
    %v2673 = vld [vmem:[%s2671 + $0x8] sm:$0xff]
    %v2674 = vld [vmem:[%s2671 + $0x10] sm:$0xff]
    %v2675 = vld [vmem:[%s2671 + $0x18] sm:$0xff]
    %v2676 = vld [vmem:[%s2671 + $0x20] sm:$0xff]
    %v2677 = vld [vmem:[%s2671 + $0x28] sm:$0xff]
    %v2678 = vld [vmem:[%s2671 + $0x30] sm:$0xff]
    %v2679 = vld [vmem:[%s2671 + $0x38] sm:$0xff]
    %v2680 = vld [vmem:[%s2671 + $0x40] sm:$0xff]
    %v2681 = vld [vmem:[%s2671 + $0x48] sm:$0xff]
    %v2682 = vld [vmem:[%s2671 + $0x50] sm:$0xff]
    %v2683 = vld [vmem:[%s2671 + $0x58] sm:$0xff]
    %v2684 = vld [vmem:[%s2671 + $0x60] sm:$0xff]
    %v2685 = vld [vmem:[%s2671 + $0x68] sm:$0xff]
    %v2686 = vld [vmem:[%s2671 + $0x70] sm:$0xff]
    %v2687 = vld [vmem:[%s2671 + $0x78] sm:$0xff]
    %2688 = vmatprep.subr.mxu0 0.0
    %2689 = vmatpush1.msra.mxu0 %v2667
    %2690 = vmatprep.subr.mxu0 0.0
    %2691 = vmatpush1.msra.mxu0 %v2668
    %2692 = vmatprep.subr.mxu0 0.0
    %2693 = vmatpush1.msra.mxu0 %v2669
    %2694 = vmatprep.subr.mxu0 0.0
    %2695 = vmatpush1.msra.mxu0 %v2670
    %2696 = vmatprep.subr.mxu0 0.0
    %2697 = vmatpush1.msra.mxu0 0.0
    %2698 = vmatprep.subr.mxu0 0.0
    %2699 = vmatpush1.msra.mxu0 0.0
    %2700 = vmatprep.subr.mxu0 0.0
    %2701 = vmatpush1.msra.mxu0 0.0
    %2702 = vmatprep.subr.mxu0 0.0
    %2703 = vmatpush1.msra.mxu0 0.0
    %2704 = vmatprep.subr.mxu0 0.0
    %2705 = vmatpush1.msra.mxu0 0.0
    %2706 = vmatprep.subr.mxu0 0.0
    %2707 = vmatpush1.msra.mxu0 0.0
    %2708 = vmatprep.subr.mxu0 0.0
    %2709 = vmatpush1.msra.mxu0 0.0
    %2710 = vmatprep.subr.mxu0 0.0
    %2711 = vmatpush1.msra.mxu0 0.0
    %2712 = vmatprep.subr.mxu0 0.0
    %2713 = vmatpush1.msra.mxu0 0.0
    %2714 = vmatprep.subr.mxu0 0.0
    %2715 = vmatpush1.msra.mxu0 0.0
    %2716 = vmatprep.subr.mxu0 0.0
    %2717 = vmatpush1.msra.mxu0 0.0
    %2718 = vmatprep.subr.mxu0 0.0
    %2719 = vmatpush1.msra.mxu0 0.0
    %2720 = vmatprep.subr.mxu0 0.0
    %2721 = vmatpush1.msra.mxu0 0.0
    %2722 = vmatprep.subr.mxu0 0.0
    %2723 = vmatpush1.msra.mxu0 0.0
    %2724 = vmatprep.subr.mxu0 0.0
    %2725 = vmatpush1.msra.mxu0 0.0
    %2726 = vmatprep.subr.mxu0 0.0
    %2727 = vmatpush1.msra.mxu0 0.0
    %2728 = vmatprep.subr.mxu0 0.0
    %2729 = vmatpush1.msra.mxu0 0.0
    %2730 = vmatprep.subr.mxu0 0.0
    %2731 = vmatpush1.msra.mxu0 0.0
    %2732 = vmatprep.subr.mxu0 0.0
    %2733 = vmatpush1.msra.mxu0 0.0
    %2734 = vmatprep.subr.mxu0 0.0
    %2735 = vmatpush1.msra.mxu0 0.0
    %2736 = vmatprep.subr.mxu0 0.0
    %2737 = vmatpush1.msra.mxu0 0.0
    %2738 = vmatprep.subr.mxu0 0.0
    %2739 = vmatpush1.msra.mxu0 0.0
    %2740 = vmatprep.subr.mxu0 0.0
    %2741 = vmatpush1.msra.mxu0 0.0
    %2742 = vmatprep.subr.mxu0 0.0
    %2743 = vmatpush1.msra.mxu0 0.0
    %2744 = vmatprep.subr.mxu0 0.0
    %2745 = vmatpush1.msra.mxu0 0.0
    %2746 = vmatprep.subr.mxu0 0.0
    %2747 = vmatpush1.msra.mxu0 0.0
    %2748 = vmatprep.subr.mxu0 0.0
    %2749 = vmatpush1.msra.mxu0 0.0
    %2750 = vmatprep.subr.mxu0 0.0
    %2751 = vmatpush1.msra.mxu0 0.0
    %2752 = vmatprep.mubr.f32.mxu0 0.0
    %2753 = vmatmul.mubr.f32.gmra.mrb[0].mxu0 %v137
    %v2754 = vpop.f32.mrb[0].mxu0
    %v2755 = vadd.f32 0.0, %v2754
    %v2756 = vpop.f32.mrb[0].mxu0
    %2757 = vmatprep.mubr.f32.mxu0 0.0
    %2758 = vmatmul.mubr.f32.gmra.mrb[0].mxu0 %v140
    %v2759 = vpop.f32.mrb[0].mxu0
    %v2760 = vadd.f32 0.0, %v2759
    %v2761 = vpop.f32.mrb[0].mxu0
    %2762 = vmatprep.mubr.f32.mxu0 0.0
    %2763 = vmatmul.mubr.f32.gmra.mrb[0].mxu0 %v143
    %v2764 = vpop.f32.mrb[0].mxu0
    %v2765 = vadd.f32 0.0, %v2764
    %v2766 = vpop.f32.mrb[0].mxu0
    %2767 = vmatprep.mubr.f32.mxu0 0.0
    %2768 = vmatmul.mubr.f32.gmra.mrb[0].mxu0 %v146
    %v2769 = vpop.f32.mrb[0].mxu0
    %v2770 = vadd.f32 0.0, %v2769
    %v2771 = vpop.f32.mrb[0].mxu0
    %2772 = vdwg.mxu0
    %v2773 = vadd.f32 %v2672, %v2755
    %v2774 = vadd.f32 %v2673, %v2760
    %v2775 = vadd.f32 %v2674, %v2765
    %v2776 = vadd.f32 %v2675, %v2770
    %v2777 = vxor.u32 %v2773, 2147483648
    %v2778 = vxor.u32 %v2774, 2147483648
    %v2779 = vxor.u32 %v2775, 2147483648
    %v2780 = vxor.u32 %v2776, 2147483648
    %v2781 = vmul.f32 %v2777, 1.442695
    %v2782 = vpow.pop %v2781
    %v2783 = vmul.f32 %v2778, 1.442695
    %v2784 = vpow.pop %v2783
    %v2785 = vmul.f32 %v2779, 1.442695
    %v2786 = vpow.pop %v2785
    %v2787 = vmul.f32 %v2780, 1.442695
    %v2788 = vpow.pop %v2787
    %v2789 = vadd.f32 %v2782, 1.0
    %v2790 = vadd.f32 %v2784, 1.0
    %v2791 = vadd.f32 %v2786, 1.0
    %v2792 = vadd.f32 %v2788, 1.0
    %v2793 = vrcp.pop %v2789
    %v2794 = vmul.f32 1.0, %v2793
    %v2795 = vrcp.pop %v2790
    %v2796 = vmul.f32 1.0, %v2795
    %v2797 = vrcp.pop %v2791
    %v2798 = vmul.f32 1.0, %v2797
    %v2799 = vrcp.pop %v2792
    %v2800 = vmul.f32 1.0, %v2799
    %2801 = vmatprep.subr.mxu0 0.0
    %2802 = vmatpush1.msra.mxu0 %v2667
    %2803 = vmatprep.subr.mxu0 0.0
    %2804 = vmatpush1.msra.mxu0 %v2668
    %2805 = vmatprep.subr.mxu0 0.0
    %2806 = vmatpush1.msra.mxu0 %v2669
    %2807 = vmatprep.subr.mxu0 0.0
    %2808 = vmatpush1.msra.mxu0 %v2670
    %2809 = vmatprep.subr.mxu0 0.0
    %2810 = vmatpush1.msra.mxu0 0.0
    %2811 = vmatprep.subr.mxu0 0.0
    %2812 = vmatpush1.msra.mxu0 0.0
    %2813 = vmatprep.subr.mxu0 0.0
    %2814 = vmatpush1.msra.mxu0 0.0
    %2815 = vmatprep.subr.mxu0 0.0
    %2816 = vmatpush1.msra.mxu0 0.0
    %2817 = vmatprep.subr.mxu0 0.0
    %2818 = vmatpush1.msra.mxu0 0.0
    %2819 = vmatprep.subr.mxu0 0.0
    %2820 = vmatpush1.msra.mxu0 0.0
    %2821 = vmatprep.subr.mxu0 0.0
    %2822 = vmatpush1.msra.mxu0 0.0
    %2823 = vmatprep.subr.mxu0 0.0
    %2824 = vmatpush1.msra.mxu0 0.0
    %2825 = vmatprep.subr.mxu0 0.0
    %2826 = vmatpush1.msra.mxu0 0.0
    %2827 = vmatprep.subr.mxu0 0.0
    %2828 = vmatpush1.msra.mxu0 0.0
    %2829 = vmatprep.subr.mxu0 0.0
    %2830 = vmatpush1.msra.mxu0 0.0
    %2831 = vmatprep.subr.mxu0 0.0
    %2832 = vmatpush1.msra.mxu0 0.0
    %2833 = vmatprep.subr.mxu0 0.0
    %2834 = vmatpush1.msra.mxu0 0.0
    %2835 = vmatprep.subr.mxu0 0.0
    %2836 = vmatpush1.msra.mxu0 0.0
    %2837 = vmatprep.subr.mxu0 0.0
    %2838 = vmatpush1.msra.mxu0 0.0
    %2839 = vmatprep.subr.mxu0 0.0
    %2840 = vmatpush1.msra.mxu0 0.0
    %2841 = vmatprep.subr.mxu0 0.0
    %2842 = vmatpush1.msra.mxu0 0.0
    %2843 = vmatprep.subr.mxu0 0.0
    %2844 = vmatpush1.msra.mxu0 0.0
    %2845 = vmatprep.subr.mxu0 0.0
    %2846 = vmatpush1.msra.mxu0 0.0
    %2847 = vmatprep.subr.mxu0 0.0
    %2848 = vmatpush1.msra.mxu0 0.0
    %2849 = vmatprep.subr.mxu0 0.0
    %2850 = vmatpush1.msra.mxu0 0.0
    %2851 = vmatprep.subr.mxu0 0.0
    %2852 = vmatpush1.msra.mxu0 0.0
    %2853 = vmatprep.subr.mxu0 0.0
    %2854 = vmatpush1.msra.mxu0 0.0
    %2855 = vmatprep.subr.mxu0 0.0
    %2856 = vmatpush1.msra.mxu0 0.0
    %2857 = vmatprep.subr.mxu0 0.0
    %2858 = vmatpush1.msra.mxu0 0.0
    %2859 = vmatprep.subr.mxu0 0.0
    %2860 = vmatpush1.msra.mxu0 0.0
    %2861 = vmatprep.subr.mxu0 0.0
    %2862 = vmatpush1.msra.mxu0 0.0
    %2863 = vmatprep.subr.mxu0 0.0
    %2864 = vmatpush1.msra.mxu0 0.0
    %2865 = vmatprep.mubr.f32.mxu0 0.0
    %2866 = vmatmul.mubr.f32.gmra.mrb[0].mxu0 %v262
    %v2867 = vpop.f32.mrb[0].mxu0
    %v2868 = vadd.f32 0.0, %v2867
    %v2869 = vpop.f32.mrb[0].mxu0
    %2870 = vmatprep.mubr.f32.mxu0 0.0
    %2871 = vmatmul.mubr.f32.gmra.mrb[0].mxu0 %v265
    %v2872 = vpop.f32.mrb[0].mxu0
    %v2873 = vadd.f32 0.0, %v2872
    %v2874 = vpop.f32.mrb[0].mxu0
    %2875 = vmatprep.mubr.f32.mxu0 0.0
    %2876 = vmatmul.mubr.f32.gmra.mrb[0].mxu0 %v268
    %v2877 = vpop.f32.mrb[0].mxu0
    %v2878 = vadd.f32 0.0, %v2877
    %v2879 = vpop.f32.mrb[0].mxu0
    %2880 = vmatprep.mubr.f32.mxu0 0.0
    %2881 = vmatmul.mubr.f32.gmra.mrb[0].mxu0 %v271
    %v2882 = vpop.f32.mrb[0].mxu0
    %v2883 = vadd.f32 0.0, %v2882
    %v2884 = vpop.f32.mrb[0].mxu0
    %2885 = vdwg.mxu0
    %v2886 = vadd.f32 %v2676, %v2868
    %v2887 = vadd.f32 %v2677, %v2873
    %v2888 = vadd.f32 %v2678, %v2878
    %v2889 = vadd.f32 %v2679, %v2883
    %v2890 = vxor.u32 %v2886, 2147483648
    %v2891 = vxor.u32 %v2887, 2147483648
    %v2892 = vxor.u32 %v2888, 2147483648
    %v2893 = vxor.u32 %v2889, 2147483648
    %v2894 = vmul.f32 %v2890, 1.442695
    %v2895 = vpow.pop %v2894
    %v2896 = vmul.f32 %v2891, 1.442695
    %v2897 = vpow.pop %v2896
    %v2898 = vmul.f32 %v2892, 1.442695
    %v2899 = vpow.pop %v2898
    %v2900 = vmul.f32 %v2893, 1.442695
    %v2901 = vpow.pop %v2900
    %v2902 = vadd.f32 %v2895, 1.0
    %v2903 = vadd.f32 %v2897, 1.0
    %v2904 = vadd.f32 %v2899, 1.0
    %v2905 = vadd.f32 %v2901, 1.0
    %v2906 = vrcp.pop %v2902
    %v2907 = vmul.f32 1.0, %v2906
    %v2908 = vrcp.pop %v2903
    %v2909 = vmul.f32 1.0, %v2908
    %v2910 = vrcp.pop %v2904
    %v2911 = vmul.f32 1.0, %v2910
    %v2912 = vrcp.pop %v2905
    %v2913 = vmul.f32 1.0, %v2912
    %2914 = vmatprep.subr.mxu0 0.0
    %2915 = vmatpush1.msra.mxu0 %v2667
    %2916 = vmatprep.subr.mxu0 0.0
    %2917 = vmatpush1.msra.mxu0 %v2668
    %2918 = vmatprep.subr.mxu0 0.0
    %2919 = vmatpush1.msra.mxu0 %v2669
    %2920 = vmatprep.subr.mxu0 0.0
    %2921 = vmatpush1.msra.mxu0 %v2670
    %2922 = vmatprep.subr.mxu0 0.0
    %2923 = vmatpush1.msra.mxu0 0.0
    %2924 = vmatprep.subr.mxu0 0.0
    %2925 = vmatpush1.msra.mxu0 0.0
    %2926 = vmatprep.subr.mxu0 0.0
    %2927 = vmatpush1.msra.mxu0 0.0
    %2928 = vmatprep.subr.mxu0 0.0
    %2929 = vmatpush1.msra.mxu0 0.0
    %2930 = vmatprep.subr.mxu0 0.0
    %2931 = vmatpush1.msra.mxu0 0.0
    %2932 = vmatprep.subr.mxu0 0.0
    %2933 = vmatpush1.msra.mxu0 0.0
    %2934 = vmatprep.subr.mxu0 0.0
    %2935 = vmatpush1.msra.mxu0 0.0
    %2936 = vmatprep.subr.mxu0 0.0
    %2937 = vmatpush1.msra.mxu0 0.0
    %2938 = vmatprep.subr.mxu0 0.0
    %2939 = vmatpush1.msra.mxu0 0.0
    %2940 = vmatprep.subr.mxu0 0.0
    %2941 = vmatpush1.msra.mxu0 0.0
    %2942 = vmatprep.subr.mxu0 0.0
    %2943 = vmatpush1.msra.mxu0 0.0
    %2944 = vmatprep.subr.mxu0 0.0
    %2945 = vmatpush1.msra.mxu0 0.0
    %2946 = vmatprep.subr.mxu0 0.0
    %2947 = vmatpush1.msra.mxu0 0.0
    %2948 = vmatprep.subr.mxu0 0.0
    %2949 = vmatpush1.msra.mxu0 0.0
    %2950 = vmatprep.subr.mxu0 0.0
    %2951 = vmatpush1.msra.mxu0 0.0
    %2952 = vmatprep.subr.mxu0 0.0
    %2953 = vmatpush1.msra.mxu0 0.0
    %2954 = vmatprep.subr.mxu0 0.0
    %2955 = vmatpush1.msra.mxu0 0.0
    %2956 = vmatprep.subr.mxu0 0.0
    %2957 = vmatpush1.msra.mxu0 0.0
    %2958 = vmatprep.subr.mxu0 0.0
    %2959 = vmatpush1.msra.mxu0 0.0
    %2960 = vmatprep.subr.mxu0 0.0
    %2961 = vmatpush1.msra.mxu0 0.0
    %2962 = vmatprep.subr.mxu0 0.0
    %2963 = vmatpush1.msra.mxu0 0.0
    %2964 = vmatprep.subr.mxu0 0.0
    %2965 = vmatpush1.msra.mxu0 0.0
    %2966 = vmatprep.subr.mxu0 0.0
    %2967 = vmatpush1.msra.mxu0 0.0
    %2968 = vmatprep.subr.mxu0 0.0
    %2969 = vmatpush1.msra.mxu0 0.0
    %2970 = vmatprep.subr.mxu0 0.0
    %2971 = vmatpush1.msra.mxu0 0.0
    %2972 = vmatprep.subr.mxu0 0.0
    %2973 = vmatpush1.msra.mxu0 0.0
    %2974 = vmatprep.subr.mxu0 0.0
    %2975 = vmatpush1.msra.mxu0 0.0
    %2976 = vmatprep.subr.mxu0 0.0
    %2977 = vmatpush1.msra.mxu0 0.0
    %2978 = vmatprep.mubr.f32.mxu0 0.0
    %2979 = vmatmul.mubr.f32.gmra.mrb[0].mxu0 %v387
    %v2980 = vpop.f32.mrb[0].mxu0
    %v2981 = vadd.f32 0.0, %v2980
    %v2982 = vpop.f32.mrb[0].mxu0
    %2983 = vmatprep.mubr.f32.mxu0 0.0
    %2984 = vmatmul.mubr.f32.gmra.mrb[0].mxu0 %v390
    %v2985 = vpop.f32.mrb[0].mxu0
    %v2986 = vadd.f32 0.0, %v2985
    %v2987 = vpop.f32.mrb[0].mxu0
    %2988 = vmatprep.mubr.f32.mxu0 0.0
    %2989 = vmatmul.mubr.f32.gmra.mrb[0].mxu0 %v393
    %v2990 = vpop.f32.mrb[0].mxu0
    %v2991 = vadd.f32 0.0, %v2990
    %v2992 = vpop.f32.mrb[0].mxu0
    %2993 = vmatprep.mubr.f32.mxu0 0.0
    %2994 = vmatmul.mubr.f32.gmra.mrb[0].mxu0 %v396
    %v2995 = vpop.f32.mrb[0].mxu0
    %v2996 = vadd.f32 0.0, %v2995
    %v2997 = vpop.f32.mrb[0].mxu0
    %2998 = vdwg.mxu0
    %v2999 = vadd.f32 %v2680, %v2981
    %v3000 = vadd.f32 %v2681, %v2986
    %v3001 = vadd.f32 %v2682, %v2991
    %v3002 = vadd.f32 %v2683, %v2996
    %v3003 = vtanh.pop %v2999
    %v3004 = vtanh.pop %v3000
    %v3005 = vtanh.pop %v3001
    %v3006 = vtanh.pop %v3002
    %3007 = vmatprep.subr.mxu0 0.0
    %3008 = vmatpush1.msra.mxu0 %v2667
    %3009 = vmatprep.subr.mxu0 0.0
    %3010 = vmatpush1.msra.mxu0 %v2668
    %3011 = vmatprep.subr.mxu0 0.0
    %3012 = vmatpush1.msra.mxu0 %v2669
    %3013 = vmatprep.subr.mxu0 0.0
    %3014 = vmatpush1.msra.mxu0 %v2670
    %3015 = vmatprep.subr.mxu0 0.0
    %3016 = vmatpush1.msra.mxu0 0.0
    %3017 = vmatprep.subr.mxu0 0.0
    %3018 = vmatpush1.msra.mxu0 0.0
    %3019 = vmatprep.subr.mxu0 0.0
    %3020 = vmatpush1.msra.mxu0 0.0
    %3021 = vmatprep.subr.mxu0 0.0
    %3022 = vmatpush1.msra.mxu0 0.0
    %3023 = vmatprep.subr.mxu0 0.0
    %3024 = vmatpush1.msra.mxu0 0.0
    %3025 = vmatprep.subr.mxu0 0.0
    %3026 = vmatpush1.msra.mxu0 0.0
    %3027 = vmatprep.subr.mxu0 0.0
    %3028 = vmatpush1.msra.mxu0 0.0
    %3029 = vmatprep.subr.mxu0 0.0
    %3030 = vmatpush1.msra.mxu0 0.0
    %3031 = vmatprep.subr.mxu0 0.0
    %3032 = vmatpush1.msra.mxu0 0.0
    %3033 = vmatprep.subr.mxu0 0.0
    %3034 = vmatpush1.msra.mxu0 0.0
    %3035 = vmatprep.subr.mxu0 0.0
    %3036 = vmatpush1.msra.mxu0 0.0
    %3037 = vmatprep.subr.mxu0 0.0
    %3038 = vmatpush1.msra.mxu0 0.0
    %3039 = vmatprep.subr.mxu0 0.0
    %3040 = vmatpush1.msra.mxu0 0.0
    %3041 = vmatprep.subr.mxu0 0.0
    %3042 = vmatpush1.msra.mxu0 0.0
    %3043 = vmatprep.subr.mxu0 0.0
    %3044 = vmatpush1.msra.mxu0 0.0
    %3045 = vmatprep.subr.mxu0 0.0
    %3046 = vmatpush1.msra.mxu0 0.0
    %3047 = vmatprep.subr.mxu0 0.0
    %3048 = vmatpush1.msra.mxu0 0.0
    %3049 = vmatprep.subr.mxu0 0.0
    %3050 = vmatpush1.msra.mxu0 0.0
    %3051 = vmatprep.subr.mxu0 0.0
    %3052 = vmatpush1.msra.mxu0 0.0
    %3053 = vmatprep.subr.mxu0 0.0
    %3054 = vmatpush1.msra.mxu0 0.0
    %3055 = vmatprep.subr.mxu0 0.0
    %3056 = vmatpush1.msra.mxu0 0.0
    %3057 = vmatprep.subr.mxu0 0.0
    %3058 = vmatpush1.msra.mxu0 0.0
    %3059 = vmatprep.subr.mxu0 0.0
    %3060 = vmatpush1.msra.mxu0 0.0
    %3061 = vmatprep.subr.mxu0 0.0
    %3062 = vmatpush1.msra.mxu0 0.0
    %3063 = vmatprep.subr.mxu0 0.0
    %3064 = vmatpush1.msra.mxu0 0.0
    %3065 = vmatprep.subr.mxu0 0.0
    %3066 = vmatpush1.msra.mxu0 0.0
    %3067 = vmatprep.subr.mxu0 0.0
    %3068 = vmatpush1.msra.mxu0 0.0
    %3069 = vmatprep.subr.mxu0 0.0
    %3070 = vmatpush1.msra.mxu0 0.0
    %3071 = vmatprep.mubr.f32.mxu0 0.0
    %3072 = vmatmul.mubr.f32.gmra.mrb[0].mxu0 %v492
    %v3073 = vpop.f32.mrb[0].mxu0
    %v3074 = vadd.f32 0.0, %v3073
    %v3075 = vpop.f32.mrb[0].mxu0
    %3076 = vmatprep.mubr.f32.mxu0 0.0
    %3077 = vmatmul.mubr.f32.gmra.mrb[0].mxu0 %v495
    %v3078 = vpop.f32.mrb[0].mxu0
    %v3079 = vadd.f32 0.0, %v3078
    %v3080 = vpop.f32.mrb[0].mxu0
    %3081 = vmatprep.mubr.f32.mxu0 0.0
    %3082 = vmatmul.mubr.f32.gmra.mrb[0].mxu0 %v498
    %v3083 = vpop.f32.mrb[0].mxu0
    %v3084 = vadd.f32 0.0, %v3083
    %v3085 = vpop.f32.mrb[0].mxu0
    %3086 = vmatprep.mubr.f32.mxu0 0.0
    %3087 = vmatmul.mubr.f32.gmra.mrb[0].mxu0 %v501
    %v3088 = vpop.f32.mrb[0].mxu0
    %v3089 = vadd.f32 0.0, %v3088
    %v3090 = vpop.f32.mrb[0].mxu0
    %3091 = vdwg.mxu0
    %v3092 = vadd.f32 %v2684, %v3074
    %v3093 = vadd.f32 %v2685, %v3079
    %v3094 = vadd.f32 %v2686, %v3084
    %v3095 = vadd.f32 %v2687, %v3089
    %v3096 = vxor.u32 %v3092, 2147483648
    %v3097 = vxor.u32 %v3093, 2147483648
    %v3098 = vxor.u32 %v3094, 2147483648
    %v3099 = vxor.u32 %v3095, 2147483648
    %v3100 = vmul.f32 %v3096, 1.442695
    %v3101 = vpow.pop %v3100
    %v3102 = vmul.f32 %v3097, 1.442695
    %v3103 = vpow.pop %v3102
    %v3104 = vmul.f32 %v3098, 1.442695
    %v3105 = vpow.pop %v3104
    %v3106 = vmul.f32 %v3099, 1.442695
    %v3107 = vpow.pop %v3106
    %v3108 = vadd.f32 %v3101, 1.0
    %v3109 = vadd.f32 %v3103, 1.0
    %v3110 = vadd.f32 %v3105, 1.0
    %v3111 = vadd.f32 %v3107, 1.0
    %v3112 = vrcp.pop %v3108
    %v3113 = vmul.f32 1.0, %v3112
    %v3114 = vrcp.pop %v3109
    %v3115 = vmul.f32 1.0, %v3114
    %v3116 = vrcp.pop %v3110
    %v3117 = vmul.f32 1.0, %v3116
    %v3118 = vrcp.pop %v3111
    %v3119 = vmul.f32 1.0, %v3118
    %v3120 = vmul.f32 %v2907, %v2659
    %v3121 = vmul.f32 %v2909, %v2660
    %v3122 = vmul.f32 %v2911, %v2661
    %v3123 = vmul.f32 %v2913, %v2662
    %v3124 = vmul.f32 %v2794, %v3003
    %v3125 = vmul.f32 %v2796, %v3004
    %v3126 = vmul.f32 %v2798, %v3005
    %v3127 = vmul.f32 %v2800, %v3006
    %v3128 = vadd.f32 %v3120, %v3124
    %v3129 = vadd.f32 %v3121, %v3125
    %v3130 = vadd.f32 %v3122, %v3126
    %v3131 = vadd.f32 %v3123, %v3127
    %v3132 = vtanh.pop %v3128
    %v3133 = vtanh.pop %v3129
    %v3134 = vtanh.pop %v3130
    %v3135 = vtanh.pop %v3131
    %v3136 = vmul.f32 %v3113, %v3132
    %v3137 = vmul.f32 %v3115, %v3133
    %v3138 = vmul.f32 %v3117, %v3134
    %v3139 = vmul.f32 %v3119, %v3135
    %s3140 = scalar_lea.vmem [#allocation5], 64
    %3141 = vst [vmem:[%s3140] sm:$0xff] %v3136
    %3142 = vst [vmem:[%s3140 + $0x8] sm:$0xff] %v3137
    %3143 = vst [vmem:[%s3140 + $0x10] sm:$0xff] %v3138
    %3144 = vst [vmem:[%s3140 + $0x18] sm:$0xff] %v3139
    %v3145 = vld [vmem:[%s1653] sm:$0xff]
    %v3146 = vld [vmem:[%s1653 + $0x8] sm:$0xff]
    %v3147 = vld [vmem:[%s1653 + $0x10] sm:$0xff]
    %v3148 = vld [vmem:[%s1653 + $0x18] sm:$0xff]
    %v3149 = vld [vmem:[%s1653 + $0x40] sm:$0xff]
    %v3150 = vld [vmem:[%s1653 + $0x48] sm:$0xff]
    %v3151 = vld [vmem:[%s1653 + $0x50] sm:$0xff]
    %v3152 = vld [vmem:[%s1653 + $0x58] sm:$0xff]
    %v3153 = vld [vmem:[%s1653 + $0x60] sm:$0xff]
    %v3154 = vld [vmem:[%s1653 + $0x68] sm:$0xff]
    %v3155 = vld [vmem:[%s1653 + $0x70] sm:$0xff]
    %v3156 = vld [vmem:[%s1653 + $0x78] sm:$0xff]
    %v3157 = vxor.u32 %v3145, 2147483648
    %v3158 = vxor.u32 %v3146, 2147483648
    %v3159 = vxor.u32 %v3147, 2147483648
    %v3160 = vxor.u32 %v3148, 2147483648
    %v3161 = vmul.f32 %v3157, 1.442695
    %v3162 = vpow.pop %v3161
    %v3163 = vmul.f32 %v3158, 1.442695
    %v3164 = vpow.pop %v3163
    %v3165 = vmul.f32 %v3159, 1.442695
    %v3166 = vpow.pop %v3165
    %v3167 = vmul.f32 %v3160, 1.442695
    %v3168 = vpow.pop %v3167
    %v3169 = vadd.f32 %v3162, 1.0
    %v3170 = vadd.f32 %v3164, 1.0
    %v3171 = vadd.f32 %v3166, 1.0
    %v3172 = vadd.f32 %v3168, 1.0
    %v3173 = vrcp.pop %v3169
    %v3174 = vmul.f32 1.0, %v3173
    %v3175 = vrcp.pop %v3170
    %v3176 = vmul.f32 1.0, %v3175
    %v3177 = vrcp.pop %v3171
    %v3178 = vmul.f32 1.0, %v3177
    %v3179 = vrcp.pop %v3172
    %v3180 = vmul.f32 1.0, %v3179
    %v3181 = vtanh.pop %v3149
    %v3182 = vtanh.pop %v3150
    %v3183 = vtanh.pop %v3151
    %v3184 = vtanh.pop %v3152
    %v3185 = vxor.u32 %v3153, 2147483648
    %v3186 = vxor.u32 %v3154, 2147483648
    %v3187 = vxor.u32 %v3155, 2147483648
    %v3188 = vxor.u32 %v3156, 2147483648
    %v3189 = vmul.f32 %v3185, 1.442695
    %v3190 = vpow.pop %v3189
    %v3191 = vmul.f32 %v3186, 1.442695
    %v3192 = vpow.pop %v3191
    %v3193 = vmul.f32 %v3187, 1.442695
    %v3194 = vpow.pop %v3193
    %v3195 = vmul.f32 %v3188, 1.442695
    %v3196 = vpow.pop %v3195
    %v3197 = vadd.f32 %v3190, 1.0
    %v3198 = vadd.f32 %v3192, 1.0
    %v3199 = vadd.f32 %v3194, 1.0
    %v3200 = vadd.f32 %v3196, 1.0
    %v3201 = vrcp.pop %v3197
    %v3202 = vmul.f32 1.0, %v3201
    %v3203 = vrcp.pop %v3198
    %v3204 = vmul.f32 1.0, %v3203
    %v3205 = vrcp.pop %v3199
    %v3206 = vmul.f32 1.0, %v3205
    %v3207 = vrcp.pop %v3200
    %v3208 = vmul.f32 1.0, %v3207
    %v3209 = vmul.f32 %v3174, %v3181
    %v3210 = vmul.f32 %v3176, %v3182
    %v3211 = vmul.f32 %v3178, %v3183
    %v3212 = vmul.f32 %v3180, %v3184
    %v3213 = vtanh.pop %v3209
    %v3214 = vtanh.pop %v3210
    %v3215 = vtanh.pop %v3211
    %v3216 = vtanh.pop %v3212
    %v3217 = vmul.f32 %v3202, %v3213
    %v3218 = vmul.f32 %v3204, %v3214
    %v3219 = vmul.f32 %v3206, %v3215
    %v3220 = vmul.f32 %v3208, %v3216
    %v3221 = vld [vmem:[%s2671] sm:$0xff]
    %v3222 = vld [vmem:[%s2671 + $0x8] sm:$0xff]
    %v3223 = vld [vmem:[%s2671 + $0x10] sm:$0xff]
    %v3224 = vld [vmem:[%s2671 + $0x18] sm:$0xff]
    %v3225 = vld [vmem:[%s2671 + $0x20] sm:$0xff]
    %v3226 = vld [vmem:[%s2671 + $0x28] sm:$0xff]
    %v3227 = vld [vmem:[%s2671 + $0x30] sm:$0xff]
    %v3228 = vld [vmem:[%s2671 + $0x38] sm:$0xff]
    %v3229 = vld [vmem:[%s2671 + $0x40] sm:$0xff]
    %v3230 = vld [vmem:[%s2671 + $0x48] sm:$0xff]
    %v3231 = vld [vmem:[%s2671 + $0x50] sm:$0xff]
    %v3232 = vld [vmem:[%s2671 + $0x58] sm:$0xff]
    %v3233 = vld [vmem:[%s2671 + $0x60] sm:$0xff]
    %v3234 = vld [vmem:[%s2671 + $0x68] sm:$0xff]
    %v3235 = vld [vmem:[%s2671 + $0x70] sm:$0xff]
    %v3236 = vld [vmem:[%s2671 + $0x78] sm:$0xff]
    %3237 = vmatprep.subr.mxu0 0.0
    %3238 = vmatpush1.msra.mxu0 %v3217
    %3239 = vmatprep.subr.mxu0 0.0
    %3240 = vmatpush1.msra.mxu0 %v3218
    %3241 = vmatprep.subr.mxu0 0.0
    %3242 = vmatpush1.msra.mxu0 %v3219
    %3243 = vmatprep.subr.mxu0 0.0
    %3244 = vmatpush1.msra.mxu0 %v3220
    %3245 = vmatprep.subr.mxu0 0.0
    %3246 = vmatpush1.msra.mxu0 0.0
    %3247 = vmatprep.subr.mxu0 0.0
    %3248 = vmatpush1.msra.mxu0 0.0
    %3249 = vmatprep.subr.mxu0 0.0
    %3250 = vmatpush1.msra.mxu0 0.0
    %3251 = vmatprep.subr.mxu0 0.0
    %3252 = vmatpush1.msra.mxu0 0.0
    %3253 = vmatprep.subr.mxu0 0.0
    %3254 = vmatpush1.msra.mxu0 0.0
    %3255 = vmatprep.subr.mxu0 0.0
    %3256 = vmatpush1.msra.mxu0 0.0
    %3257 = vmatprep.subr.mxu0 0.0
    %3258 = vmatpush1.msra.mxu0 0.0
    %3259 = vmatprep.subr.mxu0 0.0
    %3260 = vmatpush1.msra.mxu0 0.0
    %3261 = vmatprep.subr.mxu0 0.0
    %3262 = vmatpush1.msra.mxu0 0.0
    %3263 = vmatprep.subr.mxu0 0.0
    %3264 = vmatpush1.msra.mxu0 0.0
    %3265 = vmatprep.subr.mxu0 0.0
    %3266 = vmatpush1.msra.mxu0 0.0
    %3267 = vmatprep.subr.mxu0 0.0
    %3268 = vmatpush1.msra.mxu0 0.0
    %3269 = vmatprep.subr.mxu0 0.0
    %3270 = vmatpush1.msra.mxu0 0.0
    %3271 = vmatprep.subr.mxu0 0.0
    %3272 = vmatpush1.msra.mxu0 0.0
    %3273 = vmatprep.subr.mxu0 0.0
    %3274 = vmatpush1.msra.mxu0 0.0
    %3275 = vmatprep.subr.mxu0 0.0
    %3276 = vmatpush1.msra.mxu0 0.0
    %3277 = vmatprep.subr.mxu0 0.0
    %3278 = vmatpush1.msra.mxu0 0.0
    %3279 = vmatprep.subr.mxu0 0.0
    %3280 = vmatpush1.msra.mxu0 0.0
    %3281 = vmatprep.subr.mxu0 0.0
    %3282 = vmatpush1.msra.mxu0 0.0
    %3283 = vmatprep.subr.mxu0 0.0
    %3284 = vmatpush1.msra.mxu0 0.0
    %3285 = vmatprep.subr.mxu0 0.0
    %3286 = vmatpush1.msra.mxu0 0.0
    %3287 = vmatprep.subr.mxu0 0.0
    %3288 = vmatpush1.msra.mxu0 0.0
    %3289 = vmatprep.subr.mxu0 0.0
    %3290 = vmatpush1.msra.mxu0 0.0
    %3291 = vmatprep.subr.mxu0 0.0
    %3292 = vmatpush1.msra.mxu0 0.0
    %3293 = vmatprep.subr.mxu0 0.0
    %3294 = vmatpush1.msra.mxu0 0.0
    %3295 = vmatprep.subr.mxu0 0.0
    %3296 = vmatpush1.msra.mxu0 0.0
    %3297 = vmatprep.subr.mxu0 0.0
    %3298 = vmatpush1.msra.mxu0 0.0
    %3299 = vmatprep.subr.mxu0 0.0
    %3300 = vmatpush1.msra.mxu0 0.0
    %3301 = vmatprep.mubr.f32.mxu0 0.0
    %3302 = vmatmul.mubr.f32.gmra.mrb[0].mxu0 %v137
    %v3303 = vpop.f32.mrb[0].mxu0
    %v3304 = vadd.f32 0.0, %v3303
    %v3305 = vpop.f32.mrb[0].mxu0
    %3306 = vmatprep.mubr.f32.mxu0 0.0
    %3307 = vmatmul.mubr.f32.gmra.mrb[0].mxu0 %v140
    %v3308 = vpop.f32.mrb[0].mxu0
    %v3309 = vadd.f32 0.0, %v3308
    %v3310 = vpop.f32.mrb[0].mxu0
    %3311 = vmatprep.mubr.f32.mxu0 0.0
    %3312 = vmatmul.mubr.f32.gmra.mrb[0].mxu0 %v143
    %v3313 = vpop.f32.mrb[0].mxu0
    %v3314 = vadd.f32 0.0, %v3313
    %v3315 = vpop.f32.mrb[0].mxu0
    %3316 = vmatprep.mubr.f32.mxu0 0.0
    %3317 = vmatmul.mubr.f32.gmra.mrb[0].mxu0 %v146
    %v3318 = vpop.f32.mrb[0].mxu0
    %v3319 = vadd.f32 0.0, %v3318
    %v3320 = vpop.f32.mrb[0].mxu0
    %3321 = vdwg.mxu0
    %v3322 = vadd.f32 %v3221, %v3304
    %v3323 = vadd.f32 %v3222, %v3309
    %v3324 = vadd.f32 %v3223, %v3314
    %v3325 = vadd.f32 %v3224, %v3319
    %v3326 = vxor.u32 %v3322, 2147483648
    %v3327 = vxor.u32 %v3323, 2147483648
    %v3328 = vxor.u32 %v3324, 2147483648
    %v3329 = vxor.u32 %v3325, 2147483648
    %v3330 = vmul.f32 %v3326, 1.442695
    %v3331 = vpow.pop %v3330
    %v3332 = vmul.f32 %v3327, 1.442695
    %v3333 = vpow.pop %v3332
    %v3334 = vmul.f32 %v3328, 1.442695
    %v3335 = vpow.pop %v3334
    %v3336 = vmul.f32 %v3329, 1.442695
    %v3337 = vpow.pop %v3336
    %v3338 = vadd.f32 %v3331, 1.0
    %v3339 = vadd.f32 %v3333, 1.0
    %v3340 = vadd.f32 %v3335, 1.0
    %v3341 = vadd.f32 %v3337, 1.0
    %v3342 = vrcp.pop %v3338
    %v3343 = vmul.f32 1.0, %v3342
    %v3344 = vrcp.pop %v3339
    %v3345 = vmul.f32 1.0, %v3344
    %v3346 = vrcp.pop %v3340
    %v3347 = vmul.f32 1.0, %v3346
    %v3348 = vrcp.pop %v3341
    %v3349 = vmul.f32 1.0, %v3348
    %3350 = vmatprep.subr.mxu0 0.0
    %3351 = vmatpush1.msra.mxu0 %v3217
    %3352 = vmatprep.subr.mxu0 0.0
    %3353 = vmatpush1.msra.mxu0 %v3218
    %3354 = vmatprep.subr.mxu0 0.0
    %3355 = vmatpush1.msra.mxu0 %v3219
    %3356 = vmatprep.subr.mxu0 0.0
    %3357 = vmatpush1.msra.mxu0 %v3220
    %3358 = vmatprep.subr.mxu0 0.0
    %3359 = vmatpush1.msra.mxu0 0.0
    %3360 = vmatprep.subr.mxu0 0.0
    %3361 = vmatpush1.msra.mxu0 0.0
    %3362 = vmatprep.subr.mxu0 0.0
    %3363 = vmatpush1.msra.mxu0 0.0
    %3364 = vmatprep.subr.mxu0 0.0
    %3365 = vmatpush1.msra.mxu0 0.0
    %3366 = vmatprep.subr.mxu0 0.0
    %3367 = vmatpush1.msra.mxu0 0.0
    %3368 = vmatprep.subr.mxu0 0.0
    %3369 = vmatpush1.msra.mxu0 0.0
    %3370 = vmatprep.subr.mxu0 0.0
    %3371 = vmatpush1.msra.mxu0 0.0
    %3372 = vmatprep.subr.mxu0 0.0
    %3373 = vmatpush1.msra.mxu0 0.0
    %3374 = vmatprep.subr.mxu0 0.0
    %3375 = vmatpush1.msra.mxu0 0.0
    %3376 = vmatprep.subr.mxu0 0.0
    %3377 = vmatpush1.msra.mxu0 0.0
    %3378 = vmatprep.subr.mxu0 0.0
    %3379 = vmatpush1.msra.mxu0 0.0
    %3380 = vmatprep.subr.mxu0 0.0
    %3381 = vmatpush1.msra.mxu0 0.0
    %3382 = vmatprep.subr.mxu0 0.0
    %3383 = vmatpush1.msra.mxu0 0.0
    %3384 = vmatprep.subr.mxu0 0.0
    %3385 = vmatpush1.msra.mxu0 0.0
    %3386 = vmatprep.subr.mxu0 0.0
    %3387 = vmatpush1.msra.mxu0 0.0
    %3388 = vmatprep.subr.mxu0 0.0
    %3389 = vmatpush1.msra.mxu0 0.0
    %3390 = vmatprep.subr.mxu0 0.0
    %3391 = vmatpush1.msra.mxu0 0.0
    %3392 = vmatprep.subr.mxu0 0.0
    %3393 = vmatpush1.msra.mxu0 0.0
    %3394 = vmatprep.subr.mxu0 0.0
    %3395 = vmatpush1.msra.mxu0 0.0
    %3396 = vmatprep.subr.mxu0 0.0
    %3397 = vmatpush1.msra.mxu0 0.0
    %3398 = vmatprep.subr.mxu0 0.0
    %3399 = vmatpush1.msra.mxu0 0.0
    %3400 = vmatprep.subr.mxu0 0.0
    %3401 = vmatpush1.msra.mxu0 0.0
    %3402 = vmatprep.subr.mxu0 0.0
    %3403 = vmatpush1.msra.mxu0 0.0
    %3404 = vmatprep.subr.mxu0 0.0
    %3405 = vmatpush1.msra.mxu0 0.0
    %3406 = vmatprep.subr.mxu0 0.0
    %3407 = vmatpush1.msra.mxu0 0.0
    %3408 = vmatprep.subr.mxu0 0.0
    %3409 = vmatpush1.msra.mxu0 0.0
    %3410 = vmatprep.subr.mxu0 0.0
    %3411 = vmatpush1.msra.mxu0 0.0
    %3412 = vmatprep.subr.mxu0 0.0
    %3413 = vmatpush1.msra.mxu0 0.0
    %3414 = vmatprep.mubr.f32.mxu0 0.0
    %3415 = vmatmul.mubr.f32.gmra.mrb[0].mxu0 %v262
    %v3416 = vpop.f32.mrb[0].mxu0
    %v3417 = vadd.f32 0.0, %v3416
    %v3418 = vpop.f32.mrb[0].mxu0
    %3419 = vmatprep.mubr.f32.mxu0 0.0
    %3420 = vmatmul.mubr.f32.gmra.mrb[0].mxu0 %v265
    %v3421 = vpop.f32.mrb[0].mxu0
    %v3422 = vadd.f32 0.0, %v3421
    %v3423 = vpop.f32.mrb[0].mxu0
    %3424 = vmatprep.mubr.f32.mxu0 0.0
    %3425 = vmatmul.mubr.f32.gmra.mrb[0].mxu0 %v268
    %v3426 = vpop.f32.mrb[0].mxu0
    %v3427 = vadd.f32 0.0, %v3426
    %v3428 = vpop.f32.mrb[0].mxu0
    %3429 = vmatprep.mubr.f32.mxu0 0.0
    %3430 = vmatmul.mubr.f32.gmra.mrb[0].mxu0 %v271
    %v3431 = vpop.f32.mrb[0].mxu0
    %v3432 = vadd.f32 0.0, %v3431
    %v3433 = vpop.f32.mrb[0].mxu0
    %3434 = vdwg.mxu0
    %v3435 = vadd.f32 %v3225, %v3417
    %v3436 = vadd.f32 %v3226, %v3422
    %v3437 = vadd.f32 %v3227, %v3427
    %v3438 = vadd.f32 %v3228, %v3432
    %v3439 = vxor.u32 %v3435, 2147483648
    %v3440 = vxor.u32 %v3436, 2147483648
    %v3441 = vxor.u32 %v3437, 2147483648
    %v3442 = vxor.u32 %v3438, 2147483648
    %v3443 = vmul.f32 %v3439, 1.442695
    %v3444 = vpow.pop %v3443
    %v3445 = vmul.f32 %v3440, 1.442695
    %v3446 = vpow.pop %v3445
    %v3447 = vmul.f32 %v3441, 1.442695
    %v3448 = vpow.pop %v3447
    %v3449 = vmul.f32 %v3442, 1.442695
    %v3450 = vpow.pop %v3449
    %v3451 = vadd.f32 %v3444, 1.0
    %v3452 = vadd.f32 %v3446, 1.0
    %v3453 = vadd.f32 %v3448, 1.0
    %v3454 = vadd.f32 %v3450, 1.0
    %v3455 = vrcp.pop %v3451
    %v3456 = vmul.f32 1.0, %v3455
    %v3457 = vrcp.pop %v3452
    %v3458 = vmul.f32 1.0, %v3457
    %v3459 = vrcp.pop %v3453
    %v3460 = vmul.f32 1.0, %v3459
    %v3461 = vrcp.pop %v3454
    %v3462 = vmul.f32 1.0, %v3461
    %3463 = vmatprep.subr.mxu0 0.0
    %3464 = vmatpush1.msra.mxu0 %v3217
    %3465 = vmatprep.subr.mxu0 0.0
    %3466 = vmatpush1.msra.mxu0 %v3218
    %3467 = vmatprep.subr.mxu0 0.0
    %3468 = vmatpush1.msra.mxu0 %v3219
    %3469 = vmatprep.subr.mxu0 0.0
    %3470 = vmatpush1.msra.mxu0 %v3220
    %3471 = vmatprep.subr.mxu0 0.0
    %3472 = vmatpush1.msra.mxu0 0.0
    %3473 = vmatprep.subr.mxu0 0.0
    %3474 = vmatpush1.msra.mxu0 0.0
    %3475 = vmatprep.subr.mxu0 0.0
    %3476 = vmatpush1.msra.mxu0 0.0
    %3477 = vmatprep.subr.mxu0 0.0
    %3478 = vmatpush1.msra.mxu0 0.0
    %3479 = vmatprep.subr.mxu0 0.0
    %3480 = vmatpush1.msra.mxu0 0.0
    %3481 = vmatprep.subr.mxu0 0.0
    %3482 = vmatpush1.msra.mxu0 0.0
    %3483 = vmatprep.subr.mxu0 0.0
    %3484 = vmatpush1.msra.mxu0 0.0
    %3485 = vmatprep.subr.mxu0 0.0
    %3486 = vmatpush1.msra.mxu0 0.0
    %3487 = vmatprep.subr.mxu0 0.0
    %3488 = vmatpush1.msra.mxu0 0.0
    %3489 = vmatprep.subr.mxu0 0.0
    %3490 = vmatpush1.msra.mxu0 0.0
    %3491 = vmatprep.subr.mxu0 0.0
    %3492 = vmatpush1.msra.mxu0 0.0
    %3493 = vmatprep.subr.mxu0 0.0
    %3494 = vmatpush1.msra.mxu0 0.0
    %3495 = vmatprep.subr.mxu0 0.0
    %3496 = vmatpush1.msra.mxu0 0.0
    %3497 = vmatprep.subr.mxu0 0.0
    %3498 = vmatpush1.msra.mxu0 0.0
    %3499 = vmatprep.subr.mxu0 0.0
    %3500 = vmatpush1.msra.mxu0 0.0
    %3501 = vmatprep.subr.mxu0 0.0
    %3502 = vmatpush1.msra.mxu0 0.0
    %3503 = vmatprep.subr.mxu0 0.0
    %3504 = vmatpush1.msra.mxu0 0.0
    %3505 = vmatprep.subr.mxu0 0.0
    %3506 = vmatpush1.msra.mxu0 0.0
    %3507 = vmatprep.subr.mxu0 0.0
    %3508 = vmatpush1.msra.mxu0 0.0
    %3509 = vmatprep.subr.mxu0 0.0
    %3510 = vmatpush1.msra.mxu0 0.0
    %3511 = vmatprep.subr.mxu0 0.0
    %3512 = vmatpush1.msra.mxu0 0.0
    %3513 = vmatprep.subr.mxu0 0.0
    %3514 = vmatpush1.msra.mxu0 0.0
    %3515 = vmatprep.subr.mxu0 0.0
    %3516 = vmatpush1.msra.mxu0 0.0
    %3517 = vmatprep.subr.mxu0 0.0
    %3518 = vmatpush1.msra.mxu0 0.0
    %3519 = vmatprep.subr.mxu0 0.0
    %3520 = vmatpush1.msra.mxu0 0.0
    %3521 = vmatprep.subr.mxu0 0.0
    %3522 = vmatpush1.msra.mxu0 0.0
    %3523 = vmatprep.subr.mxu0 0.0
    %3524 = vmatpush1.msra.mxu0 0.0
    %3525 = vmatprep.subr.mxu0 0.0
    %3526 = vmatpush1.msra.mxu0 0.0
    %3527 = vmatprep.mubr.f32.mxu0 0.0
    %3528 = vmatmul.mubr.f32.gmra.mrb[0].mxu0 %v387
    %v3529 = vpop.f32.mrb[0].mxu0
    %v3530 = vadd.f32 0.0, %v3529
    %v3531 = vpop.f32.mrb[0].mxu0
    %3532 = vmatprep.mubr.f32.mxu0 0.0
    %3533 = vmatmul.mubr.f32.gmra.mrb[0].mxu0 %v390
    %v3534 = vpop.f32.mrb[0].mxu0
    %v3535 = vadd.f32 0.0, %v3534
    %v3536 = vpop.f32.mrb[0].mxu0
    %3537 = vmatprep.mubr.f32.mxu0 0.0
    %3538 = vmatmul.mubr.f32.gmra.mrb[0].mxu0 %v393
    %v3539 = vpop.f32.mrb[0].mxu0
    %v3540 = vadd.f32 0.0, %v3539
    %v3541 = vpop.f32.mrb[0].mxu0
    %3542 = vmatprep.mubr.f32.mxu0 0.0
    %3543 = vmatmul.mubr.f32.gmra.mrb[0].mxu0 %v396
    %v3544 = vpop.f32.mrb[0].mxu0
    %v3545 = vadd.f32 0.0, %v3544
    %v3546 = vpop.f32.mrb[0].mxu0
    %3547 = vdwg.mxu0
    %v3548 = vadd.f32 %v3229, %v3530
    %v3549 = vadd.f32 %v3230, %v3535
    %v3550 = vadd.f32 %v3231, %v3540
    %v3551 = vadd.f32 %v3232, %v3545
    %v3552 = vtanh.pop %v3548
    %v3553 = vtanh.pop %v3549
    %v3554 = vtanh.pop %v3550
    %v3555 = vtanh.pop %v3551
    %3556 = vmatprep.subr.mxu0 0.0
    %3557 = vmatpush1.msra.mxu0 %v3217
    %3558 = vmatprep.subr.mxu0 0.0
    %3559 = vmatpush1.msra.mxu0 %v3218
    %3560 = vmatprep.subr.mxu0 0.0
    %3561 = vmatpush1.msra.mxu0 %v3219
    %3562 = vmatprep.subr.mxu0 0.0
    %3563 = vmatpush1.msra.mxu0 %v3220
    %3564 = vmatprep.subr.mxu0 0.0
    %3565 = vmatpush1.msra.mxu0 0.0
    %3566 = vmatprep.subr.mxu0 0.0
    %3567 = vmatpush1.msra.mxu0 0.0
    %3568 = vmatprep.subr.mxu0 0.0
    %3569 = vmatpush1.msra.mxu0 0.0
    %3570 = vmatprep.subr.mxu0 0.0
    %3571 = vmatpush1.msra.mxu0 0.0
    %3572 = vmatprep.subr.mxu0 0.0
    %3573 = vmatpush1.msra.mxu0 0.0
    %3574 = vmatprep.subr.mxu0 0.0
    %3575 = vmatpush1.msra.mxu0 0.0
    %3576 = vmatprep.subr.mxu0 0.0
    %3577 = vmatpush1.msra.mxu0 0.0
    %3578 = vmatprep.subr.mxu0 0.0
    %3579 = vmatpush1.msra.mxu0 0.0
    %3580 = vmatprep.subr.mxu0 0.0
    %3581 = vmatpush1.msra.mxu0 0.0
    %3582 = vmatprep.subr.mxu0 0.0
    %3583 = vmatpush1.msra.mxu0 0.0
    %3584 = vmatprep.subr.mxu0 0.0
    %3585 = vmatpush1.msra.mxu0 0.0
    %3586 = vmatprep.subr.mxu0 0.0
    %3587 = vmatpush1.msra.mxu0 0.0
    %3588 = vmatprep.subr.mxu0 0.0
    %3589 = vmatpush1.msra.mxu0 0.0
    %3590 = vmatprep.subr.mxu0 0.0
    %3591 = vmatpush1.msra.mxu0 0.0
    %3592 = vmatprep.subr.mxu0 0.0
    %3593 = vmatpush1.msra.mxu0 0.0
    %3594 = vmatprep.subr.mxu0 0.0
    %3595 = vmatpush1.msra.mxu0 0.0
    %3596 = vmatprep.subr.mxu0 0.0
    %3597 = vmatpush1.msra.mxu0 0.0
    %3598 = vmatprep.subr.mxu0 0.0
    %3599 = vmatpush1.msra.mxu0 0.0
    %3600 = vmatprep.subr.mxu0 0.0
    %3601 = vmatpush1.msra.mxu0 0.0
    %3602 = vmatprep.subr.mxu0 0.0
    %3603 = vmatpush1.msra.mxu0 0.0
    %3604 = vmatprep.subr.mxu0 0.0
    %3605 = vmatpush1.msra.mxu0 0.0
    %3606 = vmatprep.subr.mxu0 0.0
    %3607 = vmatpush1.msra.mxu0 0.0
    %3608 = vmatprep.subr.mxu0 0.0
    %3609 = vmatpush1.msra.mxu0 0.0
    %3610 = vmatprep.subr.mxu0 0.0
    %3611 = vmatpush1.msra.mxu0 0.0
    %3612 = vmatprep.subr.mxu0 0.0
    %3613 = vmatpush1.msra.mxu0 0.0
    %3614 = vmatprep.subr.mxu0 0.0
    %3615 = vmatpush1.msra.mxu0 0.0
    %3616 = vmatprep.subr.mxu0 0.0
    %3617 = vmatpush1.msra.mxu0 0.0
    %3618 = vmatprep.subr.mxu0 0.0
    %3619 = vmatpush1.msra.mxu0 0.0
    %3620 = vmatprep.mubr.f32.mxu0 0.0
    %3621 = vmatmul.mubr.f32.gmra.mrb[0].mxu0 %v492
    %v3622 = vpop.f32.mrb[0].mxu0
    %v3623 = vadd.f32 0.0, %v3622
    %v3624 = vpop.f32.mrb[0].mxu0
    %3625 = vmatprep.mubr.f32.mxu0 0.0
    %3626 = vmatmul.mubr.f32.gmra.mrb[0].mxu0 %v495
    %v3627 = vpop.f32.mrb[0].mxu0
    %v3628 = vadd.f32 0.0, %v3627
    %v3629 = vpop.f32.mrb[0].mxu0
    %3630 = vmatprep.mubr.f32.mxu0 0.0
    %3631 = vmatmul.mubr.f32.gmra.mrb[0].mxu0 %v498
    %v3632 = vpop.f32.mrb[0].mxu0
    %v3633 = vadd.f32 0.0, %v3632
    %v3634 = vpop.f32.mrb[0].mxu0
    %3635 = vmatprep.mubr.f32.mxu0 0.0
    %3636 = vmatmul.mubr.f32.gmra.mrb[0].mxu0 %v501
    %v3637 = vpop.f32.mrb[0].mxu0
    %v3638 = vadd.f32 0.0, %v3637
    %v3639 = vpop.f32.mrb[0].mxu0
    %3640 = vdwg.mxu0
    %v3641 = vadd.f32 %v3233, %v3623
    %v3642 = vadd.f32 %v3234, %v3628
    %v3643 = vadd.f32 %v3235, %v3633
    %v3644 = vadd.f32 %v3236, %v3638
    %v3645 = vxor.u32 %v3641, 2147483648
    %v3646 = vxor.u32 %v3642, 2147483648
    %v3647 = vxor.u32 %v3643, 2147483648
    %v3648 = vxor.u32 %v3644, 2147483648
    %v3649 = vmul.f32 %v3645, 1.442695
    %v3650 = vpow.pop %v3649
    %v3651 = vmul.f32 %v3646, 1.442695
    %v3652 = vpow.pop %v3651
    %v3653 = vmul.f32 %v3647, 1.442695
    %v3654 = vpow.pop %v3653
    %v3655 = vmul.f32 %v3648, 1.442695
    %v3656 = vpow.pop %v3655
    %v3657 = vadd.f32 %v3650, 1.0
    %v3658 = vadd.f32 %v3652, 1.0
    %v3659 = vadd.f32 %v3654, 1.0
    %v3660 = vadd.f32 %v3656, 1.0
    %v3661 = vrcp.pop %v3657
    %v3662 = vmul.f32 1.0, %v3661
    %v3663 = vrcp.pop %v3658
    %v3664 = vmul.f32 1.0, %v3663
    %v3665 = vrcp.pop %v3659
    %v3666 = vmul.f32 1.0, %v3665
    %v3667 = vrcp.pop %v3660
    %v3668 = vmul.f32 1.0, %v3667
    %v3669 = vmul.f32 %v3456, %v3209
    %v3670 = vmul.f32 %v3458, %v3210
    %v3671 = vmul.f32 %v3460, %v3211
    %v3672 = vmul.f32 %v3462, %v3212
    %v3673 = vmul.f32 %v3343, %v3552
    %v3674 = vmul.f32 %v3345, %v3553
    %v3675 = vmul.f32 %v3347, %v3554
    %v3676 = vmul.f32 %v3349, %v3555
    %v3677 = vadd.f32 %v3669, %v3673
    %v3678 = vadd.f32 %v3670, %v3674
    %v3679 = vadd.f32 %v3671, %v3675
    %v3680 = vadd.f32 %v3672, %v3676
    %v3681 = vtanh.pop %v3677
    %v3682 = vtanh.pop %v3678
    %v3683 = vtanh.pop %v3679
    %v3684 = vtanh.pop %v3680
    %v3685 = vmul.f32 %v3662, %v3681
    %v3686 = vmul.f32 %v3664, %v3682
    %v3687 = vmul.f32 %v3666, %v3683
    %v3688 = vmul.f32 %v3668, %v3684
    %s3689 = scalar_lea.vmem [#allocation2], 640
    %v3690 = vld [vmem:[%s3689] sm:$0xff]
    %v3691 = vld [vmem:[%s3689 + $0x8] sm:$0xff]
    %v3692 = vld [vmem:[%s3689 + $0x10] sm:$0xff]
    %v3693 = vld [vmem:[%s3689 + $0x18] sm:$0xff]
    %v3694 = vld [vmem:[%s3689 + $0x20] sm:$0xff]
    %v3695 = vld [vmem:[%s3689 + $0x28] sm:$0xff]
    %v3696 = vld [vmem:[%s3689 + $0x30] sm:$0xff]
    %v3697 = vld [vmem:[%s3689 + $0x38] sm:$0xff]
    %v3698 = vld [vmem:[%s3689 + $0x40] sm:$0xff]
    %v3699 = vld [vmem:[%s3689 + $0x48] sm:$0xff]
    %v3700 = vld [vmem:[%s3689 + $0x50] sm:$0xff]
    %v3701 = vld [vmem:[%s3689 + $0x58] sm:$0xff]
    %v3702 = vld [vmem:[%s3689 + $0x60] sm:$0xff]
    %v3703 = vld [vmem:[%s3689 + $0x68] sm:$0xff]
    %v3704 = vld [vmem:[%s3689 + $0x70] sm:$0xff]
    %v3705 = vld [vmem:[%s3689 + $0x78] sm:$0xff]
    %3706 = vmatprep.subr.mxu0 0.0
    %3707 = vmatpush1.msra.mxu0 %v3685
    %3708 = vmatprep.subr.mxu0 0.0
    %3709 = vmatpush1.msra.mxu0 %v3686
    %3710 = vmatprep.subr.mxu0 0.0
    %3711 = vmatpush1.msra.mxu0 %v3687
    %3712 = vmatprep.subr.mxu0 0.0
    %3713 = vmatpush1.msra.mxu0 %v3688
    %3714 = vmatprep.subr.mxu0 0.0
    %3715 = vmatpush1.msra.mxu0 0.0
    %3716 = vmatprep.subr.mxu0 0.0
    %3717 = vmatpush1.msra.mxu0 0.0
    %3718 = vmatprep.subr.mxu0 0.0
    %3719 = vmatpush1.msra.mxu0 0.0
    %3720 = vmatprep.subr.mxu0 0.0
    %3721 = vmatpush1.msra.mxu0 0.0
    %3722 = vmatprep.subr.mxu0 0.0
    %3723 = vmatpush1.msra.mxu0 0.0
    %3724 = vmatprep.subr.mxu0 0.0
    %3725 = vmatpush1.msra.mxu0 0.0
    %3726 = vmatprep.subr.mxu0 0.0
    %3727 = vmatpush1.msra.mxu0 0.0
    %3728 = vmatprep.subr.mxu0 0.0
    %3729 = vmatpush1.msra.mxu0 0.0
    %3730 = vmatprep.subr.mxu0 0.0
    %3731 = vmatpush1.msra.mxu0 0.0
    %3732 = vmatprep.subr.mxu0 0.0
    %3733 = vmatpush1.msra.mxu0 0.0
    %3734 = vmatprep.subr.mxu0 0.0
    %3735 = vmatpush1.msra.mxu0 0.0
    %3736 = vmatprep.subr.mxu0 0.0
    %3737 = vmatpush1.msra.mxu0 0.0
    %3738 = vmatprep.subr.mxu0 0.0
    %3739 = vmatpush1.msra.mxu0 0.0
    %3740 = vmatprep.subr.mxu0 0.0
    %3741 = vmatpush1.msra.mxu0 0.0
    %3742 = vmatprep.subr.mxu0 0.0
    %3743 = vmatpush1.msra.mxu0 0.0
    %3744 = vmatprep.subr.mxu0 0.0
    %3745 = vmatpush1.msra.mxu0 0.0
    %3746 = vmatprep.subr.mxu0 0.0
    %3747 = vmatpush1.msra.mxu0 0.0
    %3748 = vmatprep.subr.mxu0 0.0
    %3749 = vmatpush1.msra.mxu0 0.0
    %3750 = vmatprep.subr.mxu0 0.0
    %3751 = vmatpush1.msra.mxu0 0.0
    %3752 = vmatprep.subr.mxu0 0.0
    %3753 = vmatpush1.msra.mxu0 0.0
    %3754 = vmatprep.subr.mxu0 0.0
    %3755 = vmatpush1.msra.mxu0 0.0
    %3756 = vmatprep.subr.mxu0 0.0
    %3757 = vmatpush1.msra.mxu0 0.0
    %3758 = vmatprep.subr.mxu0 0.0
    %3759 = vmatpush1.msra.mxu0 0.0
    %3760 = vmatprep.subr.mxu0 0.0
    %3761 = vmatpush1.msra.mxu0 0.0
    %3762 = vmatprep.subr.mxu0 0.0
    %3763 = vmatpush1.msra.mxu0 0.0
    %3764 = vmatprep.subr.mxu0 0.0
    %3765 = vmatpush1.msra.mxu0 0.0
    %3766 = vmatprep.subr.mxu0 0.0
    %3767 = vmatpush1.msra.mxu0 0.0
    %3768 = vmatprep.subr.mxu0 0.0
    %3769 = vmatpush1.msra.mxu0 0.0
    %3770 = vmatprep.mubr.f32.mxu0 0.0
    %3771 = vmatmul.mubr.f32.gmra.mrb[0].mxu0 %v137
    %v3772 = vpop.f32.mrb[0].mxu0
    %v3773 = vadd.f32 0.0, %v3772
    %v3774 = vpop.f32.mrb[0].mxu0
    %3775 = vmatprep.mubr.f32.mxu0 0.0
    %3776 = vmatmul.mubr.f32.gmra.mrb[0].mxu0 %v140
    %v3777 = vpop.f32.mrb[0].mxu0
    %v3778 = vadd.f32 0.0, %v3777
    %v3779 = vpop.f32.mrb[0].mxu0
    %3780 = vmatprep.mubr.f32.mxu0 0.0
    %3781 = vmatmul.mubr.f32.gmra.mrb[0].mxu0 %v143
    %v3782 = vpop.f32.mrb[0].mxu0
    %v3783 = vadd.f32 0.0, %v3782
    %v3784 = vpop.f32.mrb[0].mxu0
    %3785 = vmatprep.mubr.f32.mxu0 0.0
    %3786 = vmatmul.mubr.f32.gmra.mrb[0].mxu0 %v146
    %v3787 = vpop.f32.mrb[0].mxu0
    %v3788 = vadd.f32 0.0, %v3787
    %v3789 = vpop.f32.mrb[0].mxu0
    %3790 = vdwg.mxu0
    %v3791 = vadd.f32 %v3690, %v3773
    %v3792 = vadd.f32 %v3691, %v3778
    %v3793 = vadd.f32 %v3692, %v3783
    %v3794 = vadd.f32 %v3693, %v3788
    %v3795 = vxor.u32 %v3791, 2147483648
    %v3796 = vxor.u32 %v3792, 2147483648
    %v3797 = vxor.u32 %v3793, 2147483648
    %v3798 = vxor.u32 %v3794, 2147483648
    %v3799 = vmul.f32 %v3795, 1.442695
    %v3800 = vpow.pop %v3799
    %v3801 = vmul.f32 %v3796, 1.442695
    %v3802 = vpow.pop %v3801
    %v3803 = vmul.f32 %v3797, 1.442695
    %v3804 = vpow.pop %v3803
    %v3805 = vmul.f32 %v3798, 1.442695
    %v3806 = vpow.pop %v3805
    %v3807 = vadd.f32 %v3800, 1.0
    %v3808 = vadd.f32 %v3802, 1.0
    %v3809 = vadd.f32 %v3804, 1.0
    %v3810 = vadd.f32 %v3806, 1.0
    %v3811 = vrcp.pop %v3807
    %v3812 = vmul.f32 1.0, %v3811
    %v3813 = vrcp.pop %v3808
    %v3814 = vmul.f32 1.0, %v3813
    %v3815 = vrcp.pop %v3809
    %v3816 = vmul.f32 1.0, %v3815
    %v3817 = vrcp.pop %v3810
    %v3818 = vmul.f32 1.0, %v3817
    %3819 = vmatprep.subr.mxu0 0.0
    %3820 = vmatpush1.msra.mxu0 %v3685
    %3821 = vmatprep.subr.mxu0 0.0
    %3822 = vmatpush1.msra.mxu0 %v3686
    %3823 = vmatprep.subr.mxu0 0.0
    %3824 = vmatpush1.msra.mxu0 %v3687
    %3825 = vmatprep.subr.mxu0 0.0
    %3826 = vmatpush1.msra.mxu0 %v3688
    %3827 = vmatprep.subr.mxu0 0.0
    %3828 = vmatpush1.msra.mxu0 0.0
    %3829 = vmatprep.subr.mxu0 0.0
    %3830 = vmatpush1.msra.mxu0 0.0
    %3831 = vmatprep.subr.mxu0 0.0
    %3832 = vmatpush1.msra.mxu0 0.0
    %3833 = vmatprep.subr.mxu0 0.0
    %3834 = vmatpush1.msra.mxu0 0.0
    %3835 = vmatprep.subr.mxu0 0.0
    %3836 = vmatpush1.msra.mxu0 0.0
    %3837 = vmatprep.subr.mxu0 0.0
    %3838 = vmatpush1.msra.mxu0 0.0
    %3839 = vmatprep.subr.mxu0 0.0
    %3840 = vmatpush1.msra.mxu0 0.0
    %3841 = vmatprep.subr.mxu0 0.0
    %3842 = vmatpush1.msra.mxu0 0.0
    %3843 = vmatprep.subr.mxu0 0.0
    %3844 = vmatpush1.msra.mxu0 0.0
    %3845 = vmatprep.subr.mxu0 0.0
    %3846 = vmatpush1.msra.mxu0 0.0
    %3847 = vmatprep.subr.mxu0 0.0
    %3848 = vmatpush1.msra.mxu0 0.0
    %3849 = vmatprep.subr.mxu0 0.0
    %3850 = vmatpush1.msra.mxu0 0.0
    %3851 = vmatprep.subr.mxu0 0.0
    %3852 = vmatpush1.msra.mxu0 0.0
    %3853 = vmatprep.subr.mxu0 0.0
    %3854 = vmatpush1.msra.mxu0 0.0
    %3855 = vmatprep.subr.mxu0 0.0
    %3856 = vmatpush1.msra.mxu0 0.0
    %3857 = vmatprep.subr.mxu0 0.0
    %3858 = vmatpush1.msra.mxu0 0.0
    %3859 = vmatprep.subr.mxu0 0.0
    %3860 = vmatpush1.msra.mxu0 0.0
    %3861 = vmatprep.subr.mxu0 0.0
    %3862 = vmatpush1.msra.mxu0 0.0
    %3863 = vmatprep.subr.mxu0 0.0
    %3864 = vmatpush1.msra.mxu0 0.0
    %3865 = vmatprep.subr.mxu0 0.0
    %3866 = vmatpush1.msra.mxu0 0.0
    %3867 = vmatprep.subr.mxu0 0.0
    %3868 = vmatpush1.msra.mxu0 0.0
    %3869 = vmatprep.subr.mxu0 0.0
    %3870 = vmatpush1.msra.mxu0 0.0
    %3871 = vmatprep.subr.mxu0 0.0
    %3872 = vmatpush1.msra.mxu0 0.0
    %3873 = vmatprep.subr.mxu0 0.0
    %3874 = vmatpush1.msra.mxu0 0.0
    %3875 = vmatprep.subr.mxu0 0.0
    %3876 = vmatpush1.msra.mxu0 0.0
    %3877 = vmatprep.subr.mxu0 0.0
    %3878 = vmatpush1.msra.mxu0 0.0
    %3879 = vmatprep.subr.mxu0 0.0
    %3880 = vmatpush1.msra.mxu0 0.0
    %3881 = vmatprep.subr.mxu0 0.0
    %3882 = vmatpush1.msra.mxu0 0.0
    %3883 = vmatprep.mubr.f32.mxu0 0.0
    %3884 = vmatmul.mubr.f32.gmra.mrb[0].mxu0 %v262
    %v3885 = vpop.f32.mrb[0].mxu0
    %v3886 = vadd.f32 0.0, %v3885
    %v3887 = vpop.f32.mrb[0].mxu0
    %3888 = vmatprep.mubr.f32.mxu0 0.0
    %3889 = vmatmul.mubr.f32.gmra.mrb[0].mxu0 %v265
    %v3890 = vpop.f32.mrb[0].mxu0
    %v3891 = vadd.f32 0.0, %v3890
    %v3892 = vpop.f32.mrb[0].mxu0
    %3893 = vmatprep.mubr.f32.mxu0 0.0
    %3894 = vmatmul.mubr.f32.gmra.mrb[0].mxu0 %v268
    %v3895 = vpop.f32.mrb[0].mxu0
    %v3896 = vadd.f32 0.0, %v3895
    %v3897 = vpop.f32.mrb[0].mxu0
    %3898 = vmatprep.mubr.f32.mxu0 0.0
    %3899 = vmatmul.mubr.f32.gmra.mrb[0].mxu0 %v271
    %v3900 = vpop.f32.mrb[0].mxu0
    %v3901 = vadd.f32 0.0, %v3900
    %v3902 = vpop.f32.mrb[0].mxu0
    %3903 = vdwg.mxu0
    %v3904 = vadd.f32 %v3694, %v3886
    %v3905 = vadd.f32 %v3695, %v3891
    %v3906 = vadd.f32 %v3696, %v3896
    %v3907 = vadd.f32 %v3697, %v3901
    %v3908 = vxor.u32 %v3904, 2147483648
    %v3909 = vxor.u32 %v3905, 2147483648
    %v3910 = vxor.u32 %v3906, 2147483648
    %v3911 = vxor.u32 %v3907, 2147483648
    %v3912 = vmul.f32 %v3908, 1.442695
    %v3913 = vpow.pop %v3912
    %v3914 = vmul.f32 %v3909, 1.442695
    %v3915 = vpow.pop %v3914
    %v3916 = vmul.f32 %v3910, 1.442695
    %v3917 = vpow.pop %v3916
    %v3918 = vmul.f32 %v3911, 1.442695
    %v3919 = vpow.pop %v3918
    %v3920 = vadd.f32 %v3913, 1.0
    %v3921 = vadd.f32 %v3915, 1.0
    %v3922 = vadd.f32 %v3917, 1.0
    %v3923 = vadd.f32 %v3919, 1.0
    %v3924 = vrcp.pop %v3920
    %v3925 = vmul.f32 1.0, %v3924
    %v3926 = vrcp.pop %v3921
    %v3927 = vmul.f32 1.0, %v3926
    %v3928 = vrcp.pop %v3922
    %v3929 = vmul.f32 1.0, %v3928
    %v3930 = vrcp.pop %v3923
    %v3931 = vmul.f32 1.0, %v3930
    %3932 = vmatprep.subr.mxu0 0.0
    %3933 = vmatpush1.msra.mxu0 %v3685
    %3934 = vmatprep.subr.mxu0 0.0
    %3935 = vmatpush1.msra.mxu0 %v3686
    %3936 = vmatprep.subr.mxu0 0.0
    %3937 = vmatpush1.msra.mxu0 %v3687
    %3938 = vmatprep.subr.mxu0 0.0
    %3939 = vmatpush1.msra.mxu0 %v3688
    %3940 = vmatprep.subr.mxu0 0.0
    %3941 = vmatpush1.msra.mxu0 0.0
    %3942 = vmatprep.subr.mxu0 0.0
    %3943 = vmatpush1.msra.mxu0 0.0
    %3944 = vmatprep.subr.mxu0 0.0
    %3945 = vmatpush1.msra.mxu0 0.0
    %3946 = vmatprep.subr.mxu0 0.0
    %3947 = vmatpush1.msra.mxu0 0.0
    %3948 = vmatprep.subr.mxu0 0.0
    %3949 = vmatpush1.msra.mxu0 0.0
    %3950 = vmatprep.subr.mxu0 0.0
    %3951 = vmatpush1.msra.mxu0 0.0
    %3952 = vmatprep.subr.mxu0 0.0
    %3953 = vmatpush1.msra.mxu0 0.0
    %3954 = vmatprep.subr.mxu0 0.0
    %3955 = vmatpush1.msra.mxu0 0.0
    %3956 = vmatprep.subr.mxu0 0.0
    %3957 = vmatpush1.msra.mxu0 0.0
    %3958 = vmatprep.subr.mxu0 0.0
    %3959 = vmatpush1.msra.mxu0 0.0
    %3960 = vmatprep.subr.mxu0 0.0
    %3961 = vmatpush1.msra.mxu0 0.0
    %3962 = vmatprep.subr.mxu0 0.0
    %3963 = vmatpush1.msra.mxu0 0.0
    %3964 = vmatprep.subr.mxu0 0.0
    %3965 = vmatpush1.msra.mxu0 0.0
    %3966 = vmatprep.subr.mxu0 0.0
    %3967 = vmatpush1.msra.mxu0 0.0
    %3968 = vmatprep.subr.mxu0 0.0
    %3969 = vmatpush1.msra.mxu0 0.0
    %3970 = vmatprep.subr.mxu0 0.0
    %3971 = vmatpush1.msra.mxu0 0.0
    %3972 = vmatprep.subr.mxu0 0.0
    %3973 = vmatpush1.msra.mxu0 0.0
    %3974 = vmatprep.subr.mxu0 0.0
    %3975 = vmatpush1.msra.mxu0 0.0
    %3976 = vmatprep.subr.mxu0 0.0
    %3977 = vmatpush1.msra.mxu0 0.0
    %3978 = vmatprep.subr.mxu0 0.0
    %3979 = vmatpush1.msra.mxu0 0.0
    %3980 = vmatprep.subr.mxu0 0.0
    %3981 = vmatpush1.msra.mxu0 0.0
    %3982 = vmatprep.subr.mxu0 0.0
    %3983 = vmatpush1.msra.mxu0 0.0
    %3984 = vmatprep.subr.mxu0 0.0
    %3985 = vmatpush1.msra.mxu0 0.0
    %3986 = vmatprep.subr.mxu0 0.0
    %3987 = vmatpush1.msra.mxu0 0.0
    %3988 = vmatprep.subr.mxu0 0.0
    %3989 = vmatpush1.msra.mxu0 0.0
    %3990 = vmatprep.subr.mxu0 0.0
    %3991 = vmatpush1.msra.mxu0 0.0
    %3992 = vmatprep.subr.mxu0 0.0
    %3993 = vmatpush1.msra.mxu0 0.0
    %3994 = vmatprep.subr.mxu0 0.0
    %3995 = vmatpush1.msra.mxu0 0.0
    %3996 = vmatprep.mubr.f32.mxu0 0.0
    %3997 = vmatmul.mubr.f32.gmra.mrb[0].mxu0 %v387
    %v3998 = vpop.f32.mrb[0].mxu0
    %v3999 = vadd.f32 0.0, %v3998
    %v4000 = vpop.f32.mrb[0].mxu0
    %4001 = vmatprep.mubr.f32.mxu0 0.0
    %4002 = vmatmul.mubr.f32.gmra.mrb[0].mxu0 %v390
    %v4003 = vpop.f32.mrb[0].mxu0
    %v4004 = vadd.f32 0.0, %v4003
    %v4005 = vpop.f32.mrb[0].mxu0
    %4006 = vmatprep.mubr.f32.mxu0 0.0
    %4007 = vmatmul.mubr.f32.gmra.mrb[0].mxu0 %v393
    %v4008 = vpop.f32.mrb[0].mxu0
    %v4009 = vadd.f32 0.0, %v4008
    %v4010 = vpop.f32.mrb[0].mxu0
    %4011 = vmatprep.mubr.f32.mxu0 0.0
    %4012 = vmatmul.mubr.f32.gmra.mrb[0].mxu0 %v396
    %v4013 = vpop.f32.mrb[0].mxu0
    %v4014 = vadd.f32 0.0, %v4013
    %v4015 = vpop.f32.mrb[0].mxu0
    %4016 = vdwg.mxu0
    %v4017 = vadd.f32 %v3698, %v3999
    %v4018 = vadd.f32 %v3699, %v4004
    %v4019 = vadd.f32 %v3700, %v4009
    %v4020 = vadd.f32 %v3701, %v4014
    %v4021 = vtanh.pop %v4017
    %v4022 = vtanh.pop %v4018
    %v4023 = vtanh.pop %v4019
    %v4024 = vtanh.pop %v4020
    %4025 = vmatprep.subr.mxu0 0.0
    %4026 = vmatpush1.msra.mxu0 %v3685
    %4027 = vmatprep.subr.mxu0 0.0
    %4028 = vmatpush1.msra.mxu0 %v3686
    %4029 = vmatprep.subr.mxu0 0.0
    %4030 = vmatpush1.msra.mxu0 %v3687
    %4031 = vmatprep.subr.mxu0 0.0
    %4032 = vmatpush1.msra.mxu0 %v3688
    %4033 = vmatprep.subr.mxu0 0.0
    %4034 = vmatpush1.msra.mxu0 0.0
    %4035 = vmatprep.subr.mxu0 0.0
    %4036 = vmatpush1.msra.mxu0 0.0
    %4037 = vmatprep.subr.mxu0 0.0
    %4038 = vmatpush1.msra.mxu0 0.0
    %4039 = vmatprep.subr.mxu0 0.0
    %4040 = vmatpush1.msra.mxu0 0.0
    %4041 = vmatprep.subr.mxu0 0.0
    %4042 = vmatpush1.msra.mxu0 0.0
    %4043 = vmatprep.subr.mxu0 0.0
    %4044 = vmatpush1.msra.mxu0 0.0
    %4045 = vmatprep.subr.mxu0 0.0
    %4046 = vmatpush1.msra.mxu0 0.0
    %4047 = vmatprep.subr.mxu0 0.0
    %4048 = vmatpush1.msra.mxu0 0.0
    %4049 = vmatprep.subr.mxu0 0.0
    %4050 = vmatpush1.msra.mxu0 0.0
    %4051 = vmatprep.subr.mxu0 0.0
    %4052 = vmatpush1.msra.mxu0 0.0
    %4053 = vmatprep.subr.mxu0 0.0
    %4054 = vmatpush1.msra.mxu0 0.0
    %4055 = vmatprep.subr.mxu0 0.0
    %4056 = vmatpush1.msra.mxu0 0.0
    %4057 = vmatprep.subr.mxu0 0.0
    %4058 = vmatpush1.msra.mxu0 0.0
    %4059 = vmatprep.subr.mxu0 0.0
    %4060 = vmatpush1.msra.mxu0 0.0
    %4061 = vmatprep.subr.mxu0 0.0
    %4062 = vmatpush1.msra.mxu0 0.0
    %4063 = vmatprep.subr.mxu0 0.0
    %4064 = vmatpush1.msra.mxu0 0.0
    %4065 = vmatprep.subr.mxu0 0.0
    %4066 = vmatpush1.msra.mxu0 0.0
    %4067 = vmatprep.subr.mxu0 0.0
    %4068 = vmatpush1.msra.mxu0 0.0
    %4069 = vmatprep.subr.mxu0 0.0
    %4070 = vmatpush1.msra.mxu0 0.0
    %4071 = vmatprep.subr.mxu0 0.0
    %4072 = vmatpush1.msra.mxu0 0.0
    %4073 = vmatprep.subr.mxu0 0.0
    %4074 = vmatpush1.msra.mxu0 0.0
    %4075 = vmatprep.subr.mxu0 0.0
    %4076 = vmatpush1.msra.mxu0 0.0
    %4077 = vmatprep.subr.mxu0 0.0
    %4078 = vmatpush1.msra.mxu0 0.0
    %4079 = vmatprep.subr.mxu0 0.0
    %4080 = vmatpush1.msra.mxu0 0.0
    %4081 = vmatprep.subr.mxu0 0.0
    %4082 = vmatpush1.msra.mxu0 0.0
    %4083 = vmatprep.subr.mxu0 0.0
    %4084 = vmatpush1.msra.mxu0 0.0
    %4085 = vmatprep.subr.mxu0 0.0
    %4086 = vmatpush1.msra.mxu0 0.0
    %4087 = vmatprep.subr.mxu0 0.0
    %4088 = vmatpush1.msra.mxu0 0.0
    %4089 = vmatprep.mubr.f32.mxu0 0.0
    %4090 = vmatmul.mubr.f32.gmra.mrb[0].mxu0 %v492
    %v4091 = vpop.f32.mrb[0].mxu0
    %v4092 = vadd.f32 0.0, %v4091
    %v4093 = vpop.f32.mrb[0].mxu0
    %4094 = vmatprep.mubr.f32.mxu0 0.0
    %4095 = vmatmul.mubr.f32.gmra.mrb[0].mxu0 %v495
    %v4096 = vpop.f32.mrb[0].mxu0
    %v4097 = vadd.f32 0.0, %v4096
    %v4098 = vpop.f32.mrb[0].mxu0
    %4099 = vmatprep.mubr.f32.mxu0 0.0
    %4100 = vmatmul.mubr.f32.gmra.mrb[0].mxu0 %v498
    %v4101 = vpop.f32.mrb[0].mxu0
    %v4102 = vadd.f32 0.0, %v4101
    %v4103 = vpop.f32.mrb[0].mxu0
    %4104 = vmatprep.mubr.f32.mxu0 0.0
    %4105 = vmatmul.mubr.f32.gmra.mrb[0].mxu0 %v501
    %v4106 = vpop.f32.mrb[0].mxu0
    %v4107 = vadd.f32 0.0, %v4106
    %v4108 = vpop.f32.mrb[0].mxu0
    %4109 = vdwg.mxu0
    %v4110 = vadd.f32 %v3702, %v4092
    %v4111 = vadd.f32 %v3703, %v4097
    %v4112 = vadd.f32 %v3704, %v4102
    %v4113 = vadd.f32 %v3705, %v4107
    %v4114 = vxor.u32 %v4110, 2147483648
    %v4115 = vxor.u32 %v4111, 2147483648
    %v4116 = vxor.u32 %v4112, 2147483648
    %v4117 = vxor.u32 %v4113, 2147483648
    %v4118 = vmul.f32 %v4114, 1.442695
    %v4119 = vpow.pop %v4118
    %v4120 = vmul.f32 %v4115, 1.442695
    %v4121 = vpow.pop %v4120
    %v4122 = vmul.f32 %v4116, 1.442695
    %v4123 = vpow.pop %v4122
    %v4124 = vmul.f32 %v4117, 1.442695
    %v4125 = vpow.pop %v4124
    %v4126 = vadd.f32 %v4119, 1.0
    %v4127 = vadd.f32 %v4121, 1.0
    %v4128 = vadd.f32 %v4123, 1.0
    %v4129 = vadd.f32 %v4125, 1.0
    %v4130 = vrcp.pop %v4126
    %v4131 = vmul.f32 1.0, %v4130
    %v4132 = vrcp.pop %v4127
    %v4133 = vmul.f32 1.0, %v4132
    %v4134 = vrcp.pop %v4128
    %v4135 = vmul.f32 1.0, %v4134
    %v4136 = vrcp.pop %v4129
    %v4137 = vmul.f32 1.0, %v4136
    %v4138 = vmul.f32 %v3925, %v3677
    %v4139 = vmul.f32 %v3927, %v3678
    %v4140 = vmul.f32 %v3929, %v3679
    %v4141 = vmul.f32 %v3931, %v3680
    %v4142 = vmul.f32 %v3812, %v4021
    %v4143 = vmul.f32 %v3814, %v4022
    %v4144 = vmul.f32 %v3816, %v4023
    %v4145 = vmul.f32 %v3818, %v4024
    %v4146 = vadd.f32 %v4138, %v4142
    %v4147 = vadd.f32 %v4139, %v4143
    %v4148 = vadd.f32 %v4140, %v4144
    %v4149 = vadd.f32 %v4141, %v4145
    %v4150 = vtanh.pop %v4146
    %v4151 = vtanh.pop %v4147
    %v4152 = vtanh.pop %v4148
    %v4153 = vtanh.pop %v4149
    %v4154 = vmul.f32 %v4131, %v4150
    %v4155 = vmul.f32 %v4133, %v4151
    %v4156 = vmul.f32 %v4135, %v4152
    %v4157 = vmul.f32 %v4137, %v4153
    %s4158 = scalar_lea.vmem [#allocation5], 96
    %4159 = vst [vmem:[%s4158] sm:$0xff] %v4154
    %4160 = vst [vmem:[%s4158 + $0x8] sm:$0xff] %v4155
    %4161 = vst [vmem:[%s4158 + $0x10] sm:$0xff] %v4156
    %4162 = vst [vmem:[%s4158 + $0x18] sm:$0xff] %v4157
    %v4163 = vld [vmem:[%s2671] sm:$0xff]
    %v4164 = vld [vmem:[%s2671 + $0x8] sm:$0xff]
    %v4165 = vld [vmem:[%s2671 + $0x10] sm:$0xff]
    %v4166 = vld [vmem:[%s2671 + $0x18] sm:$0xff]
    %v4167 = vld [vmem:[%s2671 + $0x40] sm:$0xff]
    %v4168 = vld [vmem:[%s2671 + $0x48] sm:$0xff]
    %v4169 = vld [vmem:[%s2671 + $0x50] sm:$0xff]
    %v4170 = vld [vmem:[%s2671 + $0x58] sm:$0xff]
    %v4171 = vld [vmem:[%s2671 + $0x60] sm:$0xff]
    %v4172 = vld [vmem:[%s2671 + $0x68] sm:$0xff]
    %v4173 = vld [vmem:[%s2671 + $0x70] sm:$0xff]
    %v4174 = vld [vmem:[%s2671 + $0x78] sm:$0xff]
    %v4175 = vxor.u32 %v4163, 2147483648
    %v4176 = vxor.u32 %v4164, 2147483648
    %v4177 = vxor.u32 %v4165, 2147483648
    %v4178 = vxor.u32 %v4166, 2147483648
    %v4179 = vmul.f32 %v4175, 1.442695
    %v4180 = vpow.pop %v4179
    %v4181 = vmul.f32 %v4176, 1.442695
    %v4182 = vpow.pop %v4181
    %v4183 = vmul.f32 %v4177, 1.442695
    %v4184 = vpow.pop %v4183
    %v4185 = vmul.f32 %v4178, 1.442695
    %v4186 = vpow.pop %v4185
    %v4187 = vadd.f32 %v4180, 1.0
    %v4188 = vadd.f32 %v4182, 1.0
    %v4189 = vadd.f32 %v4184, 1.0
    %v4190 = vadd.f32 %v4186, 1.0
    %v4191 = vrcp.pop %v4187
    %v4192 = vmul.f32 1.0, %v4191
    %v4193 = vrcp.pop %v4188
    %v4194 = vmul.f32 1.0, %v4193
    %v4195 = vrcp.pop %v4189
    %v4196 = vmul.f32 1.0, %v4195
    %v4197 = vrcp.pop %v4190
    %v4198 = vmul.f32 1.0, %v4197
    %v4199 = vtanh.pop %v4167
    %v4200 = vtanh.pop %v4168
    %v4201 = vtanh.pop %v4169
    %v4202 = vtanh.pop %v4170
    %v4203 = vxor.u32 %v4171, 2147483648
    %v4204 = vxor.u32 %v4172, 2147483648
    %v4205 = vxor.u32 %v4173, 2147483648
    %v4206 = vxor.u32 %v4174, 2147483648
    %v4207 = vmul.f32 %v4203, 1.442695
    %v4208 = vpow.pop %v4207
    %v4209 = vmul.f32 %v4204, 1.442695
    %v4210 = vpow.pop %v4209
    %v4211 = vmul.f32 %v4205, 1.442695
    %v4212 = vpow.pop %v4211
    %v4213 = vmul.f32 %v4206, 1.442695
    %v4214 = vpow.pop %v4213
    %v4215 = vadd.f32 %v4208, 1.0
    %v4216 = vadd.f32 %v4210, 1.0
    %v4217 = vadd.f32 %v4212, 1.0
    %v4218 = vadd.f32 %v4214, 1.0
    %v4219 = vrcp.pop %v4215
    %v4220 = vmul.f32 1.0, %v4219
    %v4221 = vrcp.pop %v4216
    %v4222 = vmul.f32 1.0, %v4221
    %v4223 = vrcp.pop %v4217
    %v4224 = vmul.f32 1.0, %v4223
    %v4225 = vrcp.pop %v4218
    %v4226 = vmul.f32 1.0, %v4225
    %v4227 = vmul.f32 %v4192, %v4199
    %v4228 = vmul.f32 %v4194, %v4200
    %v4229 = vmul.f32 %v4196, %v4201
    %v4230 = vmul.f32 %v4198, %v4202
    %v4231 = vtanh.pop %v4227
    %v4232 = vtanh.pop %v4228
    %v4233 = vtanh.pop %v4229
    %v4234 = vtanh.pop %v4230
    %v4235 = vmul.f32 %v4220, %v4231
    %v4236 = vmul.f32 %v4222, %v4232
    %v4237 = vmul.f32 %v4224, %v4233
    %v4238 = vmul.f32 %v4226, %v4234
    %v4239 = vld [vmem:[%s3689] sm:$0xff]
    %v4240 = vld [vmem:[%s3689 + $0x8] sm:$0xff]
    %v4241 = vld [vmem:[%s3689 + $0x10] sm:$0xff]
    %v4242 = vld [vmem:[%s3689 + $0x18] sm:$0xff]
    %v4243 = vld [vmem:[%s3689 + $0x20] sm:$0xff]
    %v4244 = vld [vmem:[%s3689 + $0x28] sm:$0xff]
    %v4245 = vld [vmem:[%s3689 + $0x30] sm:$0xff]
    %v4246 = vld [vmem:[%s3689 + $0x38] sm:$0xff]
    %v4247 = vld [vmem:[%s3689 + $0x40] sm:$0xff]
    %v4248 = vld [vmem:[%s3689 + $0x48] sm:$0xff]
    %v4249 = vld [vmem:[%s3689 + $0x50] sm:$0xff]
    %v4250 = vld [vmem:[%s3689 + $0x58] sm:$0xff]
    %v4251 = vld [vmem:[%s3689 + $0x60] sm:$0xff]
    %v4252 = vld [vmem:[%s3689 + $0x68] sm:$0xff]
    %v4253 = vld [vmem:[%s3689 + $0x70] sm:$0xff]
    %v4254 = vld [vmem:[%s3689 + $0x78] sm:$0xff]
    %4255 = vmatprep.subr.mxu0 0.0
    %4256 = vmatpush1.msra.mxu0 %v4235
    %4257 = vmatprep.subr.mxu0 0.0
    %4258 = vmatpush1.msra.mxu0 %v4236
    %4259 = vmatprep.subr.mxu0 0.0
    %4260 = vmatpush1.msra.mxu0 %v4237
    %4261 = vmatprep.subr.mxu0 0.0
    %4262 = vmatpush1.msra.mxu0 %v4238
    %4263 = vmatprep.subr.mxu0 0.0
    %4264 = vmatpush1.msra.mxu0 0.0
    %4265 = vmatprep.subr.mxu0 0.0
    %4266 = vmatpush1.msra.mxu0 0.0
    %4267 = vmatprep.subr.mxu0 0.0
    %4268 = vmatpush1.msra.mxu0 0.0
    %4269 = vmatprep.subr.mxu0 0.0
    %4270 = vmatpush1.msra.mxu0 0.0
    %4271 = vmatprep.subr.mxu0 0.0
    %4272 = vmatpush1.msra.mxu0 0.0
    %4273 = vmatprep.subr.mxu0 0.0
    %4274 = vmatpush1.msra.mxu0 0.0
    %4275 = vmatprep.subr.mxu0 0.0
    %4276 = vmatpush1.msra.mxu0 0.0
    %4277 = vmatprep.subr.mxu0 0.0
    %4278 = vmatpush1.msra.mxu0 0.0
    %4279 = vmatprep.subr.mxu0 0.0
    %4280 = vmatpush1.msra.mxu0 0.0
    %4281 = vmatprep.subr.mxu0 0.0
    %4282 = vmatpush1.msra.mxu0 0.0
    %4283 = vmatprep.subr.mxu0 0.0
    %4284 = vmatpush1.msra.mxu0 0.0
    %4285 = vmatprep.subr.mxu0 0.0
    %4286 = vmatpush1.msra.mxu0 0.0
    %4287 = vmatprep.subr.mxu0 0.0
    %4288 = vmatpush1.msra.mxu0 0.0
    %4289 = vmatprep.subr.mxu0 0.0
    %4290 = vmatpush1.msra.mxu0 0.0
    %4291 = vmatprep.subr.mxu0 0.0
    %4292 = vmatpush1.msra.mxu0 0.0
    %4293 = vmatprep.subr.mxu0 0.0
    %4294 = vmatpush1.msra.mxu0 0.0
    %4295 = vmatprep.subr.mxu0 0.0
    %4296 = vmatpush1.msra.mxu0 0.0
    %4297 = vmatprep.subr.mxu0 0.0
    %4298 = vmatpush1.msra.mxu0 0.0
    %4299 = vmatprep.subr.mxu0 0.0
    %4300 = vmatpush1.msra.mxu0 0.0
    %4301 = vmatprep.subr.mxu0 0.0
    %4302 = vmatpush1.msra.mxu0 0.0
    %4303 = vmatprep.subr.mxu0 0.0
    %4304 = vmatpush1.msra.mxu0 0.0
    %4305 = vmatprep.subr.mxu0 0.0
    %4306 = vmatpush1.msra.mxu0 0.0
    %4307 = vmatprep.subr.mxu0 0.0
    %4308 = vmatpush1.msra.mxu0 0.0
    %4309 = vmatprep.subr.mxu0 0.0
    %4310 = vmatpush1.msra.mxu0 0.0
    %4311 = vmatprep.subr.mxu0 0.0
    %4312 = vmatpush1.msra.mxu0 0.0
    %4313 = vmatprep.subr.mxu0 0.0
    %4314 = vmatpush1.msra.mxu0 0.0
    %4315 = vmatprep.subr.mxu0 0.0
    %4316 = vmatpush1.msra.mxu0 0.0
    %4317 = vmatprep.subr.mxu0 0.0
    %4318 = vmatpush1.msra.mxu0 0.0
    %4319 = vmatprep.mubr.f32.mxu0 0.0
    %4320 = vmatmul.mubr.f32.gmra.mrb[0].mxu0 %v137
    %v4321 = vpop.f32.mrb[0].mxu0
    %v4322 = vadd.f32 0.0, %v4321
    %v4323 = vpop.f32.mrb[0].mxu0
    %4324 = vmatprep.mubr.f32.mxu0 0.0
    %4325 = vmatmul.mubr.f32.gmra.mrb[0].mxu0 %v140
    %v4326 = vpop.f32.mrb[0].mxu0
    %v4327 = vadd.f32 0.0, %v4326
    %v4328 = vpop.f32.mrb[0].mxu0
    %4329 = vmatprep.mubr.f32.mxu0 0.0
    %4330 = vmatmul.mubr.f32.gmra.mrb[0].mxu0 %v143
    %v4331 = vpop.f32.mrb[0].mxu0
    %v4332 = vadd.f32 0.0, %v4331
    %v4333 = vpop.f32.mrb[0].mxu0
    %4334 = vmatprep.mubr.f32.mxu0 0.0
    %4335 = vmatmul.mubr.f32.gmra.mrb[0].mxu0 %v146
    %v4336 = vpop.f32.mrb[0].mxu0
    %v4337 = vadd.f32 0.0, %v4336
    %v4338 = vpop.f32.mrb[0].mxu0
    %4339 = vdwg.mxu0
    %v4340 = vadd.f32 %v4239, %v4322
    %v4341 = vadd.f32 %v4240, %v4327
    %v4342 = vadd.f32 %v4241, %v4332
    %v4343 = vadd.f32 %v4242, %v4337
    %v4344 = vxor.u32 %v4340, 2147483648
    %v4345 = vxor.u32 %v4341, 2147483648
    %v4346 = vxor.u32 %v4342, 2147483648
    %v4347 = vxor.u32 %v4343, 2147483648
    %v4348 = vmul.f32 %v4344, 1.442695
    %v4349 = vpow.pop %v4348
    %v4350 = vmul.f32 %v4345, 1.442695
    %v4351 = vpow.pop %v4350
    %v4352 = vmul.f32 %v4346, 1.442695
    %v4353 = vpow.pop %v4352
    %v4354 = vmul.f32 %v4347, 1.442695
    %v4355 = vpow.pop %v4354
    %v4356 = vadd.f32 %v4349, 1.0
    %v4357 = vadd.f32 %v4351, 1.0
    %v4358 = vadd.f32 %v4353, 1.0
    %v4359 = vadd.f32 %v4355, 1.0
    %v4360 = vrcp.pop %v4356
    %v4361 = vmul.f32 1.0, %v4360
    %v4362 = vrcp.pop %v4357
    %v4363 = vmul.f32 1.0, %v4362
    %v4364 = vrcp.pop %v4358
    %v4365 = vmul.f32 1.0, %v4364
    %v4366 = vrcp.pop %v4359
    %v4367 = vmul.f32 1.0, %v4366
    %4368 = vmatprep.subr.mxu0 0.0
    %4369 = vmatpush1.msra.mxu0 %v4235
    %4370 = vmatprep.subr.mxu0 0.0
    %4371 = vmatpush1.msra.mxu0 %v4236
    %4372 = vmatprep.subr.mxu0 0.0
    %4373 = vmatpush1.msra.mxu0 %v4237
    %4374 = vmatprep.subr.mxu0 0.0
    %4375 = vmatpush1.msra.mxu0 %v4238
    %4376 = vmatprep.subr.mxu0 0.0
    %4377 = vmatpush1.msra.mxu0 0.0
    %4378 = vmatprep.subr.mxu0 0.0
    %4379 = vmatpush1.msra.mxu0 0.0
    %4380 = vmatprep.subr.mxu0 0.0
    %4381 = vmatpush1.msra.mxu0 0.0
    %4382 = vmatprep.subr.mxu0 0.0
    %4383 = vmatpush1.msra.mxu0 0.0
    %4384 = vmatprep.subr.mxu0 0.0
    %4385 = vmatpush1.msra.mxu0 0.0
    %4386 = vmatprep.subr.mxu0 0.0
    %4387 = vmatpush1.msra.mxu0 0.0
    %4388 = vmatprep.subr.mxu0 0.0
    %4389 = vmatpush1.msra.mxu0 0.0
    %4390 = vmatprep.subr.mxu0 0.0
    %4391 = vmatpush1.msra.mxu0 0.0
    %4392 = vmatprep.subr.mxu0 0.0
    %4393 = vmatpush1.msra.mxu0 0.0
    %4394 = vmatprep.subr.mxu0 0.0
    %4395 = vmatpush1.msra.mxu0 0.0
    %4396 = vmatprep.subr.mxu0 0.0
    %4397 = vmatpush1.msra.mxu0 0.0
    %4398 = vmatprep.subr.mxu0 0.0
    %4399 = vmatpush1.msra.mxu0 0.0
    %4400 = vmatprep.subr.mxu0 0.0
    %4401 = vmatpush1.msra.mxu0 0.0
    %4402 = vmatprep.subr.mxu0 0.0
    %4403 = vmatpush1.msra.mxu0 0.0
    %4404 = vmatprep.subr.mxu0 0.0
    %4405 = vmatpush1.msra.mxu0 0.0
    %4406 = vmatprep.subr.mxu0 0.0
    %4407 = vmatpush1.msra.mxu0 0.0
    %4408 = vmatprep.subr.mxu0 0.0
    %4409 = vmatpush1.msra.mxu0 0.0
    %4410 = vmatprep.subr.mxu0 0.0
    %4411 = vmatpush1.msra.mxu0 0.0
    %4412 = vmatprep.subr.mxu0 0.0
    %4413 = vmatpush1.msra.mxu0 0.0
    %4414 = vmatprep.subr.mxu0 0.0
    %4415 = vmatpush1.msra.mxu0 0.0
    %4416 = vmatprep.subr.mxu0 0.0
    %4417 = vmatpush1.msra.mxu0 0.0
    %4418 = vmatprep.subr.mxu0 0.0
    %4419 = vmatpush1.msra.mxu0 0.0
    %4420 = vmatprep.subr.mxu0 0.0
    %4421 = vmatpush1.msra.mxu0 0.0
    %4422 = vmatprep.subr.mxu0 0.0
    %4423 = vmatpush1.msra.mxu0 0.0
    %4424 = vmatprep.subr.mxu0 0.0
    %4425 = vmatpush1.msra.mxu0 0.0
    %4426 = vmatprep.subr.mxu0 0.0
    %4427 = vmatpush1.msra.mxu0 0.0
    %4428 = vmatprep.subr.mxu0 0.0
    %4429 = vmatpush1.msra.mxu0 0.0
    %4430 = vmatprep.subr.mxu0 0.0
    %4431 = vmatpush1.msra.mxu0 0.0
    %4432 = vmatprep.mubr.f32.mxu0 0.0
    %4433 = vmatmul.mubr.f32.gmra.mrb[0].mxu0 %v262
    %v4434 = vpop.f32.mrb[0].mxu0
    %v4435 = vadd.f32 0.0, %v4434
    %v4436 = vpop.f32.mrb[0].mxu0
    %4437 = vmatprep.mubr.f32.mxu0 0.0
    %4438 = vmatmul.mubr.f32.gmra.mrb[0].mxu0 %v265
    %v4439 = vpop.f32.mrb[0].mxu0
    %v4440 = vadd.f32 0.0, %v4439
    %v4441 = vpop.f32.mrb[0].mxu0
    %4442 = vmatprep.mubr.f32.mxu0 0.0
    %4443 = vmatmul.mubr.f32.gmra.mrb[0].mxu0 %v268
    %v4444 = vpop.f32.mrb[0].mxu0
    %v4445 = vadd.f32 0.0, %v4444
    %v4446 = vpop.f32.mrb[0].mxu0
    %4447 = vmatprep.mubr.f32.mxu0 0.0
    %4448 = vmatmul.mubr.f32.gmra.mrb[0].mxu0 %v271
    %v4449 = vpop.f32.mrb[0].mxu0
    %v4450 = vadd.f32 0.0, %v4449
    %v4451 = vpop.f32.mrb[0].mxu0
    %4452 = vdwg.mxu0
    %v4453 = vadd.f32 %v4243, %v4435
    %v4454 = vadd.f32 %v4244, %v4440
    %v4455 = vadd.f32 %v4245, %v4445
    %v4456 = vadd.f32 %v4246, %v4450
    %v4457 = vxor.u32 %v4453, 2147483648
    %v4458 = vxor.u32 %v4454, 2147483648
    %v4459 = vxor.u32 %v4455, 2147483648
    %v4460 = vxor.u32 %v4456, 2147483648
    %v4461 = vmul.f32 %v4457, 1.442695
    %v4462 = vpow.pop %v4461
    %v4463 = vmul.f32 %v4458, 1.442695
    %v4464 = vpow.pop %v4463
    %v4465 = vmul.f32 %v4459, 1.442695
    %v4466 = vpow.pop %v4465
    %v4467 = vmul.f32 %v4460, 1.442695
    %v4468 = vpow.pop %v4467
    %v4469 = vadd.f32 %v4462, 1.0
    %v4470 = vadd.f32 %v4464, 1.0
    %v4471 = vadd.f32 %v4466, 1.0
    %v4472 = vadd.f32 %v4468, 1.0
    %v4473 = vrcp.pop %v4469
    %v4474 = vmul.f32 1.0, %v4473
    %v4475 = vrcp.pop %v4470
    %v4476 = vmul.f32 1.0, %v4475
    %v4477 = vrcp.pop %v4471
    %v4478 = vmul.f32 1.0, %v4477
    %v4479 = vrcp.pop %v4472
    %v4480 = vmul.f32 1.0, %v4479
    %4481 = vmatprep.subr.mxu0 0.0
    %4482 = vmatpush1.msra.mxu0 %v4235
    %4483 = vmatprep.subr.mxu0 0.0
    %4484 = vmatpush1.msra.mxu0 %v4236
    %4485 = vmatprep.subr.mxu0 0.0
    %4486 = vmatpush1.msra.mxu0 %v4237
    %4487 = vmatprep.subr.mxu0 0.0
    %4488 = vmatpush1.msra.mxu0 %v4238
    %4489 = vmatprep.subr.mxu0 0.0
    %4490 = vmatpush1.msra.mxu0 0.0
    %4491 = vmatprep.subr.mxu0 0.0
    %4492 = vmatpush1.msra.mxu0 0.0
    %4493 = vmatprep.subr.mxu0 0.0
    %4494 = vmatpush1.msra.mxu0 0.0
    %4495 = vmatprep.subr.mxu0 0.0
    %4496 = vmatpush1.msra.mxu0 0.0
    %4497 = vmatprep.subr.mxu0 0.0
    %4498 = vmatpush1.msra.mxu0 0.0
    %4499 = vmatprep.subr.mxu0 0.0
    %4500 = vmatpush1.msra.mxu0 0.0
    %4501 = vmatprep.subr.mxu0 0.0
    %4502 = vmatpush1.msra.mxu0 0.0
    %4503 = vmatprep.subr.mxu0 0.0
    %4504 = vmatpush1.msra.mxu0 0.0
    %4505 = vmatprep.subr.mxu0 0.0
    %4506 = vmatpush1.msra.mxu0 0.0
    %4507 = vmatprep.subr.mxu0 0.0
    %4508 = vmatpush1.msra.mxu0 0.0
    %4509 = vmatprep.subr.mxu0 0.0
    %4510 = vmatpush1.msra.mxu0 0.0
    %4511 = vmatprep.subr.mxu0 0.0
    %4512 = vmatpush1.msra.mxu0 0.0
    %4513 = vmatprep.subr.mxu0 0.0
    %4514 = vmatpush1.msra.mxu0 0.0
    %4515 = vmatprep.subr.mxu0 0.0
    %4516 = vmatpush1.msra.mxu0 0.0
    %4517 = vmatprep.subr.mxu0 0.0
    %4518 = vmatpush1.msra.mxu0 0.0
    %4519 = vmatprep.subr.mxu0 0.0
    %4520 = vmatpush1.msra.mxu0 0.0
    %4521 = vmatprep.subr.mxu0 0.0
    %4522 = vmatpush1.msra.mxu0 0.0
    %4523 = vmatprep.subr.mxu0 0.0
    %4524 = vmatpush1.msra.mxu0 0.0
    %4525 = vmatprep.subr.mxu0 0.0
    %4526 = vmatpush1.msra.mxu0 0.0
    %4527 = vmatprep.subr.mxu0 0.0
    %4528 = vmatpush1.msra.mxu0 0.0
    %4529 = vmatprep.subr.mxu0 0.0
    %4530 = vmatpush1.msra.mxu0 0.0
    %4531 = vmatprep.subr.mxu0 0.0
    %4532 = vmatpush1.msra.mxu0 0.0
    %4533 = vmatprep.subr.mxu0 0.0
    %4534 = vmatpush1.msra.mxu0 0.0
    %4535 = vmatprep.subr.mxu0 0.0
    %4536 = vmatpush1.msra.mxu0 0.0
    %4537 = vmatprep.subr.mxu0 0.0
    %4538 = vmatpush1.msra.mxu0 0.0
    %4539 = vmatprep.subr.mxu0 0.0
    %4540 = vmatpush1.msra.mxu0 0.0
    %4541 = vmatprep.subr.mxu0 0.0
    %4542 = vmatpush1.msra.mxu0 0.0
    %4543 = vmatprep.subr.mxu0 0.0
    %4544 = vmatpush1.msra.mxu0 0.0
    %4545 = vmatprep.mubr.f32.mxu0 0.0
    %4546 = vmatmul.mubr.f32.gmra.mrb[0].mxu0 %v387
    %v4547 = vpop.f32.mrb[0].mxu0
    %v4548 = vadd.f32 0.0, %v4547
    %v4549 = vpop.f32.mrb[0].mxu0
    %4550 = vmatprep.mubr.f32.mxu0 0.0
    %4551 = vmatmul.mubr.f32.gmra.mrb[0].mxu0 %v390
    %v4552 = vpop.f32.mrb[0].mxu0
    %v4553 = vadd.f32 0.0, %v4552
    %v4554 = vpop.f32.mrb[0].mxu0
    %4555 = vmatprep.mubr.f32.mxu0 0.0
    %4556 = vmatmul.mubr.f32.gmra.mrb[0].mxu0 %v393
    %v4557 = vpop.f32.mrb[0].mxu0
    %v4558 = vadd.f32 0.0, %v4557
    %v4559 = vpop.f32.mrb[0].mxu0
    %4560 = vmatprep.mubr.f32.mxu0 0.0
    %4561 = vmatmul.mubr.f32.gmra.mrb[0].mxu0 %v396
    %v4562 = vpop.f32.mrb[0].mxu0
    %v4563 = vadd.f32 0.0, %v4562
    %v4564 = vpop.f32.mrb[0].mxu0
    %4565 = vdwg.mxu0
    %v4566 = vadd.f32 %v4247, %v4548
    %v4567 = vadd.f32 %v4248, %v4553
    %v4568 = vadd.f32 %v4249, %v4558
    %v4569 = vadd.f32 %v4250, %v4563
    %v4570 = vtanh.pop %v4566
    %v4571 = vtanh.pop %v4567
    %v4572 = vtanh.pop %v4568
    %v4573 = vtanh.pop %v4569
    %4574 = vmatprep.subr.mxu0 0.0
    %4575 = vmatpush1.msra.mxu0 %v4235
    %4576 = vmatprep.subr.mxu0 0.0
    %4577 = vmatpush1.msra.mxu0 %v4236
    %4578 = vmatprep.subr.mxu0 0.0
    %4579 = vmatpush1.msra.mxu0 %v4237
    %4580 = vmatprep.subr.mxu0 0.0
    %4581 = vmatpush1.msra.mxu0 %v4238
    %4582 = vmatprep.subr.mxu0 0.0
    %4583 = vmatpush1.msra.mxu0 0.0
    %4584 = vmatprep.subr.mxu0 0.0
    %4585 = vmatpush1.msra.mxu0 0.0
    %4586 = vmatprep.subr.mxu0 0.0
    %4587 = vmatpush1.msra.mxu0 0.0
    %4588 = vmatprep.subr.mxu0 0.0
    %4589 = vmatpush1.msra.mxu0 0.0
    %4590 = vmatprep.subr.mxu0 0.0
    %4591 = vmatpush1.msra.mxu0 0.0
    %4592 = vmatprep.subr.mxu0 0.0
    %4593 = vmatpush1.msra.mxu0 0.0
    %4594 = vmatprep.subr.mxu0 0.0
    %4595 = vmatpush1.msra.mxu0 0.0
    %4596 = vmatprep.subr.mxu0 0.0
    %4597 = vmatpush1.msra.mxu0 0.0
    %4598 = vmatprep.subr.mxu0 0.0
    %4599 = vmatpush1.msra.mxu0 0.0
    %4600 = vmatprep.subr.mxu0 0.0
    %4601 = vmatpush1.msra.mxu0 0.0
    %4602 = vmatprep.subr.mxu0 0.0
    %4603 = vmatpush1.msra.mxu0 0.0
    %4604 = vmatprep.subr.mxu0 0.0
    %4605 = vmatpush1.msra.mxu0 0.0
    %4606 = vmatprep.subr.mxu0 0.0
    %4607 = vmatpush1.msra.mxu0 0.0
    %4608 = vmatprep.subr.mxu0 0.0
    %4609 = vmatpush1.msra.mxu0 0.0
    %4610 = vmatprep.subr.mxu0 0.0
    %4611 = vmatpush1.msra.mxu0 0.0
    %4612 = vmatprep.subr.mxu0 0.0
    %4613 = vmatpush1.msra.mxu0 0.0
    %4614 = vmatprep.subr.mxu0 0.0
    %4615 = vmatpush1.msra.mxu0 0.0
    %4616 = vmatprep.subr.mxu0 0.0
    %4617 = vmatpush1.msra.mxu0 0.0
    %4618 = vmatprep.subr.mxu0 0.0
    %4619 = vmatpush1.msra.mxu0 0.0
    %4620 = vmatprep.subr.mxu0 0.0
    %4621 = vmatpush1.msra.mxu0 0.0
    %4622 = vmatprep.subr.mxu0 0.0
    %4623 = vmatpush1.msra.mxu0 0.0
    %4624 = vmatprep.subr.mxu0 0.0
    %4625 = vmatpush1.msra.mxu0 0.0
    %4626 = vmatprep.subr.mxu0 0.0
    %4627 = vmatpush1.msra.mxu0 0.0
    %4628 = vmatprep.subr.mxu0 0.0
    %4629 = vmatpush1.msra.mxu0 0.0
    %4630 = vmatprep.subr.mxu0 0.0
    %4631 = vmatpush1.msra.mxu0 0.0
    %4632 = vmatprep.subr.mxu0 0.0
    %4633 = vmatpush1.msra.mxu0 0.0
    %4634 = vmatprep.subr.mxu0 0.0
    %4635 = vmatpush1.msra.mxu0 0.0
    %4636 = vmatprep.subr.mxu0 0.0
    %4637 = vmatpush1.msra.mxu0 0.0
    %4638 = vmatprep.mubr.f32.mxu0 0.0
    %4639 = vmatmul.mubr.f32.gmra.mrb[0].mxu0 %v492
    %v4640 = vpop.f32.mrb[0].mxu0
    %v4641 = vadd.f32 0.0, %v4640
    %v4642 = vpop.f32.mrb[0].mxu0
    %4643 = vmatprep.mubr.f32.mxu0 0.0
    %4644 = vmatmul.mubr.f32.gmra.mrb[0].mxu0 %v495
    %v4645 = vpop.f32.mrb[0].mxu0
    %v4646 = vadd.f32 0.0, %v4645
    %v4647 = vpop.f32.mrb[0].mxu0
    %4648 = vmatprep.mubr.f32.mxu0 0.0
    %4649 = vmatmul.mubr.f32.gmra.mrb[0].mxu0 %v498
    %v4650 = vpop.f32.mrb[0].mxu0
    %v4651 = vadd.f32 0.0, %v4650
    %v4652 = vpop.f32.mrb[0].mxu0
    %4653 = vmatprep.mubr.f32.mxu0 0.0
    %4654 = vmatmul.mubr.f32.gmra.mrb[0].mxu0 %v501
    %v4655 = vpop.f32.mrb[0].mxu0
    %v4656 = vadd.f32 0.0, %v4655
    %v4657 = vpop.f32.mrb[0].mxu0
    %4658 = vdwg.mxu0
    %v4659 = vadd.f32 %v4251, %v4641
    %v4660 = vadd.f32 %v4252, %v4646
    %v4661 = vadd.f32 %v4253, %v4651
    %v4662 = vadd.f32 %v4254, %v4656
    %v4663 = vxor.u32 %v4659, 2147483648
    %v4664 = vxor.u32 %v4660, 2147483648
    %v4665 = vxor.u32 %v4661, 2147483648
    %v4666 = vxor.u32 %v4662, 2147483648
    %v4667 = vmul.f32 %v4663, 1.442695
    %v4668 = vpow.pop %v4667
    %v4669 = vmul.f32 %v4664, 1.442695
    %v4670 = vpow.pop %v4669
    %v4671 = vmul.f32 %v4665, 1.442695
    %v4672 = vpow.pop %v4671
    %v4673 = vmul.f32 %v4666, 1.442695
    %v4674 = vpow.pop %v4673
    %v4675 = vadd.f32 %v4668, 1.0
    %v4676 = vadd.f32 %v4670, 1.0
    %v4677 = vadd.f32 %v4672, 1.0
    %v4678 = vadd.f32 %v4674, 1.0
    %v4679 = vrcp.pop %v4675
    %v4680 = vmul.f32 1.0, %v4679
    %v4681 = vrcp.pop %v4676
    %v4682 = vmul.f32 1.0, %v4681
    %v4683 = vrcp.pop %v4677
    %v4684 = vmul.f32 1.0, %v4683
    %v4685 = vrcp.pop %v4678
    %v4686 = vmul.f32 1.0, %v4685
    %v4687 = vmul.f32 %v4474, %v4227
    %v4688 = vmul.f32 %v4476, %v4228
    %v4689 = vmul.f32 %v4478, %v4229
    %v4690 = vmul.f32 %v4480, %v4230
    %v4691 = vmul.f32 %v4361, %v4570
    %v4692 = vmul.f32 %v4363, %v4571
    %v4693 = vmul.f32 %v4365, %v4572
    %v4694 = vmul.f32 %v4367, %v4573
    %v4695 = vadd.f32 %v4687, %v4691
    %v4696 = vadd.f32 %v4688, %v4692
    %v4697 = vadd.f32 %v4689, %v4693
    %v4698 = vadd.f32 %v4690, %v4694
    %v4699 = vtanh.pop %v4695
    %v4700 = vtanh.pop %v4696
    %v4701 = vtanh.pop %v4697
    %v4702 = vtanh.pop %v4698
    %v4703 = vmul.f32 %v4680, %v4699
    %v4704 = vmul.f32 %v4682, %v4700
    %v4705 = vmul.f32 %v4684, %v4701
    %v4706 = vmul.f32 %v4686, %v4702
    %s4707 = scalar_lea.vmem [#allocation2], 768
    %v4708 = vld [vmem:[%s4707] sm:$0xff]
    %v4709 = vld [vmem:[%s4707 + $0x8] sm:$0xff]
    %v4710 = vld [vmem:[%s4707 + $0x10] sm:$0xff]
    %v4711 = vld [vmem:[%s4707 + $0x18] sm:$0xff]
    %v4712 = vld [vmem:[%s4707 + $0x20] sm:$0xff]
    %v4713 = vld [vmem:[%s4707 + $0x28] sm:$0xff]
    %v4714 = vld [vmem:[%s4707 + $0x30] sm:$0xff]
    %v4715 = vld [vmem:[%s4707 + $0x38] sm:$0xff]
    %v4716 = vld [vmem:[%s4707 + $0x40] sm:$0xff]
    %v4717 = vld [vmem:[%s4707 + $0x48] sm:$0xff]
    %v4718 = vld [vmem:[%s4707 + $0x50] sm:$0xff]
    %v4719 = vld [vmem:[%s4707 + $0x58] sm:$0xff]
    %v4720 = vld [vmem:[%s4707 + $0x60] sm:$0xff]
    %v4721 = vld [vmem:[%s4707 + $0x68] sm:$0xff]
    %v4722 = vld [vmem:[%s4707 + $0x70] sm:$0xff]
    %v4723 = vld [vmem:[%s4707 + $0x78] sm:$0xff]
    %4724 = vmatprep.subr.mxu0 0.0
    %4725 = vmatpush1.msra.mxu0 %v4703
    %4726 = vmatprep.subr.mxu0 0.0
    %4727 = vmatpush1.msra.mxu0 %v4704
    %4728 = vmatprep.subr.mxu0 0.0
    %4729 = vmatpush1.msra.mxu0 %v4705
    %4730 = vmatprep.subr.mxu0 0.0
    %4731 = vmatpush1.msra.mxu0 %v4706
    %4732 = vmatprep.subr.mxu0 0.0
    %4733 = vmatpush1.msra.mxu0 0.0
    %4734 = vmatprep.subr.mxu0 0.0
    %4735 = vmatpush1.msra.mxu0 0.0
    %4736 = vmatprep.subr.mxu0 0.0
    %4737 = vmatpush1.msra.mxu0 0.0
    %4738 = vmatprep.subr.mxu0 0.0
    %4739 = vmatpush1.msra.mxu0 0.0
    %4740 = vmatprep.subr.mxu0 0.0
    %4741 = vmatpush1.msra.mxu0 0.0
    %4742 = vmatprep.subr.mxu0 0.0
    %4743 = vmatpush1.msra.mxu0 0.0
    %4744 = vmatprep.subr.mxu0 0.0
    %4745 = vmatpush1.msra.mxu0 0.0
    %4746 = vmatprep.subr.mxu0 0.0
    %4747 = vmatpush1.msra.mxu0 0.0
    %4748 = vmatprep.subr.mxu0 0.0
    %4749 = vmatpush1.msra.mxu0 0.0
    %4750 = vmatprep.subr.mxu0 0.0
    %4751 = vmatpush1.msra.mxu0 0.0
    %4752 = vmatprep.subr.mxu0 0.0
    %4753 = vmatpush1.msra.mxu0 0.0
    %4754 = vmatprep.subr.mxu0 0.0
    %4755 = vmatpush1.msra.mxu0 0.0
    %4756 = vmatprep.subr.mxu0 0.0
    %4757 = vmatpush1.msra.mxu0 0.0
    %4758 = vmatprep.subr.mxu0 0.0
    %4759 = vmatpush1.msra.mxu0 0.0
    %4760 = vmatprep.subr.mxu0 0.0
    %4761 = vmatpush1.msra.mxu0 0.0
    %4762 = vmatprep.subr.mxu0 0.0
    %4763 = vmatpush1.msra.mxu0 0.0
    %4764 = vmatprep.subr.mxu0 0.0
    %4765 = vmatpush1.msra.mxu0 0.0
    %4766 = vmatprep.subr.mxu0 0.0
    %4767 = vmatpush1.msra.mxu0 0.0
    %4768 = vmatprep.subr.mxu0 0.0
    %4769 = vmatpush1.msra.mxu0 0.0
    %4770 = vmatprep.subr.mxu0 0.0
    %4771 = vmatpush1.msra.mxu0 0.0
    %4772 = vmatprep.subr.mxu0 0.0
    %4773 = vmatpush1.msra.mxu0 0.0
    %4774 = vmatprep.subr.mxu0 0.0
    %4775 = vmatpush1.msra.mxu0 0.0
    %4776 = vmatprep.subr.mxu0 0.0
    %4777 = vmatpush1.msra.mxu0 0.0
    %4778 = vmatprep.subr.mxu0 0.0
    %4779 = vmatpush1.msra.mxu0 0.0
    %4780 = vmatprep.subr.mxu0 0.0
    %4781 = vmatpush1.msra.mxu0 0.0
    %4782 = vmatprep.subr.mxu0 0.0
    %4783 = vmatpush1.msra.mxu0 0.0
    %4784 = vmatprep.subr.mxu0 0.0
    %4785 = vmatpush1.msra.mxu0 0.0
    %4786 = vmatprep.subr.mxu0 0.0
    %4787 = vmatpush1.msra.mxu0 0.0
    %4788 = vmatprep.mubr.f32.mxu0 0.0
    %4789 = vmatmul.mubr.f32.gmra.mrb[0].mxu0 %v137
    %v4790 = vpop.f32.mrb[0].mxu0
    %v4791 = vadd.f32 0.0, %v4790
    %v4792 = vpop.f32.mrb[0].mxu0
    %4793 = vmatprep.mubr.f32.mxu0 0.0
    %4794 = vmatmul.mubr.f32.gmra.mrb[0].mxu0 %v140
    %v4795 = vpop.f32.mrb[0].mxu0
    %v4796 = vadd.f32 0.0, %v4795
    %v4797 = vpop.f32.mrb[0].mxu0
    %4798 = vmatprep.mubr.f32.mxu0 0.0
    %4799 = vmatmul.mubr.f32.gmra.mrb[0].mxu0 %v143
    %v4800 = vpop.f32.mrb[0].mxu0
    %v4801 = vadd.f32 0.0, %v4800
    %v4802 = vpop.f32.mrb[0].mxu0
    %4803 = vmatprep.mubr.f32.mxu0 0.0
    %4804 = vmatmul.mubr.f32.gmra.mrb[0].mxu0 %v146
    %v4805 = vpop.f32.mrb[0].mxu0
    %v4806 = vadd.f32 0.0, %v4805
    %v4807 = vpop.f32.mrb[0].mxu0
    %4808 = vdwg.mxu0
    %v4809 = vadd.f32 %v4708, %v4791
    %v4810 = vadd.f32 %v4709, %v4796
    %v4811 = vadd.f32 %v4710, %v4801
    %v4812 = vadd.f32 %v4711, %v4806
    %v4813 = vxor.u32 %v4809, 2147483648
    %v4814 = vxor.u32 %v4810, 2147483648
    %v4815 = vxor.u32 %v4811, 2147483648
    %v4816 = vxor.u32 %v4812, 2147483648
    %v4817 = vmul.f32 %v4813, 1.442695
    %v4818 = vpow.pop %v4817
    %v4819 = vmul.f32 %v4814, 1.442695
    %v4820 = vpow.pop %v4819
    %v4821 = vmul.f32 %v4815, 1.442695
    %v4822 = vpow.pop %v4821
    %v4823 = vmul.f32 %v4816, 1.442695
    %v4824 = vpow.pop %v4823
    %v4825 = vadd.f32 %v4818, 1.0
    %v4826 = vadd.f32 %v4820, 1.0
    %v4827 = vadd.f32 %v4822, 1.0
    %v4828 = vadd.f32 %v4824, 1.0
    %v4829 = vrcp.pop %v4825
    %v4830 = vmul.f32 1.0, %v4829
    %v4831 = vrcp.pop %v4826
    %v4832 = vmul.f32 1.0, %v4831
    %v4833 = vrcp.pop %v4827
    %v4834 = vmul.f32 1.0, %v4833
    %v4835 = vrcp.pop %v4828
    %v4836 = vmul.f32 1.0, %v4835
    %4837 = vmatprep.subr.mxu0 0.0
    %4838 = vmatpush1.msra.mxu0 %v4703
    %4839 = vmatprep.subr.mxu0 0.0
    %4840 = vmatpush1.msra.mxu0 %v4704
    %4841 = vmatprep.subr.mxu0 0.0
    %4842 = vmatpush1.msra.mxu0 %v4705
    %4843 = vmatprep.subr.mxu0 0.0
    %4844 = vmatpush1.msra.mxu0 %v4706
    %4845 = vmatprep.subr.mxu0 0.0
    %4846 = vmatpush1.msra.mxu0 0.0
    %4847 = vmatprep.subr.mxu0 0.0
    %4848 = vmatpush1.msra.mxu0 0.0
    %4849 = vmatprep.subr.mxu0 0.0
    %4850 = vmatpush1.msra.mxu0 0.0
    %4851 = vmatprep.subr.mxu0 0.0
    %4852 = vmatpush1.msra.mxu0 0.0
    %4853 = vmatprep.subr.mxu0 0.0
    %4854 = vmatpush1.msra.mxu0 0.0
    %4855 = vmatprep.subr.mxu0 0.0
    %4856 = vmatpush1.msra.mxu0 0.0
    %4857 = vmatprep.subr.mxu0 0.0
    %4858 = vmatpush1.msra.mxu0 0.0
    %4859 = vmatprep.subr.mxu0 0.0
    %4860 = vmatpush1.msra.mxu0 0.0
    %4861 = vmatprep.subr.mxu0 0.0
    %4862 = vmatpush1.msra.mxu0 0.0
    %4863 = vmatprep.subr.mxu0 0.0
    %4864 = vmatpush1.msra.mxu0 0.0
    %4865 = vmatprep.subr.mxu0 0.0
    %4866 = vmatpush1.msra.mxu0 0.0
    %4867 = vmatprep.subr.mxu0 0.0
    %4868 = vmatpush1.msra.mxu0 0.0
    %4869 = vmatprep.subr.mxu0 0.0
    %4870 = vmatpush1.msra.mxu0 0.0
    %4871 = vmatprep.subr.mxu0 0.0
    %4872 = vmatpush1.msra.mxu0 0.0
    %4873 = vmatprep.subr.mxu0 0.0
    %4874 = vmatpush1.msra.mxu0 0.0
    %4875 = vmatprep.subr.mxu0 0.0
    %4876 = vmatpush1.msra.mxu0 0.0
    %4877 = vmatprep.subr.mxu0 0.0
    %4878 = vmatpush1.msra.mxu0 0.0
    %4879 = vmatprep.subr.mxu0 0.0
    %4880 = vmatpush1.msra.mxu0 0.0
    %4881 = vmatprep.subr.mxu0 0.0
    %4882 = vmatpush1.msra.mxu0 0.0
    %4883 = vmatprep.subr.mxu0 0.0
    %4884 = vmatpush1.msra.mxu0 0.0
    %4885 = vmatprep.subr.mxu0 0.0
    %4886 = vmatpush1.msra.mxu0 0.0
    %4887 = vmatprep.subr.mxu0 0.0
    %4888 = vmatpush1.msra.mxu0 0.0
    %4889 = vmatprep.subr.mxu0 0.0
    %4890 = vmatpush1.msra.mxu0 0.0
    %4891 = vmatprep.subr.mxu0 0.0
    %4892 = vmatpush1.msra.mxu0 0.0
    %4893 = vmatprep.subr.mxu0 0.0
    %4894 = vmatpush1.msra.mxu0 0.0
    %4895 = vmatprep.subr.mxu0 0.0
    %4896 = vmatpush1.msra.mxu0 0.0
    %4897 = vmatprep.subr.mxu0 0.0
    %4898 = vmatpush1.msra.mxu0 0.0
    %4899 = vmatprep.subr.mxu0 0.0
    %4900 = vmatpush1.msra.mxu0 0.0
    %4901 = vmatprep.mubr.f32.mxu0 0.0
    %4902 = vmatmul.mubr.f32.gmra.mrb[0].mxu0 %v262
    %v4903 = vpop.f32.mrb[0].mxu0
    %v4904 = vadd.f32 0.0, %v4903
    %v4905 = vpop.f32.mrb[0].mxu0
    %4906 = vmatprep.mubr.f32.mxu0 0.0
    %4907 = vmatmul.mubr.f32.gmra.mrb[0].mxu0 %v265
    %v4908 = vpop.f32.mrb[0].mxu0
    %v4909 = vadd.f32 0.0, %v4908
    %v4910 = vpop.f32.mrb[0].mxu0
    %4911 = vmatprep.mubr.f32.mxu0 0.0
    %4912 = vmatmul.mubr.f32.gmra.mrb[0].mxu0 %v268
    %v4913 = vpop.f32.mrb[0].mxu0
    %v4914 = vadd.f32 0.0, %v4913
    %v4915 = vpop.f32.mrb[0].mxu0
    %4916 = vmatprep.mubr.f32.mxu0 0.0
    %4917 = vmatmul.mubr.f32.gmra.mrb[0].mxu0 %v271
    %v4918 = vpop.f32.mrb[0].mxu0
    %v4919 = vadd.f32 0.0, %v4918
    %v4920 = vpop.f32.mrb[0].mxu0
    %4921 = vdwg.mxu0
    %v4922 = vadd.f32 %v4712, %v4904
    %v4923 = vadd.f32 %v4713, %v4909
    %v4924 = vadd.f32 %v4714, %v4914
    %v4925 = vadd.f32 %v4715, %v4919
    %v4926 = vxor.u32 %v4922, 2147483648
    %v4927 = vxor.u32 %v4923, 2147483648
    %v4928 = vxor.u32 %v4924, 2147483648
    %v4929 = vxor.u32 %v4925, 2147483648
    %v4930 = vmul.f32 %v4926, 1.442695
    %v4931 = vpow.pop %v4930
    %v4932 = vmul.f32 %v4927, 1.442695
    %v4933 = vpow.pop %v4932
    %v4934 = vmul.f32 %v4928, 1.442695
    %v4935 = vpow.pop %v4934
    %v4936 = vmul.f32 %v4929, 1.442695
    %v4937 = vpow.pop %v4936
    %v4938 = vadd.f32 %v4931, 1.0
    %v4939 = vadd.f32 %v4933, 1.0
    %v4940 = vadd.f32 %v4935, 1.0
    %v4941 = vadd.f32 %v4937, 1.0
    %v4942 = vrcp.pop %v4938
    %v4943 = vmul.f32 1.0, %v4942
    %v4944 = vrcp.pop %v4939
    %v4945 = vmul.f32 1.0, %v4944
    %v4946 = vrcp.pop %v4940
    %v4947 = vmul.f32 1.0, %v4946
    %v4948 = vrcp.pop %v4941
    %v4949 = vmul.f32 1.0, %v4948
    %4950 = vmatprep.subr.mxu0 0.0
    %4951 = vmatpush1.msra.mxu0 %v4703
    %4952 = vmatprep.subr.mxu0 0.0
    %4953 = vmatpush1.msra.mxu0 %v4704
    %4954 = vmatprep.subr.mxu0 0.0
    %4955 = vmatpush1.msra.mxu0 %v4705
    %4956 = vmatprep.subr.mxu0 0.0
    %4957 = vmatpush1.msra.mxu0 %v4706
    %4958 = vmatprep.subr.mxu0 0.0
    %4959 = vmatpush1.msra.mxu0 0.0
    %4960 = vmatprep.subr.mxu0 0.0
    %4961 = vmatpush1.msra.mxu0 0.0
    %4962 = vmatprep.subr.mxu0 0.0
    %4963 = vmatpush1.msra.mxu0 0.0
    %4964 = vmatprep.subr.mxu0 0.0
    %4965 = vmatpush1.msra.mxu0 0.0
    %4966 = vmatprep.subr.mxu0 0.0
    %4967 = vmatpush1.msra.mxu0 0.0
    %4968 = vmatprep.subr.mxu0 0.0
    %4969 = vmatpush1.msra.mxu0 0.0
    %4970 = vmatprep.subr.mxu0 0.0
    %4971 = vmatpush1.msra.mxu0 0.0
    %4972 = vmatprep.subr.mxu0 0.0
    %4973 = vmatpush1.msra.mxu0 0.0
    %4974 = vmatprep.subr.mxu0 0.0
    %4975 = vmatpush1.msra.mxu0 0.0
    %4976 = vmatprep.subr.mxu0 0.0
    %4977 = vmatpush1.msra.mxu0 0.0
    %4978 = vmatprep.subr.mxu0 0.0
    %4979 = vmatpush1.msra.mxu0 0.0
    %4980 = vmatprep.subr.mxu0 0.0
    %4981 = vmatpush1.msra.mxu0 0.0
    %4982 = vmatprep.subr.mxu0 0.0
    %4983 = vmatpush1.msra.mxu0 0.0
    %4984 = vmatprep.subr.mxu0 0.0
    %4985 = vmatpush1.msra.mxu0 0.0
    %4986 = vmatprep.subr.mxu0 0.0
    %4987 = vmatpush1.msra.mxu0 0.0
    %4988 = vmatprep.subr.mxu0 0.0
    %4989 = vmatpush1.msra.mxu0 0.0
    %4990 = vmatprep.subr.mxu0 0.0
    %4991 = vmatpush1.msra.mxu0 0.0
    %4992 = vmatprep.subr.mxu0 0.0
    %4993 = vmatpush1.msra.mxu0 0.0
    %4994 = vmatprep.subr.mxu0 0.0
    %4995 = vmatpush1.msra.mxu0 0.0
    %4996 = vmatprep.subr.mxu0 0.0
    %4997 = vmatpush1.msra.mxu0 0.0
    %4998 = vmatprep.subr.mxu0 0.0
    %4999 = vmatpush1.msra.mxu0 0.0
    %5000 = vmatprep.subr.mxu0 0.0
    %5001 = vmatpush1.msra.mxu0 0.0
    %5002 = vmatprep.subr.mxu0 0.0
    %5003 = vmatpush1.msra.mxu0 0.0
    %5004 = vmatprep.subr.mxu0 0.0
    %5005 = vmatpush1.msra.mxu0 0.0
    %5006 = vmatprep.subr.mxu0 0.0
    %5007 = vmatpush1.msra.mxu0 0.0
    %5008 = vmatprep.subr.mxu0 0.0
    %5009 = vmatpush1.msra.mxu0 0.0
    %5010 = vmatprep.subr.mxu0 0.0
    %5011 = vmatpush1.msra.mxu0 0.0
    %5012 = vmatprep.subr.mxu0 0.0
    %5013 = vmatpush1.msra.mxu0 0.0
    %5014 = vmatprep.mubr.f32.mxu0 0.0
    %5015 = vmatmul.mubr.f32.gmra.mrb[0].mxu0 %v387
    %v5016 = vpop.f32.mrb[0].mxu0
    %v5017 = vadd.f32 0.0, %v5016
    %v5018 = vpop.f32.mrb[0].mxu0
    %5019 = vmatprep.mubr.f32.mxu0 0.0
    %5020 = vmatmul.mubr.f32.gmra.mrb[0].mxu0 %v390
    %v5021 = vpop.f32.mrb[0].mxu0
    %v5022 = vadd.f32 0.0, %v5021
    %v5023 = vpop.f32.mrb[0].mxu0
    %5024 = vmatprep.mubr.f32.mxu0 0.0
    %5025 = vmatmul.mubr.f32.gmra.mrb[0].mxu0 %v393
    %v5026 = vpop.f32.mrb[0].mxu0
    %v5027 = vadd.f32 0.0, %v5026
    %v5028 = vpop.f32.mrb[0].mxu0
    %5029 = vmatprep.mubr.f32.mxu0 0.0
    %5030 = vmatmul.mubr.f32.gmra.mrb[0].mxu0 %v396
    %v5031 = vpop.f32.mrb[0].mxu0
    %v5032 = vadd.f32 0.0, %v5031
    %v5033 = vpop.f32.mrb[0].mxu0
    %5034 = vdwg.mxu0
    %v5035 = vadd.f32 %v4716, %v5017
    %v5036 = vadd.f32 %v4717, %v5022
    %v5037 = vadd.f32 %v4718, %v5027
    %v5038 = vadd.f32 %v4719, %v5032
    %v5039 = vtanh.pop %v5035
    %v5040 = vtanh.pop %v5036
    %v5041 = vtanh.pop %v5037
    %v5042 = vtanh.pop %v5038
    %5043 = vmatprep.subr.mxu0 0.0
    %5044 = vmatpush1.msra.mxu0 %v4703
    %5045 = vmatprep.subr.mxu0 0.0
    %5046 = vmatpush1.msra.mxu0 %v4704
    %5047 = vmatprep.subr.mxu0 0.0
    %5048 = vmatpush1.msra.mxu0 %v4705
    %5049 = vmatprep.subr.mxu0 0.0
    %5050 = vmatpush1.msra.mxu0 %v4706
    %5051 = vmatprep.subr.mxu0 0.0
    %5052 = vmatpush1.msra.mxu0 0.0
    %5053 = vmatprep.subr.mxu0 0.0
    %5054 = vmatpush1.msra.mxu0 0.0
    %5055 = vmatprep.subr.mxu0 0.0
    %5056 = vmatpush1.msra.mxu0 0.0
    %5057 = vmatprep.subr.mxu0 0.0
    %5058 = vmatpush1.msra.mxu0 0.0
    %5059 = vmatprep.subr.mxu0 0.0
    %5060 = vmatpush1.msra.mxu0 0.0
    %5061 = vmatprep.subr.mxu0 0.0
    %5062 = vmatpush1.msra.mxu0 0.0
    %5063 = vmatprep.subr.mxu0 0.0
    %5064 = vmatpush1.msra.mxu0 0.0
    %5065 = vmatprep.subr.mxu0 0.0
    %5066 = vmatpush1.msra.mxu0 0.0
    %5067 = vmatprep.subr.mxu0 0.0
    %5068 = vmatpush1.msra.mxu0 0.0
    %5069 = vmatprep.subr.mxu0 0.0
    %5070 = vmatpush1.msra.mxu0 0.0
    %5071 = vmatprep.subr.mxu0 0.0
    %5072 = vmatpush1.msra.mxu0 0.0
    %5073 = vmatprep.subr.mxu0 0.0
    %5074 = vmatpush1.msra.mxu0 0.0
    %5075 = vmatprep.subr.mxu0 0.0
    %5076 = vmatpush1.msra.mxu0 0.0
    %5077 = vmatprep.subr.mxu0 0.0
    %5078 = vmatpush1.msra.mxu0 0.0
    %5079 = vmatprep.subr.mxu0 0.0
    %5080 = vmatpush1.msra.mxu0 0.0
    %5081 = vmatprep.subr.mxu0 0.0
    %5082 = vmatpush1.msra.mxu0 0.0
    %5083 = vmatprep.subr.mxu0 0.0
    %5084 = vmatpush1.msra.mxu0 0.0
    %5085 = vmatprep.subr.mxu0 0.0
    %5086 = vmatpush1.msra.mxu0 0.0
    %5087 = vmatprep.subr.mxu0 0.0
    %5088 = vmatpush1.msra.mxu0 0.0
    %5089 = vmatprep.subr.mxu0 0.0
    %5090 = vmatpush1.msra.mxu0 0.0
    %5091 = vmatprep.subr.mxu0 0.0
    %5092 = vmatpush1.msra.mxu0 0.0
    %5093 = vmatprep.subr.mxu0 0.0
    %5094 = vmatpush1.msra.mxu0 0.0
    %5095 = vmatprep.subr.mxu0 0.0
    %5096 = vmatpush1.msra.mxu0 0.0
    %5097 = vmatprep.subr.mxu0 0.0
    %5098 = vmatpush1.msra.mxu0 0.0
    %5099 = vmatprep.subr.mxu0 0.0
    %5100 = vmatpush1.msra.mxu0 0.0
    %5101 = vmatprep.subr.mxu0 0.0
    %5102 = vmatpush1.msra.mxu0 0.0
    %5103 = vmatprep.subr.mxu0 0.0
    %5104 = vmatpush1.msra.mxu0 0.0
    %5105 = vmatprep.subr.mxu0 0.0
    %5106 = vmatpush1.msra.mxu0 0.0
    %5107 = vmatprep.mubr.f32.mxu0 0.0
    %5108 = vmatmul.mubr.f32.gmra.mrb[0].mxu0 %v492
    %v5109 = vpop.f32.mrb[0].mxu0
    %v5110 = vadd.f32 0.0, %v5109
    %v5111 = vpop.f32.mrb[0].mxu0
    %5112 = vmatprep.mubr.f32.mxu0 0.0
    %5113 = vmatmul.mubr.f32.gmra.mrb[0].mxu0 %v495
    %v5114 = vpop.f32.mrb[0].mxu0
    %v5115 = vadd.f32 0.0, %v5114
    %v5116 = vpop.f32.mrb[0].mxu0
    %5117 = vmatprep.mubr.f32.mxu0 0.0
    %5118 = vmatmul.mubr.f32.gmra.mrb[0].mxu0 %v498
    %v5119 = vpop.f32.mrb[0].mxu0
    %v5120 = vadd.f32 0.0, %v5119
    %v5121 = vpop.f32.mrb[0].mxu0
    %5122 = vmatprep.mubr.f32.mxu0 0.0
    %5123 = vmatmul.mubr.f32.gmra.mrb[0].mxu0 %v501
    %v5124 = vpop.f32.mrb[0].mxu0
    %v5125 = vadd.f32 0.0, %v5124
    %v5126 = vpop.f32.mrb[0].mxu0
    %5127 = vdwg.mxu0
    %v5128 = vadd.f32 %v4720, %v5110
    %v5129 = vadd.f32 %v4721, %v5115
    %v5130 = vadd.f32 %v4722, %v5120
    %v5131 = vadd.f32 %v4723, %v5125
    %v5132 = vxor.u32 %v5128, 2147483648
    %v5133 = vxor.u32 %v5129, 2147483648
    %v5134 = vxor.u32 %v5130, 2147483648
    %v5135 = vxor.u32 %v5131, 2147483648
    %v5136 = vmul.f32 %v5132, 1.442695
    %v5137 = vpow.pop %v5136
    %v5138 = vmul.f32 %v5133, 1.442695
    %v5139 = vpow.pop %v5138
    %v5140 = vmul.f32 %v5134, 1.442695
    %v5141 = vpow.pop %v5140
    %v5142 = vmul.f32 %v5135, 1.442695
    %v5143 = vpow.pop %v5142
    %v5144 = vadd.f32 %v5137, 1.0
    %v5145 = vadd.f32 %v5139, 1.0
    %v5146 = vadd.f32 %v5141, 1.0
    %v5147 = vadd.f32 %v5143, 1.0
    %v5148 = vrcp.pop %v5144
    %v5149 = vmul.f32 1.0, %v5148
    %v5150 = vrcp.pop %v5145
    %v5151 = vmul.f32 1.0, %v5150
    %v5152 = vrcp.pop %v5146
    %v5153 = vmul.f32 1.0, %v5152
    %v5154 = vrcp.pop %v5147
    %v5155 = vmul.f32 1.0, %v5154
    %v5156 = vmul.f32 %v4943, %v4695
    %v5157 = vmul.f32 %v4945, %v4696
    %v5158 = vmul.f32 %v4947, %v4697
    %v5159 = vmul.f32 %v4949, %v4698
    %v5160 = vmul.f32 %v4830, %v5039
    %v5161 = vmul.f32 %v4832, %v5040
    %v5162 = vmul.f32 %v4834, %v5041
    %v5163 = vmul.f32 %v4836, %v5042
    %v5164 = vadd.f32 %v5156, %v5160
    %v5165 = vadd.f32 %v5157, %v5161
    %v5166 = vadd.f32 %v5158, %v5162
    %v5167 = vadd.f32 %v5159, %v5163
    %v5168 = vtanh.pop %v5164
    %v5169 = vtanh.pop %v5165
    %v5170 = vtanh.pop %v5166
    %v5171 = vtanh.pop %v5167
    %v5172 = vmul.f32 %v5149, %v5168
    %v5173 = vmul.f32 %v5151, %v5169
    %v5174 = vmul.f32 %v5153, %v5170
    %v5175 = vmul.f32 %v5155, %v5171
    %s5176 = scalar_lea.vmem [#allocation5], 128
    %5177 = vst [vmem:[%s5176] sm:$0xff] %v5172
    %5178 = vst [vmem:[%s5176 + $0x8] sm:$0xff] %v5173
    %5179 = vst [vmem:[%s5176 + $0x10] sm:$0xff] %v5174
    %5180 = vst [vmem:[%s5176 + $0x18] sm:$0xff] %v5175
    %v5181 = vld [vmem:[%s3689] sm:$0xff]
    %v5182 = vld [vmem:[%s3689 + $0x8] sm:$0xff]
    %v5183 = vld [vmem:[%s3689 + $0x10] sm:$0xff]
    %v5184 = vld [vmem:[%s3689 + $0x18] sm:$0xff]
    %v5185 = vld [vmem:[%s3689 + $0x40] sm:$0xff]
    %v5186 = vld [vmem:[%s3689 + $0x48] sm:$0xff]
    %v5187 = vld [vmem:[%s3689 + $0x50] sm:$0xff]
    %v5188 = vld [vmem:[%s3689 + $0x58] sm:$0xff]
    %v5189 = vld [vmem:[%s3689 + $0x60] sm:$0xff]
    %v5190 = vld [vmem:[%s3689 + $0x68] sm:$0xff]
    %v5191 = vld [vmem:[%s3689 + $0x70] sm:$0xff]
    %v5192 = vld [vmem:[%s3689 + $0x78] sm:$0xff]
    %v5193 = vxor.u32 %v5181, 2147483648
    %v5194 = vxor.u32 %v5182, 2147483648
    %v5195 = vxor.u32 %v5183, 2147483648
    %v5196 = vxor.u32 %v5184, 2147483648
    %v5197 = vmul.f32 %v5193, 1.442695
    %v5198 = vpow.pop %v5197
    %v5199 = vmul.f32 %v5194, 1.442695
    %v5200 = vpow.pop %v5199
    %v5201 = vmul.f32 %v5195, 1.442695
    %v5202 = vpow.pop %v5201
    %v5203 = vmul.f32 %v5196, 1.442695
    %v5204 = vpow.pop %v5203
    %v5205 = vadd.f32 %v5198, 1.0
    %v5206 = vadd.f32 %v5200, 1.0
    %v5207 = vadd.f32 %v5202, 1.0
    %v5208 = vadd.f32 %v5204, 1.0
    %v5209 = vrcp.pop %v5205
    %v5210 = vmul.f32 1.0, %v5209
    %v5211 = vrcp.pop %v5206
    %v5212 = vmul.f32 1.0, %v5211
    %v5213 = vrcp.pop %v5207
    %v5214 = vmul.f32 1.0, %v5213
    %v5215 = vrcp.pop %v5208
    %v5216 = vmul.f32 1.0, %v5215
    %v5217 = vtanh.pop %v5185
    %v5218 = vtanh.pop %v5186
    %v5219 = vtanh.pop %v5187
    %v5220 = vtanh.pop %v5188
    %v5221 = vxor.u32 %v5189, 2147483648
    %v5222 = vxor.u32 %v5190, 2147483648
    %v5223 = vxor.u32 %v5191, 2147483648
    %v5224 = vxor.u32 %v5192, 2147483648
    %v5225 = vmul.f32 %v5221, 1.442695
    %v5226 = vpow.pop %v5225
    %v5227 = vmul.f32 %v5222, 1.442695
    %v5228 = vpow.pop %v5227
    %v5229 = vmul.f32 %v5223, 1.442695
    %v5230 = vpow.pop %v5229
    %v5231 = vmul.f32 %v5224, 1.442695
    %v5232 = vpow.pop %v5231
    %v5233 = vadd.f32 %v5226, 1.0
    %v5234 = vadd.f32 %v5228, 1.0
    %v5235 = vadd.f32 %v5230, 1.0
    %v5236 = vadd.f32 %v5232, 1.0
    %v5237 = vrcp.pop %v5233
    %v5238 = vmul.f32 1.0, %v5237
    %v5239 = vrcp.pop %v5234
    %v5240 = vmul.f32 1.0, %v5239
    %v5241 = vrcp.pop %v5235
    %v5242 = vmul.f32 1.0, %v5241
    %v5243 = vrcp.pop %v5236
    %v5244 = vmul.f32 1.0, %v5243
    %v5245 = vmul.f32 %v5210, %v5217
    %v5246 = vmul.f32 %v5212, %v5218
    %v5247 = vmul.f32 %v5214, %v5219
    %v5248 = vmul.f32 %v5216, %v5220
    %v5249 = vtanh.pop %v5245
    %v5250 = vtanh.pop %v5246
    %v5251 = vtanh.pop %v5247
    %v5252 = vtanh.pop %v5248
    %v5253 = vmul.f32 %v5238, %v5249
    %v5254 = vmul.f32 %v5240, %v5250
    %v5255 = vmul.f32 %v5242, %v5251
    %v5256 = vmul.f32 %v5244, %v5252
    %v5257 = vld [vmem:[%s4707] sm:$0xff]
    %v5258 = vld [vmem:[%s4707 + $0x8] sm:$0xff]
    %v5259 = vld [vmem:[%s4707 + $0x10] sm:$0xff]
    %v5260 = vld [vmem:[%s4707 + $0x18] sm:$0xff]
    %v5261 = vld [vmem:[%s4707 + $0x20] sm:$0xff]
    %v5262 = vld [vmem:[%s4707 + $0x28] sm:$0xff]
    %v5263 = vld [vmem:[%s4707 + $0x30] sm:$0xff]
    %v5264 = vld [vmem:[%s4707 + $0x38] sm:$0xff]
    %v5265 = vld [vmem:[%s4707 + $0x40] sm:$0xff]
    %v5266 = vld [vmem:[%s4707 + $0x48] sm:$0xff]
    %v5267 = vld [vmem:[%s4707 + $0x50] sm:$0xff]
    %v5268 = vld [vmem:[%s4707 + $0x58] sm:$0xff]
    %v5269 = vld [vmem:[%s4707 + $0x60] sm:$0xff]
    %v5270 = vld [vmem:[%s4707 + $0x68] sm:$0xff]
    %v5271 = vld [vmem:[%s4707 + $0x70] sm:$0xff]
    %v5272 = vld [vmem:[%s4707 + $0x78] sm:$0xff]
    %5273 = vmatprep.subr.mxu0 0.0
    %5274 = vmatpush1.msra.mxu0 %v5253
    %5275 = vmatprep.subr.mxu0 0.0
    %5276 = vmatpush1.msra.mxu0 %v5254
    %5277 = vmatprep.subr.mxu0 0.0
    %5278 = vmatpush1.msra.mxu0 %v5255
    %5279 = vmatprep.subr.mxu0 0.0
    %5280 = vmatpush1.msra.mxu0 %v5256
    %5281 = vmatprep.subr.mxu0 0.0
    %5282 = vmatpush1.msra.mxu0 0.0
    %5283 = vmatprep.subr.mxu0 0.0
    %5284 = vmatpush1.msra.mxu0 0.0
    %5285 = vmatprep.subr.mxu0 0.0
    %5286 = vmatpush1.msra.mxu0 0.0
    %5287 = vmatprep.subr.mxu0 0.0
    %5288 = vmatpush1.msra.mxu0 0.0
    %5289 = vmatprep.subr.mxu0 0.0
    %5290 = vmatpush1.msra.mxu0 0.0
    %5291 = vmatprep.subr.mxu0 0.0
    %5292 = vmatpush1.msra.mxu0 0.0
    %5293 = vmatprep.subr.mxu0 0.0
    %5294 = vmatpush1.msra.mxu0 0.0
    %5295 = vmatprep.subr.mxu0 0.0
    %5296 = vmatpush1.msra.mxu0 0.0
    %5297 = vmatprep.subr.mxu0 0.0
    %5298 = vmatpush1.msra.mxu0 0.0
    %5299 = vmatprep.subr.mxu0 0.0
    %5300 = vmatpush1.msra.mxu0 0.0
    %5301 = vmatprep.subr.mxu0 0.0
    %5302 = vmatpush1.msra.mxu0 0.0
    %5303 = vmatprep.subr.mxu0 0.0
    %5304 = vmatpush1.msra.mxu0 0.0
    %5305 = vmatprep.subr.mxu0 0.0
    %5306 = vmatpush1.msra.mxu0 0.0
    %5307 = vmatprep.subr.mxu0 0.0
    %5308 = vmatpush1.msra.mxu0 0.0
    %5309 = vmatprep.subr.mxu0 0.0
    %5310 = vmatpush1.msra.mxu0 0.0
    %5311 = vmatprep.subr.mxu0 0.0
    %5312 = vmatpush1.msra.mxu0 0.0
    %5313 = vmatprep.subr.mxu0 0.0
    %5314 = vmatpush1.msra.mxu0 0.0
    %5315 = vmatprep.subr.mxu0 0.0
    %5316 = vmatpush1.msra.mxu0 0.0
    %5317 = vmatprep.subr.mxu0 0.0
    %5318 = vmatpush1.msra.mxu0 0.0
    %5319 = vmatprep.subr.mxu0 0.0
    %5320 = vmatpush1.msra.mxu0 0.0
    %5321 = vmatprep.subr.mxu0 0.0
    %5322 = vmatpush1.msra.mxu0 0.0
    %5323 = vmatprep.subr.mxu0 0.0
    %5324 = vmatpush1.msra.mxu0 0.0
    %5325 = vmatprep.subr.mxu0 0.0
    %5326 = vmatpush1.msra.mxu0 0.0
    %5327 = vmatprep.subr.mxu0 0.0
    %5328 = vmatpush1.msra.mxu0 0.0
    %5329 = vmatprep.subr.mxu0 0.0
    %5330 = vmatpush1.msra.mxu0 0.0
    %5331 = vmatprep.subr.mxu0 0.0
    %5332 = vmatpush1.msra.mxu0 0.0
    %5333 = vmatprep.subr.mxu0 0.0
    %5334 = vmatpush1.msra.mxu0 0.0
    %5335 = vmatprep.subr.mxu0 0.0
    %5336 = vmatpush1.msra.mxu0 0.0
    %5337 = vmatprep.mubr.f32.mxu0 0.0
    %5338 = vmatmul.mubr.f32.gmra.mrb[0].mxu0 %v137
    %v5339 = vpop.f32.mrb[0].mxu0
    %v5340 = vadd.f32 0.0, %v5339
    %v5341 = vpop.f32.mrb[0].mxu0
    %5342 = vmatprep.mubr.f32.mxu0 0.0
    %5343 = vmatmul.mubr.f32.gmra.mrb[0].mxu0 %v140
    %v5344 = vpop.f32.mrb[0].mxu0
    %v5345 = vadd.f32 0.0, %v5344
    %v5346 = vpop.f32.mrb[0].mxu0
    %5347 = vmatprep.mubr.f32.mxu0 0.0
    %5348 = vmatmul.mubr.f32.gmra.mrb[0].mxu0 %v143
    %v5349 = vpop.f32.mrb[0].mxu0
    %v5350 = vadd.f32 0.0, %v5349
    %v5351 = vpop.f32.mrb[0].mxu0
    %5352 = vmatprep.mubr.f32.mxu0 0.0
    %5353 = vmatmul.mubr.f32.gmra.mrb[0].mxu0 %v146
    %v5354 = vpop.f32.mrb[0].mxu0
    %v5355 = vadd.f32 0.0, %v5354
    %v5356 = vpop.f32.mrb[0].mxu0
    %5357 = vdwg.mxu0
    %v5358 = vadd.f32 %v5257, %v5340
    %v5359 = vadd.f32 %v5258, %v5345
    %v5360 = vadd.f32 %v5259, %v5350
    %v5361 = vadd.f32 %v5260, %v5355
    %v5362 = vxor.u32 %v5358, 2147483648
    %v5363 = vxor.u32 %v5359, 2147483648
    %v5364 = vxor.u32 %v5360, 2147483648
    %v5365 = vxor.u32 %v5361, 2147483648
    %v5366 = vmul.f32 %v5362, 1.442695
    %v5367 = vpow.pop %v5366
    %v5368 = vmul.f32 %v5363, 1.442695
    %v5369 = vpow.pop %v5368
    %v5370 = vmul.f32 %v5364, 1.442695
    %v5371 = vpow.pop %v5370
    %v5372 = vmul.f32 %v5365, 1.442695
    %v5373 = vpow.pop %v5372
    %v5374 = vadd.f32 %v5367, 1.0
    %v5375 = vadd.f32 %v5369, 1.0
    %v5376 = vadd.f32 %v5371, 1.0
    %v5377 = vadd.f32 %v5373, 1.0
    %v5378 = vrcp.pop %v5374
    %v5379 = vmul.f32 1.0, %v5378
    %v5380 = vrcp.pop %v5375
    %v5381 = vmul.f32 1.0, %v5380
    %v5382 = vrcp.pop %v5376
    %v5383 = vmul.f32 1.0, %v5382
    %v5384 = vrcp.pop %v5377
    %v5385 = vmul.f32 1.0, %v5384
    %5386 = vmatprep.subr.mxu0 0.0
    %5387 = vmatpush1.msra.mxu0 %v5253
    %5388 = vmatprep.subr.mxu0 0.0
    %5389 = vmatpush1.msra.mxu0 %v5254
    %5390 = vmatprep.subr.mxu0 0.0
    %5391 = vmatpush1.msra.mxu0 %v5255
    %5392 = vmatprep.subr.mxu0 0.0
    %5393 = vmatpush1.msra.mxu0 %v5256
    %5394 = vmatprep.subr.mxu0 0.0
    %5395 = vmatpush1.msra.mxu0 0.0
    %5396 = vmatprep.subr.mxu0 0.0
    %5397 = vmatpush1.msra.mxu0 0.0
    %5398 = vmatprep.subr.mxu0 0.0
    %5399 = vmatpush1.msra.mxu0 0.0
    %5400 = vmatprep.subr.mxu0 0.0
    %5401 = vmatpush1.msra.mxu0 0.0
    %5402 = vmatprep.subr.mxu0 0.0
    %5403 = vmatpush1.msra.mxu0 0.0
    %5404 = vmatprep.subr.mxu0 0.0
    %5405 = vmatpush1.msra.mxu0 0.0
    %5406 = vmatprep.subr.mxu0 0.0
    %5407 = vmatpush1.msra.mxu0 0.0
    %5408 = vmatprep.subr.mxu0 0.0
    %5409 = vmatpush1.msra.mxu0 0.0
    %5410 = vmatprep.subr.mxu0 0.0
    %5411 = vmatpush1.msra.mxu0 0.0
    %5412 = vmatprep.subr.mxu0 0.0
    %5413 = vmatpush1.msra.mxu0 0.0
    %5414 = vmatprep.subr.mxu0 0.0
    %5415 = vmatpush1.msra.mxu0 0.0
    %5416 = vmatprep.subr.mxu0 0.0
    %5417 = vmatpush1.msra.mxu0 0.0
    %5418 = vmatprep.subr.mxu0 0.0
    %5419 = vmatpush1.msra.mxu0 0.0
    %5420 = vmatprep.subr.mxu0 0.0
    %5421 = vmatpush1.msra.mxu0 0.0
    %5422 = vmatprep.subr.mxu0 0.0
    %5423 = vmatpush1.msra.mxu0 0.0
    %5424 = vmatprep.subr.mxu0 0.0
    %5425 = vmatpush1.msra.mxu0 0.0
    %5426 = vmatprep.subr.mxu0 0.0
    %5427 = vmatpush1.msra.mxu0 0.0
    %5428 = vmatprep.subr.mxu0 0.0
    %5429 = vmatpush1.msra.mxu0 0.0
    %5430 = vmatprep.subr.mxu0 0.0
    %5431 = vmatpush1.msra.mxu0 0.0
    %5432 = vmatprep.subr.mxu0 0.0
    %5433 = vmatpush1.msra.mxu0 0.0
    %5434 = vmatprep.subr.mxu0 0.0
    %5435 = vmatpush1.msra.mxu0 0.0
    %5436 = vmatprep.subr.mxu0 0.0
    %5437 = vmatpush1.msra.mxu0 0.0
    %5438 = vmatprep.subr.mxu0 0.0
    %5439 = vmatpush1.msra.mxu0 0.0
    %5440 = vmatprep.subr.mxu0 0.0
    %5441 = vmatpush1.msra.mxu0 0.0
    %5442 = vmatprep.subr.mxu0 0.0
    %5443 = vmatpush1.msra.mxu0 0.0
    %5444 = vmatprep.subr.mxu0 0.0
    %5445 = vmatpush1.msra.mxu0 0.0
    %5446 = vmatprep.subr.mxu0 0.0
    %5447 = vmatpush1.msra.mxu0 0.0
    %5448 = vmatprep.subr.mxu0 0.0
    %5449 = vmatpush1.msra.mxu0 0.0
    %5450 = vmatprep.mubr.f32.mxu0 0.0
    %5451 = vmatmul.mubr.f32.gmra.mrb[0].mxu0 %v262
    %v5452 = vpop.f32.mrb[0].mxu0
    %v5453 = vadd.f32 0.0, %v5452
    %v5454 = vpop.f32.mrb[0].mxu0
    %5455 = vmatprep.mubr.f32.mxu0 0.0
    %5456 = vmatmul.mubr.f32.gmra.mrb[0].mxu0 %v265
    %v5457 = vpop.f32.mrb[0].mxu0
    %v5458 = vadd.f32 0.0, %v5457
    %v5459 = vpop.f32.mrb[0].mxu0
    %5460 = vmatprep.mubr.f32.mxu0 0.0
    %5461 = vmatmul.mubr.f32.gmra.mrb[0].mxu0 %v268
    %v5462 = vpop.f32.mrb[0].mxu0
    %v5463 = vadd.f32 0.0, %v5462
    %v5464 = vpop.f32.mrb[0].mxu0
    %5465 = vmatprep.mubr.f32.mxu0 0.0
    %5466 = vmatmul.mubr.f32.gmra.mrb[0].mxu0 %v271
    %v5467 = vpop.f32.mrb[0].mxu0
    %v5468 = vadd.f32 0.0, %v5467
    %v5469 = vpop.f32.mrb[0].mxu0
    %5470 = vdwg.mxu0
    %v5471 = vadd.f32 %v5261, %v5453
    %v5472 = vadd.f32 %v5262, %v5458
    %v5473 = vadd.f32 %v5263, %v5463
    %v5474 = vadd.f32 %v5264, %v5468
    %v5475 = vxor.u32 %v5471, 2147483648
    %v5476 = vxor.u32 %v5472, 2147483648
    %v5477 = vxor.u32 %v5473, 2147483648
    %v5478 = vxor.u32 %v5474, 2147483648
    %v5479 = vmul.f32 %v5475, 1.442695
    %v5480 = vpow.pop %v5479
    %v5481 = vmul.f32 %v5476, 1.442695
    %v5482 = vpow.pop %v5481
    %v5483 = vmul.f32 %v5477, 1.442695
    %v5484 = vpow.pop %v5483
    %v5485 = vmul.f32 %v5478, 1.442695
    %v5486 = vpow.pop %v5485
    %v5487 = vadd.f32 %v5480, 1.0
    %v5488 = vadd.f32 %v5482, 1.0
    %v5489 = vadd.f32 %v5484, 1.0
    %v5490 = vadd.f32 %v5486, 1.0
    %v5491 = vrcp.pop %v5487
    %v5492 = vmul.f32 1.0, %v5491
    %v5493 = vrcp.pop %v5488
    %v5494 = vmul.f32 1.0, %v5493
    %v5495 = vrcp.pop %v5489
    %v5496 = vmul.f32 1.0, %v5495
    %v5497 = vrcp.pop %v5490
    %v5498 = vmul.f32 1.0, %v5497
    %5499 = vmatprep.subr.mxu0 0.0
    %5500 = vmatpush1.msra.mxu0 %v5253
    %5501 = vmatprep.subr.mxu0 0.0
    %5502 = vmatpush1.msra.mxu0 %v5254
    %5503 = vmatprep.subr.mxu0 0.0
    %5504 = vmatpush1.msra.mxu0 %v5255
    %5505 = vmatprep.subr.mxu0 0.0
    %5506 = vmatpush1.msra.mxu0 %v5256
    %5507 = vmatprep.subr.mxu0 0.0
    %5508 = vmatpush1.msra.mxu0 0.0
    %5509 = vmatprep.subr.mxu0 0.0
    %5510 = vmatpush1.msra.mxu0 0.0
    %5511 = vmatprep.subr.mxu0 0.0
    %5512 = vmatpush1.msra.mxu0 0.0
    %5513 = vmatprep.subr.mxu0 0.0
    %5514 = vmatpush1.msra.mxu0 0.0
    %5515 = vmatprep.subr.mxu0 0.0
    %5516 = vmatpush1.msra.mxu0 0.0
    %5517 = vmatprep.subr.mxu0 0.0
    %5518 = vmatpush1.msra.mxu0 0.0
    %5519 = vmatprep.subr.mxu0 0.0
    %5520 = vmatpush1.msra.mxu0 0.0
    %5521 = vmatprep.subr.mxu0 0.0
    %5522 = vmatpush1.msra.mxu0 0.0
    %5523 = vmatprep.subr.mxu0 0.0
    %5524 = vmatpush1.msra.mxu0 0.0
    %5525 = vmatprep.subr.mxu0 0.0
    %5526 = vmatpush1.msra.mxu0 0.0
    %5527 = vmatprep.subr.mxu0 0.0
    %5528 = vmatpush1.msra.mxu0 0.0
    %5529 = vmatprep.subr.mxu0 0.0
    %5530 = vmatpush1.msra.mxu0 0.0
    %5531 = vmatprep.subr.mxu0 0.0
    %5532 = vmatpush1.msra.mxu0 0.0
    %5533 = vmatprep.subr.mxu0 0.0
    %5534 = vmatpush1.msra.mxu0 0.0
    %5535 = vmatprep.subr.mxu0 0.0
    %5536 = vmatpush1.msra.mxu0 0.0
    %5537 = vmatprep.subr.mxu0 0.0
    %5538 = vmatpush1.msra.mxu0 0.0
    %5539 = vmatprep.subr.mxu0 0.0
    %5540 = vmatpush1.msra.mxu0 0.0
    %5541 = vmatprep.subr.mxu0 0.0
    %5542 = vmatpush1.msra.mxu0 0.0
    %5543 = vmatprep.subr.mxu0 0.0
    %5544 = vmatpush1.msra.mxu0 0.0
    %5545 = vmatprep.subr.mxu0 0.0
    %5546 = vmatpush1.msra.mxu0 0.0
    %5547 = vmatprep.subr.mxu0 0.0
    %5548 = vmatpush1.msra.mxu0 0.0
    %5549 = vmatprep.subr.mxu0 0.0
    %5550 = vmatpush1.msra.mxu0 0.0
    %5551 = vmatprep.subr.mxu0 0.0
    %5552 = vmatpush1.msra.mxu0 0.0
    %5553 = vmatprep.subr.mxu0 0.0
    %5554 = vmatpush1.msra.mxu0 0.0
    %5555 = vmatprep.subr.mxu0 0.0
    %5556 = vmatpush1.msra.mxu0 0.0
    %5557 = vmatprep.subr.mxu0 0.0
    %5558 = vmatpush1.msra.mxu0 0.0
    %5559 = vmatprep.subr.mxu0 0.0
    %5560 = vmatpush1.msra.mxu0 0.0
    %5561 = vmatprep.subr.mxu0 0.0
    %5562 = vmatpush1.msra.mxu0 0.0
    %5563 = vmatprep.mubr.f32.mxu0 0.0
    %5564 = vmatmul.mubr.f32.gmra.mrb[0].mxu0 %v387
    %v5565 = vpop.f32.mrb[0].mxu0
    %v5566 = vadd.f32 0.0, %v5565
    %v5567 = vpop.f32.mrb[0].mxu0
    %5568 = vmatprep.mubr.f32.mxu0 0.0
    %5569 = vmatmul.mubr.f32.gmra.mrb[0].mxu0 %v390
    %v5570 = vpop.f32.mrb[0].mxu0
    %v5571 = vadd.f32 0.0, %v5570
    %v5572 = vpop.f32.mrb[0].mxu0
    %5573 = vmatprep.mubr.f32.mxu0 0.0
    %5574 = vmatmul.mubr.f32.gmra.mrb[0].mxu0 %v393
    %v5575 = vpop.f32.mrb[0].mxu0
    %v5576 = vadd.f32 0.0, %v5575
    %v5577 = vpop.f32.mrb[0].mxu0
    %5578 = vmatprep.mubr.f32.mxu0 0.0
    %5579 = vmatmul.mubr.f32.gmra.mrb[0].mxu0 %v396
    %v5580 = vpop.f32.mrb[0].mxu0
    %v5581 = vadd.f32 0.0, %v5580
    %v5582 = vpop.f32.mrb[0].mxu0
    %5583 = vdwg.mxu0
    %v5584 = vadd.f32 %v5265, %v5566
    %v5585 = vadd.f32 %v5266, %v5571
    %v5586 = vadd.f32 %v5267, %v5576
    %v5587 = vadd.f32 %v5268, %v5581
    %v5588 = vtanh.pop %v5584
    %v5589 = vtanh.pop %v5585
    %v5590 = vtanh.pop %v5586
    %v5591 = vtanh.pop %v5587
    %5592 = vmatprep.subr.mxu0 0.0
    %5593 = vmatpush1.msra.mxu0 %v5253
    %5594 = vmatprep.subr.mxu0 0.0
    %5595 = vmatpush1.msra.mxu0 %v5254
    %5596 = vmatprep.subr.mxu0 0.0
    %5597 = vmatpush1.msra.mxu0 %v5255
    %5598 = vmatprep.subr.mxu0 0.0
    %5599 = vmatpush1.msra.mxu0 %v5256
    %5600 = vmatprep.subr.mxu0 0.0
    %5601 = vmatpush1.msra.mxu0 0.0
    %5602 = vmatprep.subr.mxu0 0.0
    %5603 = vmatpush1.msra.mxu0 0.0
    %5604 = vmatprep.subr.mxu0 0.0
    %5605 = vmatpush1.msra.mxu0 0.0
    %5606 = vmatprep.subr.mxu0 0.0
    %5607 = vmatpush1.msra.mxu0 0.0
    %5608 = vmatprep.subr.mxu0 0.0
    %5609 = vmatpush1.msra.mxu0 0.0
    %5610 = vmatprep.subr.mxu0 0.0
    %5611 = vmatpush1.msra.mxu0 0.0
    %5612 = vmatprep.subr.mxu0 0.0
    %5613 = vmatpush1.msra.mxu0 0.0
    %5614 = vmatprep.subr.mxu0 0.0
    %5615 = vmatpush1.msra.mxu0 0.0
    %5616 = vmatprep.subr.mxu0 0.0
    %5617 = vmatpush1.msra.mxu0 0.0
    %5618 = vmatprep.subr.mxu0 0.0
    %5619 = vmatpush1.msra.mxu0 0.0
    %5620 = vmatprep.subr.mxu0 0.0
    %5621 = vmatpush1.msra.mxu0 0.0
    %5622 = vmatprep.subr.mxu0 0.0
    %5623 = vmatpush1.msra.mxu0 0.0
    %5624 = vmatprep.subr.mxu0 0.0
    %5625 = vmatpush1.msra.mxu0 0.0
    %5626 = vmatprep.subr.mxu0 0.0
    %5627 = vmatpush1.msra.mxu0 0.0
    %5628 = vmatprep.subr.mxu0 0.0
    %5629 = vmatpush1.msra.mxu0 0.0
    %5630 = vmatprep.subr.mxu0 0.0
    %5631 = vmatpush1.msra.mxu0 0.0
    %5632 = vmatprep.subr.mxu0 0.0
    %5633 = vmatpush1.msra.mxu0 0.0
    %5634 = vmatprep.subr.mxu0 0.0
    %5635 = vmatpush1.msra.mxu0 0.0
    %5636 = vmatprep.subr.mxu0 0.0
    %5637 = vmatpush1.msra.mxu0 0.0
    %5638 = vmatprep.subr.mxu0 0.0
    %5639 = vmatpush1.msra.mxu0 0.0
    %5640 = vmatprep.subr.mxu0 0.0
    %5641 = vmatpush1.msra.mxu0 0.0
    %5642 = vmatprep.subr.mxu0 0.0
    %5643 = vmatpush1.msra.mxu0 0.0
    %5644 = vmatprep.subr.mxu0 0.0
    %5645 = vmatpush1.msra.mxu0 0.0
    %5646 = vmatprep.subr.mxu0 0.0
    %5647 = vmatpush1.msra.mxu0 0.0
    %5648 = vmatprep.subr.mxu0 0.0
    %5649 = vmatpush1.msra.mxu0 0.0
    %5650 = vmatprep.subr.mxu0 0.0
    %5651 = vmatpush1.msra.mxu0 0.0
    %5652 = vmatprep.subr.mxu0 0.0
    %5653 = vmatpush1.msra.mxu0 0.0
    %5654 = vmatprep.subr.mxu0 0.0
    %5655 = vmatpush1.msra.mxu0 0.0
    %5656 = vmatprep.mubr.f32.mxu0 0.0
    %5657 = vmatmul.mubr.f32.gmra.mrb[0].mxu0 %v492
    %v5658 = vpop.f32.mrb[0].mxu0
    %v5659 = vadd.f32 0.0, %v5658
    %v5660 = vpop.f32.mrb[0].mxu0
    %5661 = vmatprep.mubr.f32.mxu0 0.0
    %5662 = vmatmul.mubr.f32.gmra.mrb[0].mxu0 %v495
    %v5663 = vpop.f32.mrb[0].mxu0
    %v5664 = vadd.f32 0.0, %v5663
    %v5665 = vpop.f32.mrb[0].mxu0
    %5666 = vmatprep.mubr.f32.mxu0 0.0
    %5667 = vmatmul.mubr.f32.gmra.mrb[0].mxu0 %v498
    %v5668 = vpop.f32.mrb[0].mxu0
    %v5669 = vadd.f32 0.0, %v5668
    %v5670 = vpop.f32.mrb[0].mxu0
    %5671 = vmatprep.mubr.f32.mxu0 0.0
    %5672 = vmatmul.mubr.f32.gmra.mrb[0].mxu0 %v501
    %v5673 = vpop.f32.mrb[0].mxu0
    %v5674 = vadd.f32 0.0, %v5673
    %v5675 = vpop.f32.mrb[0].mxu0
    %5676 = vdwg.mxu0
    %v5677 = vadd.f32 %v5269, %v5659
    %v5678 = vadd.f32 %v5270, %v5664
    %v5679 = vadd.f32 %v5271, %v5669
    %v5680 = vadd.f32 %v5272, %v5674
    %v5681 = vxor.u32 %v5677, 2147483648
    %v5682 = vxor.u32 %v5678, 2147483648
    %v5683 = vxor.u32 %v5679, 2147483648
    %v5684 = vxor.u32 %v5680, 2147483648
    %v5685 = vmul.f32 %v5681, 1.442695
    %v5686 = vpow.pop %v5685
    %v5687 = vmul.f32 %v5682, 1.442695
    %v5688 = vpow.pop %v5687
    %v5689 = vmul.f32 %v5683, 1.442695
    %v5690 = vpow.pop %v5689
    %v5691 = vmul.f32 %v5684, 1.442695
    %v5692 = vpow.pop %v5691
    %v5693 = vadd.f32 %v5686, 1.0
    %v5694 = vadd.f32 %v5688, 1.0
    %v5695 = vadd.f32 %v5690, 1.0
    %v5696 = vadd.f32 %v5692, 1.0
    %v5697 = vrcp.pop %v5693
    %v5698 = vmul.f32 1.0, %v5697
    %v5699 = vrcp.pop %v5694
    %v5700 = vmul.f32 1.0, %v5699
    %v5701 = vrcp.pop %v5695
    %v5702 = vmul.f32 1.0, %v5701
    %v5703 = vrcp.pop %v5696
    %v5704 = vmul.f32 1.0, %v5703
    %v5705 = vmul.f32 %v5492, %v5245
    %v5706 = vmul.f32 %v5494, %v5246
    %v5707 = vmul.f32 %v5496, %v5247
    %v5708 = vmul.f32 %v5498, %v5248
    %v5709 = vmul.f32 %v5379, %v5588
    %v5710 = vmul.f32 %v5381, %v5589
    %v5711 = vmul.f32 %v5383, %v5590
    %v5712 = vmul.f32 %v5385, %v5591
    %v5713 = vadd.f32 %v5705, %v5709
    %v5714 = vadd.f32 %v5706, %v5710
    %v5715 = vadd.f32 %v5707, %v5711
    %v5716 = vadd.f32 %v5708, %v5712
    %v5717 = vtanh.pop %v5713
    %v5718 = vtanh.pop %v5714
    %v5719 = vtanh.pop %v5715
    %v5720 = vtanh.pop %v5716
    %v5721 = vmul.f32 %v5698, %v5717
    %v5722 = vmul.f32 %v5700, %v5718
    %v5723 = vmul.f32 %v5702, %v5719
    %v5724 = vmul.f32 %v5704, %v5720
    %s5725 = scalar_lea.vmem [#allocation2], 896
    %v5726 = vld [vmem:[%s5725] sm:$0xff]
    %v5727 = vld [vmem:[%s5725 + $0x8] sm:$0xff]
    %v5728 = vld [vmem:[%s5725 + $0x10] sm:$0xff]
    %v5729 = vld [vmem:[%s5725 + $0x18] sm:$0xff]
    %v5730 = vld [vmem:[%s5725 + $0x20] sm:$0xff]
    %v5731 = vld [vmem:[%s5725 + $0x28] sm:$0xff]
    %v5732 = vld [vmem:[%s5725 + $0x30] sm:$0xff]
    %v5733 = vld [vmem:[%s5725 + $0x38] sm:$0xff]
    %v5734 = vld [vmem:[%s5725 + $0x40] sm:$0xff]
    %v5735 = vld [vmem:[%s5725 + $0x48] sm:$0xff]
    %v5736 = vld [vmem:[%s5725 + $0x50] sm:$0xff]
    %v5737 = vld [vmem:[%s5725 + $0x58] sm:$0xff]
    %v5738 = vld [vmem:[%s5725 + $0x60] sm:$0xff]
    %v5739 = vld [vmem:[%s5725 + $0x68] sm:$0xff]
    %v5740 = vld [vmem:[%s5725 + $0x70] sm:$0xff]
    %v5741 = vld [vmem:[%s5725 + $0x78] sm:$0xff]
    %5742 = vmatprep.subr.mxu0 0.0
    %5743 = vmatpush1.msra.mxu0 %v5721
    %5744 = vmatprep.subr.mxu0 0.0
    %5745 = vmatpush1.msra.mxu0 %v5722
    %5746 = vmatprep.subr.mxu0 0.0
    %5747 = vmatpush1.msra.mxu0 %v5723
    %5748 = vmatprep.subr.mxu0 0.0
    %5749 = vmatpush1.msra.mxu0 %v5724
    %5750 = vmatprep.subr.mxu0 0.0
    %5751 = vmatpush1.msra.mxu0 0.0
    %5752 = vmatprep.subr.mxu0 0.0
    %5753 = vmatpush1.msra.mxu0 0.0
    %5754 = vmatprep.subr.mxu0 0.0
    %5755 = vmatpush1.msra.mxu0 0.0
    %5756 = vmatprep.subr.mxu0 0.0
    %5757 = vmatpush1.msra.mxu0 0.0
    %5758 = vmatprep.subr.mxu0 0.0
    %5759 = vmatpush1.msra.mxu0 0.0
    %5760 = vmatprep.subr.mxu0 0.0
    %5761 = vmatpush1.msra.mxu0 0.0
    %5762 = vmatprep.subr.mxu0 0.0
    %5763 = vmatpush1.msra.mxu0 0.0
    %5764 = vmatprep.subr.mxu0 0.0
    %5765 = vmatpush1.msra.mxu0 0.0
    %5766 = vmatprep.subr.mxu0 0.0
    %5767 = vmatpush1.msra.mxu0 0.0
    %5768 = vmatprep.subr.mxu0 0.0
    %5769 = vmatpush1.msra.mxu0 0.0
    %5770 = vmatprep.subr.mxu0 0.0
    %5771 = vmatpush1.msra.mxu0 0.0
    %5772 = vmatprep.subr.mxu0 0.0
    %5773 = vmatpush1.msra.mxu0 0.0
    %5774 = vmatprep.subr.mxu0 0.0
    %5775 = vmatpush1.msra.mxu0 0.0
    %5776 = vmatprep.subr.mxu0 0.0
    %5777 = vmatpush1.msra.mxu0 0.0
    %5778 = vmatprep.subr.mxu0 0.0
    %5779 = vmatpush1.msra.mxu0 0.0
    %5780 = vmatprep.subr.mxu0 0.0
    %5781 = vmatpush1.msra.mxu0 0.0
    %5782 = vmatprep.subr.mxu0 0.0
    %5783 = vmatpush1.msra.mxu0 0.0
    %5784 = vmatprep.subr.mxu0 0.0
    %5785 = vmatpush1.msra.mxu0 0.0
    %5786 = vmatprep.subr.mxu0 0.0
    %5787 = vmatpush1.msra.mxu0 0.0
    %5788 = vmatprep.subr.mxu0 0.0
    %5789 = vmatpush1.msra.mxu0 0.0
    %5790 = vmatprep.subr.mxu0 0.0
    %5791 = vmatpush1.msra.mxu0 0.0
    %5792 = vmatprep.subr.mxu0 0.0
    %5793 = vmatpush1.msra.mxu0 0.0
    %5794 = vmatprep.subr.mxu0 0.0
    %5795 = vmatpush1.msra.mxu0 0.0
    %5796 = vmatprep.subr.mxu0 0.0
    %5797 = vmatpush1.msra.mxu0 0.0
    %5798 = vmatprep.subr.mxu0 0.0
    %5799 = vmatpush1.msra.mxu0 0.0
    %5800 = vmatprep.subr.mxu0 0.0
    %5801 = vmatpush1.msra.mxu0 0.0
    %5802 = vmatprep.subr.mxu0 0.0
    %5803 = vmatpush1.msra.mxu0 0.0
    %5804 = vmatprep.subr.mxu0 0.0
    %5805 = vmatpush1.msra.mxu0 0.0
    %5806 = vmatprep.mubr.f32.mxu0 0.0
    %5807 = vmatmul.mubr.f32.gmra.mrb[0].mxu0 %v137
    %v5808 = vpop.f32.mrb[0].mxu0
    %v5809 = vadd.f32 0.0, %v5808
    %v5810 = vpop.f32.mrb[0].mxu0
    %5811 = vmatprep.mubr.f32.mxu0 0.0
    %5812 = vmatmul.mubr.f32.gmra.mrb[0].mxu0 %v140
    %v5813 = vpop.f32.mrb[0].mxu0
    %v5814 = vadd.f32 0.0, %v5813
    %v5815 = vpop.f32.mrb[0].mxu0
    %5816 = vmatprep.mubr.f32.mxu0 0.0
    %5817 = vmatmul.mubr.f32.gmra.mrb[0].mxu0 %v143
    %v5818 = vpop.f32.mrb[0].mxu0
    %v5819 = vadd.f32 0.0, %v5818
    %v5820 = vpop.f32.mrb[0].mxu0
    %5821 = vmatprep.mubr.f32.mxu0 0.0
    %5822 = vmatmul.mubr.f32.gmra.mrb[0].mxu0 %v146
    %v5823 = vpop.f32.mrb[0].mxu0
    %v5824 = vadd.f32 0.0, %v5823
    %v5825 = vpop.f32.mrb[0].mxu0
    %5826 = vdwg.mxu0
    %v5827 = vadd.f32 %v5726, %v5809
    %v5828 = vadd.f32 %v5727, %v5814
    %v5829 = vadd.f32 %v5728, %v5819
    %v5830 = vadd.f32 %v5729, %v5824
    %v5831 = vxor.u32 %v5827, 2147483648
    %v5832 = vxor.u32 %v5828, 2147483648
    %v5833 = vxor.u32 %v5829, 2147483648
    %v5834 = vxor.u32 %v5830, 2147483648
    %v5835 = vmul.f32 %v5831, 1.442695
    %v5836 = vpow.pop %v5835
    %v5837 = vmul.f32 %v5832, 1.442695
    %v5838 = vpow.pop %v5837
    %v5839 = vmul.f32 %v5833, 1.442695
    %v5840 = vpow.pop %v5839
    %v5841 = vmul.f32 %v5834, 1.442695
    %v5842 = vpow.pop %v5841
    %v5843 = vadd.f32 %v5836, 1.0
    %v5844 = vadd.f32 %v5838, 1.0
    %v5845 = vadd.f32 %v5840, 1.0
    %v5846 = vadd.f32 %v5842, 1.0
    %v5847 = vrcp.pop %v5843
    %v5848 = vmul.f32 1.0, %v5847
    %v5849 = vrcp.pop %v5844
    %v5850 = vmul.f32 1.0, %v5849
    %v5851 = vrcp.pop %v5845
    %v5852 = vmul.f32 1.0, %v5851
    %v5853 = vrcp.pop %v5846
    %v5854 = vmul.f32 1.0, %v5853
    %5855 = vmatprep.subr.mxu0 0.0
    %5856 = vmatpush1.msra.mxu0 %v5721
    %5857 = vmatprep.subr.mxu0 0.0
    %5858 = vmatpush1.msra.mxu0 %v5722
    %5859 = vmatprep.subr.mxu0 0.0
    %5860 = vmatpush1.msra.mxu0 %v5723
    %5861 = vmatprep.subr.mxu0 0.0
    %5862 = vmatpush1.msra.mxu0 %v5724
    %5863 = vmatprep.subr.mxu0 0.0
    %5864 = vmatpush1.msra.mxu0 0.0
    %5865 = vmatprep.subr.mxu0 0.0
    %5866 = vmatpush1.msra.mxu0 0.0
    %5867 = vmatprep.subr.mxu0 0.0
    %5868 = vmatpush1.msra.mxu0 0.0
    %5869 = vmatprep.subr.mxu0 0.0
    %5870 = vmatpush1.msra.mxu0 0.0
    %5871 = vmatprep.subr.mxu0 0.0
    %5872 = vmatpush1.msra.mxu0 0.0
    %5873 = vmatprep.subr.mxu0 0.0
    %5874 = vmatpush1.msra.mxu0 0.0
    %5875 = vmatprep.subr.mxu0 0.0
    %5876 = vmatpush1.msra.mxu0 0.0
    %5877 = vmatprep.subr.mxu0 0.0
    %5878 = vmatpush1.msra.mxu0 0.0
    %5879 = vmatprep.subr.mxu0 0.0
    %5880 = vmatpush1.msra.mxu0 0.0
    %5881 = vmatprep.subr.mxu0 0.0
    %5882 = vmatpush1.msra.mxu0 0.0
    %5883 = vmatprep.subr.mxu0 0.0
    %5884 = vmatpush1.msra.mxu0 0.0
    %5885 = vmatprep.subr.mxu0 0.0
    %5886 = vmatpush1.msra.mxu0 0.0
    %5887 = vmatprep.subr.mxu0 0.0
    %5888 = vmatpush1.msra.mxu0 0.0
    %5889 = vmatprep.subr.mxu0 0.0
    %5890 = vmatpush1.msra.mxu0 0.0
    %5891 = vmatprep.subr.mxu0 0.0
    %5892 = vmatpush1.msra.mxu0 0.0
    %5893 = vmatprep.subr.mxu0 0.0
    %5894 = vmatpush1.msra.mxu0 0.0
    %5895 = vmatprep.subr.mxu0 0.0
    %5896 = vmatpush1.msra.mxu0 0.0
    %5897 = vmatprep.subr.mxu0 0.0
    %5898 = vmatpush1.msra.mxu0 0.0
    %5899 = vmatprep.subr.mxu0 0.0
    %5900 = vmatpush1.msra.mxu0 0.0
    %5901 = vmatprep.subr.mxu0 0.0
    %5902 = vmatpush1.msra.mxu0 0.0
    %5903 = vmatprep.subr.mxu0 0.0
    %5904 = vmatpush1.msra.mxu0 0.0
    %5905 = vmatprep.subr.mxu0 0.0
    %5906 = vmatpush1.msra.mxu0 0.0
    %5907 = vmatprep.subr.mxu0 0.0
    %5908 = vmatpush1.msra.mxu0 0.0
    %5909 = vmatprep.subr.mxu0 0.0
    %5910 = vmatpush1.msra.mxu0 0.0
    %5911 = vmatprep.subr.mxu0 0.0
    %5912 = vmatpush1.msra.mxu0 0.0
    %5913 = vmatprep.subr.mxu0 0.0
    %5914 = vmatpush1.msra.mxu0 0.0
    %5915 = vmatprep.subr.mxu0 0.0
    %5916 = vmatpush1.msra.mxu0 0.0
    %5917 = vmatprep.subr.mxu0 0.0
    %5918 = vmatpush1.msra.mxu0 0.0
    %5919 = vmatprep.mubr.f32.mxu0 0.0
    %5920 = vmatmul.mubr.f32.gmra.mrb[0].mxu0 %v262
    %v5921 = vpop.f32.mrb[0].mxu0
    %v5922 = vadd.f32 0.0, %v5921
    %v5923 = vpop.f32.mrb[0].mxu0
    %5924 = vmatprep.mubr.f32.mxu0 0.0
    %5925 = vmatmul.mubr.f32.gmra.mrb[0].mxu0 %v265
    %v5926 = vpop.f32.mrb[0].mxu0
    %v5927 = vadd.f32 0.0, %v5926
    %v5928 = vpop.f32.mrb[0].mxu0
    %5929 = vmatprep.mubr.f32.mxu0 0.0
    %5930 = vmatmul.mubr.f32.gmra.mrb[0].mxu0 %v268
    %v5931 = vpop.f32.mrb[0].mxu0
    %v5932 = vadd.f32 0.0, %v5931
    %v5933 = vpop.f32.mrb[0].mxu0
    %5934 = vmatprep.mubr.f32.mxu0 0.0
    %5935 = vmatmul.mubr.f32.gmra.mrb[0].mxu0 %v271
    %v5936 = vpop.f32.mrb[0].mxu0
    %v5937 = vadd.f32 0.0, %v5936
    %v5938 = vpop.f32.mrb[0].mxu0
    %5939 = vdwg.mxu0
    %v5940 = vadd.f32 %v5730, %v5922
    %v5941 = vadd.f32 %v5731, %v5927
    %v5942 = vadd.f32 %v5732, %v5932
    %v5943 = vadd.f32 %v5733, %v5937
    %v5944 = vxor.u32 %v5940, 2147483648
    %v5945 = vxor.u32 %v5941, 2147483648
    %v5946 = vxor.u32 %v5942, 2147483648
    %v5947 = vxor.u32 %v5943, 2147483648
    %v5948 = vmul.f32 %v5944, 1.442695
    %v5949 = vpow.pop %v5948
    %v5950 = vmul.f32 %v5945, 1.442695
    %v5951 = vpow.pop %v5950
    %v5952 = vmul.f32 %v5946, 1.442695
    %v5953 = vpow.pop %v5952
    %v5954 = vmul.f32 %v5947, 1.442695
    %v5955 = vpow.pop %v5954
    %v5956 = vadd.f32 %v5949, 1.0
    %v5957 = vadd.f32 %v5951, 1.0
    %v5958 = vadd.f32 %v5953, 1.0
    %v5959 = vadd.f32 %v5955, 1.0
    %v5960 = vrcp.pop %v5956
    %v5961 = vmul.f32 1.0, %v5960
    %v5962 = vrcp.pop %v5957
    %v5963 = vmul.f32 1.0, %v5962
    %v5964 = vrcp.pop %v5958
    %v5965 = vmul.f32 1.0, %v5964
    %v5966 = vrcp.pop %v5959
    %v5967 = vmul.f32 1.0, %v5966
    %5968 = vmatprep.subr.mxu0 0.0
    %5969 = vmatpush1.msra.mxu0 %v5721
    %5970 = vmatprep.subr.mxu0 0.0
    %5971 = vmatpush1.msra.mxu0 %v5722
    %5972 = vmatprep.subr.mxu0 0.0
    %5973 = vmatpush1.msra.mxu0 %v5723
    %5974 = vmatprep.subr.mxu0 0.0
    %5975 = vmatpush1.msra.mxu0 %v5724
    %5976 = vmatprep.subr.mxu0 0.0
    %5977 = vmatpush1.msra.mxu0 0.0
    %5978 = vmatprep.subr.mxu0 0.0
    %5979 = vmatpush1.msra.mxu0 0.0
    %5980 = vmatprep.subr.mxu0 0.0
    %5981 = vmatpush1.msra.mxu0 0.0
    %5982 = vmatprep.subr.mxu0 0.0
    %5983 = vmatpush1.msra.mxu0 0.0
    %5984 = vmatprep.subr.mxu0 0.0
    %5985 = vmatpush1.msra.mxu0 0.0
    %5986 = vmatprep.subr.mxu0 0.0
    %5987 = vmatpush1.msra.mxu0 0.0
    %5988 = vmatprep.subr.mxu0 0.0
    %5989 = vmatpush1.msra.mxu0 0.0
    %5990 = vmatprep.subr.mxu0 0.0
    %5991 = vmatpush1.msra.mxu0 0.0
    %5992 = vmatprep.subr.mxu0 0.0
    %5993 = vmatpush1.msra.mxu0 0.0
    %5994 = vmatprep.subr.mxu0 0.0
    %5995 = vmatpush1.msra.mxu0 0.0
    %5996 = vmatprep.subr.mxu0 0.0
    %5997 = vmatpush1.msra.mxu0 0.0
    %5998 = vmatprep.subr.mxu0 0.0
    %5999 = vmatpush1.msra.mxu0 0.0
    %6000 = vmatprep.subr.mxu0 0.0
    %6001 = vmatpush1.msra.mxu0 0.0
    %6002 = vmatprep.subr.mxu0 0.0
    %6003 = vmatpush1.msra.mxu0 0.0
    %6004 = vmatprep.subr.mxu0 0.0
    %6005 = vmatpush1.msra.mxu0 0.0
    %6006 = vmatprep.subr.mxu0 0.0
    %6007 = vmatpush1.msra.mxu0 0.0
    %6008 = vmatprep.subr.mxu0 0.0
    %6009 = vmatpush1.msra.mxu0 0.0
    %6010 = vmatprep.subr.mxu0 0.0
    %6011 = vmatpush1.msra.mxu0 0.0
    %6012 = vmatprep.subr.mxu0 0.0
    %6013 = vmatpush1.msra.mxu0 0.0
    %6014 = vmatprep.subr.mxu0 0.0
    %6015 = vmatpush1.msra.mxu0 0.0
    %6016 = vmatprep.subr.mxu0 0.0
    %6017 = vmatpush1.msra.mxu0 0.0
    %6018 = vmatprep.subr.mxu0 0.0
    %6019 = vmatpush1.msra.mxu0 0.0
    %6020 = vmatprep.subr.mxu0 0.0
    %6021 = vmatpush1.msra.mxu0 0.0
    %6022 = vmatprep.subr.mxu0 0.0
    %6023 = vmatpush1.msra.mxu0 0.0
    %6024 = vmatprep.subr.mxu0 0.0
    %6025 = vmatpush1.msra.mxu0 0.0
    %6026 = vmatprep.subr.mxu0 0.0
    %6027 = vmatpush1.msra.mxu0 0.0
    %6028 = vmatprep.subr.mxu0 0.0
    %6029 = vmatpush1.msra.mxu0 0.0
    %6030 = vmatprep.subr.mxu0 0.0
    %6031 = vmatpush1.msra.mxu0 0.0
    %6032 = vmatprep.mubr.f32.mxu0 0.0
    %6033 = vmatmul.mubr.f32.gmra.mrb[0].mxu0 %v387
    %v6034 = vpop.f32.mrb[0].mxu0
    %v6035 = vadd.f32 0.0, %v6034
    %v6036 = vpop.f32.mrb[0].mxu0
    %6037 = vmatprep.mubr.f32.mxu0 0.0
    %6038 = vmatmul.mubr.f32.gmra.mrb[0].mxu0 %v390
    %v6039 = vpop.f32.mrb[0].mxu0
    %v6040 = vadd.f32 0.0, %v6039
    %v6041 = vpop.f32.mrb[0].mxu0
    %6042 = vmatprep.mubr.f32.mxu0 0.0
    %6043 = vmatmul.mubr.f32.gmra.mrb[0].mxu0 %v393
    %v6044 = vpop.f32.mrb[0].mxu0
    %v6045 = vadd.f32 0.0, %v6044
    %v6046 = vpop.f32.mrb[0].mxu0
    %6047 = vmatprep.mubr.f32.mxu0 0.0
    %6048 = vmatmul.mubr.f32.gmra.mrb[0].mxu0 %v396
    %v6049 = vpop.f32.mrb[0].mxu0
    %v6050 = vadd.f32 0.0, %v6049
    %v6051 = vpop.f32.mrb[0].mxu0
    %6052 = vdwg.mxu0
    %v6053 = vadd.f32 %v5734, %v6035
    %v6054 = vadd.f32 %v5735, %v6040
    %v6055 = vadd.f32 %v5736, %v6045
    %v6056 = vadd.f32 %v5737, %v6050
    %v6057 = vtanh.pop %v6053
    %v6058 = vtanh.pop %v6054
    %v6059 = vtanh.pop %v6055
    %v6060 = vtanh.pop %v6056
    %6061 = vmatprep.subr.mxu0 0.0
    %6062 = vmatpush1.msra.mxu0 %v5721
    %6063 = vmatprep.subr.mxu0 0.0
    %6064 = vmatpush1.msra.mxu0 %v5722
    %6065 = vmatprep.subr.mxu0 0.0
    %6066 = vmatpush1.msra.mxu0 %v5723
    %6067 = vmatprep.subr.mxu0 0.0
    %6068 = vmatpush1.msra.mxu0 %v5724
    %6069 = vmatprep.subr.mxu0 0.0
    %6070 = vmatpush1.msra.mxu0 0.0
    %6071 = vmatprep.subr.mxu0 0.0
    %6072 = vmatpush1.msra.mxu0 0.0
    %6073 = vmatprep.subr.mxu0 0.0
    %6074 = vmatpush1.msra.mxu0 0.0
    %6075 = vmatprep.subr.mxu0 0.0
    %6076 = vmatpush1.msra.mxu0 0.0
    %6077 = vmatprep.subr.mxu0 0.0
    %6078 = vmatpush1.msra.mxu0 0.0
    %6079 = vmatprep.subr.mxu0 0.0
    %6080 = vmatpush1.msra.mxu0 0.0
    %6081 = vmatprep.subr.mxu0 0.0
    %6082 = vmatpush1.msra.mxu0 0.0
    %6083 = vmatprep.subr.mxu0 0.0
    %6084 = vmatpush1.msra.mxu0 0.0
    %6085 = vmatprep.subr.mxu0 0.0
    %6086 = vmatpush1.msra.mxu0 0.0
    %6087 = vmatprep.subr.mxu0 0.0
    %6088 = vmatpush1.msra.mxu0 0.0
    %6089 = vmatprep.subr.mxu0 0.0
    %6090 = vmatpush1.msra.mxu0 0.0
    %6091 = vmatprep.subr.mxu0 0.0
    %6092 = vmatpush1.msra.mxu0 0.0
    %6093 = vmatprep.subr.mxu0 0.0
    %6094 = vmatpush1.msra.mxu0 0.0
    %6095 = vmatprep.subr.mxu0 0.0
    %6096 = vmatpush1.msra.mxu0 0.0
    %6097 = vmatprep.subr.mxu0 0.0
    %6098 = vmatpush1.msra.mxu0 0.0
    %6099 = vmatprep.subr.mxu0 0.0
    %6100 = vmatpush1.msra.mxu0 0.0
    %6101 = vmatprep.subr.mxu0 0.0
    %6102 = vmatpush1.msra.mxu0 0.0
    %6103 = vmatprep.subr.mxu0 0.0
    %6104 = vmatpush1.msra.mxu0 0.0
    %6105 = vmatprep.subr.mxu0 0.0
    %6106 = vmatpush1.msra.mxu0 0.0
    %6107 = vmatprep.subr.mxu0 0.0
    %6108 = vmatpush1.msra.mxu0 0.0
    %6109 = vmatprep.subr.mxu0 0.0
    %6110 = vmatpush1.msra.mxu0 0.0
    %6111 = vmatprep.subr.mxu0 0.0
    %6112 = vmatpush1.msra.mxu0 0.0
    %6113 = vmatprep.subr.mxu0 0.0
    %6114 = vmatpush1.msra.mxu0 0.0
    %6115 = vmatprep.subr.mxu0 0.0
    %6116 = vmatpush1.msra.mxu0 0.0
    %6117 = vmatprep.subr.mxu0 0.0
    %6118 = vmatpush1.msra.mxu0 0.0
    %6119 = vmatprep.subr.mxu0 0.0
    %6120 = vmatpush1.msra.mxu0 0.0
    %6121 = vmatprep.subr.mxu0 0.0
    %6122 = vmatpush1.msra.mxu0 0.0
    %6123 = vmatprep.subr.mxu0 0.0
    %6124 = vmatpush1.msra.mxu0 0.0
    %6125 = vmatprep.mubr.f32.mxu0 0.0
    %6126 = vmatmul.mubr.f32.gmra.mrb[0].mxu0 %v492
    %v6127 = vpop.f32.mrb[0].mxu0
    %v6128 = vadd.f32 0.0, %v6127
    %v6129 = vpop.f32.mrb[0].mxu0
    %6130 = vmatprep.mubr.f32.mxu0 0.0
    %6131 = vmatmul.mubr.f32.gmra.mrb[0].mxu0 %v495
    %v6132 = vpop.f32.mrb[0].mxu0
    %v6133 = vadd.f32 0.0, %v6132
    %v6134 = vpop.f32.mrb[0].mxu0
    %6135 = vmatprep.mubr.f32.mxu0 0.0
    %6136 = vmatmul.mubr.f32.gmra.mrb[0].mxu0 %v498
    %v6137 = vpop.f32.mrb[0].mxu0
    %v6138 = vadd.f32 0.0, %v6137
    %v6139 = vpop.f32.mrb[0].mxu0
    %6140 = vmatprep.mubr.f32.mxu0 0.0
    %6141 = vmatmul.mubr.f32.gmra.mrb[0].mxu0 %v501
    %v6142 = vpop.f32.mrb[0].mxu0
    %v6143 = vadd.f32 0.0, %v6142
    %v6144 = vpop.f32.mrb[0].mxu0
    %6145 = vdwg.mxu0
    %v6146 = vadd.f32 %v5738, %v6128
    %v6147 = vadd.f32 %v5739, %v6133
    %v6148 = vadd.f32 %v5740, %v6138
    %v6149 = vadd.f32 %v5741, %v6143
    %v6150 = vxor.u32 %v6146, 2147483648
    %v6151 = vxor.u32 %v6147, 2147483648
    %v6152 = vxor.u32 %v6148, 2147483648
    %v6153 = vxor.u32 %v6149, 2147483648
    %v6154 = vmul.f32 %v6150, 1.442695
    %v6155 = vpow.pop %v6154
    %v6156 = vmul.f32 %v6151, 1.442695
    %v6157 = vpow.pop %v6156
    %v6158 = vmul.f32 %v6152, 1.442695
    %v6159 = vpow.pop %v6158
    %v6160 = vmul.f32 %v6153, 1.442695
    %v6161 = vpow.pop %v6160
    %v6162 = vadd.f32 %v6155, 1.0
    %v6163 = vadd.f32 %v6157, 1.0
    %v6164 = vadd.f32 %v6159, 1.0
    %v6165 = vadd.f32 %v6161, 1.0
    %v6166 = vrcp.pop %v6162
    %v6167 = vmul.f32 1.0, %v6166
    %v6168 = vrcp.pop %v6163
    %v6169 = vmul.f32 1.0, %v6168
    %v6170 = vrcp.pop %v6164
    %v6171 = vmul.f32 1.0, %v6170
    %v6172 = vrcp.pop %v6165
    %v6173 = vmul.f32 1.0, %v6172
    %v6174 = vmul.f32 %v5961, %v5713
    %v6175 = vmul.f32 %v5963, %v5714
    %v6176 = vmul.f32 %v5965, %v5715
    %v6177 = vmul.f32 %v5967, %v5716
    %v6178 = vmul.f32 %v5848, %v6057
    %v6179 = vmul.f32 %v5850, %v6058
    %v6180 = vmul.f32 %v5852, %v6059
    %v6181 = vmul.f32 %v5854, %v6060
    %v6182 = vadd.f32 %v6174, %v6178
    %v6183 = vadd.f32 %v6175, %v6179
    %v6184 = vadd.f32 %v6176, %v6180
    %v6185 = vadd.f32 %v6177, %v6181
    %v6186 = vtanh.pop %v6182
    %v6187 = vtanh.pop %v6183
    %v6188 = vtanh.pop %v6184
    %v6189 = vtanh.pop %v6185
    %v6190 = vmul.f32 %v6167, %v6186
    %v6191 = vmul.f32 %v6169, %v6187
    %v6192 = vmul.f32 %v6171, %v6188
    %v6193 = vmul.f32 %v6173, %v6189
    %s6194 = scalar_lea.vmem [#allocation5], 160
    %6195 = vst [vmem:[%s6194] sm:$0xff] %v6190
    %6196 = vst [vmem:[%s6194 + $0x8] sm:$0xff] %v6191
    %6197 = vst [vmem:[%s6194 + $0x10] sm:$0xff] %v6192
    %6198 = vst [vmem:[%s6194 + $0x18] sm:$0xff] %v6193
    // Predicated region
    $region14: #{tpu_custom_call.1} parent=1 // pred_check
      _
    $region15: #{tpu_custom_call.1} parent=1 // pred_check_branch
      %6200 = sbr.rel (0) target = $region17
    $region16: #{tpu_custom_call.1} parent=1 // pred_region
      %s6202 = ssub.s32 3072, 3072
      %6203 = vsyncadd [#allocation4], %s6202
      %s6204 = sshll.u32 [#allocation5], 4
      %s6205 = int_to_ptr.vmem [resolvable:$true] %s6204
      %6210 = dma.vmem_to_hbm [thread:$0]  %s6205, 3072, %s2, [#allocation4], 128, 128, 8
    $region17: #{tpu_custom_call.1} parent=1 // pred_fallthru
      _
    // Predicated region
    $region18: #{tpu_custom_call.1} parent=1 // pred_check
      _
    $region19: #{tpu_custom_call.1} parent=1 // pred_check_branch
      %6212 = sbr.rel (0) target = $region21
    $region20: #{tpu_custom_call.1} parent=1 // pred_region
      %6213 = dma.done [#allocation4], 3072
    $region21: #{tpu_custom_call.1} parent=1 // pred_fallthru
      _
    %6214 = vsyncpa [#allocation3], 1
    %6215 = vsyncpa [#allocation4], 1

</llo_original>
